<compile_context>
chip_gen: v7x
topology: tpu7x:2x2x1
jax: 0.10.0
libtpu: 0.0.40
codegen_flags: <defaults>
</compile_context>

<pallas_src>
import jax
import jax.numpy as jnp
from jax.experimental import pallas as pl
from jax.experimental.pallas import tpu as pltpu

EPS = 1e-5
D_IN = 128 * 128 * 3              # hardcoded by the module's reshape


def _onelayer_kernel(x_ref, s0_ref, t0_ref, w1_ref, b1_ref, w2_ref, b2_ref,
                     o_ref, acc_ref):
    """Grid axis 0 tiles the D=49152 reduction of the first matmul."""
    k = pl.program_id(0)

    @pl.when(k == 0)
    def _():
        acc_ref[...] = jnp.zeros_like(acc_ref)

    # Folded BN0 (x*scale + shift) in f32, narrowed to W1's dtype for the MXU.
    x_bn = x_ref[...] * s0_ref[...] + t0_ref[...]
    acc_ref[...] += jnp.dot(x_bn.astype(w1_ref.dtype), w1_ref[...],
                            preferred_element_type=jnp.float32)

    @pl.when(k == pl.num_programs(0) - 1)
    def _():
        h = jnp.maximum(acc_ref[...] + b1_ref[...], 0.0)     # Linear bias + ReLU
        out = jnp.dot(h, w2_ref[...], preferred_element_type=jnp.float32)
        o_ref[...] = (out + b2_ref[...]).astype(o_ref.dtype)  # BN1 already folded


def _fold_params(params, w1_dtype):
    """Fold eval-mode BN0/BN1 into exact affine terms (f32 math)."""
    (g0, b0, m0, v0, w1, bias1, g1, b1, m1, v1, w2, bias2) = params
    scale0 = g0 * jax.lax.rsqrt(v0 + EPS)
    shift0 = b0 - m0 * scale0
    s1 = g1 * jax.lax.rsqrt(v1 + EPS)
    t1 = b1 - m1 * s1
    w2f = s1[:, None] * w2                      # (H, C)
    bias2f = bias2 + t1 @ w2                    # (C,)
    return scale0, shift0, w1.astype(w1_dtype), bias1, w2f, bias2f


def onelayer_forward(x, params, *, tk=16384, w1_dtype=jnp.bfloat16):
    """x: (B, 3, 128, 128) float32 NCHW. Returns (B, n_classes) float32."""
    B = x.shape[0]
    x2d = x.reshape(B, D_IN)                    # same flattening as torch .reshape
    scale0, shift0, w1c, bias1, w2f, bias2f = _fold_params(params, w1_dtype)
    H = w1c.shape[1]
    C = w2f.shape[1]

    assert D_IN % tk == 0
    n_k = D_IN // tk

    # Lane-dense output: pad the class dim up to a multiple of 128.
    Cp = max(128, ((C + 127) // 128) * 128)
    w2p = jnp.pad(w2f, ((0, 0), (0, Cp - C)))
    b2p = jnp.pad(bias2f, (0, Cp - C))

    row = lambda a: a.reshape(1, -1)            # per-feature params as (1, N) rows

    grid_spec = pltpu.PrefetchScalarGridSpec(
        num_scalar_prefetch=0,
        grid=(n_k,),
        in_specs=[
            pl.BlockSpec((B, tk), lambda k: (0, k)),      # x tile
            pl.BlockSpec((1, tk), lambda k: (0, k)),      # BN0 scale
            pl.BlockSpec((1, tk), lambda k: (0, k)),      # BN0 shift
            pl.BlockSpec((tk, H), lambda k: (k, 0)),      # W1 tile (D,H), bf16
            pl.BlockSpec((1, H), lambda k: (0, 0)),       # bias1
            pl.BlockSpec((H, Cp), lambda k: (0, 0)),      # W2' (BN1-folded, padded)
            pl.BlockSpec((1, Cp), lambda k: (0, 0)),      # bias2' (padded)
        ],
        out_specs=pl.BlockSpec((B, Cp), lambda k: (0, 0)),
        scratch_shapes=[pltpu.VMEM((B, H), jnp.float32)],
    )

    out_padded = pl.pallas_call(
        _onelayer_kernel,
        out_shape=jax.ShapeDtypeStruct((B, Cp), jnp.float32),
        grid_spec=grid_spec,
        compiler_params=pltpu.CompilerParams(
            # Single reduction axis. At this tiny size (8x49152x32) adding a
            # 'parallel' axis for v7x's second TensorCore is not worth it.
            dimension_semantics=("arbitrary",)),
    )(x2d, row(scale0), row(shift0), w1c, row(bias1), w2p, row(b2p))

    return out_padded[:, :C]


def reference_forward_f32(x, params):
    """Pure-f32 JAX reference mirroring the PyTorch forward (eval-mode BN)."""
    (g0, b0, m0, v0, w1, bias1, g1, b1, m1, v1, w2, bias2) = params
    B = x.shape[0]
    h = x.reshape(B, -1)
    h = (h - m0) * (g0 / jnp.sqrt(v0 + EPS)) + b0
    h = h @ w1 + bias1
    h = jnp.maximum(h, 0.0)
    h = (h - m1) * (g1 / jnp.sqrt(v1 + EPS)) + b1
    return h @ w2 + bias2


def reference_forward_mixed(x, params, w1_dtype=jnp.bfloat16):
    """Reference with the kernel's dtype handling (bf16 first matmul, f32 acc)."""
    scale0, shift0, w1c, bias1, w2f, bias2f = _fold_params(params, w1_dtype)
    B = x.shape[0]
    h = x.reshape(B, -1) * scale0 + shift0
    h = jnp.dot(h.astype(w1_dtype), w1c, preferred_element_type=jnp.float32)
    h = jnp.maximum(h + bias1, 0.0)
    return h @ w2f + bias2f


def init_params(key, n_input, n_hidden, n_classes):
    ks = jax.random.split(key, 10)
    f32 = jnp.float32
    # Linear weights stored as (in, out)  (== torch weight transposed)
    w1 = jax.random.normal(ks[0], (n_input, n_hidden), f32) * 0.01
    bias1 = jax.random.normal(ks[1], (n_hidden,), f32) * 0.01
    w2 = jax.random.normal(ks[2], (n_hidden, n_classes), f32) * 0.1
    bias2 = jax.random.normal(ks[3], (n_classes,), f32) * 0.1
    # BatchNorm0 params (deterministic, non-trivial)
    g0 = 1.0 + 0.1 * jax.random.normal(ks[4], (n_input,), f32)
    b0 = 0.1 * jax.random.normal(ks[5], (n_input,), f32)
    m0 = 0.05 * jax.random.normal(ks[6], (n_input,), f32)
    v0 = 1.0 + 0.1 * jax.random.uniform(ks[7], (n_input,), f32)
    # BatchNorm1 params
    g1 = 1.0 + 0.1 * jax.random.normal(ks[8], (n_hidden,), f32)
    b1 = 0.1 * jax.random.normal(ks[9], (n_hidden,), f32)
    m1 = jnp.linspace(-0.1, 0.1, n_hidden, dtype=f32)
    v1 = jnp.linspace(0.9, 1.1, n_hidden, dtype=f32)
    return (g0, b0, m0, v0, w1, bias1, g1, b1, m1, v1, w2, bias2)


if __name__ == "__main__":
    key = jax.random.PRNGKey(0)
    kx, kp = jax.random.split(key)

    B = 8
    n_hidden = 32
    n_classes = 10                # synthetic class count

    x = jax.random.normal(kx, (B, 3, 128, 128), jnp.float32)   # NCHW
    params = init_params(kp, D_IN, n_hidden, n_classes)

    out = jax.block_until_ready(onelayer_forward(x, params))
    assert out.shape == (B, n_classes)

    ref_mixed = jax.block_until_ready(reference_forward_mixed(x, params))
    ref_f32 = jax.block_until_ready(reference_forward_f32(x, params))
    # Tight check against a reference with identical dtype handling.
    assert jnp.allclose(out, ref_mixed, atol=2e-3, rtol=2e-3), \
        "mismatch vs bf16-matched reference"
    # Looser check against the pure-f32 PyTorch-equivalent math (bf16 W1 stream).
    assert jnp.allclose(out, ref_f32, atol=3e-2, rtol=3e-2), \
        "mismatch vs f32 reference"

    print("KERNEL_OK")
</pallas_src>

<mosaic_0001>
module attributes {stable_mosaic.version = 11 : i64} {
  func.func @_onelayer_kernel(%arg0: i32, %arg1: memref<8x16384xf32, #tpu.memory_space<vmem>>, %arg2: memref<1x16384xf32, #tpu.memory_space<vmem>>, %arg3: memref<1x16384xf32, #tpu.memory_space<vmem>>, %arg4: memref<16384x32xbf16, #tpu.memory_space<vmem>>, %arg5: memref<1x32xf32, #tpu.memory_space<vmem>>, %arg6: memref<32x128xf32, #tpu.memory_space<vmem>>, %arg7: memref<1x128xf32, #tpu.memory_space<vmem>>, %arg8: memref<8x128xf32, #tpu.memory_space<vmem>>, %arg9: memref<8x32xf32, #tpu.memory_space<vmem>>) attributes {dimension_semantics = [#tpu.dimension_semantics<arbitrary>], iteration_bounds = array<i64: 3>, scalar_prefetch = 0 : i64, scratch_operands = 1 : i64, tpu.core_type = #tpu.core_type<tc>, window_params = [{transform_indices = @transform_0, window_bounds = array<i64: 8, 16384>}, {transform_indices = @transform_1, window_bounds = array<i64: 1, 16384>}, {transform_indices = @transform_2, window_bounds = array<i64: 1, 16384>}, {transform_indices = @transform_3, window_bounds = array<i64: 16384, 32>}, {pipeline_mode = #tpu.pipeline_mode<synchronous>, transform_indices = @transform_4, window_bounds = array<i64: 1, 32>}, {pipeline_mode = #tpu.pipeline_mode<synchronous>, transform_indices = @transform_5, window_bounds = array<i64: 32, 128>}, {pipeline_mode = #tpu.pipeline_mode<synchronous>, transform_indices = @transform_6, window_bounds = array<i64: 1, 128>}, {pipeline_mode = #tpu.pipeline_mode<synchronous>, transform_indices = @transform_7, window_bounds = array<i64: 8, 128>}]} {
    %c0_i32 = arith.constant 0 : i32
    %0 = arith.cmpi eq, %arg0, %c0_i32 : i32
    %1 = arith.extui %0 : i1 to i32
    %c0_i32_0 = arith.constant 0 : i32
    %2 = arith.cmpi ne, %1, %c0_i32_0 : i32
    scf.if %2 {
      %cst_13 = arith.constant 0.000000e+00 : f32
      %19 = vector.broadcast %cst_13 : f32 to vector<8x32xf32>
      %c0_14 = arith.constant 0 : index
      %c0_15 = arith.constant 0 : index
      %20 = vector.load %arg9[%c0_14, %c0_15] : memref<8x32xf32, #tpu.memory_space<vmem>>, vector<8x32xf32>
      tpu.vector_store %arg9[%c0_14, %c0_15], %19 {strides = array<i32>} : memref<8x32xf32, #tpu.memory_space<vmem>>, vector<8x32xf32>,
    } else {
    }
    %c0 = arith.constant 0 : index
    %c0_1 = arith.constant 0 : index
    %3 = vector.load %arg1[%c0, %c0_1] : memref<8x16384xf32, #tpu.memory_space<vmem>>, vector<8x16384xf32>
    %c0_2 = arith.constant 0 : index
    %c0_3 = arith.constant 0 : index
    %4 = vector.load %arg2[%c0_2, %c0_3] : memref<1x16384xf32, #tpu.memory_space<vmem>>, vector<1x16384xf32>
    %5 = vector.broadcast %4 : vector<1x16384xf32> to vector<8x16384xf32>
    %6 = arith.mulf %3, %5 : vector<8x16384xf32>
    %c0_4 = arith.constant 0 : index
    %c0_5 = arith.constant 0 : index
    %7 = vector.load %arg3[%c0_4, %c0_5] : memref<1x16384xf32, #tpu.memory_space<vmem>>, vector<1x16384xf32>
    %8 = vector.broadcast %7 : vector<1x16384xf32> to vector<8x16384xf32>
    %9 = arith.addf %6, %8 : vector<8x16384xf32>
    %c0_6 = arith.constant 0 : index
    %c0_7 = arith.constant 0 : index
    %10 = vector.load %arg9[%c0_6, %c0_7] : memref<8x32xf32, #tpu.memory_space<vmem>>, vector<8x32xf32>
    %11 = arith.truncf %9 : vector<8x16384xf32> to vector<8x16384xbf16>
    %c0_8 = arith.constant 0 : index
    %c0_9 = arith.constant 0 : index
    %12 = vector.load %arg4[%c0_8, %c0_9] : memref<16384x32xbf16, #tpu.memory_space<vmem>>, vector<16384x32xbf16>
    %cst = arith.constant dense<0.000000e+00> : vector<8x32xf32>
    %13 = tpu.matmul %11, %12, %cst {dimension_numbers = #tpu.dot_dimension_numbers<[1], [0], [0], [1], [0, 0, 1, 1], [], []>} : vector<8x16384xbf16>, vector<16384x32xbf16>, vector<8x32xf32> -> vector<8x32xf32>
    %14 = arith.addf %10, %13 : vector<8x32xf32>
    %c0_10 = arith.constant 0 : index
    %c0_11 = arith.constant 0 : index
    %15 = vector.load %arg9[%c0_10, %c0_11] : memref<8x32xf32, #tpu.memory_space<vmem>>, vector<8x32xf32>
    tpu.vector_store %arg9[%c0_10, %c0_11], %14 {strides = array<i32>} : memref<8x32xf32, #tpu.memory_space<vmem>>, vector<8x32xf32>,
    %c2_i32 = arith.constant 2 : i32
    %16 = arith.cmpi eq, %arg0, %c2_i32 : i32
    %17 = arith.extui %16 : i1 to i32
    %c0_i32_12 = arith.constant 0 : i32
    %18 = arith.cmpi ne, %17, %c0_i32_12 : i32
    scf.if %18 {
      %c0_13 = arith.constant 0 : index
      %c0_14 = arith.constant 0 : index
      %19 = vector.load %arg9[%c0_13, %c0_14] : memref<8x32xf32, #tpu.memory_space<vmem>>, vector<8x32xf32>
      %c0_15 = arith.constant 0 : index
      %c0_16 = arith.constant 0 : index
      %20 = vector.load %arg5[%c0_15, %c0_16] : memref<1x32xf32, #tpu.memory_space<vmem>>, vector<1x32xf32>
      %21 = vector.broadcast %20 : vector<1x32xf32> to vector<8x32xf32>
      %22 = arith.addf %19, %21 : vector<8x32xf32>
      %cst_17 = arith.constant 0.000000e+00 : f32
      %23 = vector.broadcast %cst_17 : f32 to vector<8x32xf32>
      %24 = arith.maximumf %22, %23 : vector<8x32xf32>
      %c0_18 = arith.constant 0 : index
      %c0_19 = arith.constant 0 : index
      %25 = vector.load %arg6[%c0_18, %c0_19] : memref<32x128xf32, #tpu.memory_space<vmem>>, vector<32x128xf32>
      %cst_20 = arith.constant dense<0.000000e+00> : vector<8x128xf32>
      %26 = tpu.matmul %24, %25, %cst_20 {dimension_numbers = #tpu.dot_dimension_numbers<[1], [0], [0], [1], [0, 0, 1, 1], [], []>} : vector<8x32xf32>, vector<32x128xf32>, vector<8x128xf32> -> vector<8x128xf32>
      %c0_21 = arith.constant 0 : index
      %c0_22 = arith.constant 0 : index
      %27 = vector.load %arg7[%c0_21, %c0_22] : memref<1x128xf32, #tpu.memory_space<vmem>>, vector<1x128xf32>
      %28 = vector.broadcast %27 : vector<1x128xf32> to vector<8x128xf32>
      %29 = arith.addf %26, %28 : vector<8x128xf32>
      %c0_23 = arith.constant 0 : index
      %c0_24 = arith.constant 0 : index
      %30 = vector.load %arg8[%c0_23, %c0_24] : memref<8x128xf32, #tpu.memory_space<vmem>>, vector<8x128xf32>
      tpu.vector_store %arg8[%c0_23, %c0_24], %29 {strides = array<i32>} : memref<8x128xf32, #tpu.memory_space<vmem>>, vector<8x128xf32>,
    } else {
    }
    return
  }
  func.func @transform_0(%arg0: i32) -> (i32, i32) {
    %c0_i32 = arith.constant 0 : i32
    %c0_i32_0 = arith.constant 0 : i32
    return %c0_i32, %arg0 : i32, i32
  }
  func.func @transform_1(%arg0: i32) -> (i32, i32) {
    %c0_i32 = arith.constant 0 : i32
    %c0_i32_0 = arith.constant 0 : i32
    return %c0_i32, %arg0 : i32, i32
  }
  func.func @transform_2(%arg0: i32) -> (i32, i32) {
    %c0_i32 = arith.constant 0 : i32
    %c0_i32_0 = arith.constant 0 : i32
    return %c0_i32, %arg0 : i32, i32
  }
  func.func @transform_3(%arg0: i32) -> (i32, i32) {
    %c0_i32 = arith.constant 0 : i32
    %c0_i32_0 = arith.constant 0 : i32
    return %arg0, %c0_i32 : i32, i32
  }
  func.func @transform_4(%arg0: i32) -> (i32, i32) {
    %c0_i32 = arith.constant 0 : i32
    %c0_i32_0 = arith.constant 0 : i32
    %c0_i32_1 = arith.constant 0 : i32
    return %c0_i32, %c0_i32_0 : i32, i32
  }
  func.func @transform_5(%arg0: i32) -> (i32, i32) {
    %c0_i32 = arith.constant 0 : i32
    %c0_i32_0 = arith.constant 0 : i32
    %c0_i32_1 = arith.constant 0 : i32
    return %c0_i32, %c0_i32_0 : i32, i32
  }
  func.func @transform_6(%arg0: i32) -> (i32, i32) {
    %c0_i32 = arith.constant 0 : i32
    %c0_i32_0 = arith.constant 0 : i32
    %c0_i32_1 = arith.constant 0 : i32
    return %c0_i32, %c0_i32_0 : i32, i32
  }
  func.func @transform_7(%arg0: i32) -> (i32, i32) {
    %c0_i32 = arith.constant 0 : i32
    %c0_i32_0 = arith.constant 0 : i32
    %c0_i32_1 = arith.constant 0 : i32
    return %c0_i32, %c0_i32_0 : i32, i32
  }
}

</mosaic_0001>

<llo_original>
// kernel: tpu_custom_call.1
$region0: #{tpu_custom_call.1}
  #allocation0 [shape = 'u32[]', space=smem, size = 0x4, offset = 0x4, fixed_abs, tag = 'smem constant byte address 0x4 - core index']
  #allocation1 [shape = 'u32[144,128]{1,0:T(1,128)}', space=vmem, size = 0x12000, scoped, tag = 'internal scratch']
  #allocation2 [shape = 'f32[8,32]{1,0:T(8,128)}', space=vmem, size = 0x1000, scoped, tag = 'scratch operand']
  %s0 = inlined_call_operand.vmem [shape: f32[8,49152], index: 0, kind: input, shape index: {}]
  %s1 = inlined_call_operand.vmem [shape: f32[1,49152], index: 1, kind: input, shape index: {}]
  %s2 = inlined_call_operand.vmem [shape: f32[1,49152], index: 2, kind: input, shape index: {}]
  %s3 = inlined_call_operand.vmem [shape: bf16[49152,32], index: 3, kind: input, shape index: {}]
  %s4 = inlined_call_operand.vmem [shape: f32[1,32], index: 4, kind: input, shape index: {}]
  %s5 = inlined_call_operand.vmem [shape: f32[32,128], index: 5, kind: input, shape index: {}]
  %s6 = inlined_call_operand.vmem [shape: f32[1,128], index: 6, kind: input, shape index: {}]
  %s7 = inlined_call_operand.hbm [shape: f32[8,128], index: 7, kind: output, shape index: {}]
  %s8 = sld [smem:[#allocation0]]
  $region69: #{tpu_custom_call.1} parent=0
    _
  %s10 = ssub.s32 1, %s8
  %s11 = scalar_select 0, %s10, %s8
  $region1: #{tpu_custom_call.1} parent=0
    #allocation3 [shape = 'u8[4096]{0}', space=vmem, size = 0x1000, scoped, tag = 'output window, operand 0, single buffered']
    #allocation4 [shape = 's32[2]{0}', space=sflag, size = 0x8, scoped, tag = 'scoped memory for tpu_custom_call.1']
    %12 = vsyncpa [#allocation4], 0
    loop: start=0, step=1, limit=5
    $region2: #{tpu_custom_call.1} parent=1 // loop_pre_header
      _
    $region3: #{tpu_custom_call.1} parent=1 // loop_header
      %s14 = sphi 0, %s18
      %p15 = scmp.ge.s32.totalorder %s14, 5
      %s24 = sphi 0, %s26
      %s27 = sphi 0, %s24
      %s28 = sphi 0, %s27
      %s44 = sphi 0, %s28
      %s50 = sphi 0, %s52
      %s53 = sphi 0, %s50
      %s54 = sphi 0, %s53
      %s70 = sphi 0, %s54
      %s76 = sphi 0, %s78
      %s79 = sphi 0, %s76
      %s80 = sphi 0, %s79
      %s96 = sphi 0, %s80
      %s102 = sphi 0, %s104
      %s105 = sphi 0, %s102
      %s106 = sphi 0, %s105
      %s122 = sphi 0, %s106
      %s126 = sphi 0, %s126
      %s128 = sphi 0, %s126
      %s129 = sphi 0, %s128
      %s143 = sphi 0, %s129
      %s147 = sphi 0, %s147
      %s149 = sphi 0, %s147
      %s150 = sphi 0, %s149
      %s164 = sphi 0, %s150
      %s168 = sphi 0, %s168
      %s170 = sphi 0, %s168
      %s171 = sphi 0, %s170
      %s185 = sphi 0, %s171
      %s189 = sphi 0, %s189
      %s191 = sphi 0, %s189
      %s192 = sphi 0, %s191
      %s206 = sphi 0, %s192
    $region4: #{tpu_custom_call.1} parent=1 // loop_header_branch
      %17 = sbr.rel (%p15) target = $region8
    $region5: #{tpu_custom_call.1} parent=1 // loop_body
      %s19 = ssub.s32 %s14, 1
      %s20 = ssub.s32 %s14, 2
      %s21 = sadd.s32 %s14, 1
      %s22 = ssub.s32 %s14, %s21
      %p23 = scmp.eq.s32.totalorder %s22, 0
      %s25 = sadd.s32 %s24, 1
      %s26 = scalar_select %p23, %s24, %s25
      %p29 = pneg %p23
      %p30 = scmp.eq.s32.totalorder %s14, 2
      %p31 = por %p29, %p30
      %p32 = scmp.ne.s32.totalorder %s24, %s27
      %p33 = scmp.eq.s32.totalorder %s14, 0
      %p34 = por %p32, %p33
      %p35 = scmp.ne.s32.totalorder %s24, %s27
      %p36 = scmp.eq.s32.totalorder %s19, 2
      %p37 = por %p35, %p36
      %p38 = scmp.ne.s32.totalorder %s27, %s28
      %p39 = scmp.eq.s32.totalorder %s19, 0
      %p40 = por %p38, %p39
      %p41 = scmp.ne.s32.totalorder %s27, %s28
      %p42 = scmp.eq.s32.totalorder %s20, 2
      %p43 = por %p41, %p42
      %p45 = scmp.ne.s32.totalorder %s28, %s44
      %p46 = scmp.eq.s32.totalorder %s20, 0
      %p47 = por %p45, %p46
      %s48 = ssub.s32 %s14, %s21
      %p49 = scmp.eq.s32.totalorder %s48, 0
      %s51 = sadd.s32 %s50, 1
      %s52 = scalar_select %p49, %s50, %s51
      %p55 = pneg %p49
      %p56 = scmp.eq.s32.totalorder %s14, 2
      %p57 = por %p55, %p56
      %p58 = scmp.ne.s32.totalorder %s50, %s53
      %p59 = scmp.eq.s32.totalorder %s14, 0
      %p60 = por %p58, %p59
      %p61 = scmp.ne.s32.totalorder %s50, %s53
      %p62 = scmp.eq.s32.totalorder %s19, 2
      %p63 = por %p61, %p62
      %p64 = scmp.ne.s32.totalorder %s53, %s54
      %p65 = scmp.eq.s32.totalorder %s19, 0
      %p66 = por %p64, %p65
      %p67 = scmp.ne.s32.totalorder %s53, %s54
      %p68 = scmp.eq.s32.totalorder %s20, 2
      %p69 = por %p67, %p68
      %p71 = scmp.ne.s32.totalorder %s54, %s70
      %p72 = scmp.eq.s32.totalorder %s20, 0
      %p73 = por %p71, %p72
      %s74 = ssub.s32 %s14, %s21
      %p75 = scmp.eq.s32.totalorder %s74, 0
      %s77 = sadd.s32 %s76, 1
      %s78 = scalar_select %p75, %s76, %s77
      %p81 = pneg %p75
      %p82 = scmp.eq.s32.totalorder %s14, 2
      %p83 = por %p81, %p82
      %p84 = scmp.ne.s32.totalorder %s76, %s79
      %p85 = scmp.eq.s32.totalorder %s14, 0
      %p86 = por %p84, %p85
      %p87 = scmp.ne.s32.totalorder %s76, %s79
      %p88 = scmp.eq.s32.totalorder %s19, 2
      %p89 = por %p87, %p88
      %p90 = scmp.ne.s32.totalorder %s79, %s80
      %p91 = scmp.eq.s32.totalorder %s19, 0
      %p92 = por %p90, %p91
      %p93 = scmp.ne.s32.totalorder %s79, %s80
      %p94 = scmp.eq.s32.totalorder %s20, 2
      %p95 = por %p93, %p94
      %p97 = scmp.ne.s32.totalorder %s80, %s96
      %p98 = scmp.eq.s32.totalorder %s20, 0
      %p99 = por %p97, %p98
      %s100 = ssub.s32 %s14, %s21
      %p101 = scmp.eq.s32.totalorder %s100, 0
      %s103 = sadd.s32 %s102, 1
      %s104 = scalar_select %p101, %s102, %s103
      %p107 = pneg %p101
      %p108 = scmp.eq.s32.totalorder %s14, 2
      %p109 = por %p107, %p108
      %p110 = scmp.ne.s32.totalorder %s102, %s105
      %p111 = scmp.eq.s32.totalorder %s14, 0
      %p112 = por %p110, %p111
      %p113 = scmp.ne.s32.totalorder %s102, %s105
      %p114 = scmp.eq.s32.totalorder %s19, 2
      %p115 = por %p113, %p114
      %p116 = scmp.ne.s32.totalorder %s105, %s106
      %p117 = scmp.eq.s32.totalorder %s19, 0
      %p118 = por %p116, %p117
      %p119 = scmp.ne.s32.totalorder %s105, %s106
      %p120 = scmp.eq.s32.totalorder %s20, 2
      %p121 = por %p119, %p120
      %p123 = scmp.ne.s32.totalorder %s106, %s122
      %p124 = scmp.eq.s32.totalorder %s20, 0
      %p125 = por %p123, %p124
      %s127 = sadd.s32 %s126, 1
      %p130 = scmp.eq.s32.totalorder %s14, 2
      %p131 = scmp.ne.s32.totalorder %s126, %s128
      %p132 = scmp.eq.s32.totalorder %s14, 0
      %p133 = por %p131, %p132
      %p134 = scmp.ne.s32.totalorder %s126, %s128
      %p135 = scmp.eq.s32.totalorder %s19, 2
      %p136 = por %p134, %p135
      %p137 = scmp.ne.s32.totalorder %s128, %s129
      %p138 = scmp.eq.s32.totalorder %s19, 0
      %p139 = por %p137, %p138
      %p140 = scmp.ne.s32.totalorder %s128, %s129
      %p141 = scmp.eq.s32.totalorder %s20, 2
      %p142 = por %p140, %p141
      %p144 = scmp.ne.s32.totalorder %s129, %s143
      %p145 = scmp.eq.s32.totalorder %s20, 0
      %p146 = por %p144, %p145
      %s148 = sadd.s32 %s147, 1
      %p151 = scmp.eq.s32.totalorder %s14, 2
      %p152 = scmp.ne.s32.totalorder %s147, %s149
      %p153 = scmp.eq.s32.totalorder %s14, 0
      %p154 = por %p152, %p153
      %p155 = scmp.ne.s32.totalorder %s147, %s149
      %p156 = scmp.eq.s32.totalorder %s19, 2
      %p157 = por %p155, %p156
      %p158 = scmp.ne.s32.totalorder %s149, %s150
      %p159 = scmp.eq.s32.totalorder %s19, 0
      %p160 = por %p158, %p159
      %p161 = scmp.ne.s32.totalorder %s149, %s150
      %p162 = scmp.eq.s32.totalorder %s20, 2
      %p163 = por %p161, %p162
      %p165 = scmp.ne.s32.totalorder %s150, %s164
      %p166 = scmp.eq.s32.totalorder %s20, 0
      %p167 = por %p165, %p166
      %s169 = sadd.s32 %s168, 1
      %p172 = scmp.eq.s32.totalorder %s14, 2
      %p173 = scmp.ne.s32.totalorder %s168, %s170
      %p174 = scmp.eq.s32.totalorder %s14, 0
      %p175 = por %p173, %p174
      %p176 = scmp.ne.s32.totalorder %s168, %s170
      %p177 = scmp.eq.s32.totalorder %s19, 2
      %p178 = por %p176, %p177
      %p179 = scmp.ne.s32.totalorder %s170, %s171
      %p180 = scmp.eq.s32.totalorder %s19, 0
      %p181 = por %p179, %p180
      %p182 = scmp.ne.s32.totalorder %s170, %s171
      %p183 = scmp.eq.s32.totalorder %s20, 2
      %p184 = por %p182, %p183
      %p186 = scmp.ne.s32.totalorder %s171, %s185
      %p187 = scmp.eq.s32.totalorder %s20, 0
      %p188 = por %p186, %p187
      %s190 = sadd.s32 %s189, 1
      %p193 = scmp.eq.s32.totalorder %s14, 2
      %p194 = scmp.ne.s32.totalorder %s189, %s191
      %p195 = scmp.eq.s32.totalorder %s14, 0
      %p196 = por %p194, %p195
      %p197 = scmp.ne.s32.totalorder %s189, %s191
      %p198 = scmp.eq.s32.totalorder %s19, 2
      %p199 = por %p197, %p198
      %p200 = scmp.ne.s32.totalorder %s191, %s192
      %p201 = scmp.eq.s32.totalorder %s19, 0
      %p202 = por %p200, %p201
      %p203 = scmp.ne.s32.totalorder %s191, %s192
      %p204 = scmp.eq.s32.totalorder %s20, 2
      %p205 = por %p203, %p204
      %p207 = scmp.ne.s32.totalorder %s192, %s206
      %p208 = scmp.eq.s32.totalorder %s20, 0
      %p209 = por %p207, %p208
      %p210 = scmp.le.s32.totalorder 1, %s14
      %p211 = scmp.lt.s32.totalorder %s14, 4
      %p212 = pnand %p210, %p211
      %p213 = pneg %p212
      // Predicated region
      $region9: #{tpu_custom_call.1} parent=5 // pred_check
        _
      $region10: #{tpu_custom_call.1} parent=5 // pred_check_branch
        %215 = sbr.rel (%p212) target = $region12
      $region11: #{tpu_custom_call.1} parent=5 // pred_region
        %s216 = ssub.s32 %s14, 1
        // Predicated region
        $region13: #{tpu_custom_call.1} parent=11 // pred_check
          %p217 = pneg %p139
        $region14: #{tpu_custom_call.1} parent=11 // pred_check_branch
          %219 = sbr.rel (%p217) target = $region16
        $region15: #{tpu_custom_call.1} parent=11 // pred_region
          _
        $region16: #{tpu_custom_call.1} parent=11 // pred_fallthru
          _
        // Predicated region
        $region17: #{tpu_custom_call.1} parent=11 // pred_check
          %p220 = pneg %p160
        $region18: #{tpu_custom_call.1} parent=11 // pred_check_branch
          %222 = sbr.rel (%p220) target = $region20
        $region19: #{tpu_custom_call.1} parent=11 // pred_region
          _
        $region20: #{tpu_custom_call.1} parent=11 // pred_fallthru
          _
        // Predicated region
        $region21: #{tpu_custom_call.1} parent=11 // pred_check
          %p223 = pneg %p181
        $region22: #{tpu_custom_call.1} parent=11 // pred_check_branch
          %225 = sbr.rel (%p223) target = $region24
        $region23: #{tpu_custom_call.1} parent=11 // pred_region
          _
        $region24: #{tpu_custom_call.1} parent=11 // pred_fallthru
          _
      $region12: #{tpu_custom_call.1} parent=5 // pred_fallthru
        _
      %p226 = scmp.lt.s32.totalorder %s14, 3
      // Predicated region
      $region25: #{tpu_custom_call.1} parent=5 // pred_check
        %p227 = pneg %p226
      $region26: #{tpu_custom_call.1} parent=5 // pred_check_branch
        %229 = sbr.rel (%p227) target = $region28
      $region27: #{tpu_custom_call.1} parent=5 // pred_region
        // Predicated region
        $region29: #{tpu_custom_call.1} parent=27 // pred_check
          %p230 = pneg %p34
        $region30: #{tpu_custom_call.1} parent=27 // pred_check_branch
          %232 = sbr.rel (%p230) target = $region32
        $region31: #{tpu_custom_call.1} parent=27 // pred_region
          %s233 = smul.u32 128, %s14
          %p234 = scmp.lt.s32.totalorder %s233, 383
          %s235 = scalar_select %p234, %s233, 383
          %s236 = smul.addr %s235, 8
          %s237 = scalar_lea.vmem %s0, %s236
          %s238 = smul.u32 128, %s14
        $region32: #{tpu_custom_call.1} parent=27 // pred_fallthru
          _
        // Predicated region
        $region33: #{tpu_custom_call.1} parent=27 // pred_check
          %p239 = pneg %p60
        $region34: #{tpu_custom_call.1} parent=27 // pred_check_branch
          %241 = sbr.rel (%p239) target = $region36
        $region35: #{tpu_custom_call.1} parent=27 // pred_region
          %s242 = smul.u32 128, %s14
          %p243 = scmp.lt.s32.totalorder %s242, 383
          %s244 = scalar_select %p243, %s242, 383
          %s245 = scalar_lea.vmem %s1, %s244
          %s246 = smul.u32 128, %s14
        $region36: #{tpu_custom_call.1} parent=27 // pred_fallthru
          _
        // Predicated region
        $region37: #{tpu_custom_call.1} parent=27 // pred_check
          %p247 = pneg %p86
        $region38: #{tpu_custom_call.1} parent=27 // pred_check_branch
          %249 = sbr.rel (%p247) target = $region40
        $region39: #{tpu_custom_call.1} parent=27 // pred_region
          %s250 = smul.u32 128, %s14
          %p251 = scmp.lt.s32.totalorder %s250, 383
          %s252 = scalar_select %p251, %s250, 383
          %s253 = scalar_lea.vmem %s2, %s252
          %s254 = smul.u32 128, %s14
        $region40: #{tpu_custom_call.1} parent=27 // pred_fallthru
          _
        // Predicated region
        $region41: #{tpu_custom_call.1} parent=27 // pred_check
          %p255 = pneg %p112
        $region42: #{tpu_custom_call.1} parent=27 // pred_check_branch
          %257 = sbr.rel (%p255) target = $region44
        $region43: #{tpu_custom_call.1} parent=27 // pred_region
          %s258 = smul.u32 2048, %s14
          %p259 = scmp.lt.s32.totalorder %s258, 6143
          %s260 = scalar_select %p259, %s258, 6143
          %s261 = smul.addr %s260, 4
          %s262 = scalar_lea.vmem %s3, %s261
          %s263 = smul.u32 2048, %s14
        $region44: #{tpu_custom_call.1} parent=27 // pred_fallthru
          _
      $region28: #{tpu_custom_call.1} parent=5 // pred_fallthru
        _
      %p264 = scmp.le.s32.totalorder 1, %s14
      %p265 = scmp.lt.s32.totalorder %s14, 4
      %p266 = pnand %p264, %p265
      %p267 = pneg %p266
      // Predicated region
      $region45: #{tpu_custom_call.1} parent=5 // pred_check
        _
      $region46: #{tpu_custom_call.1} parent=5 // pred_check_branch
        %269 = sbr.rel (%p266) target = $region48
      $region47: #{tpu_custom_call.1} parent=5 // pred_region
        %s270 = ssub.s32 %s14, 1
        %s271 = smul.u32 128, %s19
        %p272 = scmp.lt.s32.totalorder %s271, 383
        %s273 = scalar_select %p272, %s271, 383
        %s274 = smul.addr %s273, 8
        %s275 = scalar_lea.vmem %s0, %s274
        %p276 = pneg %p40
        %p277 = pneg %p37
        %s278 = smul.u32 128, %s19
        %p279 = scmp.lt.s32.totalorder %s278, 383
        %s280 = scalar_select %p279, %s278, 383
        %s281 = scalar_lea.vmem %s1, %s280
        %p282 = pneg %p66
        %p283 = pneg %p63
        %s284 = smul.u32 128, %s19
        %p285 = scmp.lt.s32.totalorder %s284, 383
        %s286 = scalar_select %p285, %s284, 383
        %s287 = scalar_lea.vmem %s2, %s286
        %p288 = pneg %p92
        %p289 = pneg %p89
        %s290 = smul.u32 2048, %s19
        %p291 = scmp.lt.s32.totalorder %s290, 6143
        %s292 = scalar_select %p291, %s290, 6143
        %s293 = smul.addr %s292, 4
        %s294 = scalar_lea.vmem %s3, %s293
        %p295 = pneg %p118
        %p296 = pneg %p115
        %p297 = pneg %p139
        %p298 = pneg %p136
        %p299 = pneg %p160
        %p300 = pneg %p157
        %p301 = pneg %p181
        %p302 = pneg %p178
        %p303 = pneg %p202
        %p304 = pneg %p199
        %s305 = smul.u32 128, %s19
        %p306 = scmp.lt.s32.totalorder %s305, 383
        %s307 = scalar_select %p306, %s305, 383
        %s308 = smul.addr %s307, 8
        %s309 = scalar_lea.vmem %s0, %s308
        %s310 = smul.u32 128, %s19
        %s311 = smul.u32 128, %s19
        %p312 = scmp.lt.s32.totalorder %s311, 383
        %s313 = scalar_select %p312, %s311, 383
        %s314 = scalar_lea.vmem %s1, %s313
        %s315 = smul.u32 128, %s19
        %s316 = smul.u32 128, %s19
        %p317 = scmp.lt.s32.totalorder %s316, 383
        %s318 = scalar_select %p317, %s316, 383
        %s319 = scalar_lea.vmem %s2, %s318
        %s320 = smul.u32 128, %s19
        %s321 = smul.u32 2048, %s19
        %p322 = scmp.lt.s32.totalorder %s321, 6143
        %s323 = scalar_select %p322, %s321, 6143
        %s324 = smul.addr %s323, 4
        %s325 = scalar_lea.vmem %s3, %s324
        %s326 = smul.u32 2048, %s19
        %p328 = scmp.eq.s32.totalorder %s19, 0
        // Predicated region
        $region49: #{tpu_custom_call.1} parent=47 // pred_check
          %p329 = pneg %p328
        $region50: #{tpu_custom_call.1} parent=47 // pred_check_branch
          %331 = sbr.rel (%p329) target = $region52
        $region51: #{tpu_custom_call.1} parent=47 // pred_region
          %vm332 = vcmask 261120
          %333 = vst.msk [vmem:[#allocation2] sm:$0xff] %vm332, 0.0
        $region52: #{tpu_custom_call.1} parent=47 // pred_fallthru
          _
        %v334 = vld [vmem:[%s309] sm:$0xff]
        %v335 = vld [vmem:[%s309 + $0x8] sm:$0xff]
        %v336 = vld [vmem:[%s309 + $0x10] sm:$0xff]
        %v337 = vld [vmem:[%s309 + $0x18] sm:$0xff]
        %v338 = vld [vmem:[%s309 + $0x20] sm:$0xff]
        %v339 = vld [vmem:[%s309 + $0x28] sm:$0xff]
        %v340 = vld [vmem:[%s309 + $0x30] sm:$0xff]
        %v341 = vld [vmem:[%s309 + $0x38] sm:$0xff]
        %v342 = vld [vmem:[%s309 + $0x40] sm:$0xff]
        %v343 = vld [vmem:[%s309 + $0x48] sm:$0xff]
        %v344 = vld [vmem:[%s309 + $0x50] sm:$0xff]
        %v345 = vld [vmem:[%s309 + $0x58] sm:$0xff]
        %v346 = vld [vmem:[%s309 + $0x60] sm:$0xff]
        %v347 = vld [vmem:[%s309 + $0x68] sm:$0xff]
        %v348 = vld [vmem:[%s309 + $0x70] sm:$0xff]
        %v349 = vld [vmem:[%s309 + $0x78] sm:$0xff]
        %v350 = vld [vmem:[%s309 + $0x80] sm:$0xff]
        %v351 = vld [vmem:[%s309 + $0x88] sm:$0xff]
        %v352 = vld [vmem:[%s309 + $0x90] sm:$0xff]
        %v353 = vld [vmem:[%s309 + $0x98] sm:$0xff]
        %v354 = vld [vmem:[%s309 + $0xa0] sm:$0xff]
        %v355 = vld [vmem:[%s309 + $0xa8] sm:$0xff]
        %v356 = vld [vmem:[%s309 + $0xb0] sm:$0xff]
        %v357 = vld [vmem:[%s309 + $0xb8] sm:$0xff]
        %v358 = vld [vmem:[%s309 + $0xc0] sm:$0xff]
        %v359 = vld [vmem:[%s309 + $0xc8] sm:$0xff]
        %v360 = vld [vmem:[%s309 + $0xd0] sm:$0xff]
        %v361 = vld [vmem:[%s309 + $0xd8] sm:$0xff]
        %v362 = vld [vmem:[%s309 + $0xe0] sm:$0xff]
        %v363 = vld [vmem:[%s309 + $0xe8] sm:$0xff]
        %v364 = vld [vmem:[%s309 + $0xf0] sm:$0xff]
        %v365 = vld [vmem:[%s309 + $0xf8] sm:$0xff]
        %v366 = vld [vmem:[%s309 + $0x100] sm:$0xff]
        %v367 = vld [vmem:[%s309 + $0x108] sm:$0xff]
        %v368 = vld [vmem:[%s309 + $0x110] sm:$0xff]
        %v369 = vld [vmem:[%s309 + $0x118] sm:$0xff]
        %v370 = vld [vmem:[%s309 + $0x120] sm:$0xff]
        %v371 = vld [vmem:[%s309 + $0x128] sm:$0xff]
        %v372 = vld [vmem:[%s309 + $0x130] sm:$0xff]
        %v373 = vld [vmem:[%s309 + $0x138] sm:$0xff]
        %v374 = vld [vmem:[%s309 + $0x140] sm:$0xff]
        %v375 = vld [vmem:[%s309 + $0x148] sm:$0xff]
        %v376 = vld [vmem:[%s309 + $0x150] sm:$0xff]
        %v377 = vld [vmem:[%s309 + $0x158] sm:$0xff]
        %v378 = vld [vmem:[%s309 + $0x160] sm:$0xff]
        %v379 = vld [vmem:[%s309 + $0x168] sm:$0xff]
        %v380 = vld [vmem:[%s309 + $0x170] sm:$0xff]
        %v381 = vld [vmem:[%s309 + $0x178] sm:$0xff]
        %v382 = vld [vmem:[%s309 + $0x180] sm:$0xff]
        %v383 = vld [vmem:[%s309 + $0x188] sm:$0xff]
        %v384 = vld [vmem:[%s309 + $0x190] sm:$0xff]
        %v385 = vld [vmem:[%s309 + $0x198] sm:$0xff]
        %v386 = vld [vmem:[%s309 + $0x1a0] sm:$0xff]
        %v387 = vld [vmem:[%s309 + $0x1a8] sm:$0xff]
        %v388 = vld [vmem:[%s309 + $0x1b0] sm:$0xff]
        %v389 = vld [vmem:[%s309 + $0x1b8] sm:$0xff]
        %v390 = vld [vmem:[%s309 + $0x1c0] sm:$0xff]
        %v391 = vld [vmem:[%s309 + $0x1c8] sm:$0xff]
        %v392 = vld [vmem:[%s309 + $0x1d0] sm:$0xff]
        %v393 = vld [vmem:[%s309 + $0x1d8] sm:$0xff]
        %v394 = vld [vmem:[%s309 + $0x1e0] sm:$0xff]
        %v395 = vld [vmem:[%s309 + $0x1e8] sm:$0xff]
        %v396 = vld [vmem:[%s309 + $0x1f0] sm:$0xff]
        %v397 = vld [vmem:[%s309 + $0x1f8] sm:$0xff]
        %v398 = vld [vmem:[%s309 + $0x200] sm:$0xff]
        %v399 = vld [vmem:[%s309 + $0x208] sm:$0xff]
        %v400 = vld [vmem:[%s309 + $0x210] sm:$0xff]
        %v401 = vld [vmem:[%s309 + $0x218] sm:$0xff]
        %v402 = vld [vmem:[%s309 + $0x220] sm:$0xff]
        %v403 = vld [vmem:[%s309 + $0x228] sm:$0xff]
        %v404 = vld [vmem:[%s309 + $0x230] sm:$0xff]
        %v405 = vld [vmem:[%s309 + $0x238] sm:$0xff]
        %v406 = vld [vmem:[%s309 + $0x240] sm:$0xff]
        %v407 = vld [vmem:[%s309 + $0x248] sm:$0xff]
        %v408 = vld [vmem:[%s309 + $0x250] sm:$0xff]
        %v409 = vld [vmem:[%s309 + $0x258] sm:$0xff]
        %v410 = vld [vmem:[%s309 + $0x260] sm:$0xff]
        %v411 = vld [vmem:[%s309 + $0x268] sm:$0xff]
        %v412 = vld [vmem:[%s309 + $0x270] sm:$0xff]
        %v413 = vld [vmem:[%s309 + $0x278] sm:$0xff]
        %v414 = vld [vmem:[%s309 + $0x280] sm:$0xff]
        %v415 = vld [vmem:[%s309 + $0x288] sm:$0xff]
        %v416 = vld [vmem:[%s309 + $0x290] sm:$0xff]
        %v417 = vld [vmem:[%s309 + $0x298] sm:$0xff]
        %v418 = vld [vmem:[%s309 + $0x2a0] sm:$0xff]
        %v419 = vld [vmem:[%s309 + $0x2a8] sm:$0xff]
        %v420 = vld [vmem:[%s309 + $0x2b0] sm:$0xff]
        %v421 = vld [vmem:[%s309 + $0x2b8] sm:$0xff]
        %v422 = vld [vmem:[%s309 + $0x2c0] sm:$0xff]
        %v423 = vld [vmem:[%s309 + $0x2c8] sm:$0xff]
        %v424 = vld [vmem:[%s309 + $0x2d0] sm:$0xff]
        %v425 = vld [vmem:[%s309 + $0x2d8] sm:$0xff]
        %v426 = vld [vmem:[%s309 + $0x2e0] sm:$0xff]
        %v427 = vld [vmem:[%s309 + $0x2e8] sm:$0xff]
        %v428 = vld [vmem:[%s309 + $0x2f0] sm:$0xff]
        %v429 = vld [vmem:[%s309 + $0x2f8] sm:$0xff]
        %v430 = vld [vmem:[%s309 + $0x300] sm:$0xff]
        %v431 = vld [vmem:[%s309 + $0x308] sm:$0xff]
        %v432 = vld [vmem:[%s309 + $0x310] sm:$0xff]
        %v433 = vld [vmem:[%s309 + $0x318] sm:$0xff]
        %v434 = vld [vmem:[%s309 + $0x320] sm:$0xff]
        %v435 = vld [vmem:[%s309 + $0x328] sm:$0xff]
        %v436 = vld [vmem:[%s309 + $0x330] sm:$0xff]
        %v437 = vld [vmem:[%s309 + $0x338] sm:$0xff]
        %v438 = vld [vmem:[%s309 + $0x340] sm:$0xff]
        %v439 = vld [vmem:[%s309 + $0x348] sm:$0xff]
        %v440 = vld [vmem:[%s309 + $0x350] sm:$0xff]
        %v441 = vld [vmem:[%s309 + $0x358] sm:$0xff]
        %v442 = vld [vmem:[%s309 + $0x360] sm:$0xff]
        %v443 = vld [vmem:[%s309 + $0x368] sm:$0xff]
        %v444 = vld [vmem:[%s309 + $0x370] sm:$0xff]
        %v445 = vld [vmem:[%s309 + $0x378] sm:$0xff]
        %v446 = vld [vmem:[%s309 + $0x380] sm:$0xff]
        %v447 = vld [vmem:[%s309 + $0x388] sm:$0xff]
        %v448 = vld [vmem:[%s309 + $0x390] sm:$0xff]
        %v449 = vld [vmem:[%s309 + $0x398] sm:$0xff]
        %v450 = vld [vmem:[%s309 + $0x3a0] sm:$0xff]
        %v451 = vld [vmem:[%s309 + $0x3a8] sm:$0xff]
        %v452 = vld [vmem:[%s309 + $0x3b0] sm:$0xff]
        %v453 = vld [vmem:[%s309 + $0x3b8] sm:$0xff]
        %v454 = vld [vmem:[%s309 + $0x3c0] sm:$0xff]
        %v455 = vld [vmem:[%s309 + $0x3c8] sm:$0xff]
        %v456 = vld [vmem:[%s309 + $0x3d0] sm:$0xff]
        %v457 = vld [vmem:[%s309 + $0x3d8] sm:$0xff]
        %v458 = vld [vmem:[%s309 + $0x3e0] sm:$0xff]
        %v459 = vld [vmem:[%s309 + $0x3e8] sm:$0xff]
        %v460 = vld [vmem:[%s309 + $0x3f0] sm:$0xff]
        %v461 = vld [vmem:[%s309 + $0x3f8] sm:$0xff]
        %v462 = vld [vmem:[%s314] sm:$0xff]
        %v463 = vld [vmem:[%s314 + $0x8] sm:$0xff]
        %v464 = vld [vmem:[%s314 + $0x10] sm:$0xff]
        %v465 = vld [vmem:[%s314 + $0x18] sm:$0xff]
        %v466 = vld [vmem:[%s314 + $0x20] sm:$0xff]
        %v467 = vld [vmem:[%s314 + $0x28] sm:$0xff]
        %v468 = vld [vmem:[%s314 + $0x30] sm:$0xff]
        %v469 = vld [vmem:[%s314 + $0x38] sm:$0xff]
        %v470 = vld [vmem:[%s314 + $0x40] sm:$0xff]
        %v471 = vld [vmem:[%s314 + $0x48] sm:$0xff]
        %v472 = vld [vmem:[%s314 + $0x50] sm:$0xff]
        %v473 = vld [vmem:[%s314 + $0x58] sm:$0xff]
        %v474 = vld [vmem:[%s314 + $0x60] sm:$0xff]
        %v475 = vld [vmem:[%s314 + $0x68] sm:$0xff]
        %v476 = vld [vmem:[%s314 + $0x70] sm:$0xff]
        %v477 = vld [vmem:[%s314 + $0x78] sm:$0xff]
        %v494 = vlaneseq
        %v495 = vshrl.u32 %v494, 7
        %v496 = vsub.s32 0, %v495
        %v497 = vrot.slane %v462, %v496
        %v498 = vlaneseq
        %v499 = vshrl.u32 %v498, 7
        %v500 = vsub.s32 1, %v499
        %v501 = vrot.slane %v462, %v500
        %v502 = vlaneseq
        %v503 = vshrl.u32 %v502, 7
        %v504 = vsub.s32 2, %v503
        %v505 = vrot.slane %v462, %v504
        %v506 = vlaneseq
        %v507 = vshrl.u32 %v506, 7
        %v508 = vsub.s32 3, %v507
        %v509 = vrot.slane %v462, %v508
        %v510 = vlaneseq
        %v511 = vshrl.u32 %v510, 7
        %v512 = vsub.s32 4, %v511
        %v513 = vrot.slane %v462, %v512
        %v514 = vlaneseq
        %v515 = vshrl.u32 %v514, 7
        %v516 = vsub.s32 5, %v515
        %v517 = vrot.slane %v462, %v516
        %v518 = vlaneseq
        %v519 = vshrl.u32 %v518, 7
        %v520 = vsub.s32 6, %v519
        %v521 = vrot.slane %v462, %v520
        %v522 = vlaneseq
        %v523 = vshrl.u32 %v522, 7
        %v524 = vsub.s32 7, %v523
        %v525 = vrot.slane %v462, %v524
        %v526 = vlaneseq
        %v527 = vshrl.u32 %v526, 7
        %v528 = vsub.s32 0, %v527
        %v529 = vrot.slane %v463, %v528
        %v530 = vlaneseq
        %v531 = vshrl.u32 %v530, 7
        %v532 = vsub.s32 1, %v531
        %v533 = vrot.slane %v463, %v532
        %v534 = vlaneseq
        %v535 = vshrl.u32 %v534, 7
        %v536 = vsub.s32 2, %v535
        %v537 = vrot.slane %v463, %v536
        %v538 = vlaneseq
        %v539 = vshrl.u32 %v538, 7
        %v540 = vsub.s32 3, %v539
        %v541 = vrot.slane %v463, %v540
        %v542 = vlaneseq
        %v543 = vshrl.u32 %v542, 7
        %v544 = vsub.s32 4, %v543
        %v545 = vrot.slane %v463, %v544
        %v546 = vlaneseq
        %v547 = vshrl.u32 %v546, 7
        %v548 = vsub.s32 5, %v547
        %v549 = vrot.slane %v463, %v548
        %v550 = vlaneseq
        %v551 = vshrl.u32 %v550, 7
        %v552 = vsub.s32 6, %v551
        %v553 = vrot.slane %v463, %v552
        %v554 = vlaneseq
        %v555 = vshrl.u32 %v554, 7
        %v556 = vsub.s32 7, %v555
        %v557 = vrot.slane %v463, %v556
        %v558 = vlaneseq
        %v559 = vshrl.u32 %v558, 7
        %v560 = vsub.s32 0, %v559
        %v561 = vrot.slane %v464, %v560
        %v562 = vlaneseq
        %v563 = vshrl.u32 %v562, 7
        %v564 = vsub.s32 1, %v563
        %v565 = vrot.slane %v464, %v564
        %v566 = vlaneseq
        %v567 = vshrl.u32 %v566, 7
        %v568 = vsub.s32 2, %v567
        %v569 = vrot.slane %v464, %v568
        %v570 = vlaneseq
        %v571 = vshrl.u32 %v570, 7
        %v572 = vsub.s32 3, %v571
        %v573 = vrot.slane %v464, %v572
        %v574 = vlaneseq
        %v575 = vshrl.u32 %v574, 7
        %v576 = vsub.s32 4, %v575
        %v577 = vrot.slane %v464, %v576
        %v578 = vlaneseq
        %v579 = vshrl.u32 %v578, 7
        %v580 = vsub.s32 5, %v579
        %v581 = vrot.slane %v464, %v580
        %v582 = vlaneseq
        %v583 = vshrl.u32 %v582, 7
        %v584 = vsub.s32 6, %v583
        %v585 = vrot.slane %v464, %v584
        %v586 = vlaneseq
        %v587 = vshrl.u32 %v586, 7
        %v588 = vsub.s32 7, %v587
        %v589 = vrot.slane %v464, %v588
        %v590 = vlaneseq
        %v591 = vshrl.u32 %v590, 7
        %v592 = vsub.s32 0, %v591
        %v593 = vrot.slane %v465, %v592
        %v594 = vlaneseq
        %v595 = vshrl.u32 %v594, 7
        %v596 = vsub.s32 1, %v595
        %v597 = vrot.slane %v465, %v596
        %v598 = vlaneseq
        %v599 = vshrl.u32 %v598, 7
        %v600 = vsub.s32 2, %v599
        %v601 = vrot.slane %v465, %v600
        %v602 = vlaneseq
        %v603 = vshrl.u32 %v602, 7
        %v604 = vsub.s32 3, %v603
        %v605 = vrot.slane %v465, %v604
        %v606 = vlaneseq
        %v607 = vshrl.u32 %v606, 7
        %v608 = vsub.s32 4, %v607
        %v609 = vrot.slane %v465, %v608
        %v610 = vlaneseq
        %v611 = vshrl.u32 %v610, 7
        %v612 = vsub.s32 5, %v611
        %v613 = vrot.slane %v465, %v612
        %v614 = vlaneseq
        %v615 = vshrl.u32 %v614, 7
        %v616 = vsub.s32 6, %v615
        %v617 = vrot.slane %v465, %v616
        %v618 = vlaneseq
        %v619 = vshrl.u32 %v618, 7
        %v620 = vsub.s32 7, %v619
        %v621 = vrot.slane %v465, %v620
        %v622 = vlaneseq
        %v623 = vshrl.u32 %v622, 7
        %v624 = vsub.s32 0, %v623
        %v625 = vrot.slane %v466, %v624
        %v626 = vlaneseq
        %v627 = vshrl.u32 %v626, 7
        %v628 = vsub.s32 1, %v627
        %v629 = vrot.slane %v466, %v628
        %v630 = vlaneseq
        %v631 = vshrl.u32 %v630, 7
        %v632 = vsub.s32 2, %v631
        %v633 = vrot.slane %v466, %v632
        %v634 = vlaneseq
        %v635 = vshrl.u32 %v634, 7
        %v636 = vsub.s32 3, %v635
        %v637 = vrot.slane %v466, %v636
        %v638 = vlaneseq
        %v639 = vshrl.u32 %v638, 7
        %v640 = vsub.s32 4, %v639
        %v641 = vrot.slane %v466, %v640
        %v642 = vlaneseq
        %v643 = vshrl.u32 %v642, 7
        %v644 = vsub.s32 5, %v643
        %v645 = vrot.slane %v466, %v644
        %v646 = vlaneseq
        %v647 = vshrl.u32 %v646, 7
        %v648 = vsub.s32 6, %v647
        %v649 = vrot.slane %v466, %v648
        %v650 = vlaneseq
        %v651 = vshrl.u32 %v650, 7
        %v652 = vsub.s32 7, %v651
        %v653 = vrot.slane %v466, %v652
        %v654 = vlaneseq
        %v655 = vshrl.u32 %v654, 7
        %v656 = vsub.s32 0, %v655
        %v657 = vrot.slane %v467, %v656
        %v658 = vlaneseq
        %v659 = vshrl.u32 %v658, 7
        %v660 = vsub.s32 1, %v659
        %v661 = vrot.slane %v467, %v660
        %v662 = vlaneseq
        %v663 = vshrl.u32 %v662, 7
        %v664 = vsub.s32 2, %v663
        %v665 = vrot.slane %v467, %v664
        %v666 = vlaneseq
        %v667 = vshrl.u32 %v666, 7
        %v668 = vsub.s32 3, %v667
        %v669 = vrot.slane %v467, %v668
        %v670 = vlaneseq
        %v671 = vshrl.u32 %v670, 7
        %v672 = vsub.s32 4, %v671
        %v673 = vrot.slane %v467, %v672
        %v674 = vlaneseq
        %v675 = vshrl.u32 %v674, 7
        %v676 = vsub.s32 5, %v675
        %v677 = vrot.slane %v467, %v676
        %v678 = vlaneseq
        %v679 = vshrl.u32 %v678, 7
        %v680 = vsub.s32 6, %v679
        %v681 = vrot.slane %v467, %v680
        %v682 = vlaneseq
        %v683 = vshrl.u32 %v682, 7
        %v684 = vsub.s32 7, %v683
        %v685 = vrot.slane %v467, %v684
        %v686 = vlaneseq
        %v687 = vshrl.u32 %v686, 7
        %v688 = vsub.s32 0, %v687
        %v689 = vrot.slane %v468, %v688
        %v690 = vlaneseq
        %v691 = vshrl.u32 %v690, 7
        %v692 = vsub.s32 1, %v691
        %v693 = vrot.slane %v468, %v692
        %v694 = vlaneseq
        %v695 = vshrl.u32 %v694, 7
        %v696 = vsub.s32 2, %v695
        %v697 = vrot.slane %v468, %v696
        %v698 = vlaneseq
        %v699 = vshrl.u32 %v698, 7
        %v700 = vsub.s32 3, %v699
        %v701 = vrot.slane %v468, %v700
        %v702 = vlaneseq
        %v703 = vshrl.u32 %v702, 7
        %v704 = vsub.s32 4, %v703
        %v705 = vrot.slane %v468, %v704
        %v706 = vlaneseq
        %v707 = vshrl.u32 %v706, 7
        %v708 = vsub.s32 5, %v707
        %v709 = vrot.slane %v468, %v708
        %v710 = vlaneseq
        %v711 = vshrl.u32 %v710, 7
        %v712 = vsub.s32 6, %v711
        %v713 = vrot.slane %v468, %v712
        %v714 = vlaneseq
        %v715 = vshrl.u32 %v714, 7
        %v716 = vsub.s32 7, %v715
        %v717 = vrot.slane %v468, %v716
        %v718 = vlaneseq
        %v719 = vshrl.u32 %v718, 7
        %v720 = vsub.s32 0, %v719
        %v721 = vrot.slane %v469, %v720
        %v722 = vlaneseq
        %v723 = vshrl.u32 %v722, 7
        %v724 = vsub.s32 1, %v723
        %v725 = vrot.slane %v469, %v724
        %v726 = vlaneseq
        %v727 = vshrl.u32 %v726, 7
        %v728 = vsub.s32 2, %v727
        %v729 = vrot.slane %v469, %v728
        %v730 = vlaneseq
        %v731 = vshrl.u32 %v730, 7
        %v732 = vsub.s32 3, %v731
        %v733 = vrot.slane %v469, %v732
        %v734 = vlaneseq
        %v735 = vshrl.u32 %v734, 7
        %v736 = vsub.s32 4, %v735
        %v737 = vrot.slane %v469, %v736
        %v738 = vlaneseq
        %v739 = vshrl.u32 %v738, 7
        %v740 = vsub.s32 5, %v739
        %v741 = vrot.slane %v469, %v740
        %v742 = vlaneseq
        %v743 = vshrl.u32 %v742, 7
        %v744 = vsub.s32 6, %v743
        %v745 = vrot.slane %v469, %v744
        %v746 = vlaneseq
        %v747 = vshrl.u32 %v746, 7
        %v748 = vsub.s32 7, %v747
        %v749 = vrot.slane %v469, %v748
        %v750 = vlaneseq
        %v751 = vshrl.u32 %v750, 7
        %v752 = vsub.s32 0, %v751
        %v753 = vrot.slane %v470, %v752
        %v754 = vlaneseq
        %v755 = vshrl.u32 %v754, 7
        %v756 = vsub.s32 1, %v755
        %v757 = vrot.slane %v470, %v756
        %v758 = vlaneseq
        %v759 = vshrl.u32 %v758, 7
        %v760 = vsub.s32 2, %v759
        %v761 = vrot.slane %v470, %v760
        %v762 = vlaneseq
        %v763 = vshrl.u32 %v762, 7
        %v764 = vsub.s32 3, %v763
        %v765 = vrot.slane %v470, %v764
        %v766 = vlaneseq
        %v767 = vshrl.u32 %v766, 7
        %v768 = vsub.s32 4, %v767
        %v769 = vrot.slane %v470, %v768
        %v770 = vlaneseq
        %v771 = vshrl.u32 %v770, 7
        %v772 = vsub.s32 5, %v771
        %v773 = vrot.slane %v470, %v772
        %v774 = vlaneseq
        %v775 = vshrl.u32 %v774, 7
        %v776 = vsub.s32 6, %v775
        %v777 = vrot.slane %v470, %v776
        %v778 = vlaneseq
        %v779 = vshrl.u32 %v778, 7
        %v780 = vsub.s32 7, %v779
        %v781 = vrot.slane %v470, %v780
        %v782 = vlaneseq
        %v783 = vshrl.u32 %v782, 7
        %v784 = vsub.s32 0, %v783
        %v785 = vrot.slane %v471, %v784
        %v786 = vlaneseq
        %v787 = vshrl.u32 %v786, 7
        %v788 = vsub.s32 1, %v787
        %v789 = vrot.slane %v471, %v788
        %v790 = vlaneseq
        %v791 = vshrl.u32 %v790, 7
        %v792 = vsub.s32 2, %v791
        %v793 = vrot.slane %v471, %v792
        %v794 = vlaneseq
        %v795 = vshrl.u32 %v794, 7
        %v796 = vsub.s32 3, %v795
        %v797 = vrot.slane %v471, %v796
        %v798 = vlaneseq
        %v799 = vshrl.u32 %v798, 7
        %v800 = vsub.s32 4, %v799
        %v801 = vrot.slane %v471, %v800
        %v802 = vlaneseq
        %v803 = vshrl.u32 %v802, 7
        %v804 = vsub.s32 5, %v803
        %v805 = vrot.slane %v471, %v804
        %v806 = vlaneseq
        %v807 = vshrl.u32 %v806, 7
        %v808 = vsub.s32 6, %v807
        %v809 = vrot.slane %v471, %v808
        %v810 = vlaneseq
        %v811 = vshrl.u32 %v810, 7
        %v812 = vsub.s32 7, %v811
        %v813 = vrot.slane %v471, %v812
        %v814 = vlaneseq
        %v815 = vshrl.u32 %v814, 7
        %v816 = vsub.s32 0, %v815
        %v817 = vrot.slane %v472, %v816
        %v818 = vlaneseq
        %v819 = vshrl.u32 %v818, 7
        %v820 = vsub.s32 1, %v819
        %v821 = vrot.slane %v472, %v820
        %v822 = vlaneseq
        %v823 = vshrl.u32 %v822, 7
        %v824 = vsub.s32 2, %v823
        %v825 = vrot.slane %v472, %v824
        %v826 = vlaneseq
        %v827 = vshrl.u32 %v826, 7
        %v828 = vsub.s32 3, %v827
        %v829 = vrot.slane %v472, %v828
        %v830 = vlaneseq
        %v831 = vshrl.u32 %v830, 7
        %v832 = vsub.s32 4, %v831
        %v833 = vrot.slane %v472, %v832
        %v834 = vlaneseq
        %v835 = vshrl.u32 %v834, 7
        %v836 = vsub.s32 5, %v835
        %v837 = vrot.slane %v472, %v836
        %v838 = vlaneseq
        %v839 = vshrl.u32 %v838, 7
        %v840 = vsub.s32 6, %v839
        %v841 = vrot.slane %v472, %v840
        %v842 = vlaneseq
        %v843 = vshrl.u32 %v842, 7
        %v844 = vsub.s32 7, %v843
        %v845 = vrot.slane %v472, %v844
        %v846 = vlaneseq
        %v847 = vshrl.u32 %v846, 7
        %v848 = vsub.s32 0, %v847
        %v849 = vrot.slane %v473, %v848
        %v850 = vlaneseq
        %v851 = vshrl.u32 %v850, 7
        %v852 = vsub.s32 1, %v851
        %v853 = vrot.slane %v473, %v852
        %v854 = vlaneseq
        %v855 = vshrl.u32 %v854, 7
        %v856 = vsub.s32 2, %v855
        %v857 = vrot.slane %v473, %v856
        %v858 = vlaneseq
        %v859 = vshrl.u32 %v858, 7
        %v860 = vsub.s32 3, %v859
        %v861 = vrot.slane %v473, %v860
        %v862 = vlaneseq
        %v863 = vshrl.u32 %v862, 7
        %v864 = vsub.s32 4, %v863
        %v865 = vrot.slane %v473, %v864
        %v866 = vlaneseq
        %v867 = vshrl.u32 %v866, 7
        %v868 = vsub.s32 5, %v867
        %v869 = vrot.slane %v473, %v868
        %v870 = vlaneseq
        %v871 = vshrl.u32 %v870, 7
        %v872 = vsub.s32 6, %v871
        %v873 = vrot.slane %v473, %v872
        %v874 = vlaneseq
        %v875 = vshrl.u32 %v874, 7
        %v876 = vsub.s32 7, %v875
        %v877 = vrot.slane %v473, %v876
        %v878 = vlaneseq
        %v879 = vshrl.u32 %v878, 7
        %v880 = vsub.s32 0, %v879
        %v881 = vrot.slane %v474, %v880
        %v882 = vlaneseq
        %v883 = vshrl.u32 %v882, 7
        %v884 = vsub.s32 1, %v883
        %v885 = vrot.slane %v474, %v884
        %v886 = vlaneseq
        %v887 = vshrl.u32 %v886, 7
        %v888 = vsub.s32 2, %v887
        %v889 = vrot.slane %v474, %v888
        %v890 = vlaneseq
        %v891 = vshrl.u32 %v890, 7
        %v892 = vsub.s32 3, %v891
        %v893 = vrot.slane %v474, %v892
        %v894 = vlaneseq
        %v895 = vshrl.u32 %v894, 7
        %v896 = vsub.s32 4, %v895
        %v897 = vrot.slane %v474, %v896
        %v898 = vlaneseq
        %v899 = vshrl.u32 %v898, 7
        %v900 = vsub.s32 5, %v899
        %v901 = vrot.slane %v474, %v900
        %v902 = vlaneseq
        %v903 = vshrl.u32 %v902, 7
        %v904 = vsub.s32 6, %v903
        %v905 = vrot.slane %v474, %v904
        %v906 = vlaneseq
        %v907 = vshrl.u32 %v906, 7
        %v908 = vsub.s32 7, %v907
        %v909 = vrot.slane %v474, %v908
        %v910 = vlaneseq
        %v911 = vshrl.u32 %v910, 7
        %v912 = vsub.s32 0, %v911
        %v913 = vrot.slane %v475, %v912
        %v914 = vlaneseq
        %v915 = vshrl.u32 %v914, 7
        %v916 = vsub.s32 1, %v915
        %v917 = vrot.slane %v475, %v916
        %v918 = vlaneseq
        %v919 = vshrl.u32 %v918, 7
        %v920 = vsub.s32 2, %v919
        %v921 = vrot.slane %v475, %v920
        %v922 = vlaneseq
        %v923 = vshrl.u32 %v922, 7
        %v924 = vsub.s32 3, %v923
        %v925 = vrot.slane %v475, %v924
        %v926 = vlaneseq
        %v927 = vshrl.u32 %v926, 7
        %v928 = vsub.s32 4, %v927
        %v929 = vrot.slane %v475, %v928
        %v930 = vlaneseq
        %v931 = vshrl.u32 %v930, 7
        %v932 = vsub.s32 5, %v931
        %v933 = vrot.slane %v475, %v932
        %v934 = vlaneseq
        %v935 = vshrl.u32 %v934, 7
        %v936 = vsub.s32 6, %v935
        %v937 = vrot.slane %v475, %v936
        %v938 = vlaneseq
        %v939 = vshrl.u32 %v938, 7
        %v940 = vsub.s32 7, %v939
        %v941 = vrot.slane %v475, %v940
        %v942 = vlaneseq
        %v943 = vshrl.u32 %v942, 7
        %v944 = vsub.s32 0, %v943
        %v945 = vrot.slane %v476, %v944
        %v946 = vlaneseq
        %v947 = vshrl.u32 %v946, 7
        %v948 = vsub.s32 1, %v947
        %v949 = vrot.slane %v476, %v948
        %v950 = vlaneseq
        %v951 = vshrl.u32 %v950, 7
        %v952 = vsub.s32 2, %v951
        %v953 = vrot.slane %v476, %v952
        %v954 = vlaneseq
        %v955 = vshrl.u32 %v954, 7
        %v956 = vsub.s32 3, %v955
        %v957 = vrot.slane %v476, %v956
        %v958 = vlaneseq
        %v959 = vshrl.u32 %v958, 7
        %v960 = vsub.s32 4, %v959
        %v961 = vrot.slane %v476, %v960
        %v962 = vlaneseq
        %v963 = vshrl.u32 %v962, 7
        %v964 = vsub.s32 5, %v963
        %v965 = vrot.slane %v476, %v964
        %v966 = vlaneseq
        %v967 = vshrl.u32 %v966, 7
        %v968 = vsub.s32 6, %v967
        %v969 = vrot.slane %v476, %v968
        %v970 = vlaneseq
        %v971 = vshrl.u32 %v970, 7
        %v972 = vsub.s32 7, %v971
        %v973 = vrot.slane %v476, %v972
        %v974 = vlaneseq
        %v975 = vshrl.u32 %v974, 7
        %v976 = vsub.s32 0, %v975
        %v977 = vrot.slane %v477, %v976
        %v978 = vlaneseq
        %v979 = vshrl.u32 %v978, 7
        %v980 = vsub.s32 1, %v979
        %v981 = vrot.slane %v477, %v980
        %v982 = vlaneseq
        %v983 = vshrl.u32 %v982, 7
        %v984 = vsub.s32 2, %v983
        %v985 = vrot.slane %v477, %v984
        %v986 = vlaneseq
        %v987 = vshrl.u32 %v986, 7
        %v988 = vsub.s32 3, %v987
        %v989 = vrot.slane %v477, %v988
        %v990 = vlaneseq
        %v991 = vshrl.u32 %v990, 7
        %v992 = vsub.s32 4, %v991
        %v993 = vrot.slane %v477, %v992
        %v994 = vlaneseq
        %v995 = vshrl.u32 %v994, 7
        %v996 = vsub.s32 5, %v995
        %v997 = vrot.slane %v477, %v996
        %v998 = vlaneseq
        %v999 = vshrl.u32 %v998, 7
        %v1000 = vsub.s32 6, %v999
        %v1001 = vrot.slane %v477, %v1000
        %v1002 = vlaneseq
        %v1003 = vshrl.u32 %v1002, 7
        %v1004 = vsub.s32 7, %v1003
        %v1005 = vrot.slane %v477, %v1004
        %v1134 = vmul.f32 %v334, %v497
        %v1135 = vmul.f32 %v335, %v501
        %v1136 = vmul.f32 %v336, %v505
        %v1137 = vmul.f32 %v337, %v509
        %v1138 = vmul.f32 %v338, %v513
        %v1139 = vmul.f32 %v339, %v517
        %v1140 = vmul.f32 %v340, %v521
        %v1141 = vmul.f32 %v341, %v525
        %v1142 = vmul.f32 %v342, %v529
        %v1143 = vmul.f32 %v343, %v533
        %v1144 = vmul.f32 %v344, %v537
        %v1145 = vmul.f32 %v345, %v541
        %v1146 = vmul.f32 %v346, %v545
        %v1147 = vmul.f32 %v347, %v549
        %v1148 = vmul.f32 %v348, %v553
        %v1149 = vmul.f32 %v349, %v557
        %v1150 = vmul.f32 %v350, %v561
        %v1151 = vmul.f32 %v351, %v565
        %v1152 = vmul.f32 %v352, %v569
        %v1153 = vmul.f32 %v353, %v573
        %v1154 = vmul.f32 %v354, %v577
        %v1155 = vmul.f32 %v355, %v581
        %v1156 = vmul.f32 %v356, %v585
        %v1157 = vmul.f32 %v357, %v589
        %v1158 = vmul.f32 %v358, %v593
        %v1159 = vmul.f32 %v359, %v597
        %v1160 = vmul.f32 %v360, %v601
        %v1161 = vmul.f32 %v361, %v605
        %v1162 = vmul.f32 %v362, %v609
        %v1163 = vmul.f32 %v363, %v613
        %v1164 = vmul.f32 %v364, %v617
        %v1165 = vmul.f32 %v365, %v621
        %v1166 = vmul.f32 %v366, %v625
        %v1167 = vmul.f32 %v367, %v629
        %v1168 = vmul.f32 %v368, %v633
        %v1169 = vmul.f32 %v369, %v637
        %v1170 = vmul.f32 %v370, %v641
        %v1171 = vmul.f32 %v371, %v645
        %v1172 = vmul.f32 %v372, %v649
        %v1173 = vmul.f32 %v373, %v653
        %v1174 = vmul.f32 %v374, %v657
        %v1175 = vmul.f32 %v375, %v661
        %v1176 = vmul.f32 %v376, %v665
        %v1177 = vmul.f32 %v377, %v669
        %v1178 = vmul.f32 %v378, %v673
        %v1179 = vmul.f32 %v379, %v677
        %v1180 = vmul.f32 %v380, %v681
        %v1181 = vmul.f32 %v381, %v685
        %v1182 = vmul.f32 %v382, %v689
        %v1183 = vmul.f32 %v383, %v693
        %v1184 = vmul.f32 %v384, %v697
        %v1185 = vmul.f32 %v385, %v701
        %v1186 = vmul.f32 %v386, %v705
        %v1187 = vmul.f32 %v387, %v709
        %v1188 = vmul.f32 %v388, %v713
        %v1189 = vmul.f32 %v389, %v717
        %v1190 = vmul.f32 %v390, %v721
        %v1191 = vmul.f32 %v391, %v725
        %v1192 = vmul.f32 %v392, %v729
        %v1193 = vmul.f32 %v393, %v733
        %v1194 = vmul.f32 %v394, %v737
        %v1195 = vmul.f32 %v395, %v741
        %v1196 = vmul.f32 %v396, %v745
        %v1197 = vmul.f32 %v397, %v749
        %v1198 = vmul.f32 %v398, %v753
        %v1199 = vmul.f32 %v399, %v757
        %v1200 = vmul.f32 %v400, %v761
        %v1201 = vmul.f32 %v401, %v765
        %v1202 = vmul.f32 %v402, %v769
        %v1203 = vmul.f32 %v403, %v773
        %v1204 = vmul.f32 %v404, %v777
        %v1205 = vmul.f32 %v405, %v781
        %v1206 = vmul.f32 %v406, %v785
        %v1207 = vmul.f32 %v407, %v789
        %v1208 = vmul.f32 %v408, %v793
        %v1209 = vmul.f32 %v409, %v797
        %v1210 = vmul.f32 %v410, %v801
        %v1211 = vmul.f32 %v411, %v805
        %v1212 = vmul.f32 %v412, %v809
        %v1213 = vmul.f32 %v413, %v813
        %v1214 = vmul.f32 %v414, %v817
        %v1215 = vmul.f32 %v415, %v821
        %v1216 = vmul.f32 %v416, %v825
        %v1217 = vmul.f32 %v417, %v829
        %v1218 = vmul.f32 %v418, %v833
        %v1219 = vmul.f32 %v419, %v837
        %v1220 = vmul.f32 %v420, %v841
        %v1221 = vmul.f32 %v421, %v845
        %v1222 = vmul.f32 %v422, %v849
        %v1223 = vmul.f32 %v423, %v853
        %v1224 = vmul.f32 %v424, %v857
        %v1225 = vmul.f32 %v425, %v861
        %v1226 = vmul.f32 %v426, %v865
        %v1227 = vmul.f32 %v427, %v869
        %v1228 = vmul.f32 %v428, %v873
        %v1229 = vmul.f32 %v429, %v877
        %v1230 = vmul.f32 %v430, %v881
        %v1231 = vmul.f32 %v431, %v885
        %v1232 = vmul.f32 %v432, %v889
        %v1233 = vmul.f32 %v433, %v893
        %v1234 = vmul.f32 %v434, %v897
        %v1235 = vmul.f32 %v435, %v901
        %v1236 = vmul.f32 %v436, %v905
        %v1237 = vmul.f32 %v437, %v909
        %v1238 = vmul.f32 %v438, %v913
        %v1239 = vmul.f32 %v439, %v917
        %v1240 = vmul.f32 %v440, %v921
        %v1241 = vmul.f32 %v441, %v925
        %v1242 = vmul.f32 %v442, %v929
        %v1243 = vmul.f32 %v443, %v933
        %v1244 = vmul.f32 %v444, %v937
        %v1245 = vmul.f32 %v445, %v941
        %v1246 = vmul.f32 %v446, %v945
        %v1247 = vmul.f32 %v447, %v949
        %v1248 = vmul.f32 %v448, %v953
        %v1249 = vmul.f32 %v449, %v957
        %v1250 = vmul.f32 %v450, %v961
        %v1251 = vmul.f32 %v451, %v965
        %v1252 = vmul.f32 %v452, %v969
        %v1253 = vmul.f32 %v453, %v973
        %v1254 = vmul.f32 %v454, %v977
        %v1255 = vmul.f32 %v455, %v981
        %v1256 = vmul.f32 %v456, %v985
        %v1257 = vmul.f32 %v457, %v989
        %v1258 = vmul.f32 %v458, %v993
        %v1259 = vmul.f32 %v459, %v997
        %v1260 = vmul.f32 %v460, %v1001
        %v1261 = vmul.f32 %v461, %v1005
        %v1262 = vld [vmem:[%s319] sm:$0xff]
        %v1263 = vld [vmem:[%s319 + $0x8] sm:$0xff]
        %v1264 = vld [vmem:[%s319 + $0x10] sm:$0xff]
        %v1265 = vld [vmem:[%s319 + $0x18] sm:$0xff]
        %v1266 = vld [vmem:[%s319 + $0x20] sm:$0xff]
        %v1267 = vld [vmem:[%s319 + $0x28] sm:$0xff]
        %v1268 = vld [vmem:[%s319 + $0x30] sm:$0xff]
        %v1269 = vld [vmem:[%s319 + $0x38] sm:$0xff]
        %v1270 = vld [vmem:[%s319 + $0x40] sm:$0xff]
        %v1271 = vld [vmem:[%s319 + $0x48] sm:$0xff]
        %v1272 = vld [vmem:[%s319 + $0x50] sm:$0xff]
        %v1273 = vld [vmem:[%s319 + $0x58] sm:$0xff]
        %v1274 = vld [vmem:[%s319 + $0x60] sm:$0xff]
        %v1275 = vld [vmem:[%s319 + $0x68] sm:$0xff]
        %v1276 = vld [vmem:[%s319 + $0x70] sm:$0xff]
        %v1277 = vld [vmem:[%s319 + $0x78] sm:$0xff]
        %v1294 = vlaneseq
        %v1295 = vshrl.u32 %v1294, 7
        %v1296 = vsub.s32 0, %v1295
        %v1297 = vrot.slane %v1262, %v1296
        %v1298 = vlaneseq
        %v1299 = vshrl.u32 %v1298, 7
        %v1300 = vsub.s32 1, %v1299
        %v1301 = vrot.slane %v1262, %v1300
        %v1302 = vlaneseq
        %v1303 = vshrl.u32 %v1302, 7
        %v1304 = vsub.s32 2, %v1303
        %v1305 = vrot.slane %v1262, %v1304
        %v1306 = vlaneseq
        %v1307 = vshrl.u32 %v1306, 7
        %v1308 = vsub.s32 3, %v1307
        %v1309 = vrot.slane %v1262, %v1308
        %v1310 = vlaneseq
        %v1311 = vshrl.u32 %v1310, 7
        %v1312 = vsub.s32 4, %v1311
        %v1313 = vrot.slane %v1262, %v1312
        %v1314 = vlaneseq
        %v1315 = vshrl.u32 %v1314, 7
        %v1316 = vsub.s32 5, %v1315
        %v1317 = vrot.slane %v1262, %v1316
        %v1318 = vlaneseq
        %v1319 = vshrl.u32 %v1318, 7
        %v1320 = vsub.s32 6, %v1319
        %v1321 = vrot.slane %v1262, %v1320
        %v1322 = vlaneseq
        %v1323 = vshrl.u32 %v1322, 7
        %v1324 = vsub.s32 7, %v1323
        %v1325 = vrot.slane %v1262, %v1324
        %v1326 = vlaneseq
        %v1327 = vshrl.u32 %v1326, 7
        %v1328 = vsub.s32 0, %v1327
        %v1329 = vrot.slane %v1263, %v1328
        %v1330 = vlaneseq
        %v1331 = vshrl.u32 %v1330, 7
        %v1332 = vsub.s32 1, %v1331
        %v1333 = vrot.slane %v1263, %v1332
        %v1334 = vlaneseq
        %v1335 = vshrl.u32 %v1334, 7
        %v1336 = vsub.s32 2, %v1335
        %v1337 = vrot.slane %v1263, %v1336
        %v1338 = vlaneseq
        %v1339 = vshrl.u32 %v1338, 7
        %v1340 = vsub.s32 3, %v1339
        %v1341 = vrot.slane %v1263, %v1340
        %v1342 = vlaneseq
        %v1343 = vshrl.u32 %v1342, 7
        %v1344 = vsub.s32 4, %v1343
        %v1345 = vrot.slane %v1263, %v1344
        %v1346 = vlaneseq
        %v1347 = vshrl.u32 %v1346, 7
        %v1348 = vsub.s32 5, %v1347
        %v1349 = vrot.slane %v1263, %v1348
        %v1350 = vlaneseq
        %v1351 = vshrl.u32 %v1350, 7
        %v1352 = vsub.s32 6, %v1351
        %v1353 = vrot.slane %v1263, %v1352
        %v1354 = vlaneseq
        %v1355 = vshrl.u32 %v1354, 7
        %v1356 = vsub.s32 7, %v1355
        %v1357 = vrot.slane %v1263, %v1356
        %v1358 = vlaneseq
        %v1359 = vshrl.u32 %v1358, 7
        %v1360 = vsub.s32 0, %v1359
        %v1361 = vrot.slane %v1264, %v1360
        %v1362 = vlaneseq
        %v1363 = vshrl.u32 %v1362, 7
        %v1364 = vsub.s32 1, %v1363
        %v1365 = vrot.slane %v1264, %v1364
        %v1366 = vlaneseq
        %v1367 = vshrl.u32 %v1366, 7
        %v1368 = vsub.s32 2, %v1367
        %v1369 = vrot.slane %v1264, %v1368
        %v1370 = vlaneseq
        %v1371 = vshrl.u32 %v1370, 7
        %v1372 = vsub.s32 3, %v1371
        %v1373 = vrot.slane %v1264, %v1372
        %v1374 = vlaneseq
        %v1375 = vshrl.u32 %v1374, 7
        %v1376 = vsub.s32 4, %v1375
        %v1377 = vrot.slane %v1264, %v1376
        %v1378 = vlaneseq
        %v1379 = vshrl.u32 %v1378, 7
        %v1380 = vsub.s32 5, %v1379
        %v1381 = vrot.slane %v1264, %v1380
        %v1382 = vlaneseq
        %v1383 = vshrl.u32 %v1382, 7
        %v1384 = vsub.s32 6, %v1383
        %v1385 = vrot.slane %v1264, %v1384
        %v1386 = vlaneseq
        %v1387 = vshrl.u32 %v1386, 7
        %v1388 = vsub.s32 7, %v1387
        %v1389 = vrot.slane %v1264, %v1388
        %v1390 = vlaneseq
        %v1391 = vshrl.u32 %v1390, 7
        %v1392 = vsub.s32 0, %v1391
        %v1393 = vrot.slane %v1265, %v1392
        %v1394 = vlaneseq
        %v1395 = vshrl.u32 %v1394, 7
        %v1396 = vsub.s32 1, %v1395
        %v1397 = vrot.slane %v1265, %v1396
        %v1398 = vlaneseq
        %v1399 = vshrl.u32 %v1398, 7
        %v1400 = vsub.s32 2, %v1399
        %v1401 = vrot.slane %v1265, %v1400
        %v1402 = vlaneseq
        %v1403 = vshrl.u32 %v1402, 7
        %v1404 = vsub.s32 3, %v1403
        %v1405 = vrot.slane %v1265, %v1404
        %v1406 = vlaneseq
        %v1407 = vshrl.u32 %v1406, 7
        %v1408 = vsub.s32 4, %v1407
        %v1409 = vrot.slane %v1265, %v1408
        %v1410 = vlaneseq
        %v1411 = vshrl.u32 %v1410, 7
        %v1412 = vsub.s32 5, %v1411
        %v1413 = vrot.slane %v1265, %v1412
        %v1414 = vlaneseq
        %v1415 = vshrl.u32 %v1414, 7
        %v1416 = vsub.s32 6, %v1415
        %v1417 = vrot.slane %v1265, %v1416
        %v1418 = vlaneseq
        %v1419 = vshrl.u32 %v1418, 7
        %v1420 = vsub.s32 7, %v1419
        %v1421 = vrot.slane %v1265, %v1420
        %v1422 = vlaneseq
        %v1423 = vshrl.u32 %v1422, 7
        %v1424 = vsub.s32 0, %v1423
        %v1425 = vrot.slane %v1266, %v1424
        %v1426 = vlaneseq
        %v1427 = vshrl.u32 %v1426, 7
        %v1428 = vsub.s32 1, %v1427
        %v1429 = vrot.slane %v1266, %v1428
        %v1430 = vlaneseq
        %v1431 = vshrl.u32 %v1430, 7
        %v1432 = vsub.s32 2, %v1431
        %v1433 = vrot.slane %v1266, %v1432
        %v1434 = vlaneseq
        %v1435 = vshrl.u32 %v1434, 7
        %v1436 = vsub.s32 3, %v1435
        %v1437 = vrot.slane %v1266, %v1436
        %v1438 = vlaneseq
        %v1439 = vshrl.u32 %v1438, 7
        %v1440 = vsub.s32 4, %v1439
        %v1441 = vrot.slane %v1266, %v1440
        %v1442 = vlaneseq
        %v1443 = vshrl.u32 %v1442, 7
        %v1444 = vsub.s32 5, %v1443
        %v1445 = vrot.slane %v1266, %v1444
        %v1446 = vlaneseq
        %v1447 = vshrl.u32 %v1446, 7
        %v1448 = vsub.s32 6, %v1447
        %v1449 = vrot.slane %v1266, %v1448
        %v1450 = vlaneseq
        %v1451 = vshrl.u32 %v1450, 7
        %v1452 = vsub.s32 7, %v1451
        %v1453 = vrot.slane %v1266, %v1452
        %v1454 = vlaneseq
        %v1455 = vshrl.u32 %v1454, 7
        %v1456 = vsub.s32 0, %v1455
        %v1457 = vrot.slane %v1267, %v1456
        %v1458 = vlaneseq
        %v1459 = vshrl.u32 %v1458, 7
        %v1460 = vsub.s32 1, %v1459
        %v1461 = vrot.slane %v1267, %v1460
        %v1462 = vlaneseq
        %v1463 = vshrl.u32 %v1462, 7
        %v1464 = vsub.s32 2, %v1463
        %v1465 = vrot.slane %v1267, %v1464
        %v1466 = vlaneseq
        %v1467 = vshrl.u32 %v1466, 7
        %v1468 = vsub.s32 3, %v1467
        %v1469 = vrot.slane %v1267, %v1468
        %v1470 = vlaneseq
        %v1471 = vshrl.u32 %v1470, 7
        %v1472 = vsub.s32 4, %v1471
        %v1473 = vrot.slane %v1267, %v1472
        %v1474 = vlaneseq
        %v1475 = vshrl.u32 %v1474, 7
        %v1476 = vsub.s32 5, %v1475
        %v1477 = vrot.slane %v1267, %v1476
        %v1478 = vlaneseq
        %v1479 = vshrl.u32 %v1478, 7
        %v1480 = vsub.s32 6, %v1479
        %v1481 = vrot.slane %v1267, %v1480
        %v1482 = vlaneseq
        %v1483 = vshrl.u32 %v1482, 7
        %v1484 = vsub.s32 7, %v1483
        %v1485 = vrot.slane %v1267, %v1484
        %v1486 = vlaneseq
        %v1487 = vshrl.u32 %v1486, 7
        %v1488 = vsub.s32 0, %v1487
        %v1489 = vrot.slane %v1268, %v1488
        %v1490 = vlaneseq
        %v1491 = vshrl.u32 %v1490, 7
        %v1492 = vsub.s32 1, %v1491
        %v1493 = vrot.slane %v1268, %v1492
        %v1494 = vlaneseq
        %v1495 = vshrl.u32 %v1494, 7
        %v1496 = vsub.s32 2, %v1495
        %v1497 = vrot.slane %v1268, %v1496
        %v1498 = vlaneseq
        %v1499 = vshrl.u32 %v1498, 7
        %v1500 = vsub.s32 3, %v1499
        %v1501 = vrot.slane %v1268, %v1500
        %v1502 = vlaneseq
        %v1503 = vshrl.u32 %v1502, 7
        %v1504 = vsub.s32 4, %v1503
        %v1505 = vrot.slane %v1268, %v1504
        %v1506 = vlaneseq
        %v1507 = vshrl.u32 %v1506, 7
        %v1508 = vsub.s32 5, %v1507
        %v1509 = vrot.slane %v1268, %v1508
        %v1510 = vlaneseq
        %v1511 = vshrl.u32 %v1510, 7
        %v1512 = vsub.s32 6, %v1511
        %v1513 = vrot.slane %v1268, %v1512
        %v1514 = vlaneseq
        %v1515 = vshrl.u32 %v1514, 7
        %v1516 = vsub.s32 7, %v1515
        %v1517 = vrot.slane %v1268, %v1516
        %v1518 = vlaneseq
        %v1519 = vshrl.u32 %v1518, 7
        %v1520 = vsub.s32 0, %v1519
        %v1521 = vrot.slane %v1269, %v1520
        %v1522 = vlaneseq
        %v1523 = vshrl.u32 %v1522, 7
        %v1524 = vsub.s32 1, %v1523
        %v1525 = vrot.slane %v1269, %v1524
        %v1526 = vlaneseq
        %v1527 = vshrl.u32 %v1526, 7
        %v1528 = vsub.s32 2, %v1527
        %v1529 = vrot.slane %v1269, %v1528
        %v1530 = vlaneseq
        %v1531 = vshrl.u32 %v1530, 7
        %v1532 = vsub.s32 3, %v1531
        %v1533 = vrot.slane %v1269, %v1532
        %v1534 = vlaneseq
        %v1535 = vshrl.u32 %v1534, 7
        %v1536 = vsub.s32 4, %v1535
        %v1537 = vrot.slane %v1269, %v1536
        %v1538 = vlaneseq
        %v1539 = vshrl.u32 %v1538, 7
        %v1540 = vsub.s32 5, %v1539
        %v1541 = vrot.slane %v1269, %v1540
        %v1542 = vlaneseq
        %v1543 = vshrl.u32 %v1542, 7
        %v1544 = vsub.s32 6, %v1543
        %v1545 = vrot.slane %v1269, %v1544
        %v1546 = vlaneseq
        %v1547 = vshrl.u32 %v1546, 7
        %v1548 = vsub.s32 7, %v1547
        %v1549 = vrot.slane %v1269, %v1548
        %v1550 = vlaneseq
        %v1551 = vshrl.u32 %v1550, 7
        %v1552 = vsub.s32 0, %v1551
        %v1553 = vrot.slane %v1270, %v1552
        %v1554 = vlaneseq
        %v1555 = vshrl.u32 %v1554, 7
        %v1556 = vsub.s32 1, %v1555
        %v1557 = vrot.slane %v1270, %v1556
        %v1558 = vlaneseq
        %v1559 = vshrl.u32 %v1558, 7
        %v1560 = vsub.s32 2, %v1559
        %v1561 = vrot.slane %v1270, %v1560
        %v1562 = vlaneseq
        %v1563 = vshrl.u32 %v1562, 7
        %v1564 = vsub.s32 3, %v1563
        %v1565 = vrot.slane %v1270, %v1564
        %v1566 = vlaneseq
        %v1567 = vshrl.u32 %v1566, 7
        %v1568 = vsub.s32 4, %v1567
        %v1569 = vrot.slane %v1270, %v1568
        %v1570 = vlaneseq
        %v1571 = vshrl.u32 %v1570, 7
        %v1572 = vsub.s32 5, %v1571
        %v1573 = vrot.slane %v1270, %v1572
        %v1574 = vlaneseq
        %v1575 = vshrl.u32 %v1574, 7
        %v1576 = vsub.s32 6, %v1575
        %v1577 = vrot.slane %v1270, %v1576
        %v1578 = vlaneseq
        %v1579 = vshrl.u32 %v1578, 7
        %v1580 = vsub.s32 7, %v1579
        %v1581 = vrot.slane %v1270, %v1580
        %v1582 = vlaneseq
        %v1583 = vshrl.u32 %v1582, 7
        %v1584 = vsub.s32 0, %v1583
        %v1585 = vrot.slane %v1271, %v1584
        %v1586 = vlaneseq
        %v1587 = vshrl.u32 %v1586, 7
        %v1588 = vsub.s32 1, %v1587
        %v1589 = vrot.slane %v1271, %v1588
        %v1590 = vlaneseq
        %v1591 = vshrl.u32 %v1590, 7
        %v1592 = vsub.s32 2, %v1591
        %v1593 = vrot.slane %v1271, %v1592
        %v1594 = vlaneseq
        %v1595 = vshrl.u32 %v1594, 7
        %v1596 = vsub.s32 3, %v1595
        %v1597 = vrot.slane %v1271, %v1596
        %v1598 = vlaneseq
        %v1599 = vshrl.u32 %v1598, 7
        %v1600 = vsub.s32 4, %v1599
        %v1601 = vrot.slane %v1271, %v1600
        %v1602 = vlaneseq
        %v1603 = vshrl.u32 %v1602, 7
        %v1604 = vsub.s32 5, %v1603
        %v1605 = vrot.slane %v1271, %v1604
        %v1606 = vlaneseq
        %v1607 = vshrl.u32 %v1606, 7
        %v1608 = vsub.s32 6, %v1607
        %v1609 = vrot.slane %v1271, %v1608
        %v1610 = vlaneseq
        %v1611 = vshrl.u32 %v1610, 7
        %v1612 = vsub.s32 7, %v1611
        %v1613 = vrot.slane %v1271, %v1612
        %v1614 = vlaneseq
        %v1615 = vshrl.u32 %v1614, 7
        %v1616 = vsub.s32 0, %v1615
        %v1617 = vrot.slane %v1272, %v1616
        %v1618 = vlaneseq
        %v1619 = vshrl.u32 %v1618, 7
        %v1620 = vsub.s32 1, %v1619
        %v1621 = vrot.slane %v1272, %v1620
        %v1622 = vlaneseq
        %v1623 = vshrl.u32 %v1622, 7
        %v1624 = vsub.s32 2, %v1623
        %v1625 = vrot.slane %v1272, %v1624
        %v1626 = vlaneseq
        %v1627 = vshrl.u32 %v1626, 7
        %v1628 = vsub.s32 3, %v1627
        %v1629 = vrot.slane %v1272, %v1628
        %v1630 = vlaneseq
        %v1631 = vshrl.u32 %v1630, 7
        %v1632 = vsub.s32 4, %v1631
        %v1633 = vrot.slane %v1272, %v1632
        %v1634 = vlaneseq
        %v1635 = vshrl.u32 %v1634, 7
        %v1636 = vsub.s32 5, %v1635
        %v1637 = vrot.slane %v1272, %v1636
        %v1638 = vlaneseq
        %v1639 = vshrl.u32 %v1638, 7
        %v1640 = vsub.s32 6, %v1639
        %v1641 = vrot.slane %v1272, %v1640
        %v1642 = vlaneseq
        %v1643 = vshrl.u32 %v1642, 7
        %v1644 = vsub.s32 7, %v1643
        %v1645 = vrot.slane %v1272, %v1644
        %v1646 = vlaneseq
        %v1647 = vshrl.u32 %v1646, 7
        %v1648 = vsub.s32 0, %v1647
        %v1649 = vrot.slane %v1273, %v1648
        %v1650 = vlaneseq
        %v1651 = vshrl.u32 %v1650, 7
        %v1652 = vsub.s32 1, %v1651
        %v1653 = vrot.slane %v1273, %v1652
        %v1654 = vlaneseq
        %v1655 = vshrl.u32 %v1654, 7
        %v1656 = vsub.s32 2, %v1655
        %v1657 = vrot.slane %v1273, %v1656
        %v1658 = vlaneseq
        %v1659 = vshrl.u32 %v1658, 7
        %v1660 = vsub.s32 3, %v1659
        %v1661 = vrot.slane %v1273, %v1660
        %v1662 = vlaneseq
        %v1663 = vshrl.u32 %v1662, 7
        %v1664 = vsub.s32 4, %v1663
        %v1665 = vrot.slane %v1273, %v1664
        %v1666 = vlaneseq
        %v1667 = vshrl.u32 %v1666, 7
        %v1668 = vsub.s32 5, %v1667
        %v1669 = vrot.slane %v1273, %v1668
        %v1670 = vlaneseq
        %v1671 = vshrl.u32 %v1670, 7
        %v1672 = vsub.s32 6, %v1671
        %v1673 = vrot.slane %v1273, %v1672
        %v1674 = vlaneseq
        %v1675 = vshrl.u32 %v1674, 7
        %v1676 = vsub.s32 7, %v1675
        %v1677 = vrot.slane %v1273, %v1676
        %v1678 = vlaneseq
        %v1679 = vshrl.u32 %v1678, 7
        %v1680 = vsub.s32 0, %v1679
        %v1681 = vrot.slane %v1274, %v1680
        %v1682 = vlaneseq
        %v1683 = vshrl.u32 %v1682, 7
        %v1684 = vsub.s32 1, %v1683
        %v1685 = vrot.slane %v1274, %v1684
        %v1686 = vlaneseq
        %v1687 = vshrl.u32 %v1686, 7
        %v1688 = vsub.s32 2, %v1687
        %v1689 = vrot.slane %v1274, %v1688
        %v1690 = vlaneseq
        %v1691 = vshrl.u32 %v1690, 7
        %v1692 = vsub.s32 3, %v1691
        %v1693 = vrot.slane %v1274, %v1692
        %v1694 = vlaneseq
        %v1695 = vshrl.u32 %v1694, 7
        %v1696 = vsub.s32 4, %v1695
        %v1697 = vrot.slane %v1274, %v1696
        %v1698 = vlaneseq
        %v1699 = vshrl.u32 %v1698, 7
        %v1700 = vsub.s32 5, %v1699
        %v1701 = vrot.slane %v1274, %v1700
        %v1702 = vlaneseq
        %v1703 = vshrl.u32 %v1702, 7
        %v1704 = vsub.s32 6, %v1703
        %v1705 = vrot.slane %v1274, %v1704
        %v1706 = vlaneseq
        %v1707 = vshrl.u32 %v1706, 7
        %v1708 = vsub.s32 7, %v1707
        %v1709 = vrot.slane %v1274, %v1708
        %v1710 = vlaneseq
        %v1711 = vshrl.u32 %v1710, 7
        %v1712 = vsub.s32 0, %v1711
        %v1713 = vrot.slane %v1275, %v1712
        %v1714 = vlaneseq
        %v1715 = vshrl.u32 %v1714, 7
        %v1716 = vsub.s32 1, %v1715
        %v1717 = vrot.slane %v1275, %v1716
        %v1718 = vlaneseq
        %v1719 = vshrl.u32 %v1718, 7
        %v1720 = vsub.s32 2, %v1719
        %v1721 = vrot.slane %v1275, %v1720
        %v1722 = vlaneseq
        %v1723 = vshrl.u32 %v1722, 7
        %v1724 = vsub.s32 3, %v1723
        %v1725 = vrot.slane %v1275, %v1724
        %v1726 = vlaneseq
        %v1727 = vshrl.u32 %v1726, 7
        %v1728 = vsub.s32 4, %v1727
        %v1729 = vrot.slane %v1275, %v1728
        %v1730 = vlaneseq
        %v1731 = vshrl.u32 %v1730, 7
        %v1732 = vsub.s32 5, %v1731
        %v1733 = vrot.slane %v1275, %v1732
        %v1734 = vlaneseq
        %v1735 = vshrl.u32 %v1734, 7
        %v1736 = vsub.s32 6, %v1735
        %v1737 = vrot.slane %v1275, %v1736
        %v1738 = vlaneseq
        %v1739 = vshrl.u32 %v1738, 7
        %v1740 = vsub.s32 7, %v1739
        %v1741 = vrot.slane %v1275, %v1740
        %v1742 = vlaneseq
        %v1743 = vshrl.u32 %v1742, 7
        %v1744 = vsub.s32 0, %v1743
        %v1745 = vrot.slane %v1276, %v1744
        %v1746 = vlaneseq
        %v1747 = vshrl.u32 %v1746, 7
        %v1748 = vsub.s32 1, %v1747
        %v1749 = vrot.slane %v1276, %v1748
        %v1750 = vlaneseq
        %v1751 = vshrl.u32 %v1750, 7
        %v1752 = vsub.s32 2, %v1751
        %v1753 = vrot.slane %v1276, %v1752
        %v1754 = vlaneseq
        %v1755 = vshrl.u32 %v1754, 7
        %v1756 = vsub.s32 3, %v1755
        %v1757 = vrot.slane %v1276, %v1756
        %v1758 = vlaneseq
        %v1759 = vshrl.u32 %v1758, 7
        %v1760 = vsub.s32 4, %v1759
        %v1761 = vrot.slane %v1276, %v1760
        %v1762 = vlaneseq
        %v1763 = vshrl.u32 %v1762, 7
        %v1764 = vsub.s32 5, %v1763
        %v1765 = vrot.slane %v1276, %v1764
        %v1766 = vlaneseq
        %v1767 = vshrl.u32 %v1766, 7
        %v1768 = vsub.s32 6, %v1767
        %v1769 = vrot.slane %v1276, %v1768
        %v1770 = vlaneseq
        %v1771 = vshrl.u32 %v1770, 7
        %v1772 = vsub.s32 7, %v1771
        %v1773 = vrot.slane %v1276, %v1772
        %v1774 = vlaneseq
        %v1775 = vshrl.u32 %v1774, 7
        %v1776 = vsub.s32 0, %v1775
        %v1777 = vrot.slane %v1277, %v1776
        %v1778 = vlaneseq
        %v1779 = vshrl.u32 %v1778, 7
        %v1780 = vsub.s32 1, %v1779
        %v1781 = vrot.slane %v1277, %v1780
        %v1782 = vlaneseq
        %v1783 = vshrl.u32 %v1782, 7
        %v1784 = vsub.s32 2, %v1783
        %v1785 = vrot.slane %v1277, %v1784
        %v1786 = vlaneseq
        %v1787 = vshrl.u32 %v1786, 7
        %v1788 = vsub.s32 3, %v1787
        %v1789 = vrot.slane %v1277, %v1788
        %v1790 = vlaneseq
        %v1791 = vshrl.u32 %v1790, 7
        %v1792 = vsub.s32 4, %v1791
        %v1793 = vrot.slane %v1277, %v1792
        %v1794 = vlaneseq
        %v1795 = vshrl.u32 %v1794, 7
        %v1796 = vsub.s32 5, %v1795
        %v1797 = vrot.slane %v1277, %v1796
        %v1798 = vlaneseq
        %v1799 = vshrl.u32 %v1798, 7
        %v1800 = vsub.s32 6, %v1799
        %v1801 = vrot.slane %v1277, %v1800
        %v1802 = vlaneseq
        %v1803 = vshrl.u32 %v1802, 7
        %v1804 = vsub.s32 7, %v1803
        %v1805 = vrot.slane %v1277, %v1804
        %v1934 = vadd.f32 %v1134, %v1297
        %v1935 = vadd.f32 %v1135, %v1301
        %v1936 = vadd.f32 %v1136, %v1305
        %v1937 = vadd.f32 %v1137, %v1309
        %v1938 = vadd.f32 %v1138, %v1313
        %v1939 = vadd.f32 %v1139, %v1317
        %v1940 = vadd.f32 %v1140, %v1321
        %v1941 = vadd.f32 %v1141, %v1325
        %v1942 = vadd.f32 %v1142, %v1329
        %v1943 = vadd.f32 %v1143, %v1333
        %v1944 = vadd.f32 %v1144, %v1337
        %v1945 = vadd.f32 %v1145, %v1341
        %v1946 = vadd.f32 %v1146, %v1345
        %v1947 = vadd.f32 %v1147, %v1349
        %v1948 = vadd.f32 %v1148, %v1353
        %v1949 = vadd.f32 %v1149, %v1357
        %v1950 = vadd.f32 %v1150, %v1361
        %v1951 = vadd.f32 %v1151, %v1365
        %v1952 = vadd.f32 %v1152, %v1369
        %v1953 = vadd.f32 %v1153, %v1373
        %v1954 = vadd.f32 %v1154, %v1377
        %v1955 = vadd.f32 %v1155, %v1381
        %v1956 = vadd.f32 %v1156, %v1385
        %v1957 = vadd.f32 %v1157, %v1389
        %v1958 = vadd.f32 %v1158, %v1393
        %v1959 = vadd.f32 %v1159, %v1397
        %v1960 = vadd.f32 %v1160, %v1401
        %v1961 = vadd.f32 %v1161, %v1405
        %v1962 = vadd.f32 %v1162, %v1409
        %v1963 = vadd.f32 %v1163, %v1413
        %v1964 = vadd.f32 %v1164, %v1417
        %v1965 = vadd.f32 %v1165, %v1421
        %v1966 = vadd.f32 %v1166, %v1425
        %v1967 = vadd.f32 %v1167, %v1429
        %v1968 = vadd.f32 %v1168, %v1433
        %v1969 = vadd.f32 %v1169, %v1437
        %v1970 = vadd.f32 %v1170, %v1441
        %v1971 = vadd.f32 %v1171, %v1445
        %v1972 = vadd.f32 %v1172, %v1449
        %v1973 = vadd.f32 %v1173, %v1453
        %v1974 = vadd.f32 %v1174, %v1457
        %v1975 = vadd.f32 %v1175, %v1461
        %v1976 = vadd.f32 %v1176, %v1465
        %v1977 = vadd.f32 %v1177, %v1469
        %v1978 = vadd.f32 %v1178, %v1473
        %v1979 = vadd.f32 %v1179, %v1477
        %v1980 = vadd.f32 %v1180, %v1481
        %v1981 = vadd.f32 %v1181, %v1485
        %v1982 = vadd.f32 %v1182, %v1489
        %v1983 = vadd.f32 %v1183, %v1493
        %v1984 = vadd.f32 %v1184, %v1497
        %v1985 = vadd.f32 %v1185, %v1501
        %v1986 = vadd.f32 %v1186, %v1505
        %v1987 = vadd.f32 %v1187, %v1509
        %v1988 = vadd.f32 %v1188, %v1513
        %v1989 = vadd.f32 %v1189, %v1517
        %v1990 = vadd.f32 %v1190, %v1521
        %v1991 = vadd.f32 %v1191, %v1525
        %v1992 = vadd.f32 %v1192, %v1529
        %v1993 = vadd.f32 %v1193, %v1533
        %v1994 = vadd.f32 %v1194, %v1537
        %v1995 = vadd.f32 %v1195, %v1541
        %v1996 = vadd.f32 %v1196, %v1545
        %v1997 = vadd.f32 %v1197, %v1549
        %v1998 = vadd.f32 %v1198, %v1553
        %v1999 = vadd.f32 %v1199, %v1557
        %v2000 = vadd.f32 %v1200, %v1561
        %v2001 = vadd.f32 %v1201, %v1565
        %v2002 = vadd.f32 %v1202, %v1569
        %v2003 = vadd.f32 %v1203, %v1573
        %v2004 = vadd.f32 %v1204, %v1577
        %v2005 = vadd.f32 %v1205, %v1581
        %v2006 = vadd.f32 %v1206, %v1585
        %v2007 = vadd.f32 %v1207, %v1589
        %v2008 = vadd.f32 %v1208, %v1593
        %v2009 = vadd.f32 %v1209, %v1597
        %v2010 = vadd.f32 %v1210, %v1601
        %v2011 = vadd.f32 %v1211, %v1605
        %v2012 = vadd.f32 %v1212, %v1609
        %v2013 = vadd.f32 %v1213, %v1613
        %v2014 = vadd.f32 %v1214, %v1617
        %v2015 = vadd.f32 %v1215, %v1621
        %v2016 = vadd.f32 %v1216, %v1625
        %v2017 = vadd.f32 %v1217, %v1629
        %v2018 = vadd.f32 %v1218, %v1633
        %v2019 = vadd.f32 %v1219, %v1637
        %v2020 = vadd.f32 %v1220, %v1641
        %v2021 = vadd.f32 %v1221, %v1645
        %v2022 = vadd.f32 %v1222, %v1649
        %v2023 = vadd.f32 %v1223, %v1653
        %v2024 = vadd.f32 %v1224, %v1657
        %v2025 = vadd.f32 %v1225, %v1661
        %v2026 = vadd.f32 %v1226, %v1665
        %v2027 = vadd.f32 %v1227, %v1669
        %v2028 = vadd.f32 %v1228, %v1673
        %v2029 = vadd.f32 %v1229, %v1677
        %v2030 = vadd.f32 %v1230, %v1681
        %v2031 = vadd.f32 %v1231, %v1685
        %v2032 = vadd.f32 %v1232, %v1689
        %v2033 = vadd.f32 %v1233, %v1693
        %v2034 = vadd.f32 %v1234, %v1697
        %v2035 = vadd.f32 %v1235, %v1701
        %v2036 = vadd.f32 %v1236, %v1705
        %v2037 = vadd.f32 %v1237, %v1709
        %v2038 = vadd.f32 %v1238, %v1713
        %v2039 = vadd.f32 %v1239, %v1717
        %v2040 = vadd.f32 %v1240, %v1721
        %v2041 = vadd.f32 %v1241, %v1725
        %v2042 = vadd.f32 %v1242, %v1729
        %v2043 = vadd.f32 %v1243, %v1733
        %v2044 = vadd.f32 %v1244, %v1737
        %v2045 = vadd.f32 %v1245, %v1741
        %v2046 = vadd.f32 %v1246, %v1745
        %v2047 = vadd.f32 %v1247, %v1749
        %v2048 = vadd.f32 %v1248, %v1753
        %v2049 = vadd.f32 %v1249, %v1757
        %v2050 = vadd.f32 %v1250, %v1761
        %v2051 = vadd.f32 %v1251, %v1765
        %v2052 = vadd.f32 %v1252, %v1769
        %v2053 = vadd.f32 %v1253, %v1773
        %v2054 = vadd.f32 %v1254, %v1777
        %v2055 = vadd.f32 %v1255, %v1781
        %v2056 = vadd.f32 %v1256, %v1785
        %v2057 = vadd.f32 %v1257, %v1789
        %v2058 = vadd.f32 %v1258, %v1793
        %v2059 = vadd.f32 %v1259, %v1797
        %v2060 = vadd.f32 %v1260, %v1801
        %v2061 = vadd.f32 %v1261, %v1805
        %v2062 = vld [vmem:[#allocation2] sm:$0xff]
        %v2063 = vpack.c.bf16 %v1934, %v1934
        %v2064 = vpack.c.bf16 %v1935, %v1935
        %v2065 = vpack.c.bf16 %v1936, %v1936
        %v2066 = vpack.c.bf16 %v1937, %v1937
        %v2067 = vpack.c.bf16 %v1938, %v1938
        %v2068 = vpack.c.bf16 %v1939, %v1939
        %v2069 = vpack.c.bf16 %v1940, %v1940
        %v2070 = vpack.c.bf16 %v1941, %v1941
        %v2071 = vpack.c.bf16 %v1942, %v1942
        %v2072 = vpack.c.bf16 %v1943, %v1943
        %v2073 = vpack.c.bf16 %v1944, %v1944
        %v2074 = vpack.c.bf16 %v1945, %v1945
        %v2075 = vpack.c.bf16 %v1946, %v1946
        %v2076 = vpack.c.bf16 %v1947, %v1947
        %v2077 = vpack.c.bf16 %v1948, %v1948
        %v2078 = vpack.c.bf16 %v1949, %v1949
        %v2079 = vpack.c.bf16 %v1950, %v1950
        %v2080 = vpack.c.bf16 %v1951, %v1951
        %v2081 = vpack.c.bf16 %v1952, %v1952
        %v2082 = vpack.c.bf16 %v1953, %v1953
        %v2083 = vpack.c.bf16 %v1954, %v1954
        %v2084 = vpack.c.bf16 %v1955, %v1955
        %v2085 = vpack.c.bf16 %v1956, %v1956
        %v2086 = vpack.c.bf16 %v1957, %v1957
        %v2087 = vpack.c.bf16 %v1958, %v1958
        %v2088 = vpack.c.bf16 %v1959, %v1959
        %v2089 = vpack.c.bf16 %v1960, %v1960
        %v2090 = vpack.c.bf16 %v1961, %v1961
        %v2091 = vpack.c.bf16 %v1962, %v1962
        %v2092 = vpack.c.bf16 %v1963, %v1963
        %v2093 = vpack.c.bf16 %v1964, %v1964
        %v2094 = vpack.c.bf16 %v1965, %v1965
        %v2095 = vpack.c.bf16 %v1966, %v1966
        %v2096 = vpack.c.bf16 %v1967, %v1967
        %v2097 = vpack.c.bf16 %v1968, %v1968
        %v2098 = vpack.c.bf16 %v1969, %v1969
        %v2099 = vpack.c.bf16 %v1970, %v1970
        %v2100 = vpack.c.bf16 %v1971, %v1971
        %v2101 = vpack.c.bf16 %v1972, %v1972
        %v2102 = vpack.c.bf16 %v1973, %v1973
        %v2103 = vpack.c.bf16 %v1974, %v1974
        %v2104 = vpack.c.bf16 %v1975, %v1975
        %v2105 = vpack.c.bf16 %v1976, %v1976
        %v2106 = vpack.c.bf16 %v1977, %v1977
        %v2107 = vpack.c.bf16 %v1978, %v1978
        %v2108 = vpack.c.bf16 %v1979, %v1979
        %v2109 = vpack.c.bf16 %v1980, %v1980
        %v2110 = vpack.c.bf16 %v1981, %v1981
        %v2111 = vpack.c.bf16 %v1982, %v1982
        %v2112 = vpack.c.bf16 %v1983, %v1983
        %v2113 = vpack.c.bf16 %v1984, %v1984
        %v2114 = vpack.c.bf16 %v1985, %v1985
        %v2115 = vpack.c.bf16 %v1986, %v1986
        %v2116 = vpack.c.bf16 %v1987, %v1987
        %v2117 = vpack.c.bf16 %v1988, %v1988
        %v2118 = vpack.c.bf16 %v1989, %v1989
        %v2119 = vpack.c.bf16 %v1990, %v1990
        %v2120 = vpack.c.bf16 %v1991, %v1991
        %v2121 = vpack.c.bf16 %v1992, %v1992
        %v2122 = vpack.c.bf16 %v1993, %v1993
        %v2123 = vpack.c.bf16 %v1994, %v1994
        %v2124 = vpack.c.bf16 %v1995, %v1995
        %v2125 = vpack.c.bf16 %v1996, %v1996
        %v2126 = vpack.c.bf16 %v1997, %v1997
        %v2127 = vpack.c.bf16 %v1998, %v1998
        %v2128 = vpack.c.bf16 %v1999, %v1999
        %v2129 = vpack.c.bf16 %v2000, %v2000
        %v2130 = vpack.c.bf16 %v2001, %v2001
        %v2131 = vpack.c.bf16 %v2002, %v2002
        %v2132 = vpack.c.bf16 %v2003, %v2003
        %v2133 = vpack.c.bf16 %v2004, %v2004
        %v2134 = vpack.c.bf16 %v2005, %v2005
        %v2135 = vpack.c.bf16 %v2006, %v2006
        %v2136 = vpack.c.bf16 %v2007, %v2007
        %v2137 = vpack.c.bf16 %v2008, %v2008
        %v2138 = vpack.c.bf16 %v2009, %v2009
        %v2139 = vpack.c.bf16 %v2010, %v2010
        %v2140 = vpack.c.bf16 %v2011, %v2011
        %v2141 = vpack.c.bf16 %v2012, %v2012
        %v2142 = vpack.c.bf16 %v2013, %v2013
        %v2143 = vpack.c.bf16 %v2014, %v2014
        %v2144 = vpack.c.bf16 %v2015, %v2015
        %v2145 = vpack.c.bf16 %v2016, %v2016
        %v2146 = vpack.c.bf16 %v2017, %v2017
        %v2147 = vpack.c.bf16 %v2018, %v2018
        %v2148 = vpack.c.bf16 %v2019, %v2019
        %v2149 = vpack.c.bf16 %v2020, %v2020
        %v2150 = vpack.c.bf16 %v2021, %v2021
        %v2151 = vpack.c.bf16 %v2022, %v2022
        %v2152 = vpack.c.bf16 %v2023, %v2023
        %v2153 = vpack.c.bf16 %v2024, %v2024
        %v2154 = vpack.c.bf16 %v2025, %v2025
        %v2155 = vpack.c.bf16 %v2026, %v2026
        %v2156 = vpack.c.bf16 %v2027, %v2027
        %v2157 = vpack.c.bf16 %v2028, %v2028
        %v2158 = vpack.c.bf16 %v2029, %v2029
        %v2159 = vpack.c.bf16 %v2030, %v2030
        %v2160 = vpack.c.bf16 %v2031, %v2031
        %v2161 = vpack.c.bf16 %v2032, %v2032
        %v2162 = vpack.c.bf16 %v2033, %v2033
        %v2163 = vpack.c.bf16 %v2034, %v2034
        %v2164 = vpack.c.bf16 %v2035, %v2035
        %v2165 = vpack.c.bf16 %v2036, %v2036
        %v2166 = vpack.c.bf16 %v2037, %v2037
        %v2167 = vpack.c.bf16 %v2038, %v2038
        %v2168 = vpack.c.bf16 %v2039, %v2039
        %v2169 = vpack.c.bf16 %v2040, %v2040
        %v2170 = vpack.c.bf16 %v2041, %v2041
        %v2171 = vpack.c.bf16 %v2042, %v2042
        %v2172 = vpack.c.bf16 %v2043, %v2043
        %v2173 = vpack.c.bf16 %v2044, %v2044
        %v2174 = vpack.c.bf16 %v2045, %v2045
        %v2175 = vpack.c.bf16 %v2046, %v2046
        %v2176 = vpack.c.bf16 %v2047, %v2047
        %v2177 = vpack.c.bf16 %v2048, %v2048
        %v2178 = vpack.c.bf16 %v2049, %v2049
        %v2179 = vpack.c.bf16 %v2050, %v2050
        %v2180 = vpack.c.bf16 %v2051, %v2051
        %v2181 = vpack.c.bf16 %v2052, %v2052
        %v2182 = vpack.c.bf16 %v2053, %v2053
        %v2183 = vpack.c.bf16 %v2054, %v2054
        %v2184 = vpack.c.bf16 %v2055, %v2055
        %v2185 = vpack.c.bf16 %v2056, %v2056
        %v2186 = vpack.c.bf16 %v2057, %v2057
        %v2187 = vpack.c.bf16 %v2058, %v2058
        %v2188 = vpack.c.bf16 %v2059, %v2059
        %v2189 = vpack.c.bf16 %v2060, %v2060
        %v2190 = vpack.c.bf16 %v2061, %v2061
        %v2191 = vld [vmem:[%s325] sm:$0xf]
        %v2192 = vld [vmem:[%s325 + $0x4] sm:$0xf]
        %v2193 = vld [vmem:[%s325 + $0x8] sm:$0xf]
        %v2194 = vld [vmem:[%s325 + $0xc] sm:$0xf]
        %v2195 = vld [vmem:[%s325 + $0x10] sm:$0xf]
        %v2196 = vld [vmem:[%s325 + $0x14] sm:$0xf]
        %v2197 = vld [vmem:[%s325 + $0x18] sm:$0xf]
        %v2198 = vld [vmem:[%s325 + $0x1c] sm:$0xf]
        %v2199 = vld [vmem:[%s325 + $0x20] sm:$0xf]
        %v2200 = vld [vmem:[%s325 + $0x24] sm:$0xf]
        %v2201 = vld [vmem:[%s325 + $0x28] sm:$0xf]
        %v2202 = vld [vmem:[%s325 + $0x2c] sm:$0xf]
        %v2203 = vld [vmem:[%s325 + $0x30] sm:$0xf]
        %v2204 = vld [vmem:[%s325 + $0x34] sm:$0xf]
        %v2205 = vld [vmem:[%s325 + $0x38] sm:$0xf]
        %v2206 = vld [vmem:[%s325 + $0x3c] sm:$0xf]
        %v2207 = vld [vmem:[%s325 + $0x40] sm:$0xf]
        %v2208 = vld [vmem:[%s325 + $0x44] sm:$0xf]
        %v2209 = vld [vmem:[%s325 + $0x48] sm:$0xf]
        %v2210 = vld [vmem:[%s325 + $0x4c] sm:$0xf]
        %v2211 = vld [vmem:[%s325 + $0x50] sm:$0xf]
        %v2212 = vld [vmem:[%s325 + $0x54] sm:$0xf]
        %v2213 = vld [vmem:[%s325 + $0x58] sm:$0xf]
        %v2214 = vld [vmem:[%s325 + $0x5c] sm:$0xf]
        %v2215 = vld [vmem:[%s325 + $0x60] sm:$0xf]
        %v2216 = vld [vmem:[%s325 + $0x64] sm:$0xf]
        %v2217 = vld [vmem:[%s325 + $0x68] sm:$0xf]
        %v2218 = vld [vmem:[%s325 + $0x6c] sm:$0xf]
        %v2219 = vld [vmem:[%s325 + $0x70] sm:$0xf]
        %v2220 = vld [vmem:[%s325 + $0x74] sm:$0xf]
        %v2221 = vld [vmem:[%s325 + $0x78] sm:$0xf]
        %v2222 = vld [vmem:[%s325 + $0x7c] sm:$0xf]
        %v2223 = vld [vmem:[%s325 + $0x80] sm:$0xf]
        %v2224 = vld [vmem:[%s325 + $0x84] sm:$0xf]
        %v2225 = vld [vmem:[%s325 + $0x88] sm:$0xf]
        %v2226 = vld [vmem:[%s325 + $0x8c] sm:$0xf]
        %v2227 = vld [vmem:[%s325 + $0x90] sm:$0xf]
        %v2228 = vld [vmem:[%s325 + $0x94] sm:$0xf]
        %v2229 = vld [vmem:[%s325 + $0x98] sm:$0xf]
        %v2230 = vld [vmem:[%s325 + $0x9c] sm:$0xf]
        %v2231 = vld [vmem:[%s325 + $0xa0] sm:$0xf]
        %v2232 = vld [vmem:[%s325 + $0xa4] sm:$0xf]
        %v2233 = vld [vmem:[%s325 + $0xa8] sm:$0xf]
        %v2234 = vld [vmem:[%s325 + $0xac] sm:$0xf]
        %v2235 = vld [vmem:[%s325 + $0xb0] sm:$0xf]
        %v2236 = vld [vmem:[%s325 + $0xb4] sm:$0xf]
        %v2237 = vld [vmem:[%s325 + $0xb8] sm:$0xf]
        %v2238 = vld [vmem:[%s325 + $0xbc] sm:$0xf]
        %v2239 = vld [vmem:[%s325 + $0xc0] sm:$0xf]
        %v2240 = vld [vmem:[%s325 + $0xc4] sm:$0xf]
        %v2241 = vld [vmem:[%s325 + $0xc8] sm:$0xf]
        %v2242 = vld [vmem:[%s325 + $0xcc] sm:$0xf]
        %v2243 = vld [vmem:[%s325 + $0xd0] sm:$0xf]
        %v2244 = vld [vmem:[%s325 + $0xd4] sm:$0xf]
        %v2245 = vld [vmem:[%s325 + $0xd8] sm:$0xf]
        %v2246 = vld [vmem:[%s325 + $0xdc] sm:$0xf]
        %v2247 = vld [vmem:[%s325 + $0xe0] sm:$0xf]
        %v2248 = vld [vmem:[%s325 + $0xe4] sm:$0xf]
        %v2249 = vld [vmem:[%s325 + $0xe8] sm:$0xf]
        %v2250 = vld [vmem:[%s325 + $0xec] sm:$0xf]
        %v2251 = vld [vmem:[%s325 + $0xf0] sm:$0xf]
        %v2252 = vld [vmem:[%s325 + $0xf4] sm:$0xf]
        %v2253 = vld [vmem:[%s325 + $0xf8] sm:$0xf]
        %v2254 = vld [vmem:[%s325 + $0xfc] sm:$0xf]
        %v2255 = vld [vmem:[%s325 + $0x100] sm:$0xf]
        %v2256 = vld [vmem:[%s325 + $0x104] sm:$0xf]
        %v2257 = vld [vmem:[%s325 + $0x108] sm:$0xf]
        %v2258 = vld [vmem:[%s325 + $0x10c] sm:$0xf]
        %v2259 = vld [vmem:[%s325 + $0x110] sm:$0xf]
        %v2260 = vld [vmem:[%s325 + $0x114] sm:$0xf]
        %v2261 = vld [vmem:[%s325 + $0x118] sm:$0xf]
        %v2262 = vld [vmem:[%s325 + $0x11c] sm:$0xf]
        %v2263 = vld [vmem:[%s325 + $0x120] sm:$0xf]
        %v2264 = vld [vmem:[%s325 + $0x124] sm:$0xf]
        %v2265 = vld [vmem:[%s325 + $0x128] sm:$0xf]
        %v2266 = vld [vmem:[%s325 + $0x12c] sm:$0xf]
        %v2267 = vld [vmem:[%s325 + $0x130] sm:$0xf]
        %v2268 = vld [vmem:[%s325 + $0x134] sm:$0xf]
        %v2269 = vld [vmem:[%s325 + $0x138] sm:$0xf]
        %v2270 = vld [vmem:[%s325 + $0x13c] sm:$0xf]
        %v2271 = vld [vmem:[%s325 + $0x140] sm:$0xf]
        %v2272 = vld [vmem:[%s325 + $0x144] sm:$0xf]
        %v2273 = vld [vmem:[%s325 + $0x148] sm:$0xf]
        %v2274 = vld [vmem:[%s325 + $0x14c] sm:$0xf]
        %v2275 = vld [vmem:[%s325 + $0x150] sm:$0xf]
        %v2276 = vld [vmem:[%s325 + $0x154] sm:$0xf]
        %v2277 = vld [vmem:[%s325 + $0x158] sm:$0xf]
        %v2278 = vld [vmem:[%s325 + $0x15c] sm:$0xf]
        %v2279 = vld [vmem:[%s325 + $0x160] sm:$0xf]
        %v2280 = vld [vmem:[%s325 + $0x164] sm:$0xf]
        %v2281 = vld [vmem:[%s325 + $0x168] sm:$0xf]
        %v2282 = vld [vmem:[%s325 + $0x16c] sm:$0xf]
        %v2283 = vld [vmem:[%s325 + $0x170] sm:$0xf]
        %v2284 = vld [vmem:[%s325 + $0x174] sm:$0xf]
        %v2285 = vld [vmem:[%s325 + $0x178] sm:$0xf]
        %v2286 = vld [vmem:[%s325 + $0x17c] sm:$0xf]
        %v2287 = vld [vmem:[%s325 + $0x180] sm:$0xf]
        %v2288 = vld [vmem:[%s325 + $0x184] sm:$0xf]
        %v2289 = vld [vmem:[%s325 + $0x188] sm:$0xf]
        %v2290 = vld [vmem:[%s325 + $0x18c] sm:$0xf]
        %v2291 = vld [vmem:[%s325 + $0x190] sm:$0xf]
        %v2292 = vld [vmem:[%s325 + $0x194] sm:$0xf]
        %v2293 = vld [vmem:[%s325 + $0x198] sm:$0xf]
        %v2294 = vld [vmem:[%s325 + $0x19c] sm:$0xf]
        %v2295 = vld [vmem:[%s325 + $0x1a0] sm:$0xf]
        %v2296 = vld [vmem:[%s325 + $0x1a4] sm:$0xf]
        %v2297 = vld [vmem:[%s325 + $0x1a8] sm:$0xf]
        %v2298 = vld [vmem:[%s325 + $0x1ac] sm:$0xf]
        %v2299 = vld [vmem:[%s325 + $0x1b0] sm:$0xf]
        %v2300 = vld [vmem:[%s325 + $0x1b4] sm:$0xf]
        %v2301 = vld [vmem:[%s325 + $0x1b8] sm:$0xf]
        %v2302 = vld [vmem:[%s325 + $0x1bc] sm:$0xf]
        %v2303 = vld [vmem:[%s325 + $0x1c0] sm:$0xf]
        %v2304 = vld [vmem:[%s325 + $0x1c4] sm:$0xf]
        %v2305 = vld [vmem:[%s325 + $0x1c8] sm:$0xf]
        %v2306 = vld [vmem:[%s325 + $0x1cc] sm:$0xf]
        %v2307 = vld [vmem:[%s325 + $0x1d0] sm:$0xf]
        %v2308 = vld [vmem:[%s325 + $0x1d4] sm:$0xf]
        %v2309 = vld [vmem:[%s325 + $0x1d8] sm:$0xf]
        %v2310 = vld [vmem:[%s325 + $0x1dc] sm:$0xf]
        %v2311 = vld [vmem:[%s325 + $0x1e0] sm:$0xf]
        %v2312 = vld [vmem:[%s325 + $0x1e4] sm:$0xf]
        %v2313 = vld [vmem:[%s325 + $0x1e8] sm:$0xf]
        %v2314 = vld [vmem:[%s325 + $0x1ec] sm:$0xf]
        %v2315 = vld [vmem:[%s325 + $0x1f0] sm:$0xf]
        %v2316 = vld [vmem:[%s325 + $0x1f4] sm:$0xf]
        %v2317 = vld [vmem:[%s325 + $0x1f8] sm:$0xf]
        %v2318 = vld [vmem:[%s325 + $0x1fc] sm:$0xf]
        %v2319 = vld [vmem:[%s325 + $0x200] sm:$0xf]
        %v2320 = vld [vmem:[%s325 + $0x204] sm:$0xf]
        %v2321 = vld [vmem:[%s325 + $0x208] sm:$0xf]
        %v2322 = vld [vmem:[%s325 + $0x20c] sm:$0xf]
        %v2323 = vld [vmem:[%s325 + $0x210] sm:$0xf]
        %v2324 = vld [vmem:[%s325 + $0x214] sm:$0xf]
        %v2325 = vld [vmem:[%s325 + $0x218] sm:$0xf]
        %v2326 = vld [vmem:[%s325 + $0x21c] sm:$0xf]
        %v2327 = vld [vmem:[%s325 + $0x220] sm:$0xf]
        %v2328 = vld [vmem:[%s325 + $0x224] sm:$0xf]
        %v2329 = vld [vmem:[%s325 + $0x228] sm:$0xf]
        %v2330 = vld [vmem:[%s325 + $0x22c] sm:$0xf]
        %v2331 = vld [vmem:[%s325 + $0x230] sm:$0xf]
        %v2332 = vld [vmem:[%s325 + $0x234] sm:$0xf]
        %v2333 = vld [vmem:[%s325 + $0x238] sm:$0xf]
        %v2334 = vld [vmem:[%s325 + $0x23c] sm:$0xf]
        %v2335 = vld [vmem:[%s325 + $0x240] sm:$0xf]
        %v2336 = vld [vmem:[%s325 + $0x244] sm:$0xf]
        %v2337 = vld [vmem:[%s325 + $0x248] sm:$0xf]
        %v2338 = vld [vmem:[%s325 + $0x24c] sm:$0xf]
        %v2339 = vld [vmem:[%s325 + $0x250] sm:$0xf]
        %v2340 = vld [vmem:[%s325 + $0x254] sm:$0xf]
        %v2341 = vld [vmem:[%s325 + $0x258] sm:$0xf]
        %v2342 = vld [vmem:[%s325 + $0x25c] sm:$0xf]
        %v2343 = vld [vmem:[%s325 + $0x260] sm:$0xf]
        %v2344 = vld [vmem:[%s325 + $0x264] sm:$0xf]
        %v2345 = vld [vmem:[%s325 + $0x268] sm:$0xf]
        %v2346 = vld [vmem:[%s325 + $0x26c] sm:$0xf]
        %v2347 = vld [vmem:[%s325 + $0x270] sm:$0xf]
        %v2348 = vld [vmem:[%s325 + $0x274] sm:$0xf]
        %v2349 = vld [vmem:[%s325 + $0x278] sm:$0xf]
        %v2350 = vld [vmem:[%s325 + $0x27c] sm:$0xf]
        %v2351 = vld [vmem:[%s325 + $0x280] sm:$0xf]
        %v2352 = vld [vmem:[%s325 + $0x284] sm:$0xf]
        %v2353 = vld [vmem:[%s325 + $0x288] sm:$0xf]
        %v2354 = vld [vmem:[%s325 + $0x28c] sm:$0xf]
        %v2355 = vld [vmem:[%s325 + $0x290] sm:$0xf]
        %v2356 = vld [vmem:[%s325 + $0x294] sm:$0xf]
        %v2357 = vld [vmem:[%s325 + $0x298] sm:$0xf]
        %v2358 = vld [vmem:[%s325 + $0x29c] sm:$0xf]
        %v2359 = vld [vmem:[%s325 + $0x2a0] sm:$0xf]
        %v2360 = vld [vmem:[%s325 + $0x2a4] sm:$0xf]
        %v2361 = vld [vmem:[%s325 + $0x2a8] sm:$0xf]
        %v2362 = vld [vmem:[%s325 + $0x2ac] sm:$0xf]
        %v2363 = vld [vmem:[%s325 + $0x2b0] sm:$0xf]
        %v2364 = vld [vmem:[%s325 + $0x2b4] sm:$0xf]
        %v2365 = vld [vmem:[%s325 + $0x2b8] sm:$0xf]
        %v2366 = vld [vmem:[%s325 + $0x2bc] sm:$0xf]
        %v2367 = vld [vmem:[%s325 + $0x2c0] sm:$0xf]
        %v2368 = vld [vmem:[%s325 + $0x2c4] sm:$0xf]
        %v2369 = vld [vmem:[%s325 + $0x2c8] sm:$0xf]
        %v2370 = vld [vmem:[%s325 + $0x2cc] sm:$0xf]
        %v2371 = vld [vmem:[%s325 + $0x2d0] sm:$0xf]
        %v2372 = vld [vmem:[%s325 + $0x2d4] sm:$0xf]
        %v2373 = vld [vmem:[%s325 + $0x2d8] sm:$0xf]
        %v2374 = vld [vmem:[%s325 + $0x2dc] sm:$0xf]
        %v2375 = vld [vmem:[%s325 + $0x2e0] sm:$0xf]
        %v2376 = vld [vmem:[%s325 + $0x2e4] sm:$0xf]
        %v2377 = vld [vmem:[%s325 + $0x2e8] sm:$0xf]
        %v2378 = vld [vmem:[%s325 + $0x2ec] sm:$0xf]
        %v2379 = vld [vmem:[%s325 + $0x2f0] sm:$0xf]
        %v2380 = vld [vmem:[%s325 + $0x2f4] sm:$0xf]
        %v2381 = vld [vmem:[%s325 + $0x2f8] sm:$0xf]
        %v2382 = vld [vmem:[%s325 + $0x2fc] sm:$0xf]
        %v2383 = vld [vmem:[%s325 + $0x300] sm:$0xf]
        %v2384 = vld [vmem:[%s325 + $0x304] sm:$0xf]
        %v2385 = vld [vmem:[%s325 + $0x308] sm:$0xf]
        %v2386 = vld [vmem:[%s325 + $0x30c] sm:$0xf]
        %v2387 = vld [vmem:[%s325 + $0x310] sm:$0xf]
        %v2388 = vld [vmem:[%s325 + $0x314] sm:$0xf]
        %v2389 = vld [vmem:[%s325 + $0x318] sm:$0xf]
        %v2390 = vld [vmem:[%s325 + $0x31c] sm:$0xf]
        %v2391 = vld [vmem:[%s325 + $0x320] sm:$0xf]
        %v2392 = vld [vmem:[%s325 + $0x324] sm:$0xf]
        %v2393 = vld [vmem:[%s325 + $0x328] sm:$0xf]
        %v2394 = vld [vmem:[%s325 + $0x32c] sm:$0xf]
        %v2395 = vld [vmem:[%s325 + $0x330] sm:$0xf]
        %v2396 = vld [vmem:[%s325 + $0x334] sm:$0xf]
        %v2397 = vld [vmem:[%s325 + $0x338] sm:$0xf]
        %v2398 = vld [vmem:[%s325 + $0x33c] sm:$0xf]
        %v2399 = vld [vmem:[%s325 + $0x340] sm:$0xf]
        %v2400 = vld [vmem:[%s325 + $0x344] sm:$0xf]
        %v2401 = vld [vmem:[%s325 + $0x348] sm:$0xf]
        %v2402 = vld [vmem:[%s325 + $0x34c] sm:$0xf]
        %v2403 = vld [vmem:[%s325 + $0x350] sm:$0xf]
        %v2404 = vld [vmem:[%s325 + $0x354] sm:$0xf]
        %v2405 = vld [vmem:[%s325 + $0x358] sm:$0xf]
        %v2406 = vld [vmem:[%s325 + $0x35c] sm:$0xf]
        %v2407 = vld [vmem:[%s325 + $0x360] sm:$0xf]
        %v2408 = vld [vmem:[%s325 + $0x364] sm:$0xf]
        %v2409 = vld [vmem:[%s325 + $0x368] sm:$0xf]
        %v2410 = vld [vmem:[%s325 + $0x36c] sm:$0xf]
        %v2411 = vld [vmem:[%s325 + $0x370] sm:$0xf]
        %v2412 = vld [vmem:[%s325 + $0x374] sm:$0xf]
        %v2413 = vld [vmem:[%s325 + $0x378] sm:$0xf]
        %v2414 = vld [vmem:[%s325 + $0x37c] sm:$0xf]
        %v2415 = vld [vmem:[%s325 + $0x380] sm:$0xf]
        %v2416 = vld [vmem:[%s325 + $0x384] sm:$0xf]
        %v2417 = vld [vmem:[%s325 + $0x388] sm:$0xf]
        %v2418 = vld [vmem:[%s325 + $0x38c] sm:$0xf]
        %v2419 = vld [vmem:[%s325 + $0x390] sm:$0xf]
        %v2420 = vld [vmem:[%s325 + $0x394] sm:$0xf]
        %v2421 = vld [vmem:[%s325 + $0x398] sm:$0xf]
        %v2422 = vld [vmem:[%s325 + $0x39c] sm:$0xf]
        %v2423 = vld [vmem:[%s325 + $0x3a0] sm:$0xf]
        %v2424 = vld [vmem:[%s325 + $0x3a4] sm:$0xf]
        %v2425 = vld [vmem:[%s325 + $0x3a8] sm:$0xf]
        %v2426 = vld [vmem:[%s325 + $0x3ac] sm:$0xf]
        %v2427 = vld [vmem:[%s325 + $0x3b0] sm:$0xf]
        %v2428 = vld [vmem:[%s325 + $0x3b4] sm:$0xf]
        %v2429 = vld [vmem:[%s325 + $0x3b8] sm:$0xf]
        %v2430 = vld [vmem:[%s325 + $0x3bc] sm:$0xf]
        %v2431 = vld [vmem:[%s325 + $0x3c0] sm:$0xf]
        %v2432 = vld [vmem:[%s325 + $0x3c4] sm:$0xf]
        %v2433 = vld [vmem:[%s325 + $0x3c8] sm:$0xf]
        %v2434 = vld [vmem:[%s325 + $0x3cc] sm:$0xf]
        %v2435 = vld [vmem:[%s325 + $0x3d0] sm:$0xf]
        %v2436 = vld [vmem:[%s325 + $0x3d4] sm:$0xf]
        %v2437 = vld [vmem:[%s325 + $0x3d8] sm:$0xf]
        %v2438 = vld [vmem:[%s325 + $0x3dc] sm:$0xf]
        %v2439 = vld [vmem:[%s325 + $0x3e0] sm:$0xf]
        %v2440 = vld [vmem:[%s325 + $0x3e4] sm:$0xf]
        %v2441 = vld [vmem:[%s325 + $0x3e8] sm:$0xf]
        %v2442 = vld [vmem:[%s325 + $0x3ec] sm:$0xf]
        %v2443 = vld [vmem:[%s325 + $0x3f0] sm:$0xf]
        %v2444 = vld [vmem:[%s325 + $0x3f4] sm:$0xf]
        %v2445 = vld [vmem:[%s325 + $0x3f8] sm:$0xf]
        %v2446 = vld [vmem:[%s325 + $0x3fc] sm:$0xf]
        %v2447 = vld [vmem:[%s325 + $0x400] sm:$0xf]
        %v2448 = vld [vmem:[%s325 + $0x404] sm:$0xf]
        %v2449 = vld [vmem:[%s325 + $0x408] sm:$0xf]
        %v2450 = vld [vmem:[%s325 + $0x40c] sm:$0xf]
        %v2451 = vld [vmem:[%s325 + $0x410] sm:$0xf]
        %v2452 = vld [vmem:[%s325 + $0x414] sm:$0xf]
        %v2453 = vld [vmem:[%s325 + $0x418] sm:$0xf]
        %v2454 = vld [vmem:[%s325 + $0x41c] sm:$0xf]
        %v2455 = vld [vmem:[%s325 + $0x420] sm:$0xf]
        %v2456 = vld [vmem:[%s325 + $0x424] sm:$0xf]
        %v2457 = vld [vmem:[%s325 + $0x428] sm:$0xf]
        %v2458 = vld [vmem:[%s325 + $0x42c] sm:$0xf]
        %v2459 = vld [vmem:[%s325 + $0x430] sm:$0xf]
        %v2460 = vld [vmem:[%s325 + $0x434] sm:$0xf]
        %v2461 = vld [vmem:[%s325 + $0x438] sm:$0xf]
        %v2462 = vld [vmem:[%s325 + $0x43c] sm:$0xf]
        %v2463 = vld [vmem:[%s325 + $0x440] sm:$0xf]
        %v2464 = vld [vmem:[%s325 + $0x444] sm:$0xf]
        %v2465 = vld [vmem:[%s325 + $0x448] sm:$0xf]
        %v2466 = vld [vmem:[%s325 + $0x44c] sm:$0xf]
        %v2467 = vld [vmem:[%s325 + $0x450] sm:$0xf]
        %v2468 = vld [vmem:[%s325 + $0x454] sm:$0xf]
        %v2469 = vld [vmem:[%s325 + $0x458] sm:$0xf]
        %v2470 = vld [vmem:[%s325 + $0x45c] sm:$0xf]
        %v2471 = vld [vmem:[%s325 + $0x460] sm:$0xf]
        %v2472 = vld [vmem:[%s325 + $0x464] sm:$0xf]
        %v2473 = vld [vmem:[%s325 + $0x468] sm:$0xf]
        %v2474 = vld [vmem:[%s325 + $0x46c] sm:$0xf]
        %v2475 = vld [vmem:[%s325 + $0x470] sm:$0xf]
        %v2476 = vld [vmem:[%s325 + $0x474] sm:$0xf]
        %v2477 = vld [vmem:[%s325 + $0x478] sm:$0xf]
        %v2478 = vld [vmem:[%s325 + $0x47c] sm:$0xf]
        %v2479 = vld [vmem:[%s325 + $0x480] sm:$0xf]
        %v2480 = vld [vmem:[%s325 + $0x484] sm:$0xf]
        %v2481 = vld [vmem:[%s325 + $0x488] sm:$0xf]
        %v2482 = vld [vmem:[%s325 + $0x48c] sm:$0xf]
        %v2483 = vld [vmem:[%s325 + $0x490] sm:$0xf]
        %v2484 = vld [vmem:[%s325 + $0x494] sm:$0xf]
        %v2485 = vld [vmem:[%s325 + $0x498] sm:$0xf]
        %v2486 = vld [vmem:[%s325 + $0x49c] sm:$0xf]
        %v2487 = vld [vmem:[%s325 + $0x4a0] sm:$0xf]
        %v2488 = vld [vmem:[%s325 + $0x4a4] sm:$0xf]
        %v2489 = vld [vmem:[%s325 + $0x4a8] sm:$0xf]
        %v2490 = vld [vmem:[%s325 + $0x4ac] sm:$0xf]
        %v2491 = vld [vmem:[%s325 + $0x4b0] sm:$0xf]
        %v2492 = vld [vmem:[%s325 + $0x4b4] sm:$0xf]
        %v2493 = vld [vmem:[%s325 + $0x4b8] sm:$0xf]
        %v2494 = vld [vmem:[%s325 + $0x4bc] sm:$0xf]
        %v2495 = vld [vmem:[%s325 + $0x4c0] sm:$0xf]
        %v2496 = vld [vmem:[%s325 + $0x4c4] sm:$0xf]
        %v2497 = vld [vmem:[%s325 + $0x4c8] sm:$0xf]
        %v2498 = vld [vmem:[%s325 + $0x4cc] sm:$0xf]
        %v2499 = vld [vmem:[%s325 + $0x4d0] sm:$0xf]
        %v2500 = vld [vmem:[%s325 + $0x4d4] sm:$0xf]
        %v2501 = vld [vmem:[%s325 + $0x4d8] sm:$0xf]
        %v2502 = vld [vmem:[%s325 + $0x4dc] sm:$0xf]
        %v2503 = vld [vmem:[%s325 + $0x4e0] sm:$0xf]
        %v2504 = vld [vmem:[%s325 + $0x4e4] sm:$0xf]
        %v2505 = vld [vmem:[%s325 + $0x4e8] sm:$0xf]
        %v2506 = vld [vmem:[%s325 + $0x4ec] sm:$0xf]
        %v2507 = vld [vmem:[%s325 + $0x4f0] sm:$0xf]
        %v2508 = vld [vmem:[%s325 + $0x4f4] sm:$0xf]
        %v2509 = vld [vmem:[%s325 + $0x4f8] sm:$0xf]
        %v2510 = vld [vmem:[%s325 + $0x4fc] sm:$0xf]
        %v2511 = vld [vmem:[%s325 + $0x500] sm:$0xf]
        %v2512 = vld [vmem:[%s325 + $0x504] sm:$0xf]
        %v2513 = vld [vmem:[%s325 + $0x508] sm:$0xf]
        %v2514 = vld [vmem:[%s325 + $0x50c] sm:$0xf]
        %v2515 = vld [vmem:[%s325 + $0x510] sm:$0xf]
        %v2516 = vld [vmem:[%s325 + $0x514] sm:$0xf]
        %v2517 = vld [vmem:[%s325 + $0x518] sm:$0xf]
        %v2518 = vld [vmem:[%s325 + $0x51c] sm:$0xf]
        %v2519 = vld [vmem:[%s325 + $0x520] sm:$0xf]
        %v2520 = vld [vmem:[%s325 + $0x524] sm:$0xf]
        %v2521 = vld [vmem:[%s325 + $0x528] sm:$0xf]
        %v2522 = vld [vmem:[%s325 + $0x52c] sm:$0xf]
        %v2523 = vld [vmem:[%s325 + $0x530] sm:$0xf]
        %v2524 = vld [vmem:[%s325 + $0x534] sm:$0xf]
        %v2525 = vld [vmem:[%s325 + $0x538] sm:$0xf]
        %v2526 = vld [vmem:[%s325 + $0x53c] sm:$0xf]
        %v2527 = vld [vmem:[%s325 + $0x540] sm:$0xf]
        %v2528 = vld [vmem:[%s325 + $0x544] sm:$0xf]
        %v2529 = vld [vmem:[%s325 + $0x548] sm:$0xf]
        %v2530 = vld [vmem:[%s325 + $0x54c] sm:$0xf]
        %v2531 = vld [vmem:[%s325 + $0x550] sm:$0xf]
        %v2532 = vld [vmem:[%s325 + $0x554] sm:$0xf]
        %v2533 = vld [vmem:[%s325 + $0x558] sm:$0xf]
        %v2534 = vld [vmem:[%s325 + $0x55c] sm:$0xf]
        %v2535 = vld [vmem:[%s325 + $0x560] sm:$0xf]
        %v2536 = vld [vmem:[%s325 + $0x564] sm:$0xf]
        %v2537 = vld [vmem:[%s325 + $0x568] sm:$0xf]
        %v2538 = vld [vmem:[%s325 + $0x56c] sm:$0xf]
        %v2539 = vld [vmem:[%s325 + $0x570] sm:$0xf]
        %v2540 = vld [vmem:[%s325 + $0x574] sm:$0xf]
        %v2541 = vld [vmem:[%s325 + $0x578] sm:$0xf]
        %v2542 = vld [vmem:[%s325 + $0x57c] sm:$0xf]
        %v2543 = vld [vmem:[%s325 + $0x580] sm:$0xf]
        %v2544 = vld [vmem:[%s325 + $0x584] sm:$0xf]
        %v2545 = vld [vmem:[%s325 + $0x588] sm:$0xf]
        %v2546 = vld [vmem:[%s325 + $0x58c] sm:$0xf]
        %v2547 = vld [vmem:[%s325 + $0x590] sm:$0xf]
        %v2548 = vld [vmem:[%s325 + $0x594] sm:$0xf]
        %v2549 = vld [vmem:[%s325 + $0x598] sm:$0xf]
        %v2550 = vld [vmem:[%s325 + $0x59c] sm:$0xf]
        %v2551 = vld [vmem:[%s325 + $0x5a0] sm:$0xf]
        %v2552 = vld [vmem:[%s325 + $0x5a4] sm:$0xf]
        %v2553 = vld [vmem:[%s325 + $0x5a8] sm:$0xf]
        %v2554 = vld [vmem:[%s325 + $0x5ac] sm:$0xf]
        %v2555 = vld [vmem:[%s325 + $0x5b0] sm:$0xf]
        %v2556 = vld [vmem:[%s325 + $0x5b4] sm:$0xf]
        %v2557 = vld [vmem:[%s325 + $0x5b8] sm:$0xf]
        %v2558 = vld [vmem:[%s325 + $0x5bc] sm:$0xf]
        %v2559 = vld [vmem:[%s325 + $0x5c0] sm:$0xf]
        %v2560 = vld [vmem:[%s325 + $0x5c4] sm:$0xf]
        %v2561 = vld [vmem:[%s325 + $0x5c8] sm:$0xf]
        %v2562 = vld [vmem:[%s325 + $0x5cc] sm:$0xf]
        %v2563 = vld [vmem:[%s325 + $0x5d0] sm:$0xf]
        %v2564 = vld [vmem:[%s325 + $0x5d4] sm:$0xf]
        %v2565 = vld [vmem:[%s325 + $0x5d8] sm:$0xf]
        %v2566 = vld [vmem:[%s325 + $0x5dc] sm:$0xf]
        %v2567 = vld [vmem:[%s325 + $0x5e0] sm:$0xf]
        %v2568 = vld [vmem:[%s325 + $0x5e4] sm:$0xf]
        %v2569 = vld [vmem:[%s325 + $0x5e8] sm:$0xf]
        %v2570 = vld [vmem:[%s325 + $0x5ec] sm:$0xf]
        %v2571 = vld [vmem:[%s325 + $0x5f0] sm:$0xf]
        %v2572 = vld [vmem:[%s325 + $0x5f4] sm:$0xf]
        %v2573 = vld [vmem:[%s325 + $0x5f8] sm:$0xf]
        %v2574 = vld [vmem:[%s325 + $0x5fc] sm:$0xf]
        %v2575 = vld [vmem:[%s325 + $0x600] sm:$0xf]
        %v2576 = vld [vmem:[%s325 + $0x604] sm:$0xf]
        %v2577 = vld [vmem:[%s325 + $0x608] sm:$0xf]
        %v2578 = vld [vmem:[%s325 + $0x60c] sm:$0xf]
        %v2579 = vld [vmem:[%s325 + $0x610] sm:$0xf]
        %v2580 = vld [vmem:[%s325 + $0x614] sm:$0xf]
        %v2581 = vld [vmem:[%s325 + $0x618] sm:$0xf]
        %v2582 = vld [vmem:[%s325 + $0x61c] sm:$0xf]
        %v2583 = vld [vmem:[%s325 + $0x620] sm:$0xf]
        %v2584 = vld [vmem:[%s325 + $0x624] sm:$0xf]
        %v2585 = vld [vmem:[%s325 + $0x628] sm:$0xf]
        %v2586 = vld [vmem:[%s325 + $0x62c] sm:$0xf]
        %v2587 = vld [vmem:[%s325 + $0x630] sm:$0xf]
        %v2588 = vld [vmem:[%s325 + $0x634] sm:$0xf]
        %v2589 = vld [vmem:[%s325 + $0x638] sm:$0xf]
        %v2590 = vld [vmem:[%s325 + $0x63c] sm:$0xf]
        %v2591 = vld [vmem:[%s325 + $0x640] sm:$0xf]
        %v2592 = vld [vmem:[%s325 + $0x644] sm:$0xf]
        %v2593 = vld [vmem:[%s325 + $0x648] sm:$0xf]
        %v2594 = vld [vmem:[%s325 + $0x64c] sm:$0xf]
        %v2595 = vld [vmem:[%s325 + $0x650] sm:$0xf]
        %v2596 = vld [vmem:[%s325 + $0x654] sm:$0xf]
        %v2597 = vld [vmem:[%s325 + $0x658] sm:$0xf]
        %v2598 = vld [vmem:[%s325 + $0x65c] sm:$0xf]
        %v2599 = vld [vmem:[%s325 + $0x660] sm:$0xf]
        %v2600 = vld [vmem:[%s325 + $0x664] sm:$0xf]
        %v2601 = vld [vmem:[%s325 + $0x668] sm:$0xf]
        %v2602 = vld [vmem:[%s325 + $0x66c] sm:$0xf]
        %v2603 = vld [vmem:[%s325 + $0x670] sm:$0xf]
        %v2604 = vld [vmem:[%s325 + $0x674] sm:$0xf]
        %v2605 = vld [vmem:[%s325 + $0x678] sm:$0xf]
        %v2606 = vld [vmem:[%s325 + $0x67c] sm:$0xf]
        %v2607 = vld [vmem:[%s325 + $0x680] sm:$0xf]
        %v2608 = vld [vmem:[%s325 + $0x684] sm:$0xf]
        %v2609 = vld [vmem:[%s325 + $0x688] sm:$0xf]
        %v2610 = vld [vmem:[%s325 + $0x68c] sm:$0xf]
        %v2611 = vld [vmem:[%s325 + $0x690] sm:$0xf]
        %v2612 = vld [vmem:[%s325 + $0x694] sm:$0xf]
        %v2613 = vld [vmem:[%s325 + $0x698] sm:$0xf]
        %v2614 = vld [vmem:[%s325 + $0x69c] sm:$0xf]
        %v2615 = vld [vmem:[%s325 + $0x6a0] sm:$0xf]
        %v2616 = vld [vmem:[%s325 + $0x6a4] sm:$0xf]
        %v2617 = vld [vmem:[%s325 + $0x6a8] sm:$0xf]
        %v2618 = vld [vmem:[%s325 + $0x6ac] sm:$0xf]
        %v2619 = vld [vmem:[%s325 + $0x6b0] sm:$0xf]
        %v2620 = vld [vmem:[%s325 + $0x6b4] sm:$0xf]
        %v2621 = vld [vmem:[%s325 + $0x6b8] sm:$0xf]
        %v2622 = vld [vmem:[%s325 + $0x6bc] sm:$0xf]
        %v2623 = vld [vmem:[%s325 + $0x6c0] sm:$0xf]
        %v2624 = vld [vmem:[%s325 + $0x6c4] sm:$0xf]
        %v2625 = vld [vmem:[%s325 + $0x6c8] sm:$0xf]
        %v2626 = vld [vmem:[%s325 + $0x6cc] sm:$0xf]
        %v2627 = vld [vmem:[%s325 + $0x6d0] sm:$0xf]
        %v2628 = vld [vmem:[%s325 + $0x6d4] sm:$0xf]
        %v2629 = vld [vmem:[%s325 + $0x6d8] sm:$0xf]
        %v2630 = vld [vmem:[%s325 + $0x6dc] sm:$0xf]
        %v2631 = vld [vmem:[%s325 + $0x6e0] sm:$0xf]
        %v2632 = vld [vmem:[%s325 + $0x6e4] sm:$0xf]
        %v2633 = vld [vmem:[%s325 + $0x6e8] sm:$0xf]
        %v2634 = vld [vmem:[%s325 + $0x6ec] sm:$0xf]
        %v2635 = vld [vmem:[%s325 + $0x6f0] sm:$0xf]
        %v2636 = vld [vmem:[%s325 + $0x6f4] sm:$0xf]
        %v2637 = vld [vmem:[%s325 + $0x6f8] sm:$0xf]
        %v2638 = vld [vmem:[%s325 + $0x6fc] sm:$0xf]
        %v2639 = vld [vmem:[%s325 + $0x700] sm:$0xf]
        %v2640 = vld [vmem:[%s325 + $0x704] sm:$0xf]
        %v2641 = vld [vmem:[%s325 + $0x708] sm:$0xf]
        %v2642 = vld [vmem:[%s325 + $0x70c] sm:$0xf]
        %v2643 = vld [vmem:[%s325 + $0x710] sm:$0xf]
        %v2644 = vld [vmem:[%s325 + $0x714] sm:$0xf]
        %v2645 = vld [vmem:[%s325 + $0x718] sm:$0xf]
        %v2646 = vld [vmem:[%s325 + $0x71c] sm:$0xf]
        %v2647 = vld [vmem:[%s325 + $0x720] sm:$0xf]
        %v2648 = vld [vmem:[%s325 + $0x724] sm:$0xf]
        %v2649 = vld [vmem:[%s325 + $0x728] sm:$0xf]
        %v2650 = vld [vmem:[%s325 + $0x72c] sm:$0xf]
        %v2651 = vld [vmem:[%s325 + $0x730] sm:$0xf]
        %v2652 = vld [vmem:[%s325 + $0x734] sm:$0xf]
        %v2653 = vld [vmem:[%s325 + $0x738] sm:$0xf]
        %v2654 = vld [vmem:[%s325 + $0x73c] sm:$0xf]
        %v2655 = vld [vmem:[%s325 + $0x740] sm:$0xf]
        %v2656 = vld [vmem:[%s325 + $0x744] sm:$0xf]
        %v2657 = vld [vmem:[%s325 + $0x748] sm:$0xf]
        %v2658 = vld [vmem:[%s325 + $0x74c] sm:$0xf]
        %v2659 = vld [vmem:[%s325 + $0x750] sm:$0xf]
        %v2660 = vld [vmem:[%s325 + $0x754] sm:$0xf]
        %v2661 = vld [vmem:[%s325 + $0x758] sm:$0xf]
        %v2662 = vld [vmem:[%s325 + $0x75c] sm:$0xf]
        %v2663 = vld [vmem:[%s325 + $0x760] sm:$0xf]
        %v2664 = vld [vmem:[%s325 + $0x764] sm:$0xf]
        %v2665 = vld [vmem:[%s325 + $0x768] sm:$0xf]
        %v2666 = vld [vmem:[%s325 + $0x76c] sm:$0xf]
        %v2667 = vld [vmem:[%s325 + $0x770] sm:$0xf]
        %v2668 = vld [vmem:[%s325 + $0x774] sm:$0xf]
        %v2669 = vld [vmem:[%s325 + $0x778] sm:$0xf]
        %v2670 = vld [vmem:[%s325 + $0x77c] sm:$0xf]
        %v2671 = vld [vmem:[%s325 + $0x780] sm:$0xf]
        %v2672 = vld [vmem:[%s325 + $0x784] sm:$0xf]
        %v2673 = vld [vmem:[%s325 + $0x788] sm:$0xf]
        %v2674 = vld [vmem:[%s325 + $0x78c] sm:$0xf]
        %v2675 = vld [vmem:[%s325 + $0x790] sm:$0xf]
        %v2676 = vld [vmem:[%s325 + $0x794] sm:$0xf]
        %v2677 = vld [vmem:[%s325 + $0x798] sm:$0xf]
        %v2678 = vld [vmem:[%s325 + $0x79c] sm:$0xf]
        %v2679 = vld [vmem:[%s325 + $0x7a0] sm:$0xf]
        %v2680 = vld [vmem:[%s325 + $0x7a4] sm:$0xf]
        %v2681 = vld [vmem:[%s325 + $0x7a8] sm:$0xf]
        %v2682 = vld [vmem:[%s325 + $0x7ac] sm:$0xf]
        %v2683 = vld [vmem:[%s325 + $0x7b0] sm:$0xf]
        %v2684 = vld [vmem:[%s325 + $0x7b4] sm:$0xf]
        %v2685 = vld [vmem:[%s325 + $0x7b8] sm:$0xf]
        %v2686 = vld [vmem:[%s325 + $0x7bc] sm:$0xf]
        %v2687 = vld [vmem:[%s325 + $0x7c0] sm:$0xf]
        %v2688 = vld [vmem:[%s325 + $0x7c4] sm:$0xf]
        %v2689 = vld [vmem:[%s325 + $0x7c8] sm:$0xf]
        %v2690 = vld [vmem:[%s325 + $0x7cc] sm:$0xf]
        %v2691 = vld [vmem:[%s325 + $0x7d0] sm:$0xf]
        %v2692 = vld [vmem:[%s325 + $0x7d4] sm:$0xf]
        %v2693 = vld [vmem:[%s325 + $0x7d8] sm:$0xf]
        %v2694 = vld [vmem:[%s325 + $0x7dc] sm:$0xf]
        %v2695 = vld [vmem:[%s325 + $0x7e0] sm:$0xf]
        %v2696 = vld [vmem:[%s325 + $0x7e4] sm:$0xf]
        %v2697 = vld [vmem:[%s325 + $0x7e8] sm:$0xf]
        %v2698 = vld [vmem:[%s325 + $0x7ec] sm:$0xf]
        %v2699 = vld [vmem:[%s325 + $0x7f0] sm:$0xf]
        %v2700 = vld [vmem:[%s325 + $0x7f4] sm:$0xf]
        %v2701 = vld [vmem:[%s325 + $0x7f8] sm:$0xf]
        %v2702 = vld [vmem:[%s325 + $0x7fc] sm:$0xf]
        %v2703 = vld [vmem:[%s325 + $0x800] sm:$0xf]
        %v2704 = vld [vmem:[%s325 + $0x804] sm:$0xf]
        %v2705 = vld [vmem:[%s325 + $0x808] sm:$0xf]
        %v2706 = vld [vmem:[%s325 + $0x80c] sm:$0xf]
        %v2707 = vld [vmem:[%s325 + $0x810] sm:$0xf]
        %v2708 = vld [vmem:[%s325 + $0x814] sm:$0xf]
        %v2709 = vld [vmem:[%s325 + $0x818] sm:$0xf]
        %v2710 = vld [vmem:[%s325 + $0x81c] sm:$0xf]
        %v2711 = vld [vmem:[%s325 + $0x820] sm:$0xf]
        %v2712 = vld [vmem:[%s325 + $0x824] sm:$0xf]
        %v2713 = vld [vmem:[%s325 + $0x828] sm:$0xf]
        %v2714 = vld [vmem:[%s325 + $0x82c] sm:$0xf]
        %v2715 = vld [vmem:[%s325 + $0x830] sm:$0xf]
        %v2716 = vld [vmem:[%s325 + $0x834] sm:$0xf]
        %v2717 = vld [vmem:[%s325 + $0x838] sm:$0xf]
        %v2718 = vld [vmem:[%s325 + $0x83c] sm:$0xf]
        %v2719 = vld [vmem:[%s325 + $0x840] sm:$0xf]
        %v2720 = vld [vmem:[%s325 + $0x844] sm:$0xf]
        %v2721 = vld [vmem:[%s325 + $0x848] sm:$0xf]
        %v2722 = vld [vmem:[%s325 + $0x84c] sm:$0xf]
        %v2723 = vld [vmem:[%s325 + $0x850] sm:$0xf]
        %v2724 = vld [vmem:[%s325 + $0x854] sm:$0xf]
        %v2725 = vld [vmem:[%s325 + $0x858] sm:$0xf]
        %v2726 = vld [vmem:[%s325 + $0x85c] sm:$0xf]
        %v2727 = vld [vmem:[%s325 + $0x860] sm:$0xf]
        %v2728 = vld [vmem:[%s325 + $0x864] sm:$0xf]
        %v2729 = vld [vmem:[%s325 + $0x868] sm:$0xf]
        %v2730 = vld [vmem:[%s325 + $0x86c] sm:$0xf]
        %v2731 = vld [vmem:[%s325 + $0x870] sm:$0xf]
        %v2732 = vld [vmem:[%s325 + $0x874] sm:$0xf]
        %v2733 = vld [vmem:[%s325 + $0x878] sm:$0xf]
        %v2734 = vld [vmem:[%s325 + $0x87c] sm:$0xf]
        %v2735 = vld [vmem:[%s325 + $0x880] sm:$0xf]
        %v2736 = vld [vmem:[%s325 + $0x884] sm:$0xf]
        %v2737 = vld [vmem:[%s325 + $0x888] sm:$0xf]
        %v2738 = vld [vmem:[%s325 + $0x88c] sm:$0xf]
        %v2739 = vld [vmem:[%s325 + $0x890] sm:$0xf]
        %v2740 = vld [vmem:[%s325 + $0x894] sm:$0xf]
        %v2741 = vld [vmem:[%s325 + $0x898] sm:$0xf]
        %v2742 = vld [vmem:[%s325 + $0x89c] sm:$0xf]
        %v2743 = vld [vmem:[%s325 + $0x8a0] sm:$0xf]
        %v2744 = vld [vmem:[%s325 + $0x8a4] sm:$0xf]
        %v2745 = vld [vmem:[%s325 + $0x8a8] sm:$0xf]
        %v2746 = vld [vmem:[%s325 + $0x8ac] sm:$0xf]
        %v2747 = vld [vmem:[%s325 + $0x8b0] sm:$0xf]
        %v2748 = vld [vmem:[%s325 + $0x8b4] sm:$0xf]
        %v2749 = vld [vmem:[%s325 + $0x8b8] sm:$0xf]
        %v2750 = vld [vmem:[%s325 + $0x8bc] sm:$0xf]
        %v2751 = vld [vmem:[%s325 + $0x8c0] sm:$0xf]
        %v2752 = vld [vmem:[%s325 + $0x8c4] sm:$0xf]
        %v2753 = vld [vmem:[%s325 + $0x8c8] sm:$0xf]
        %v2754 = vld [vmem:[%s325 + $0x8cc] sm:$0xf]
        %v2755 = vld [vmem:[%s325 + $0x8d0] sm:$0xf]
        %v2756 = vld [vmem:[%s325 + $0x8d4] sm:$0xf]
        %v2757 = vld [vmem:[%s325 + $0x8d8] sm:$0xf]
        %v2758 = vld [vmem:[%s325 + $0x8dc] sm:$0xf]
        %v2759 = vld [vmem:[%s325 + $0x8e0] sm:$0xf]
        %v2760 = vld [vmem:[%s325 + $0x8e4] sm:$0xf]
        %v2761 = vld [vmem:[%s325 + $0x8e8] sm:$0xf]
        %v2762 = vld [vmem:[%s325 + $0x8ec] sm:$0xf]
        %v2763 = vld [vmem:[%s325 + $0x8f0] sm:$0xf]
        %v2764 = vld [vmem:[%s325 + $0x8f4] sm:$0xf]
        %v2765 = vld [vmem:[%s325 + $0x8f8] sm:$0xf]
        %v2766 = vld [vmem:[%s325 + $0x8fc] sm:$0xf]
        %v2767 = vld [vmem:[%s325 + $0x900] sm:$0xf]
        %v2768 = vld [vmem:[%s325 + $0x904] sm:$0xf]
        %v2769 = vld [vmem:[%s325 + $0x908] sm:$0xf]
        %v2770 = vld [vmem:[%s325 + $0x90c] sm:$0xf]
        %v2771 = vld [vmem:[%s325 + $0x910] sm:$0xf]
        %v2772 = vld [vmem:[%s325 + $0x914] sm:$0xf]
        %v2773 = vld [vmem:[%s325 + $0x918] sm:$0xf]
        %v2774 = vld [vmem:[%s325 + $0x91c] sm:$0xf]
        %v2775 = vld [vmem:[%s325 + $0x920] sm:$0xf]
        %v2776 = vld [vmem:[%s325 + $0x924] sm:$0xf]
        %v2777 = vld [vmem:[%s325 + $0x928] sm:$0xf]
        %v2778 = vld [vmem:[%s325 + $0x92c] sm:$0xf]
        %v2779 = vld [vmem:[%s325 + $0x930] sm:$0xf]
        %v2780 = vld [vmem:[%s325 + $0x934] sm:$0xf]
        %v2781 = vld [vmem:[%s325 + $0x938] sm:$0xf]
        %v2782 = vld [vmem:[%s325 + $0x93c] sm:$0xf]
        %v2783 = vld [vmem:[%s325 + $0x940] sm:$0xf]
        %v2784 = vld [vmem:[%s325 + $0x944] sm:$0xf]
        %v2785 = vld [vmem:[%s325 + $0x948] sm:$0xf]
        %v2786 = vld [vmem:[%s325 + $0x94c] sm:$0xf]
        %v2787 = vld [vmem:[%s325 + $0x950] sm:$0xf]
        %v2788 = vld [vmem:[%s325 + $0x954] sm:$0xf]
        %v2789 = vld [vmem:[%s325 + $0x958] sm:$0xf]
        %v2790 = vld [vmem:[%s325 + $0x95c] sm:$0xf]
        %v2791 = vld [vmem:[%s325 + $0x960] sm:$0xf]
        %v2792 = vld [vmem:[%s325 + $0x964] sm:$0xf]
        %v2793 = vld [vmem:[%s325 + $0x968] sm:$0xf]
        %v2794 = vld [vmem:[%s325 + $0x96c] sm:$0xf]
        %v2795 = vld [vmem:[%s325 + $0x970] sm:$0xf]
        %v2796 = vld [vmem:[%s325 + $0x974] sm:$0xf]
        %v2797 = vld [vmem:[%s325 + $0x978] sm:$0xf]
        %v2798 = vld [vmem:[%s325 + $0x97c] sm:$0xf]
        %v2799 = vld [vmem:[%s325 + $0x980] sm:$0xf]
        %v2800 = vld [vmem:[%s325 + $0x984] sm:$0xf]
        %v2801 = vld [vmem:[%s325 + $0x988] sm:$0xf]
        %v2802 = vld [vmem:[%s325 + $0x98c] sm:$0xf]
        %v2803 = vld [vmem:[%s325 + $0x990] sm:$0xf]
        %v2804 = vld [vmem:[%s325 + $0x994] sm:$0xf]
        %v2805 = vld [vmem:[%s325 + $0x998] sm:$0xf]
        %v2806 = vld [vmem:[%s325 + $0x99c] sm:$0xf]
        %v2807 = vld [vmem:[%s325 + $0x9a0] sm:$0xf]
        %v2808 = vld [vmem:[%s325 + $0x9a4] sm:$0xf]
        %v2809 = vld [vmem:[%s325 + $0x9a8] sm:$0xf]
        %v2810 = vld [vmem:[%s325 + $0x9ac] sm:$0xf]
        %v2811 = vld [vmem:[%s325 + $0x9b0] sm:$0xf]
        %v2812 = vld [vmem:[%s325 + $0x9b4] sm:$0xf]
        %v2813 = vld [vmem:[%s325 + $0x9b8] sm:$0xf]
        %v2814 = vld [vmem:[%s325 + $0x9bc] sm:$0xf]
        %v2815 = vld [vmem:[%s325 + $0x9c0] sm:$0xf]
        %v2816 = vld [vmem:[%s325 + $0x9c4] sm:$0xf]
        %v2817 = vld [vmem:[%s325 + $0x9c8] sm:$0xf]
        %v2818 = vld [vmem:[%s325 + $0x9cc] sm:$0xf]
        %v2819 = vld [vmem:[%s325 + $0x9d0] sm:$0xf]
        %v2820 = vld [vmem:[%s325 + $0x9d4] sm:$0xf]
        %v2821 = vld [vmem:[%s325 + $0x9d8] sm:$0xf]
        %v2822 = vld [vmem:[%s325 + $0x9dc] sm:$0xf]
        %v2823 = vld [vmem:[%s325 + $0x9e0] sm:$0xf]
        %v2824 = vld [vmem:[%s325 + $0x9e4] sm:$0xf]
        %v2825 = vld [vmem:[%s325 + $0x9e8] sm:$0xf]
        %v2826 = vld [vmem:[%s325 + $0x9ec] sm:$0xf]
        %v2827 = vld [vmem:[%s325 + $0x9f0] sm:$0xf]
        %v2828 = vld [vmem:[%s325 + $0x9f4] sm:$0xf]
        %v2829 = vld [vmem:[%s325 + $0x9f8] sm:$0xf]
        %v2830 = vld [vmem:[%s325 + $0x9fc] sm:$0xf]
        %v2831 = vld [vmem:[%s325 + $0xa00] sm:$0xf]
        %v2832 = vld [vmem:[%s325 + $0xa04] sm:$0xf]
        %v2833 = vld [vmem:[%s325 + $0xa08] sm:$0xf]
        %v2834 = vld [vmem:[%s325 + $0xa0c] sm:$0xf]
        %v2835 = vld [vmem:[%s325 + $0xa10] sm:$0xf]
        %v2836 = vld [vmem:[%s325 + $0xa14] sm:$0xf]
        %v2837 = vld [vmem:[%s325 + $0xa18] sm:$0xf]
        %v2838 = vld [vmem:[%s325 + $0xa1c] sm:$0xf]
        %v2839 = vld [vmem:[%s325 + $0xa20] sm:$0xf]
        %v2840 = vld [vmem:[%s325 + $0xa24] sm:$0xf]
        %v2841 = vld [vmem:[%s325 + $0xa28] sm:$0xf]
        %v2842 = vld [vmem:[%s325 + $0xa2c] sm:$0xf]
        %v2843 = vld [vmem:[%s325 + $0xa30] sm:$0xf]
        %v2844 = vld [vmem:[%s325 + $0xa34] sm:$0xf]
        %v2845 = vld [vmem:[%s325 + $0xa38] sm:$0xf]
        %v2846 = vld [vmem:[%s325 + $0xa3c] sm:$0xf]
        %v2847 = vld [vmem:[%s325 + $0xa40] sm:$0xf]
        %v2848 = vld [vmem:[%s325 + $0xa44] sm:$0xf]
        %v2849 = vld [vmem:[%s325 + $0xa48] sm:$0xf]
        %v2850 = vld [vmem:[%s325 + $0xa4c] sm:$0xf]
        %v2851 = vld [vmem:[%s325 + $0xa50] sm:$0xf]
        %v2852 = vld [vmem:[%s325 + $0xa54] sm:$0xf]
        %v2853 = vld [vmem:[%s325 + $0xa58] sm:$0xf]
        %v2854 = vld [vmem:[%s325 + $0xa5c] sm:$0xf]
        %v2855 = vld [vmem:[%s325 + $0xa60] sm:$0xf]
        %v2856 = vld [vmem:[%s325 + $0xa64] sm:$0xf]
        %v2857 = vld [vmem:[%s325 + $0xa68] sm:$0xf]
        %v2858 = vld [vmem:[%s325 + $0xa6c] sm:$0xf]
        %v2859 = vld [vmem:[%s325 + $0xa70] sm:$0xf]
        %v2860 = vld [vmem:[%s325 + $0xa74] sm:$0xf]
        %v2861 = vld [vmem:[%s325 + $0xa78] sm:$0xf]
        %v2862 = vld [vmem:[%s325 + $0xa7c] sm:$0xf]
        %v2863 = vld [vmem:[%s325 + $0xa80] sm:$0xf]
        %v2864 = vld [vmem:[%s325 + $0xa84] sm:$0xf]
        %v2865 = vld [vmem:[%s325 + $0xa88] sm:$0xf]
        %v2866 = vld [vmem:[%s325 + $0xa8c] sm:$0xf]
        %v2867 = vld [vmem:[%s325 + $0xa90] sm:$0xf]
        %v2868 = vld [vmem:[%s325 + $0xa94] sm:$0xf]
        %v2869 = vld [vmem:[%s325 + $0xa98] sm:$0xf]
        %v2870 = vld [vmem:[%s325 + $0xa9c] sm:$0xf]
        %v2871 = vld [vmem:[%s325 + $0xaa0] sm:$0xf]
        %v2872 = vld [vmem:[%s325 + $0xaa4] sm:$0xf]
        %v2873 = vld [vmem:[%s325 + $0xaa8] sm:$0xf]
        %v2874 = vld [vmem:[%s325 + $0xaac] sm:$0xf]
        %v2875 = vld [vmem:[%s325 + $0xab0] sm:$0xf]
        %v2876 = vld [vmem:[%s325 + $0xab4] sm:$0xf]
        %v2877 = vld [vmem:[%s325 + $0xab8] sm:$0xf]
        %v2878 = vld [vmem:[%s325 + $0xabc] sm:$0xf]
        %v2879 = vld [vmem:[%s325 + $0xac0] sm:$0xf]
        %v2880 = vld [vmem:[%s325 + $0xac4] sm:$0xf]
        %v2881 = vld [vmem:[%s325 + $0xac8] sm:$0xf]
        %v2882 = vld [vmem:[%s325 + $0xacc] sm:$0xf]
        %v2883 = vld [vmem:[%s325 + $0xad0] sm:$0xf]
        %v2884 = vld [vmem:[%s325 + $0xad4] sm:$0xf]
        %v2885 = vld [vmem:[%s325 + $0xad8] sm:$0xf]
        %v2886 = vld [vmem:[%s325 + $0xadc] sm:$0xf]
        %v2887 = vld [vmem:[%s325 + $0xae0] sm:$0xf]
        %v2888 = vld [vmem:[%s325 + $0xae4] sm:$0xf]
        %v2889 = vld [vmem:[%s325 + $0xae8] sm:$0xf]
        %v2890 = vld [vmem:[%s325 + $0xaec] sm:$0xf]
        %v2891 = vld [vmem:[%s325 + $0xaf0] sm:$0xf]
        %v2892 = vld [vmem:[%s325 + $0xaf4] sm:$0xf]
        %v2893 = vld [vmem:[%s325 + $0xaf8] sm:$0xf]
        %v2894 = vld [vmem:[%s325 + $0xafc] sm:$0xf]
        %v2895 = vld [vmem:[%s325 + $0xb00] sm:$0xf]
        %v2896 = vld [vmem:[%s325 + $0xb04] sm:$0xf]
        %v2897 = vld [vmem:[%s325 + $0xb08] sm:$0xf]
        %v2898 = vld [vmem:[%s325 + $0xb0c] sm:$0xf]
        %v2899 = vld [vmem:[%s325 + $0xb10] sm:$0xf]
        %v2900 = vld [vmem:[%s325 + $0xb14] sm:$0xf]
        %v2901 = vld [vmem:[%s325 + $0xb18] sm:$0xf]
        %v2902 = vld [vmem:[%s325 + $0xb1c] sm:$0xf]
        %v2903 = vld [vmem:[%s325 + $0xb20] sm:$0xf]
        %v2904 = vld [vmem:[%s325 + $0xb24] sm:$0xf]
        %v2905 = vld [vmem:[%s325 + $0xb28] sm:$0xf]
        %v2906 = vld [vmem:[%s325 + $0xb2c] sm:$0xf]
        %v2907 = vld [vmem:[%s325 + $0xb30] sm:$0xf]
        %v2908 = vld [vmem:[%s325 + $0xb34] sm:$0xf]
        %v2909 = vld [vmem:[%s325 + $0xb38] sm:$0xf]
        %v2910 = vld [vmem:[%s325 + $0xb3c] sm:$0xf]
        %v2911 = vld [vmem:[%s325 + $0xb40] sm:$0xf]
        %v2912 = vld [vmem:[%s325 + $0xb44] sm:$0xf]
        %v2913 = vld [vmem:[%s325 + $0xb48] sm:$0xf]
        %v2914 = vld [vmem:[%s325 + $0xb4c] sm:$0xf]
        %v2915 = vld [vmem:[%s325 + $0xb50] sm:$0xf]
        %v2916 = vld [vmem:[%s325 + $0xb54] sm:$0xf]
        %v2917 = vld [vmem:[%s325 + $0xb58] sm:$0xf]
        %v2918 = vld [vmem:[%s325 + $0xb5c] sm:$0xf]
        %v2919 = vld [vmem:[%s325 + $0xb60] sm:$0xf]
        %v2920 = vld [vmem:[%s325 + $0xb64] sm:$0xf]
        %v2921 = vld [vmem:[%s325 + $0xb68] sm:$0xf]
        %v2922 = vld [vmem:[%s325 + $0xb6c] sm:$0xf]
        %v2923 = vld [vmem:[%s325 + $0xb70] sm:$0xf]
        %v2924 = vld [vmem:[%s325 + $0xb74] sm:$0xf]
        %v2925 = vld [vmem:[%s325 + $0xb78] sm:$0xf]
        %v2926 = vld [vmem:[%s325 + $0xb7c] sm:$0xf]
        %v2927 = vld [vmem:[%s325 + $0xb80] sm:$0xf]
        %v2928 = vld [vmem:[%s325 + $0xb84] sm:$0xf]
        %v2929 = vld [vmem:[%s325 + $0xb88] sm:$0xf]
        %v2930 = vld [vmem:[%s325 + $0xb8c] sm:$0xf]
        %v2931 = vld [vmem:[%s325 + $0xb90] sm:$0xf]
        %v2932 = vld [vmem:[%s325 + $0xb94] sm:$0xf]
        %v2933 = vld [vmem:[%s325 + $0xb98] sm:$0xf]
        %v2934 = vld [vmem:[%s325 + $0xb9c] sm:$0xf]
        %v2935 = vld [vmem:[%s325 + $0xba0] sm:$0xf]
        %v2936 = vld [vmem:[%s325 + $0xba4] sm:$0xf]
        %v2937 = vld [vmem:[%s325 + $0xba8] sm:$0xf]
        %v2938 = vld [vmem:[%s325 + $0xbac] sm:$0xf]
        %v2939 = vld [vmem:[%s325 + $0xbb0] sm:$0xf]
        %v2940 = vld [vmem:[%s325 + $0xbb4] sm:$0xf]
        %v2941 = vld [vmem:[%s325 + $0xbb8] sm:$0xf]
        %v2942 = vld [vmem:[%s325 + $0xbbc] sm:$0xf]
        %v2943 = vld [vmem:[%s325 + $0xbc0] sm:$0xf]
        %v2944 = vld [vmem:[%s325 + $0xbc4] sm:$0xf]
        %v2945 = vld [vmem:[%s325 + $0xbc8] sm:$0xf]
        %v2946 = vld [vmem:[%s325 + $0xbcc] sm:$0xf]
        %v2947 = vld [vmem:[%s325 + $0xbd0] sm:$0xf]
        %v2948 = vld [vmem:[%s325 + $0xbd4] sm:$0xf]
        %v2949 = vld [vmem:[%s325 + $0xbd8] sm:$0xf]
        %v2950 = vld [vmem:[%s325 + $0xbdc] sm:$0xf]
        %v2951 = vld [vmem:[%s325 + $0xbe0] sm:$0xf]
        %v2952 = vld [vmem:[%s325 + $0xbe4] sm:$0xf]
        %v2953 = vld [vmem:[%s325 + $0xbe8] sm:$0xf]
        %v2954 = vld [vmem:[%s325 + $0xbec] sm:$0xf]
        %v2955 = vld [vmem:[%s325 + $0xbf0] sm:$0xf]
        %v2956 = vld [vmem:[%s325 + $0xbf4] sm:$0xf]
        %v2957 = vld [vmem:[%s325 + $0xbf8] sm:$0xf]
        %v2958 = vld [vmem:[%s325 + $0xbfc] sm:$0xf]
        %v2959 = vld [vmem:[%s325 + $0xc00] sm:$0xf]
        %v2960 = vld [vmem:[%s325 + $0xc04] sm:$0xf]
        %v2961 = vld [vmem:[%s325 + $0xc08] sm:$0xf]
        %v2962 = vld [vmem:[%s325 + $0xc0c] sm:$0xf]
        %v2963 = vld [vmem:[%s325 + $0xc10] sm:$0xf]
        %v2964 = vld [vmem:[%s325 + $0xc14] sm:$0xf]
        %v2965 = vld [vmem:[%s325 + $0xc18] sm:$0xf]
        %v2966 = vld [vmem:[%s325 + $0xc1c] sm:$0xf]
        %v2967 = vld [vmem:[%s325 + $0xc20] sm:$0xf]
        %v2968 = vld [vmem:[%s325 + $0xc24] sm:$0xf]
        %v2969 = vld [vmem:[%s325 + $0xc28] sm:$0xf]
        %v2970 = vld [vmem:[%s325 + $0xc2c] sm:$0xf]
        %v2971 = vld [vmem:[%s325 + $0xc30] sm:$0xf]
        %v2972 = vld [vmem:[%s325 + $0xc34] sm:$0xf]
        %v2973 = vld [vmem:[%s325 + $0xc38] sm:$0xf]
        %v2974 = vld [vmem:[%s325 + $0xc3c] sm:$0xf]
        %v2975 = vld [vmem:[%s325 + $0xc40] sm:$0xf]
        %v2976 = vld [vmem:[%s325 + $0xc44] sm:$0xf]
        %v2977 = vld [vmem:[%s325 + $0xc48] sm:$0xf]
        %v2978 = vld [vmem:[%s325 + $0xc4c] sm:$0xf]
        %v2979 = vld [vmem:[%s325 + $0xc50] sm:$0xf]
        %v2980 = vld [vmem:[%s325 + $0xc54] sm:$0xf]
        %v2981 = vld [vmem:[%s325 + $0xc58] sm:$0xf]
        %v2982 = vld [vmem:[%s325 + $0xc5c] sm:$0xf]
        %v2983 = vld [vmem:[%s325 + $0xc60] sm:$0xf]
        %v2984 = vld [vmem:[%s325 + $0xc64] sm:$0xf]
        %v2985 = vld [vmem:[%s325 + $0xc68] sm:$0xf]
        %v2986 = vld [vmem:[%s325 + $0xc6c] sm:$0xf]
        %v2987 = vld [vmem:[%s325 + $0xc70] sm:$0xf]
        %v2988 = vld [vmem:[%s325 + $0xc74] sm:$0xf]
        %v2989 = vld [vmem:[%s325 + $0xc78] sm:$0xf]
        %v2990 = vld [vmem:[%s325 + $0xc7c] sm:$0xf]
        %v2991 = vld [vmem:[%s325 + $0xc80] sm:$0xf]
        %v2992 = vld [vmem:[%s325 + $0xc84] sm:$0xf]
        %v2993 = vld [vmem:[%s325 + $0xc88] sm:$0xf]
        %v2994 = vld [vmem:[%s325 + $0xc8c] sm:$0xf]
        %v2995 = vld [vmem:[%s325 + $0xc90] sm:$0xf]
        %v2996 = vld [vmem:[%s325 + $0xc94] sm:$0xf]
        %v2997 = vld [vmem:[%s325 + $0xc98] sm:$0xf]
        %v2998 = vld [vmem:[%s325 + $0xc9c] sm:$0xf]
        %v2999 = vld [vmem:[%s325 + $0xca0] sm:$0xf]
        %v3000 = vld [vmem:[%s325 + $0xca4] sm:$0xf]
        %v3001 = vld [vmem:[%s325 + $0xca8] sm:$0xf]
        %v3002 = vld [vmem:[%s325 + $0xcac] sm:$0xf]
        %v3003 = vld [vmem:[%s325 + $0xcb0] sm:$0xf]
        %v3004 = vld [vmem:[%s325 + $0xcb4] sm:$0xf]
        %v3005 = vld [vmem:[%s325 + $0xcb8] sm:$0xf]
        %v3006 = vld [vmem:[%s325 + $0xcbc] sm:$0xf]
        %v3007 = vld [vmem:[%s325 + $0xcc0] sm:$0xf]
        %v3008 = vld [vmem:[%s325 + $0xcc4] sm:$0xf]
        %v3009 = vld [vmem:[%s325 + $0xcc8] sm:$0xf]
        %v3010 = vld [vmem:[%s325 + $0xccc] sm:$0xf]
        %v3011 = vld [vmem:[%s325 + $0xcd0] sm:$0xf]
        %v3012 = vld [vmem:[%s325 + $0xcd4] sm:$0xf]
        %v3013 = vld [vmem:[%s325 + $0xcd8] sm:$0xf]
        %v3014 = vld [vmem:[%s325 + $0xcdc] sm:$0xf]
        %v3015 = vld [vmem:[%s325 + $0xce0] sm:$0xf]
        %v3016 = vld [vmem:[%s325 + $0xce4] sm:$0xf]
        %v3017 = vld [vmem:[%s325 + $0xce8] sm:$0xf]
        %v3018 = vld [vmem:[%s325 + $0xcec] sm:$0xf]
        %v3019 = vld [vmem:[%s325 + $0xcf0] sm:$0xf]
        %v3020 = vld [vmem:[%s325 + $0xcf4] sm:$0xf]
        %v3021 = vld [vmem:[%s325 + $0xcf8] sm:$0xf]
        %v3022 = vld [vmem:[%s325 + $0xcfc] sm:$0xf]
        %v3023 = vld [vmem:[%s325 + $0xd00] sm:$0xf]
        %v3024 = vld [vmem:[%s325 + $0xd04] sm:$0xf]
        %v3025 = vld [vmem:[%s325 + $0xd08] sm:$0xf]
        %v3026 = vld [vmem:[%s325 + $0xd0c] sm:$0xf]
        %v3027 = vld [vmem:[%s325 + $0xd10] sm:$0xf]
        %v3028 = vld [vmem:[%s325 + $0xd14] sm:$0xf]
        %v3029 = vld [vmem:[%s325 + $0xd18] sm:$0xf]
        %v3030 = vld [vmem:[%s325 + $0xd1c] sm:$0xf]
        %v3031 = vld [vmem:[%s325 + $0xd20] sm:$0xf]
        %v3032 = vld [vmem:[%s325 + $0xd24] sm:$0xf]
        %v3033 = vld [vmem:[%s325 + $0xd28] sm:$0xf]
        %v3034 = vld [vmem:[%s325 + $0xd2c] sm:$0xf]
        %v3035 = vld [vmem:[%s325 + $0xd30] sm:$0xf]
        %v3036 = vld [vmem:[%s325 + $0xd34] sm:$0xf]
        %v3037 = vld [vmem:[%s325 + $0xd38] sm:$0xf]
        %v3038 = vld [vmem:[%s325 + $0xd3c] sm:$0xf]
        %v3039 = vld [vmem:[%s325 + $0xd40] sm:$0xf]
        %v3040 = vld [vmem:[%s325 + $0xd44] sm:$0xf]
        %v3041 = vld [vmem:[%s325 + $0xd48] sm:$0xf]
        %v3042 = vld [vmem:[%s325 + $0xd4c] sm:$0xf]
        %v3043 = vld [vmem:[%s325 + $0xd50] sm:$0xf]
        %v3044 = vld [vmem:[%s325 + $0xd54] sm:$0xf]
        %v3045 = vld [vmem:[%s325 + $0xd58] sm:$0xf]
        %v3046 = vld [vmem:[%s325 + $0xd5c] sm:$0xf]
        %v3047 = vld [vmem:[%s325 + $0xd60] sm:$0xf]
        %v3048 = vld [vmem:[%s325 + $0xd64] sm:$0xf]
        %v3049 = vld [vmem:[%s325 + $0xd68] sm:$0xf]
        %v3050 = vld [vmem:[%s325 + $0xd6c] sm:$0xf]
        %v3051 = vld [vmem:[%s325 + $0xd70] sm:$0xf]
        %v3052 = vld [vmem:[%s325 + $0xd74] sm:$0xf]
        %v3053 = vld [vmem:[%s325 + $0xd78] sm:$0xf]
        %v3054 = vld [vmem:[%s325 + $0xd7c] sm:$0xf]
        %v3055 = vld [vmem:[%s325 + $0xd80] sm:$0xf]
        %v3056 = vld [vmem:[%s325 + $0xd84] sm:$0xf]
        %v3057 = vld [vmem:[%s325 + $0xd88] sm:$0xf]
        %v3058 = vld [vmem:[%s325 + $0xd8c] sm:$0xf]
        %v3059 = vld [vmem:[%s325 + $0xd90] sm:$0xf]
        %v3060 = vld [vmem:[%s325 + $0xd94] sm:$0xf]
        %v3061 = vld [vmem:[%s325 + $0xd98] sm:$0xf]
        %v3062 = vld [vmem:[%s325 + $0xd9c] sm:$0xf]
        %v3063 = vld [vmem:[%s325 + $0xda0] sm:$0xf]
        %v3064 = vld [vmem:[%s325 + $0xda4] sm:$0xf]
        %v3065 = vld [vmem:[%s325 + $0xda8] sm:$0xf]
        %v3066 = vld [vmem:[%s325 + $0xdac] sm:$0xf]
        %v3067 = vld [vmem:[%s325 + $0xdb0] sm:$0xf]
        %v3068 = vld [vmem:[%s325 + $0xdb4] sm:$0xf]
        %v3069 = vld [vmem:[%s325 + $0xdb8] sm:$0xf]
        %v3070 = vld [vmem:[%s325 + $0xdbc] sm:$0xf]
        %v3071 = vld [vmem:[%s325 + $0xdc0] sm:$0xf]
        %v3072 = vld [vmem:[%s325 + $0xdc4] sm:$0xf]
        %v3073 = vld [vmem:[%s325 + $0xdc8] sm:$0xf]
        %v3074 = vld [vmem:[%s325 + $0xdcc] sm:$0xf]
        %v3075 = vld [vmem:[%s325 + $0xdd0] sm:$0xf]
        %v3076 = vld [vmem:[%s325 + $0xdd4] sm:$0xf]
        %v3077 = vld [vmem:[%s325 + $0xdd8] sm:$0xf]
        %v3078 = vld [vmem:[%s325 + $0xddc] sm:$0xf]
        %v3079 = vld [vmem:[%s325 + $0xde0] sm:$0xf]
        %v3080 = vld [vmem:[%s325 + $0xde4] sm:$0xf]
        %v3081 = vld [vmem:[%s325 + $0xde8] sm:$0xf]
        %v3082 = vld [vmem:[%s325 + $0xdec] sm:$0xf]
        %v3083 = vld [vmem:[%s325 + $0xdf0] sm:$0xf]
        %v3084 = vld [vmem:[%s325 + $0xdf4] sm:$0xf]
        %v3085 = vld [vmem:[%s325 + $0xdf8] sm:$0xf]
        %v3086 = vld [vmem:[%s325 + $0xdfc] sm:$0xf]
        %v3087 = vld [vmem:[%s325 + $0xe00] sm:$0xf]
        %v3088 = vld [vmem:[%s325 + $0xe04] sm:$0xf]
        %v3089 = vld [vmem:[%s325 + $0xe08] sm:$0xf]
        %v3090 = vld [vmem:[%s325 + $0xe0c] sm:$0xf]
        %v3091 = vld [vmem:[%s325 + $0xe10] sm:$0xf]
        %v3092 = vld [vmem:[%s325 + $0xe14] sm:$0xf]
        %v3093 = vld [vmem:[%s325 + $0xe18] sm:$0xf]
        %v3094 = vld [vmem:[%s325 + $0xe1c] sm:$0xf]
        %v3095 = vld [vmem:[%s325 + $0xe20] sm:$0xf]
        %v3096 = vld [vmem:[%s325 + $0xe24] sm:$0xf]
        %v3097 = vld [vmem:[%s325 + $0xe28] sm:$0xf]
        %v3098 = vld [vmem:[%s325 + $0xe2c] sm:$0xf]
        %v3099 = vld [vmem:[%s325 + $0xe30] sm:$0xf]
        %v3100 = vld [vmem:[%s325 + $0xe34] sm:$0xf]
        %v3101 = vld [vmem:[%s325 + $0xe38] sm:$0xf]
        %v3102 = vld [vmem:[%s325 + $0xe3c] sm:$0xf]
        %v3103 = vld [vmem:[%s325 + $0xe40] sm:$0xf]
        %v3104 = vld [vmem:[%s325 + $0xe44] sm:$0xf]
        %v3105 = vld [vmem:[%s325 + $0xe48] sm:$0xf]
        %v3106 = vld [vmem:[%s325 + $0xe4c] sm:$0xf]
        %v3107 = vld [vmem:[%s325 + $0xe50] sm:$0xf]
        %v3108 = vld [vmem:[%s325 + $0xe54] sm:$0xf]
        %v3109 = vld [vmem:[%s325 + $0xe58] sm:$0xf]
        %v3110 = vld [vmem:[%s325 + $0xe5c] sm:$0xf]
        %v3111 = vld [vmem:[%s325 + $0xe60] sm:$0xf]
        %v3112 = vld [vmem:[%s325 + $0xe64] sm:$0xf]
        %v3113 = vld [vmem:[%s325 + $0xe68] sm:$0xf]
        %v3114 = vld [vmem:[%s325 + $0xe6c] sm:$0xf]
        %v3115 = vld [vmem:[%s325 + $0xe70] sm:$0xf]
        %v3116 = vld [vmem:[%s325 + $0xe74] sm:$0xf]
        %v3117 = vld [vmem:[%s325 + $0xe78] sm:$0xf]
        %v3118 = vld [vmem:[%s325 + $0xe7c] sm:$0xf]
        %v3119 = vld [vmem:[%s325 + $0xe80] sm:$0xf]
        %v3120 = vld [vmem:[%s325 + $0xe84] sm:$0xf]
        %v3121 = vld [vmem:[%s325 + $0xe88] sm:$0xf]
        %v3122 = vld [vmem:[%s325 + $0xe8c] sm:$0xf]
        %v3123 = vld [vmem:[%s325 + $0xe90] sm:$0xf]
        %v3124 = vld [vmem:[%s325 + $0xe94] sm:$0xf]
        %v3125 = vld [vmem:[%s325 + $0xe98] sm:$0xf]
        %v3126 = vld [vmem:[%s325 + $0xe9c] sm:$0xf]
        %v3127 = vld [vmem:[%s325 + $0xea0] sm:$0xf]
        %v3128 = vld [vmem:[%s325 + $0xea4] sm:$0xf]
        %v3129 = vld [vmem:[%s325 + $0xea8] sm:$0xf]
        %v3130 = vld [vmem:[%s325 + $0xeac] sm:$0xf]
        %v3131 = vld [vmem:[%s325 + $0xeb0] sm:$0xf]
        %v3132 = vld [vmem:[%s325 + $0xeb4] sm:$0xf]
        %v3133 = vld [vmem:[%s325 + $0xeb8] sm:$0xf]
        %v3134 = vld [vmem:[%s325 + $0xebc] sm:$0xf]
        %v3135 = vld [vmem:[%s325 + $0xec0] sm:$0xf]
        %v3136 = vld [vmem:[%s325 + $0xec4] sm:$0xf]
        %v3137 = vld [vmem:[%s325 + $0xec8] sm:$0xf]
        %v3138 = vld [vmem:[%s325 + $0xecc] sm:$0xf]
        %v3139 = vld [vmem:[%s325 + $0xed0] sm:$0xf]
        %v3140 = vld [vmem:[%s325 + $0xed4] sm:$0xf]
        %v3141 = vld [vmem:[%s325 + $0xed8] sm:$0xf]
        %v3142 = vld [vmem:[%s325 + $0xedc] sm:$0xf]
        %v3143 = vld [vmem:[%s325 + $0xee0] sm:$0xf]
        %v3144 = vld [vmem:[%s325 + $0xee4] sm:$0xf]
        %v3145 = vld [vmem:[%s325 + $0xee8] sm:$0xf]
        %v3146 = vld [vmem:[%s325 + $0xeec] sm:$0xf]
        %v3147 = vld [vmem:[%s325 + $0xef0] sm:$0xf]
        %v3148 = vld [vmem:[%s325 + $0xef4] sm:$0xf]
        %v3149 = vld [vmem:[%s325 + $0xef8] sm:$0xf]
        %v3150 = vld [vmem:[%s325 + $0xefc] sm:$0xf]
        %v3151 = vld [vmem:[%s325 + $0xf00] sm:$0xf]
        %v3152 = vld [vmem:[%s325 + $0xf04] sm:$0xf]
        %v3153 = vld [vmem:[%s325 + $0xf08] sm:$0xf]
        %v3154 = vld [vmem:[%s325 + $0xf0c] sm:$0xf]
        %v3155 = vld [vmem:[%s325 + $0xf10] sm:$0xf]
        %v3156 = vld [vmem:[%s325 + $0xf14] sm:$0xf]
        %v3157 = vld [vmem:[%s325 + $0xf18] sm:$0xf]
        %v3158 = vld [vmem:[%s325 + $0xf1c] sm:$0xf]
        %v3159 = vld [vmem:[%s325 + $0xf20] sm:$0xf]
        %v3160 = vld [vmem:[%s325 + $0xf24] sm:$0xf]
        %v3161 = vld [vmem:[%s325 + $0xf28] sm:$0xf]
        %v3162 = vld [vmem:[%s325 + $0xf2c] sm:$0xf]
        %v3163 = vld [vmem:[%s325 + $0xf30] sm:$0xf]
        %v3164 = vld [vmem:[%s325 + $0xf34] sm:$0xf]
        %v3165 = vld [vmem:[%s325 + $0xf38] sm:$0xf]
        %v3166 = vld [vmem:[%s325 + $0xf3c] sm:$0xf]
        %v3167 = vld [vmem:[%s325 + $0xf40] sm:$0xf]
        %v3168 = vld [vmem:[%s325 + $0xf44] sm:$0xf]
        %v3169 = vld [vmem:[%s325 + $0xf48] sm:$0xf]
        %v3170 = vld [vmem:[%s325 + $0xf4c] sm:$0xf]
        %v3171 = vld [vmem:[%s325 + $0xf50] sm:$0xf]
        %v3172 = vld [vmem:[%s325 + $0xf54] sm:$0xf]
        %v3173 = vld [vmem:[%s325 + $0xf58] sm:$0xf]
        %v3174 = vld [vmem:[%s325 + $0xf5c] sm:$0xf]
        %v3175 = vld [vmem:[%s325 + $0xf60] sm:$0xf]
        %v3176 = vld [vmem:[%s325 + $0xf64] sm:$0xf]
        %v3177 = vld [vmem:[%s325 + $0xf68] sm:$0xf]
        %v3178 = vld [vmem:[%s325 + $0xf6c] sm:$0xf]
        %v3179 = vld [vmem:[%s325 + $0xf70] sm:$0xf]
        %v3180 = vld [vmem:[%s325 + $0xf74] sm:$0xf]
        %v3181 = vld [vmem:[%s325 + $0xf78] sm:$0xf]
        %v3182 = vld [vmem:[%s325 + $0xf7c] sm:$0xf]
        %v3183 = vld [vmem:[%s325 + $0xf80] sm:$0xf]
        %v3184 = vld [vmem:[%s325 + $0xf84] sm:$0xf]
        %v3185 = vld [vmem:[%s325 + $0xf88] sm:$0xf]
        %v3186 = vld [vmem:[%s325 + $0xf8c] sm:$0xf]
        %v3187 = vld [vmem:[%s325 + $0xf90] sm:$0xf]
        %v3188 = vld [vmem:[%s325 + $0xf94] sm:$0xf]
        %v3189 = vld [vmem:[%s325 + $0xf98] sm:$0xf]
        %v3190 = vld [vmem:[%s325 + $0xf9c] sm:$0xf]
        %v3191 = vld [vmem:[%s325 + $0xfa0] sm:$0xf]
        %v3192 = vld [vmem:[%s325 + $0xfa4] sm:$0xf]
        %v3193 = vld [vmem:[%s325 + $0xfa8] sm:$0xf]
        %v3194 = vld [vmem:[%s325 + $0xfac] sm:$0xf]
        %v3195 = vld [vmem:[%s325 + $0xfb0] sm:$0xf]
        %v3196 = vld [vmem:[%s325 + $0xfb4] sm:$0xf]
        %v3197 = vld [vmem:[%s325 + $0xfb8] sm:$0xf]
        %v3198 = vld [vmem:[%s325 + $0xfbc] sm:$0xf]
        %v3199 = vld [vmem:[%s325 + $0xfc0] sm:$0xf]
        %v3200 = vld [vmem:[%s325 + $0xfc4] sm:$0xf]
        %v3201 = vld [vmem:[%s325 + $0xfc8] sm:$0xf]
        %v3202 = vld [vmem:[%s325 + $0xfcc] sm:$0xf]
        %v3203 = vld [vmem:[%s325 + $0xfd0] sm:$0xf]
        %v3204 = vld [vmem:[%s325 + $0xfd4] sm:$0xf]
        %v3205 = vld [vmem:[%s325 + $0xfd8] sm:$0xf]
        %v3206 = vld [vmem:[%s325 + $0xfdc] sm:$0xf]
        %v3207 = vld [vmem:[%s325 + $0xfe0] sm:$0xf]
        %v3208 = vld [vmem:[%s325 + $0xfe4] sm:$0xf]
        %v3209 = vld [vmem:[%s325 + $0xfe8] sm:$0xf]
        %v3210 = vld [vmem:[%s325 + $0xfec] sm:$0xf]
        %v3211 = vld [vmem:[%s325 + $0xff0] sm:$0xf]
        %v3212 = vld [vmem:[%s325 + $0xff4] sm:$0xf]
        %v3213 = vld [vmem:[%s325 + $0xff8] sm:$0xf]
        %v3214 = vld [vmem:[%s325 + $0xffc] sm:$0xf]
        %v3215 = vld [vmem:[%s325 + $0x1000] sm:$0xf]
        %v3216 = vld [vmem:[%s325 + $0x1004] sm:$0xf]
        %v3217 = vld [vmem:[%s325 + $0x1008] sm:$0xf]
        %v3218 = vld [vmem:[%s325 + $0x100c] sm:$0xf]
        %v3219 = vld [vmem:[%s325 + $0x1010] sm:$0xf]
        %v3220 = vld [vmem:[%s325 + $0x1014] sm:$0xf]
        %v3221 = vld [vmem:[%s325 + $0x1018] sm:$0xf]
        %v3222 = vld [vmem:[%s325 + $0x101c] sm:$0xf]
        %v3223 = vld [vmem:[%s325 + $0x1020] sm:$0xf]
        %v3224 = vld [vmem:[%s325 + $0x1024] sm:$0xf]
        %v3225 = vld [vmem:[%s325 + $0x1028] sm:$0xf]
        %v3226 = vld [vmem:[%s325 + $0x102c] sm:$0xf]
        %v3227 = vld [vmem:[%s325 + $0x1030] sm:$0xf]
        %v3228 = vld [vmem:[%s325 + $0x1034] sm:$0xf]
        %v3229 = vld [vmem:[%s325 + $0x1038] sm:$0xf]
        %v3230 = vld [vmem:[%s325 + $0x103c] sm:$0xf]
        %v3231 = vld [vmem:[%s325 + $0x1040] sm:$0xf]
        %v3232 = vld [vmem:[%s325 + $0x1044] sm:$0xf]
        %v3233 = vld [vmem:[%s325 + $0x1048] sm:$0xf]
        %v3234 = vld [vmem:[%s325 + $0x104c] sm:$0xf]
        %v3235 = vld [vmem:[%s325 + $0x1050] sm:$0xf]
        %v3236 = vld [vmem:[%s325 + $0x1054] sm:$0xf]
        %v3237 = vld [vmem:[%s325 + $0x1058] sm:$0xf]
        %v3238 = vld [vmem:[%s325 + $0x105c] sm:$0xf]
        %v3239 = vld [vmem:[%s325 + $0x1060] sm:$0xf]
        %v3240 = vld [vmem:[%s325 + $0x1064] sm:$0xf]
        %v3241 = vld [vmem:[%s325 + $0x1068] sm:$0xf]
        %v3242 = vld [vmem:[%s325 + $0x106c] sm:$0xf]
        %v3243 = vld [vmem:[%s325 + $0x1070] sm:$0xf]
        %v3244 = vld [vmem:[%s325 + $0x1074] sm:$0xf]
        %v3245 = vld [vmem:[%s325 + $0x1078] sm:$0xf]
        %v3246 = vld [vmem:[%s325 + $0x107c] sm:$0xf]
        %v3247 = vld [vmem:[%s325 + $0x1080] sm:$0xf]
        %v3248 = vld [vmem:[%s325 + $0x1084] sm:$0xf]
        %v3249 = vld [vmem:[%s325 + $0x1088] sm:$0xf]
        %v3250 = vld [vmem:[%s325 + $0x108c] sm:$0xf]
        %v3251 = vld [vmem:[%s325 + $0x1090] sm:$0xf]
        %v3252 = vld [vmem:[%s325 + $0x1094] sm:$0xf]
        %v3253 = vld [vmem:[%s325 + $0x1098] sm:$0xf]
        %v3254 = vld [vmem:[%s325 + $0x109c] sm:$0xf]
        %v3255 = vld [vmem:[%s325 + $0x10a0] sm:$0xf]
        %v3256 = vld [vmem:[%s325 + $0x10a4] sm:$0xf]
        %v3257 = vld [vmem:[%s325 + $0x10a8] sm:$0xf]
        %v3258 = vld [vmem:[%s325 + $0x10ac] sm:$0xf]
        %v3259 = vld [vmem:[%s325 + $0x10b0] sm:$0xf]
        %v3260 = vld [vmem:[%s325 + $0x10b4] sm:$0xf]
        %v3261 = vld [vmem:[%s325 + $0x10b8] sm:$0xf]
        %v3262 = vld [vmem:[%s325 + $0x10bc] sm:$0xf]
        %v3263 = vld [vmem:[%s325 + $0x10c0] sm:$0xf]
        %v3264 = vld [vmem:[%s325 + $0x10c4] sm:$0xf]
        %v3265 = vld [vmem:[%s325 + $0x10c8] sm:$0xf]
        %v3266 = vld [vmem:[%s325 + $0x10cc] sm:$0xf]
        %v3267 = vld [vmem:[%s325 + $0x10d0] sm:$0xf]
        %v3268 = vld [vmem:[%s325 + $0x10d4] sm:$0xf]
        %v3269 = vld [vmem:[%s325 + $0x10d8] sm:$0xf]
        %v3270 = vld [vmem:[%s325 + $0x10dc] sm:$0xf]
        %v3271 = vld [vmem:[%s325 + $0x10e0] sm:$0xf]
        %v3272 = vld [vmem:[%s325 + $0x10e4] sm:$0xf]
        %v3273 = vld [vmem:[%s325 + $0x10e8] sm:$0xf]
        %v3274 = vld [vmem:[%s325 + $0x10ec] sm:$0xf]
        %v3275 = vld [vmem:[%s325 + $0x10f0] sm:$0xf]
        %v3276 = vld [vmem:[%s325 + $0x10f4] sm:$0xf]
        %v3277 = vld [vmem:[%s325 + $0x10f8] sm:$0xf]
        %v3278 = vld [vmem:[%s325 + $0x10fc] sm:$0xf]
        %v3279 = vld [vmem:[%s325 + $0x1100] sm:$0xf]
        %v3280 = vld [vmem:[%s325 + $0x1104] sm:$0xf]
        %v3281 = vld [vmem:[%s325 + $0x1108] sm:$0xf]
        %v3282 = vld [vmem:[%s325 + $0x110c] sm:$0xf]
        %v3283 = vld [vmem:[%s325 + $0x1110] sm:$0xf]
        %v3284 = vld [vmem:[%s325 + $0x1114] sm:$0xf]
        %v3285 = vld [vmem:[%s325 + $0x1118] sm:$0xf]
        %v3286 = vld [vmem:[%s325 + $0x111c] sm:$0xf]
        %v3287 = vld [vmem:[%s325 + $0x1120] sm:$0xf]
        %v3288 = vld [vmem:[%s325 + $0x1124] sm:$0xf]
        %v3289 = vld [vmem:[%s325 + $0x1128] sm:$0xf]
        %v3290 = vld [vmem:[%s325 + $0x112c] sm:$0xf]
        %v3291 = vld [vmem:[%s325 + $0x1130] sm:$0xf]
        %v3292 = vld [vmem:[%s325 + $0x1134] sm:$0xf]
        %v3293 = vld [vmem:[%s325 + $0x1138] sm:$0xf]
        %v3294 = vld [vmem:[%s325 + $0x113c] sm:$0xf]
        %v3295 = vld [vmem:[%s325 + $0x1140] sm:$0xf]
        %v3296 = vld [vmem:[%s325 + $0x1144] sm:$0xf]
        %v3297 = vld [vmem:[%s325 + $0x1148] sm:$0xf]
        %v3298 = vld [vmem:[%s325 + $0x114c] sm:$0xf]
        %v3299 = vld [vmem:[%s325 + $0x1150] sm:$0xf]
        %v3300 = vld [vmem:[%s325 + $0x1154] sm:$0xf]
        %v3301 = vld [vmem:[%s325 + $0x1158] sm:$0xf]
        %v3302 = vld [vmem:[%s325 + $0x115c] sm:$0xf]
        %v3303 = vld [vmem:[%s325 + $0x1160] sm:$0xf]
        %v3304 = vld [vmem:[%s325 + $0x1164] sm:$0xf]
        %v3305 = vld [vmem:[%s325 + $0x1168] sm:$0xf]
        %v3306 = vld [vmem:[%s325 + $0x116c] sm:$0xf]
        %v3307 = vld [vmem:[%s325 + $0x1170] sm:$0xf]
        %v3308 = vld [vmem:[%s325 + $0x1174] sm:$0xf]
        %v3309 = vld [vmem:[%s325 + $0x1178] sm:$0xf]
        %v3310 = vld [vmem:[%s325 + $0x117c] sm:$0xf]
        %v3311 = vld [vmem:[%s325 + $0x1180] sm:$0xf]
        %v3312 = vld [vmem:[%s325 + $0x1184] sm:$0xf]
        %v3313 = vld [vmem:[%s325 + $0x1188] sm:$0xf]
        %v3314 = vld [vmem:[%s325 + $0x118c] sm:$0xf]
        %v3315 = vld [vmem:[%s325 + $0x1190] sm:$0xf]
        %v3316 = vld [vmem:[%s325 + $0x1194] sm:$0xf]
        %v3317 = vld [vmem:[%s325 + $0x1198] sm:$0xf]
        %v3318 = vld [vmem:[%s325 + $0x119c] sm:$0xf]
        %v3319 = vld [vmem:[%s325 + $0x11a0] sm:$0xf]
        %v3320 = vld [vmem:[%s325 + $0x11a4] sm:$0xf]
        %v3321 = vld [vmem:[%s325 + $0x11a8] sm:$0xf]
        %v3322 = vld [vmem:[%s325 + $0x11ac] sm:$0xf]
        %v3323 = vld [vmem:[%s325 + $0x11b0] sm:$0xf]
        %v3324 = vld [vmem:[%s325 + $0x11b4] sm:$0xf]
        %v3325 = vld [vmem:[%s325 + $0x11b8] sm:$0xf]
        %v3326 = vld [vmem:[%s325 + $0x11bc] sm:$0xf]
        %v3327 = vld [vmem:[%s325 + $0x11c0] sm:$0xf]
        %v3328 = vld [vmem:[%s325 + $0x11c4] sm:$0xf]
        %v3329 = vld [vmem:[%s325 + $0x11c8] sm:$0xf]
        %v3330 = vld [vmem:[%s325 + $0x11cc] sm:$0xf]
        %v3331 = vld [vmem:[%s325 + $0x11d0] sm:$0xf]
        %v3332 = vld [vmem:[%s325 + $0x11d4] sm:$0xf]
        %v3333 = vld [vmem:[%s325 + $0x11d8] sm:$0xf]
        %v3334 = vld [vmem:[%s325 + $0x11dc] sm:$0xf]
        %v3335 = vld [vmem:[%s325 + $0x11e0] sm:$0xf]
        %v3336 = vld [vmem:[%s325 + $0x11e4] sm:$0xf]
        %v3337 = vld [vmem:[%s325 + $0x11e8] sm:$0xf]
        %v3338 = vld [vmem:[%s325 + $0x11ec] sm:$0xf]
        %v3339 = vld [vmem:[%s325 + $0x11f0] sm:$0xf]
        %v3340 = vld [vmem:[%s325 + $0x11f4] sm:$0xf]
        %v3341 = vld [vmem:[%s325 + $0x11f8] sm:$0xf]
        %v3342 = vld [vmem:[%s325 + $0x11fc] sm:$0xf]
        %v3343 = vld [vmem:[%s325 + $0x1200] sm:$0xf]
        %v3344 = vld [vmem:[%s325 + $0x1204] sm:$0xf]
        %v3345 = vld [vmem:[%s325 + $0x1208] sm:$0xf]
        %v3346 = vld [vmem:[%s325 + $0x120c] sm:$0xf]
        %v3347 = vld [vmem:[%s325 + $0x1210] sm:$0xf]
        %v3348 = vld [vmem:[%s325 + $0x1214] sm:$0xf]
        %v3349 = vld [vmem:[%s325 + $0x1218] sm:$0xf]
        %v3350 = vld [vmem:[%s325 + $0x121c] sm:$0xf]
        %v3351 = vld [vmem:[%s325 + $0x1220] sm:$0xf]
        %v3352 = vld [vmem:[%s325 + $0x1224] sm:$0xf]
        %v3353 = vld [vmem:[%s325 + $0x1228] sm:$0xf]
        %v3354 = vld [vmem:[%s325 + $0x122c] sm:$0xf]
        %v3355 = vld [vmem:[%s325 + $0x1230] sm:$0xf]
        %v3356 = vld [vmem:[%s325 + $0x1234] sm:$0xf]
        %v3357 = vld [vmem:[%s325 + $0x1238] sm:$0xf]
        %v3358 = vld [vmem:[%s325 + $0x123c] sm:$0xf]
        %v3359 = vld [vmem:[%s325 + $0x1240] sm:$0xf]
        %v3360 = vld [vmem:[%s325 + $0x1244] sm:$0xf]
        %v3361 = vld [vmem:[%s325 + $0x1248] sm:$0xf]
        %v3362 = vld [vmem:[%s325 + $0x124c] sm:$0xf]
        %v3363 = vld [vmem:[%s325 + $0x1250] sm:$0xf]
        %v3364 = vld [vmem:[%s325 + $0x1254] sm:$0xf]
        %v3365 = vld [vmem:[%s325 + $0x1258] sm:$0xf]
        %v3366 = vld [vmem:[%s325 + $0x125c] sm:$0xf]
        %v3367 = vld [vmem:[%s325 + $0x1260] sm:$0xf]
        %v3368 = vld [vmem:[%s325 + $0x1264] sm:$0xf]
        %v3369 = vld [vmem:[%s325 + $0x1268] sm:$0xf]
        %v3370 = vld [vmem:[%s325 + $0x126c] sm:$0xf]
        %v3371 = vld [vmem:[%s325 + $0x1270] sm:$0xf]
        %v3372 = vld [vmem:[%s325 + $0x1274] sm:$0xf]
        %v3373 = vld [vmem:[%s325 + $0x1278] sm:$0xf]
        %v3374 = vld [vmem:[%s325 + $0x127c] sm:$0xf]
        %v3375 = vld [vmem:[%s325 + $0x1280] sm:$0xf]
        %v3376 = vld [vmem:[%s325 + $0x1284] sm:$0xf]
        %v3377 = vld [vmem:[%s325 + $0x1288] sm:$0xf]
        %v3378 = vld [vmem:[%s325 + $0x128c] sm:$0xf]
        %v3379 = vld [vmem:[%s325 + $0x1290] sm:$0xf]
        %v3380 = vld [vmem:[%s325 + $0x1294] sm:$0xf]
        %v3381 = vld [vmem:[%s325 + $0x1298] sm:$0xf]
        %v3382 = vld [vmem:[%s325 + $0x129c] sm:$0xf]
        %v3383 = vld [vmem:[%s325 + $0x12a0] sm:$0xf]
        %v3384 = vld [vmem:[%s325 + $0x12a4] sm:$0xf]
        %v3385 = vld [vmem:[%s325 + $0x12a8] sm:$0xf]
        %v3386 = vld [vmem:[%s325 + $0x12ac] sm:$0xf]
        %v3387 = vld [vmem:[%s325 + $0x12b0] sm:$0xf]
        %v3388 = vld [vmem:[%s325 + $0x12b4] sm:$0xf]
        %v3389 = vld [vmem:[%s325 + $0x12b8] sm:$0xf]
        %v3390 = vld [vmem:[%s325 + $0x12bc] sm:$0xf]
        %v3391 = vld [vmem:[%s325 + $0x12c0] sm:$0xf]
        %v3392 = vld [vmem:[%s325 + $0x12c4] sm:$0xf]
        %v3393 = vld [vmem:[%s325 + $0x12c8] sm:$0xf]
        %v3394 = vld [vmem:[%s325 + $0x12cc] sm:$0xf]
        %v3395 = vld [vmem:[%s325 + $0x12d0] sm:$0xf]
        %v3396 = vld [vmem:[%s325 + $0x12d4] sm:$0xf]
        %v3397 = vld [vmem:[%s325 + $0x12d8] sm:$0xf]
        %v3398 = vld [vmem:[%s325 + $0x12dc] sm:$0xf]
        %v3399 = vld [vmem:[%s325 + $0x12e0] sm:$0xf]
        %v3400 = vld [vmem:[%s325 + $0x12e4] sm:$0xf]
        %v3401 = vld [vmem:[%s325 + $0x12e8] sm:$0xf]
        %v3402 = vld [vmem:[%s325 + $0x12ec] sm:$0xf]
        %v3403 = vld [vmem:[%s325 + $0x12f0] sm:$0xf]
        %v3404 = vld [vmem:[%s325 + $0x12f4] sm:$0xf]
        %v3405 = vld [vmem:[%s325 + $0x12f8] sm:$0xf]
        %v3406 = vld [vmem:[%s325 + $0x12fc] sm:$0xf]
        %v3407 = vld [vmem:[%s325 + $0x1300] sm:$0xf]
        %v3408 = vld [vmem:[%s325 + $0x1304] sm:$0xf]
        %v3409 = vld [vmem:[%s325 + $0x1308] sm:$0xf]
        %v3410 = vld [vmem:[%s325 + $0x130c] sm:$0xf]
        %v3411 = vld [vmem:[%s325 + $0x1310] sm:$0xf]
        %v3412 = vld [vmem:[%s325 + $0x1314] sm:$0xf]
        %v3413 = vld [vmem:[%s325 + $0x1318] sm:$0xf]
        %v3414 = vld [vmem:[%s325 + $0x131c] sm:$0xf]
        %v3415 = vld [vmem:[%s325 + $0x1320] sm:$0xf]
        %v3416 = vld [vmem:[%s325 + $0x1324] sm:$0xf]
        %v3417 = vld [vmem:[%s325 + $0x1328] sm:$0xf]
        %v3418 = vld [vmem:[%s325 + $0x132c] sm:$0xf]
        %v3419 = vld [vmem:[%s325 + $0x1330] sm:$0xf]
        %v3420 = vld [vmem:[%s325 + $0x1334] sm:$0xf]
        %v3421 = vld [vmem:[%s325 + $0x1338] sm:$0xf]
        %v3422 = vld [vmem:[%s325 + $0x133c] sm:$0xf]
        %v3423 = vld [vmem:[%s325 + $0x1340] sm:$0xf]
        %v3424 = vld [vmem:[%s325 + $0x1344] sm:$0xf]
        %v3425 = vld [vmem:[%s325 + $0x1348] sm:$0xf]
        %v3426 = vld [vmem:[%s325 + $0x134c] sm:$0xf]
        %v3427 = vld [vmem:[%s325 + $0x1350] sm:$0xf]
        %v3428 = vld [vmem:[%s325 + $0x1354] sm:$0xf]
        %v3429 = vld [vmem:[%s325 + $0x1358] sm:$0xf]
        %v3430 = vld [vmem:[%s325 + $0x135c] sm:$0xf]
        %v3431 = vld [vmem:[%s325 + $0x1360] sm:$0xf]
        %v3432 = vld [vmem:[%s325 + $0x1364] sm:$0xf]
        %v3433 = vld [vmem:[%s325 + $0x1368] sm:$0xf]
        %v3434 = vld [vmem:[%s325 + $0x136c] sm:$0xf]
        %v3435 = vld [vmem:[%s325 + $0x1370] sm:$0xf]
        %v3436 = vld [vmem:[%s325 + $0x1374] sm:$0xf]
        %v3437 = vld [vmem:[%s325 + $0x1378] sm:$0xf]
        %v3438 = vld [vmem:[%s325 + $0x137c] sm:$0xf]
        %v3439 = vld [vmem:[%s325 + $0x1380] sm:$0xf]
        %v3440 = vld [vmem:[%s325 + $0x1384] sm:$0xf]
        %v3441 = vld [vmem:[%s325 + $0x1388] sm:$0xf]
        %v3442 = vld [vmem:[%s325 + $0x138c] sm:$0xf]
        %v3443 = vld [vmem:[%s325 + $0x1390] sm:$0xf]
        %v3444 = vld [vmem:[%s325 + $0x1394] sm:$0xf]
        %v3445 = vld [vmem:[%s325 + $0x1398] sm:$0xf]
        %v3446 = vld [vmem:[%s325 + $0x139c] sm:$0xf]
        %v3447 = vld [vmem:[%s325 + $0x13a0] sm:$0xf]
        %v3448 = vld [vmem:[%s325 + $0x13a4] sm:$0xf]
        %v3449 = vld [vmem:[%s325 + $0x13a8] sm:$0xf]
        %v3450 = vld [vmem:[%s325 + $0x13ac] sm:$0xf]
        %v3451 = vld [vmem:[%s325 + $0x13b0] sm:$0xf]
        %v3452 = vld [vmem:[%s325 + $0x13b4] sm:$0xf]
        %v3453 = vld [vmem:[%s325 + $0x13b8] sm:$0xf]
        %v3454 = vld [vmem:[%s325 + $0x13bc] sm:$0xf]
        %v3455 = vld [vmem:[%s325 + $0x13c0] sm:$0xf]
        %v3456 = vld [vmem:[%s325 + $0x13c4] sm:$0xf]
        %v3457 = vld [vmem:[%s325 + $0x13c8] sm:$0xf]
        %v3458 = vld [vmem:[%s325 + $0x13cc] sm:$0xf]
        %v3459 = vld [vmem:[%s325 + $0x13d0] sm:$0xf]
        %v3460 = vld [vmem:[%s325 + $0x13d4] sm:$0xf]
        %v3461 = vld [vmem:[%s325 + $0x13d8] sm:$0xf]
        %v3462 = vld [vmem:[%s325 + $0x13dc] sm:$0xf]
        %v3463 = vld [vmem:[%s325 + $0x13e0] sm:$0xf]
        %v3464 = vld [vmem:[%s325 + $0x13e4] sm:$0xf]
        %v3465 = vld [vmem:[%s325 + $0x13e8] sm:$0xf]
        %v3466 = vld [vmem:[%s325 + $0x13ec] sm:$0xf]
        %v3467 = vld [vmem:[%s325 + $0x13f0] sm:$0xf]
        %v3468 = vld [vmem:[%s325 + $0x13f4] sm:$0xf]
        %v3469 = vld [vmem:[%s325 + $0x13f8] sm:$0xf]
        %v3470 = vld [vmem:[%s325 + $0x13fc] sm:$0xf]
        %v3471 = vld [vmem:[%s325 + $0x1400] sm:$0xf]
        %v3472 = vld [vmem:[%s325 + $0x1404] sm:$0xf]
        %v3473 = vld [vmem:[%s325 + $0x1408] sm:$0xf]
        %v3474 = vld [vmem:[%s325 + $0x140c] sm:$0xf]
        %v3475 = vld [vmem:[%s325 + $0x1410] sm:$0xf]
        %v3476 = vld [vmem:[%s325 + $0x1414] sm:$0xf]
        %v3477 = vld [vmem:[%s325 + $0x1418] sm:$0xf]
        %v3478 = vld [vmem:[%s325 + $0x141c] sm:$0xf]
        %v3479 = vld [vmem:[%s325 + $0x1420] sm:$0xf]
        %v3480 = vld [vmem:[%s325 + $0x1424] sm:$0xf]
        %v3481 = vld [vmem:[%s325 + $0x1428] sm:$0xf]
        %v3482 = vld [vmem:[%s325 + $0x142c] sm:$0xf]
        %v3483 = vld [vmem:[%s325 + $0x1430] sm:$0xf]
        %v3484 = vld [vmem:[%s325 + $0x1434] sm:$0xf]
        %v3485 = vld [vmem:[%s325 + $0x1438] sm:$0xf]
        %v3486 = vld [vmem:[%s325 + $0x143c] sm:$0xf]
        %v3487 = vld [vmem:[%s325 + $0x1440] sm:$0xf]
        %v3488 = vld [vmem:[%s325 + $0x1444] sm:$0xf]
        %v3489 = vld [vmem:[%s325 + $0x1448] sm:$0xf]
        %v3490 = vld [vmem:[%s325 + $0x144c] sm:$0xf]
        %v3491 = vld [vmem:[%s325 + $0x1450] sm:$0xf]
        %v3492 = vld [vmem:[%s325 + $0x1454] sm:$0xf]
        %v3493 = vld [vmem:[%s325 + $0x1458] sm:$0xf]
        %v3494 = vld [vmem:[%s325 + $0x145c] sm:$0xf]
        %v3495 = vld [vmem:[%s325 + $0x1460] sm:$0xf]
        %v3496 = vld [vmem:[%s325 + $0x1464] sm:$0xf]
        %v3497 = vld [vmem:[%s325 + $0x1468] sm:$0xf]
        %v3498 = vld [vmem:[%s325 + $0x146c] sm:$0xf]
        %v3499 = vld [vmem:[%s325 + $0x1470] sm:$0xf]
        %v3500 = vld [vmem:[%s325 + $0x1474] sm:$0xf]
        %v3501 = vld [vmem:[%s325 + $0x1478] sm:$0xf]
        %v3502 = vld [vmem:[%s325 + $0x147c] sm:$0xf]
        %v3503 = vld [vmem:[%s325 + $0x1480] sm:$0xf]
        %v3504 = vld [vmem:[%s325 + $0x1484] sm:$0xf]
        %v3505 = vld [vmem:[%s325 + $0x1488] sm:$0xf]
        %v3506 = vld [vmem:[%s325 + $0x148c] sm:$0xf]
        %v3507 = vld [vmem:[%s325 + $0x1490] sm:$0xf]
        %v3508 = vld [vmem:[%s325 + $0x1494] sm:$0xf]
        %v3509 = vld [vmem:[%s325 + $0x1498] sm:$0xf]
        %v3510 = vld [vmem:[%s325 + $0x149c] sm:$0xf]
        %v3511 = vld [vmem:[%s325 + $0x14a0] sm:$0xf]
        %v3512 = vld [vmem:[%s325 + $0x14a4] sm:$0xf]
        %v3513 = vld [vmem:[%s325 + $0x14a8] sm:$0xf]
        %v3514 = vld [vmem:[%s325 + $0x14ac] sm:$0xf]
        %v3515 = vld [vmem:[%s325 + $0x14b0] sm:$0xf]
        %v3516 = vld [vmem:[%s325 + $0x14b4] sm:$0xf]
        %v3517 = vld [vmem:[%s325 + $0x14b8] sm:$0xf]
        %v3518 = vld [vmem:[%s325 + $0x14bc] sm:$0xf]
        %v3519 = vld [vmem:[%s325 + $0x14c0] sm:$0xf]
        %v3520 = vld [vmem:[%s325 + $0x14c4] sm:$0xf]
        %v3521 = vld [vmem:[%s325 + $0x14c8] sm:$0xf]
        %v3522 = vld [vmem:[%s325 + $0x14cc] sm:$0xf]
        %v3523 = vld [vmem:[%s325 + $0x14d0] sm:$0xf]
        %v3524 = vld [vmem:[%s325 + $0x14d4] sm:$0xf]
        %v3525 = vld [vmem:[%s325 + $0x14d8] sm:$0xf]
        %v3526 = vld [vmem:[%s325 + $0x14dc] sm:$0xf]
        %v3527 = vld [vmem:[%s325 + $0x14e0] sm:$0xf]
        %v3528 = vld [vmem:[%s325 + $0x14e4] sm:$0xf]
        %v3529 = vld [vmem:[%s325 + $0x14e8] sm:$0xf]
        %v3530 = vld [vmem:[%s325 + $0x14ec] sm:$0xf]
        %v3531 = vld [vmem:[%s325 + $0x14f0] sm:$0xf]
        %v3532 = vld [vmem:[%s325 + $0x14f4] sm:$0xf]
        %v3533 = vld [vmem:[%s325 + $0x14f8] sm:$0xf]
        %v3534 = vld [vmem:[%s325 + $0x14fc] sm:$0xf]
        %v3535 = vld [vmem:[%s325 + $0x1500] sm:$0xf]
        %v3536 = vld [vmem:[%s325 + $0x1504] sm:$0xf]
        %v3537 = vld [vmem:[%s325 + $0x1508] sm:$0xf]
        %v3538 = vld [vmem:[%s325 + $0x150c] sm:$0xf]
        %v3539 = vld [vmem:[%s325 + $0x1510] sm:$0xf]
        %v3540 = vld [vmem:[%s325 + $0x1514] sm:$0xf]
        %v3541 = vld [vmem:[%s325 + $0x1518] sm:$0xf]
        %v3542 = vld [vmem:[%s325 + $0x151c] sm:$0xf]
        %v3543 = vld [vmem:[%s325 + $0x1520] sm:$0xf]
        %v3544 = vld [vmem:[%s325 + $0x1524] sm:$0xf]
        %v3545 = vld [vmem:[%s325 + $0x1528] sm:$0xf]
        %v3546 = vld [vmem:[%s325 + $0x152c] sm:$0xf]
        %v3547 = vld [vmem:[%s325 + $0x1530] sm:$0xf]
        %v3548 = vld [vmem:[%s325 + $0x1534] sm:$0xf]
        %v3549 = vld [vmem:[%s325 + $0x1538] sm:$0xf]
        %v3550 = vld [vmem:[%s325 + $0x153c] sm:$0xf]
        %v3551 = vld [vmem:[%s325 + $0x1540] sm:$0xf]
        %v3552 = vld [vmem:[%s325 + $0x1544] sm:$0xf]
        %v3553 = vld [vmem:[%s325 + $0x1548] sm:$0xf]
        %v3554 = vld [vmem:[%s325 + $0x154c] sm:$0xf]
        %v3555 = vld [vmem:[%s325 + $0x1550] sm:$0xf]
        %v3556 = vld [vmem:[%s325 + $0x1554] sm:$0xf]
        %v3557 = vld [vmem:[%s325 + $0x1558] sm:$0xf]
        %v3558 = vld [vmem:[%s325 + $0x155c] sm:$0xf]
        %v3559 = vld [vmem:[%s325 + $0x1560] sm:$0xf]
        %v3560 = vld [vmem:[%s325 + $0x1564] sm:$0xf]
        %v3561 = vld [vmem:[%s325 + $0x1568] sm:$0xf]
        %v3562 = vld [vmem:[%s325 + $0x156c] sm:$0xf]
        %v3563 = vld [vmem:[%s325 + $0x1570] sm:$0xf]
        %v3564 = vld [vmem:[%s325 + $0x1574] sm:$0xf]
        %v3565 = vld [vmem:[%s325 + $0x1578] sm:$0xf]
        %v3566 = vld [vmem:[%s325 + $0x157c] sm:$0xf]
        %v3567 = vld [vmem:[%s325 + $0x1580] sm:$0xf]
        %v3568 = vld [vmem:[%s325 + $0x1584] sm:$0xf]
        %v3569 = vld [vmem:[%s325 + $0x1588] sm:$0xf]
        %v3570 = vld [vmem:[%s325 + $0x158c] sm:$0xf]
        %v3571 = vld [vmem:[%s325 + $0x1590] sm:$0xf]
        %v3572 = vld [vmem:[%s325 + $0x1594] sm:$0xf]
        %v3573 = vld [vmem:[%s325 + $0x1598] sm:$0xf]
        %v3574 = vld [vmem:[%s325 + $0x159c] sm:$0xf]
        %v3575 = vld [vmem:[%s325 + $0x15a0] sm:$0xf]
        %v3576 = vld [vmem:[%s325 + $0x15a4] sm:$0xf]
        %v3577 = vld [vmem:[%s325 + $0x15a8] sm:$0xf]
        %v3578 = vld [vmem:[%s325 + $0x15ac] sm:$0xf]
        %v3579 = vld [vmem:[%s325 + $0x15b0] sm:$0xf]
        %v3580 = vld [vmem:[%s325 + $0x15b4] sm:$0xf]
        %v3581 = vld [vmem:[%s325 + $0x15b8] sm:$0xf]
        %v3582 = vld [vmem:[%s325 + $0x15bc] sm:$0xf]
        %v3583 = vld [vmem:[%s325 + $0x15c0] sm:$0xf]
        %v3584 = vld [vmem:[%s325 + $0x15c4] sm:$0xf]
        %v3585 = vld [vmem:[%s325 + $0x15c8] sm:$0xf]
        %v3586 = vld [vmem:[%s325 + $0x15cc] sm:$0xf]
        %v3587 = vld [vmem:[%s325 + $0x15d0] sm:$0xf]
        %v3588 = vld [vmem:[%s325 + $0x15d4] sm:$0xf]
        %v3589 = vld [vmem:[%s325 + $0x15d8] sm:$0xf]
        %v3590 = vld [vmem:[%s325 + $0x15dc] sm:$0xf]
        %v3591 = vld [vmem:[%s325 + $0x15e0] sm:$0xf]
        %v3592 = vld [vmem:[%s325 + $0x15e4] sm:$0xf]
        %v3593 = vld [vmem:[%s325 + $0x15e8] sm:$0xf]
        %v3594 = vld [vmem:[%s325 + $0x15ec] sm:$0xf]
        %v3595 = vld [vmem:[%s325 + $0x15f0] sm:$0xf]
        %v3596 = vld [vmem:[%s325 + $0x15f4] sm:$0xf]
        %v3597 = vld [vmem:[%s325 + $0x15f8] sm:$0xf]
        %v3598 = vld [vmem:[%s325 + $0x15fc] sm:$0xf]
        %v3599 = vld [vmem:[%s325 + $0x1600] sm:$0xf]
        %v3600 = vld [vmem:[%s325 + $0x1604] sm:$0xf]
        %v3601 = vld [vmem:[%s325 + $0x1608] sm:$0xf]
        %v3602 = vld [vmem:[%s325 + $0x160c] sm:$0xf]
        %v3603 = vld [vmem:[%s325 + $0x1610] sm:$0xf]
        %v3604 = vld [vmem:[%s325 + $0x1614] sm:$0xf]
        %v3605 = vld [vmem:[%s325 + $0x1618] sm:$0xf]
        %v3606 = vld [vmem:[%s325 + $0x161c] sm:$0xf]
        %v3607 = vld [vmem:[%s325 + $0x1620] sm:$0xf]
        %v3608 = vld [vmem:[%s325 + $0x1624] sm:$0xf]
        %v3609 = vld [vmem:[%s325 + $0x1628] sm:$0xf]
        %v3610 = vld [vmem:[%s325 + $0x162c] sm:$0xf]
        %v3611 = vld [vmem:[%s325 + $0x1630] sm:$0xf]
        %v3612 = vld [vmem:[%s325 + $0x1634] sm:$0xf]
        %v3613 = vld [vmem:[%s325 + $0x1638] sm:$0xf]
        %v3614 = vld [vmem:[%s325 + $0x163c] sm:$0xf]
        %v3615 = vld [vmem:[%s325 + $0x1640] sm:$0xf]
        %v3616 = vld [vmem:[%s325 + $0x1644] sm:$0xf]
        %v3617 = vld [vmem:[%s325 + $0x1648] sm:$0xf]
        %v3618 = vld [vmem:[%s325 + $0x164c] sm:$0xf]
        %v3619 = vld [vmem:[%s325 + $0x1650] sm:$0xf]
        %v3620 = vld [vmem:[%s325 + $0x1654] sm:$0xf]
        %v3621 = vld [vmem:[%s325 + $0x1658] sm:$0xf]
        %v3622 = vld [vmem:[%s325 + $0x165c] sm:$0xf]
        %v3623 = vld [vmem:[%s325 + $0x1660] sm:$0xf]
        %v3624 = vld [vmem:[%s325 + $0x1664] sm:$0xf]
        %v3625 = vld [vmem:[%s325 + $0x1668] sm:$0xf]
        %v3626 = vld [vmem:[%s325 + $0x166c] sm:$0xf]
        %v3627 = vld [vmem:[%s325 + $0x1670] sm:$0xf]
        %v3628 = vld [vmem:[%s325 + $0x1674] sm:$0xf]
        %v3629 = vld [vmem:[%s325 + $0x1678] sm:$0xf]
        %v3630 = vld [vmem:[%s325 + $0x167c] sm:$0xf]
        %v3631 = vld [vmem:[%s325 + $0x1680] sm:$0xf]
        %v3632 = vld [vmem:[%s325 + $0x1684] sm:$0xf]
        %v3633 = vld [vmem:[%s325 + $0x1688] sm:$0xf]
        %v3634 = vld [vmem:[%s325 + $0x168c] sm:$0xf]
        %v3635 = vld [vmem:[%s325 + $0x1690] sm:$0xf]
        %v3636 = vld [vmem:[%s325 + $0x1694] sm:$0xf]
        %v3637 = vld [vmem:[%s325 + $0x1698] sm:$0xf]
        %v3638 = vld [vmem:[%s325 + $0x169c] sm:$0xf]
        %v3639 = vld [vmem:[%s325 + $0x16a0] sm:$0xf]
        %v3640 = vld [vmem:[%s325 + $0x16a4] sm:$0xf]
        %v3641 = vld [vmem:[%s325 + $0x16a8] sm:$0xf]
        %v3642 = vld [vmem:[%s325 + $0x16ac] sm:$0xf]
        %v3643 = vld [vmem:[%s325 + $0x16b0] sm:$0xf]
        %v3644 = vld [vmem:[%s325 + $0x16b4] sm:$0xf]
        %v3645 = vld [vmem:[%s325 + $0x16b8] sm:$0xf]
        %v3646 = vld [vmem:[%s325 + $0x16bc] sm:$0xf]
        %v3647 = vld [vmem:[%s325 + $0x16c0] sm:$0xf]
        %v3648 = vld [vmem:[%s325 + $0x16c4] sm:$0xf]
        %v3649 = vld [vmem:[%s325 + $0x16c8] sm:$0xf]
        %v3650 = vld [vmem:[%s325 + $0x16cc] sm:$0xf]
        %v3651 = vld [vmem:[%s325 + $0x16d0] sm:$0xf]
        %v3652 = vld [vmem:[%s325 + $0x16d4] sm:$0xf]
        %v3653 = vld [vmem:[%s325 + $0x16d8] sm:$0xf]
        %v3654 = vld [vmem:[%s325 + $0x16dc] sm:$0xf]
        %v3655 = vld [vmem:[%s325 + $0x16e0] sm:$0xf]
        %v3656 = vld [vmem:[%s325 + $0x16e4] sm:$0xf]
        %v3657 = vld [vmem:[%s325 + $0x16e8] sm:$0xf]
        %v3658 = vld [vmem:[%s325 + $0x16ec] sm:$0xf]
        %v3659 = vld [vmem:[%s325 + $0x16f0] sm:$0xf]
        %v3660 = vld [vmem:[%s325 + $0x16f4] sm:$0xf]
        %v3661 = vld [vmem:[%s325 + $0x16f8] sm:$0xf]
        %v3662 = vld [vmem:[%s325 + $0x16fc] sm:$0xf]
        %v3663 = vld [vmem:[%s325 + $0x1700] sm:$0xf]
        %v3664 = vld [vmem:[%s325 + $0x1704] sm:$0xf]
        %v3665 = vld [vmem:[%s325 + $0x1708] sm:$0xf]
        %v3666 = vld [vmem:[%s325 + $0x170c] sm:$0xf]
        %v3667 = vld [vmem:[%s325 + $0x1710] sm:$0xf]
        %v3668 = vld [vmem:[%s325 + $0x1714] sm:$0xf]
        %v3669 = vld [vmem:[%s325 + $0x1718] sm:$0xf]
        %v3670 = vld [vmem:[%s325 + $0x171c] sm:$0xf]
        %v3671 = vld [vmem:[%s325 + $0x1720] sm:$0xf]
        %v3672 = vld [vmem:[%s325 + $0x1724] sm:$0xf]
        %v3673 = vld [vmem:[%s325 + $0x1728] sm:$0xf]
        %v3674 = vld [vmem:[%s325 + $0x172c] sm:$0xf]
        %v3675 = vld [vmem:[%s325 + $0x1730] sm:$0xf]
        %v3676 = vld [vmem:[%s325 + $0x1734] sm:$0xf]
        %v3677 = vld [vmem:[%s325 + $0x1738] sm:$0xf]
        %v3678 = vld [vmem:[%s325 + $0x173c] sm:$0xf]
        %v3679 = vld [vmem:[%s325 + $0x1740] sm:$0xf]
        %v3680 = vld [vmem:[%s325 + $0x1744] sm:$0xf]
        %v3681 = vld [vmem:[%s325 + $0x1748] sm:$0xf]
        %v3682 = vld [vmem:[%s325 + $0x174c] sm:$0xf]
        %v3683 = vld [vmem:[%s325 + $0x1750] sm:$0xf]
        %v3684 = vld [vmem:[%s325 + $0x1754] sm:$0xf]
        %v3685 = vld [vmem:[%s325 + $0x1758] sm:$0xf]
        %v3686 = vld [vmem:[%s325 + $0x175c] sm:$0xf]
        %v3687 = vld [vmem:[%s325 + $0x1760] sm:$0xf]
        %v3688 = vld [vmem:[%s325 + $0x1764] sm:$0xf]
        %v3689 = vld [vmem:[%s325 + $0x1768] sm:$0xf]
        %v3690 = vld [vmem:[%s325 + $0x176c] sm:$0xf]
        %v3691 = vld [vmem:[%s325 + $0x1770] sm:$0xf]
        %v3692 = vld [vmem:[%s325 + $0x1774] sm:$0xf]
        %v3693 = vld [vmem:[%s325 + $0x1778] sm:$0xf]
        %v3694 = vld [vmem:[%s325 + $0x177c] sm:$0xf]
        %v3695 = vld [vmem:[%s325 + $0x1780] sm:$0xf]
        %v3696 = vld [vmem:[%s325 + $0x1784] sm:$0xf]
        %v3697 = vld [vmem:[%s325 + $0x1788] sm:$0xf]
        %v3698 = vld [vmem:[%s325 + $0x178c] sm:$0xf]
        %v3699 = vld [vmem:[%s325 + $0x1790] sm:$0xf]
        %v3700 = vld [vmem:[%s325 + $0x1794] sm:$0xf]
        %v3701 = vld [vmem:[%s325 + $0x1798] sm:$0xf]
        %v3702 = vld [vmem:[%s325 + $0x179c] sm:$0xf]
        %v3703 = vld [vmem:[%s325 + $0x17a0] sm:$0xf]
        %v3704 = vld [vmem:[%s325 + $0x17a4] sm:$0xf]
        %v3705 = vld [vmem:[%s325 + $0x17a8] sm:$0xf]
        %v3706 = vld [vmem:[%s325 + $0x17ac] sm:$0xf]
        %v3707 = vld [vmem:[%s325 + $0x17b0] sm:$0xf]
        %v3708 = vld [vmem:[%s325 + $0x17b4] sm:$0xf]
        %v3709 = vld [vmem:[%s325 + $0x17b8] sm:$0xf]
        %v3710 = vld [vmem:[%s325 + $0x17bc] sm:$0xf]
        %v3711 = vld [vmem:[%s325 + $0x17c0] sm:$0xf]
        %v3712 = vld [vmem:[%s325 + $0x17c4] sm:$0xf]
        %v3713 = vld [vmem:[%s325 + $0x17c8] sm:$0xf]
        %v3714 = vld [vmem:[%s325 + $0x17cc] sm:$0xf]
        %v3715 = vld [vmem:[%s325 + $0x17d0] sm:$0xf]
        %v3716 = vld [vmem:[%s325 + $0x17d4] sm:$0xf]
        %v3717 = vld [vmem:[%s325 + $0x17d8] sm:$0xf]
        %v3718 = vld [vmem:[%s325 + $0x17dc] sm:$0xf]
        %v3719 = vld [vmem:[%s325 + $0x17e0] sm:$0xf]
        %v3720 = vld [vmem:[%s325 + $0x17e4] sm:$0xf]
        %v3721 = vld [vmem:[%s325 + $0x17e8] sm:$0xf]
        %v3722 = vld [vmem:[%s325 + $0x17ec] sm:$0xf]
        %v3723 = vld [vmem:[%s325 + $0x17f0] sm:$0xf]
        %v3724 = vld [vmem:[%s325 + $0x17f4] sm:$0xf]
        %v3725 = vld [vmem:[%s325 + $0x17f8] sm:$0xf]
        %v3726 = vld [vmem:[%s325 + $0x17fc] sm:$0xf]
        %v3727 = vld [vmem:[%s325 + $0x1800] sm:$0xf]
        %v3728 = vld [vmem:[%s325 + $0x1804] sm:$0xf]
        %v3729 = vld [vmem:[%s325 + $0x1808] sm:$0xf]
        %v3730 = vld [vmem:[%s325 + $0x180c] sm:$0xf]
        %v3731 = vld [vmem:[%s325 + $0x1810] sm:$0xf]
        %v3732 = vld [vmem:[%s325 + $0x1814] sm:$0xf]
        %v3733 = vld [vmem:[%s325 + $0x1818] sm:$0xf]
        %v3734 = vld [vmem:[%s325 + $0x181c] sm:$0xf]
        %v3735 = vld [vmem:[%s325 + $0x1820] sm:$0xf]
        %v3736 = vld [vmem:[%s325 + $0x1824] sm:$0xf]
        %v3737 = vld [vmem:[%s325 + $0x1828] sm:$0xf]
        %v3738 = vld [vmem:[%s325 + $0x182c] sm:$0xf]
        %v3739 = vld [vmem:[%s325 + $0x1830] sm:$0xf]
        %v3740 = vld [vmem:[%s325 + $0x1834] sm:$0xf]
        %v3741 = vld [vmem:[%s325 + $0x1838] sm:$0xf]
        %v3742 = vld [vmem:[%s325 + $0x183c] sm:$0xf]
        %v3743 = vld [vmem:[%s325 + $0x1840] sm:$0xf]
        %v3744 = vld [vmem:[%s325 + $0x1844] sm:$0xf]
        %v3745 = vld [vmem:[%s325 + $0x1848] sm:$0xf]
        %v3746 = vld [vmem:[%s325 + $0x184c] sm:$0xf]
        %v3747 = vld [vmem:[%s325 + $0x1850] sm:$0xf]
        %v3748 = vld [vmem:[%s325 + $0x1854] sm:$0xf]
        %v3749 = vld [vmem:[%s325 + $0x1858] sm:$0xf]
        %v3750 = vld [vmem:[%s325 + $0x185c] sm:$0xf]
        %v3751 = vld [vmem:[%s325 + $0x1860] sm:$0xf]
        %v3752 = vld [vmem:[%s325 + $0x1864] sm:$0xf]
        %v3753 = vld [vmem:[%s325 + $0x1868] sm:$0xf]
        %v3754 = vld [vmem:[%s325 + $0x186c] sm:$0xf]
        %v3755 = vld [vmem:[%s325 + $0x1870] sm:$0xf]
        %v3756 = vld [vmem:[%s325 + $0x1874] sm:$0xf]
        %v3757 = vld [vmem:[%s325 + $0x1878] sm:$0xf]
        %v3758 = vld [vmem:[%s325 + $0x187c] sm:$0xf]
        %v3759 = vld [vmem:[%s325 + $0x1880] sm:$0xf]
        %v3760 = vld [vmem:[%s325 + $0x1884] sm:$0xf]
        %v3761 = vld [vmem:[%s325 + $0x1888] sm:$0xf]
        %v3762 = vld [vmem:[%s325 + $0x188c] sm:$0xf]
        %v3763 = vld [vmem:[%s325 + $0x1890] sm:$0xf]
        %v3764 = vld [vmem:[%s325 + $0x1894] sm:$0xf]
        %v3765 = vld [vmem:[%s325 + $0x1898] sm:$0xf]
        %v3766 = vld [vmem:[%s325 + $0x189c] sm:$0xf]
        %v3767 = vld [vmem:[%s325 + $0x18a0] sm:$0xf]
        %v3768 = vld [vmem:[%s325 + $0x18a4] sm:$0xf]
        %v3769 = vld [vmem:[%s325 + $0x18a8] sm:$0xf]
        %v3770 = vld [vmem:[%s325 + $0x18ac] sm:$0xf]
        %v3771 = vld [vmem:[%s325 + $0x18b0] sm:$0xf]
        %v3772 = vld [vmem:[%s325 + $0x18b4] sm:$0xf]
        %v3773 = vld [vmem:[%s325 + $0x18b8] sm:$0xf]
        %v3774 = vld [vmem:[%s325 + $0x18bc] sm:$0xf]
        %v3775 = vld [vmem:[%s325 + $0x18c0] sm:$0xf]
        %v3776 = vld [vmem:[%s325 + $0x18c4] sm:$0xf]
        %v3777 = vld [vmem:[%s325 + $0x18c8] sm:$0xf]
        %v3778 = vld [vmem:[%s325 + $0x18cc] sm:$0xf]
        %v3779 = vld [vmem:[%s325 + $0x18d0] sm:$0xf]
        %v3780 = vld [vmem:[%s325 + $0x18d4] sm:$0xf]
        %v3781 = vld [vmem:[%s325 + $0x18d8] sm:$0xf]
        %v3782 = vld [vmem:[%s325 + $0x18dc] sm:$0xf]
        %v3783 = vld [vmem:[%s325 + $0x18e0] sm:$0xf]
        %v3784 = vld [vmem:[%s325 + $0x18e4] sm:$0xf]
        %v3785 = vld [vmem:[%s325 + $0x18e8] sm:$0xf]
        %v3786 = vld [vmem:[%s325 + $0x18ec] sm:$0xf]
        %v3787 = vld [vmem:[%s325 + $0x18f0] sm:$0xf]
        %v3788 = vld [vmem:[%s325 + $0x18f4] sm:$0xf]
        %v3789 = vld [vmem:[%s325 + $0x18f8] sm:$0xf]
        %v3790 = vld [vmem:[%s325 + $0x18fc] sm:$0xf]
        %v3791 = vld [vmem:[%s325 + $0x1900] sm:$0xf]
        %v3792 = vld [vmem:[%s325 + $0x1904] sm:$0xf]
        %v3793 = vld [vmem:[%s325 + $0x1908] sm:$0xf]
        %v3794 = vld [vmem:[%s325 + $0x190c] sm:$0xf]
        %v3795 = vld [vmem:[%s325 + $0x1910] sm:$0xf]
        %v3796 = vld [vmem:[%s325 + $0x1914] sm:$0xf]
        %v3797 = vld [vmem:[%s325 + $0x1918] sm:$0xf]
        %v3798 = vld [vmem:[%s325 + $0x191c] sm:$0xf]
        %v3799 = vld [vmem:[%s325 + $0x1920] sm:$0xf]
        %v3800 = vld [vmem:[%s325 + $0x1924] sm:$0xf]
        %v3801 = vld [vmem:[%s325 + $0x1928] sm:$0xf]
        %v3802 = vld [vmem:[%s325 + $0x192c] sm:$0xf]
        %v3803 = vld [vmem:[%s325 + $0x1930] sm:$0xf]
        %v3804 = vld [vmem:[%s325 + $0x1934] sm:$0xf]
        %v3805 = vld [vmem:[%s325 + $0x1938] sm:$0xf]
        %v3806 = vld [vmem:[%s325 + $0x193c] sm:$0xf]
        %v3807 = vld [vmem:[%s325 + $0x1940] sm:$0xf]
        %v3808 = vld [vmem:[%s325 + $0x1944] sm:$0xf]
        %v3809 = vld [vmem:[%s325 + $0x1948] sm:$0xf]
        %v3810 = vld [vmem:[%s325 + $0x194c] sm:$0xf]
        %v3811 = vld [vmem:[%s325 + $0x1950] sm:$0xf]
        %v3812 = vld [vmem:[%s325 + $0x1954] sm:$0xf]
        %v3813 = vld [vmem:[%s325 + $0x1958] sm:$0xf]
        %v3814 = vld [vmem:[%s325 + $0x195c] sm:$0xf]
        %v3815 = vld [vmem:[%s325 + $0x1960] sm:$0xf]
        %v3816 = vld [vmem:[%s325 + $0x1964] sm:$0xf]
        %v3817 = vld [vmem:[%s325 + $0x1968] sm:$0xf]
        %v3818 = vld [vmem:[%s325 + $0x196c] sm:$0xf]
        %v3819 = vld [vmem:[%s325 + $0x1970] sm:$0xf]
        %v3820 = vld [vmem:[%s325 + $0x1974] sm:$0xf]
        %v3821 = vld [vmem:[%s325 + $0x1978] sm:$0xf]
        %v3822 = vld [vmem:[%s325 + $0x197c] sm:$0xf]
        %v3823 = vld [vmem:[%s325 + $0x1980] sm:$0xf]
        %v3824 = vld [vmem:[%s325 + $0x1984] sm:$0xf]
        %v3825 = vld [vmem:[%s325 + $0x1988] sm:$0xf]
        %v3826 = vld [vmem:[%s325 + $0x198c] sm:$0xf]
        %v3827 = vld [vmem:[%s325 + $0x1990] sm:$0xf]
        %v3828 = vld [vmem:[%s325 + $0x1994] sm:$0xf]
        %v3829 = vld [vmem:[%s325 + $0x1998] sm:$0xf]
        %v3830 = vld [vmem:[%s325 + $0x199c] sm:$0xf]
        %v3831 = vld [vmem:[%s325 + $0x19a0] sm:$0xf]
        %v3832 = vld [vmem:[%s325 + $0x19a4] sm:$0xf]
        %v3833 = vld [vmem:[%s325 + $0x19a8] sm:$0xf]
        %v3834 = vld [vmem:[%s325 + $0x19ac] sm:$0xf]
        %v3835 = vld [vmem:[%s325 + $0x19b0] sm:$0xf]
        %v3836 = vld [vmem:[%s325 + $0x19b4] sm:$0xf]
        %v3837 = vld [vmem:[%s325 + $0x19b8] sm:$0xf]
        %v3838 = vld [vmem:[%s325 + $0x19bc] sm:$0xf]
        %v3839 = vld [vmem:[%s325 + $0x19c0] sm:$0xf]
        %v3840 = vld [vmem:[%s325 + $0x19c4] sm:$0xf]
        %v3841 = vld [vmem:[%s325 + $0x19c8] sm:$0xf]
        %v3842 = vld [vmem:[%s325 + $0x19cc] sm:$0xf]
        %v3843 = vld [vmem:[%s325 + $0x19d0] sm:$0xf]
        %v3844 = vld [vmem:[%s325 + $0x19d4] sm:$0xf]
        %v3845 = vld [vmem:[%s325 + $0x19d8] sm:$0xf]
        %v3846 = vld [vmem:[%s325 + $0x19dc] sm:$0xf]
        %v3847 = vld [vmem:[%s325 + $0x19e0] sm:$0xf]
        %v3848 = vld [vmem:[%s325 + $0x19e4] sm:$0xf]
        %v3849 = vld [vmem:[%s325 + $0x19e8] sm:$0xf]
        %v3850 = vld [vmem:[%s325 + $0x19ec] sm:$0xf]
        %v3851 = vld [vmem:[%s325 + $0x19f0] sm:$0xf]
        %v3852 = vld [vmem:[%s325 + $0x19f4] sm:$0xf]
        %v3853 = vld [vmem:[%s325 + $0x19f8] sm:$0xf]
        %v3854 = vld [vmem:[%s325 + $0x19fc] sm:$0xf]
        %v3855 = vld [vmem:[%s325 + $0x1a00] sm:$0xf]
        %v3856 = vld [vmem:[%s325 + $0x1a04] sm:$0xf]
        %v3857 = vld [vmem:[%s325 + $0x1a08] sm:$0xf]
        %v3858 = vld [vmem:[%s325 + $0x1a0c] sm:$0xf]
        %v3859 = vld [vmem:[%s325 + $0x1a10] sm:$0xf]
        %v3860 = vld [vmem:[%s325 + $0x1a14] sm:$0xf]
        %v3861 = vld [vmem:[%s325 + $0x1a18] sm:$0xf]
        %v3862 = vld [vmem:[%s325 + $0x1a1c] sm:$0xf]
        %v3863 = vld [vmem:[%s325 + $0x1a20] sm:$0xf]
        %v3864 = vld [vmem:[%s325 + $0x1a24] sm:$0xf]
        %v3865 = vld [vmem:[%s325 + $0x1a28] sm:$0xf]
        %v3866 = vld [vmem:[%s325 + $0x1a2c] sm:$0xf]
        %v3867 = vld [vmem:[%s325 + $0x1a30] sm:$0xf]
        %v3868 = vld [vmem:[%s325 + $0x1a34] sm:$0xf]
        %v3869 = vld [vmem:[%s325 + $0x1a38] sm:$0xf]
        %v3870 = vld [vmem:[%s325 + $0x1a3c] sm:$0xf]
        %v3871 = vld [vmem:[%s325 + $0x1a40] sm:$0xf]
        %v3872 = vld [vmem:[%s325 + $0x1a44] sm:$0xf]
        %v3873 = vld [vmem:[%s325 + $0x1a48] sm:$0xf]
        %v3874 = vld [vmem:[%s325 + $0x1a4c] sm:$0xf]
        %v3875 = vld [vmem:[%s325 + $0x1a50] sm:$0xf]
        %v3876 = vld [vmem:[%s325 + $0x1a54] sm:$0xf]
        %v3877 = vld [vmem:[%s325 + $0x1a58] sm:$0xf]
        %v3878 = vld [vmem:[%s325 + $0x1a5c] sm:$0xf]
        %v3879 = vld [vmem:[%s325 + $0x1a60] sm:$0xf]
        %v3880 = vld [vmem:[%s325 + $0x1a64] sm:$0xf]
        %v3881 = vld [vmem:[%s325 + $0x1a68] sm:$0xf]
        %v3882 = vld [vmem:[%s325 + $0x1a6c] sm:$0xf]
        %v3883 = vld [vmem:[%s325 + $0x1a70] sm:$0xf]
        %v3884 = vld [vmem:[%s325 + $0x1a74] sm:$0xf]
        %v3885 = vld [vmem:[%s325 + $0x1a78] sm:$0xf]
        %v3886 = vld [vmem:[%s325 + $0x1a7c] sm:$0xf]
        %v3887 = vld [vmem:[%s325 + $0x1a80] sm:$0xf]
        %v3888 = vld [vmem:[%s325 + $0x1a84] sm:$0xf]
        %v3889 = vld [vmem:[%s325 + $0x1a88] sm:$0xf]
        %v3890 = vld [vmem:[%s325 + $0x1a8c] sm:$0xf]
        %v3891 = vld [vmem:[%s325 + $0x1a90] sm:$0xf]
        %v3892 = vld [vmem:[%s325 + $0x1a94] sm:$0xf]
        %v3893 = vld [vmem:[%s325 + $0x1a98] sm:$0xf]
        %v3894 = vld [vmem:[%s325 + $0x1a9c] sm:$0xf]
        %v3895 = vld [vmem:[%s325 + $0x1aa0] sm:$0xf]
        %v3896 = vld [vmem:[%s325 + $0x1aa4] sm:$0xf]
        %v3897 = vld [vmem:[%s325 + $0x1aa8] sm:$0xf]
        %v3898 = vld [vmem:[%s325 + $0x1aac] sm:$0xf]
        %v3899 = vld [vmem:[%s325 + $0x1ab0] sm:$0xf]
        %v3900 = vld [vmem:[%s325 + $0x1ab4] sm:$0xf]
        %v3901 = vld [vmem:[%s325 + $0x1ab8] sm:$0xf]
        %v3902 = vld [vmem:[%s325 + $0x1abc] sm:$0xf]
        %v3903 = vld [vmem:[%s325 + $0x1ac0] sm:$0xf]
        %v3904 = vld [vmem:[%s325 + $0x1ac4] sm:$0xf]
        %v3905 = vld [vmem:[%s325 + $0x1ac8] sm:$0xf]
        %v3906 = vld [vmem:[%s325 + $0x1acc] sm:$0xf]
        %v3907 = vld [vmem:[%s325 + $0x1ad0] sm:$0xf]
        %v3908 = vld [vmem:[%s325 + $0x1ad4] sm:$0xf]
        %v3909 = vld [vmem:[%s325 + $0x1ad8] sm:$0xf]
        %v3910 = vld [vmem:[%s325 + $0x1adc] sm:$0xf]
        %v3911 = vld [vmem:[%s325 + $0x1ae0] sm:$0xf]
        %v3912 = vld [vmem:[%s325 + $0x1ae4] sm:$0xf]
        %v3913 = vld [vmem:[%s325 + $0x1ae8] sm:$0xf]
        %v3914 = vld [vmem:[%s325 + $0x1aec] sm:$0xf]
        %v3915 = vld [vmem:[%s325 + $0x1af0] sm:$0xf]
        %v3916 = vld [vmem:[%s325 + $0x1af4] sm:$0xf]
        %v3917 = vld [vmem:[%s325 + $0x1af8] sm:$0xf]
        %v3918 = vld [vmem:[%s325 + $0x1afc] sm:$0xf]
        %v3919 = vld [vmem:[%s325 + $0x1b00] sm:$0xf]
        %v3920 = vld [vmem:[%s325 + $0x1b04] sm:$0xf]
        %v3921 = vld [vmem:[%s325 + $0x1b08] sm:$0xf]
        %v3922 = vld [vmem:[%s325 + $0x1b0c] sm:$0xf]
        %v3923 = vld [vmem:[%s325 + $0x1b10] sm:$0xf]
        %v3924 = vld [vmem:[%s325 + $0x1b14] sm:$0xf]
        %v3925 = vld [vmem:[%s325 + $0x1b18] sm:$0xf]
        %v3926 = vld [vmem:[%s325 + $0x1b1c] sm:$0xf]
        %v3927 = vld [vmem:[%s325 + $0x1b20] sm:$0xf]
        %v3928 = vld [vmem:[%s325 + $0x1b24] sm:$0xf]
        %v3929 = vld [vmem:[%s325 + $0x1b28] sm:$0xf]
        %v3930 = vld [vmem:[%s325 + $0x1b2c] sm:$0xf]
        %v3931 = vld [vmem:[%s325 + $0x1b30] sm:$0xf]
        %v3932 = vld [vmem:[%s325 + $0x1b34] sm:$0xf]
        %v3933 = vld [vmem:[%s325 + $0x1b38] sm:$0xf]
        %v3934 = vld [vmem:[%s325 + $0x1b3c] sm:$0xf]
        %v3935 = vld [vmem:[%s325 + $0x1b40] sm:$0xf]
        %v3936 = vld [vmem:[%s325 + $0x1b44] sm:$0xf]
        %v3937 = vld [vmem:[%s325 + $0x1b48] sm:$0xf]
        %v3938 = vld [vmem:[%s325 + $0x1b4c] sm:$0xf]
        %v3939 = vld [vmem:[%s325 + $0x1b50] sm:$0xf]
        %v3940 = vld [vmem:[%s325 + $0x1b54] sm:$0xf]
        %v3941 = vld [vmem:[%s325 + $0x1b58] sm:$0xf]
        %v3942 = vld [vmem:[%s325 + $0x1b5c] sm:$0xf]
        %v3943 = vld [vmem:[%s325 + $0x1b60] sm:$0xf]
        %v3944 = vld [vmem:[%s325 + $0x1b64] sm:$0xf]
        %v3945 = vld [vmem:[%s325 + $0x1b68] sm:$0xf]
        %v3946 = vld [vmem:[%s325 + $0x1b6c] sm:$0xf]
        %v3947 = vld [vmem:[%s325 + $0x1b70] sm:$0xf]
        %v3948 = vld [vmem:[%s325 + $0x1b74] sm:$0xf]
        %v3949 = vld [vmem:[%s325 + $0x1b78] sm:$0xf]
        %v3950 = vld [vmem:[%s325 + $0x1b7c] sm:$0xf]
        %v3951 = vld [vmem:[%s325 + $0x1b80] sm:$0xf]
        %v3952 = vld [vmem:[%s325 + $0x1b84] sm:$0xf]
        %v3953 = vld [vmem:[%s325 + $0x1b88] sm:$0xf]
        %v3954 = vld [vmem:[%s325 + $0x1b8c] sm:$0xf]
        %v3955 = vld [vmem:[%s325 + $0x1b90] sm:$0xf]
        %v3956 = vld [vmem:[%s325 + $0x1b94] sm:$0xf]
        %v3957 = vld [vmem:[%s325 + $0x1b98] sm:$0xf]
        %v3958 = vld [vmem:[%s325 + $0x1b9c] sm:$0xf]
        %v3959 = vld [vmem:[%s325 + $0x1ba0] sm:$0xf]
        %v3960 = vld [vmem:[%s325 + $0x1ba4] sm:$0xf]
        %v3961 = vld [vmem:[%s325 + $0x1ba8] sm:$0xf]
        %v3962 = vld [vmem:[%s325 + $0x1bac] sm:$0xf]
        %v3963 = vld [vmem:[%s325 + $0x1bb0] sm:$0xf]
        %v3964 = vld [vmem:[%s325 + $0x1bb4] sm:$0xf]
        %v3965 = vld [vmem:[%s325 + $0x1bb8] sm:$0xf]
        %v3966 = vld [vmem:[%s325 + $0x1bbc] sm:$0xf]
        %v3967 = vld [vmem:[%s325 + $0x1bc0] sm:$0xf]
        %v3968 = vld [vmem:[%s325 + $0x1bc4] sm:$0xf]
        %v3969 = vld [vmem:[%s325 + $0x1bc8] sm:$0xf]
        %v3970 = vld [vmem:[%s325 + $0x1bcc] sm:$0xf]
        %v3971 = vld [vmem:[%s325 + $0x1bd0] sm:$0xf]
        %v3972 = vld [vmem:[%s325 + $0x1bd4] sm:$0xf]
        %v3973 = vld [vmem:[%s325 + $0x1bd8] sm:$0xf]
        %v3974 = vld [vmem:[%s325 + $0x1bdc] sm:$0xf]
        %v3975 = vld [vmem:[%s325 + $0x1be0] sm:$0xf]
        %v3976 = vld [vmem:[%s325 + $0x1be4] sm:$0xf]
        %v3977 = vld [vmem:[%s325 + $0x1be8] sm:$0xf]
        %v3978 = vld [vmem:[%s325 + $0x1bec] sm:$0xf]
        %v3979 = vld [vmem:[%s325 + $0x1bf0] sm:$0xf]
        %v3980 = vld [vmem:[%s325 + $0x1bf4] sm:$0xf]
        %v3981 = vld [vmem:[%s325 + $0x1bf8] sm:$0xf]
        %v3982 = vld [vmem:[%s325 + $0x1bfc] sm:$0xf]
        %v3983 = vld [vmem:[%s325 + $0x1c00] sm:$0xf]
        %v3984 = vld [vmem:[%s325 + $0x1c04] sm:$0xf]
        %v3985 = vld [vmem:[%s325 + $0x1c08] sm:$0xf]
        %v3986 = vld [vmem:[%s325 + $0x1c0c] sm:$0xf]
        %v3987 = vld [vmem:[%s325 + $0x1c10] sm:$0xf]
        %v3988 = vld [vmem:[%s325 + $0x1c14] sm:$0xf]
        %v3989 = vld [vmem:[%s325 + $0x1c18] sm:$0xf]
        %v3990 = vld [vmem:[%s325 + $0x1c1c] sm:$0xf]
        %v3991 = vld [vmem:[%s325 + $0x1c20] sm:$0xf]
        %v3992 = vld [vmem:[%s325 + $0x1c24] sm:$0xf]
        %v3993 = vld [vmem:[%s325 + $0x1c28] sm:$0xf]
        %v3994 = vld [vmem:[%s325 + $0x1c2c] sm:$0xf]
        %v3995 = vld [vmem:[%s325 + $0x1c30] sm:$0xf]
        %v3996 = vld [vmem:[%s325 + $0x1c34] sm:$0xf]
        %v3997 = vld [vmem:[%s325 + $0x1c38] sm:$0xf]
        %v3998 = vld [vmem:[%s325 + $0x1c3c] sm:$0xf]
        %v3999 = vld [vmem:[%s325 + $0x1c40] sm:$0xf]
        %v4000 = vld [vmem:[%s325 + $0x1c44] sm:$0xf]
        %v4001 = vld [vmem:[%s325 + $0x1c48] sm:$0xf]
        %v4002 = vld [vmem:[%s325 + $0x1c4c] sm:$0xf]
        %v4003 = vld [vmem:[%s325 + $0x1c50] sm:$0xf]
        %v4004 = vld [vmem:[%s325 + $0x1c54] sm:$0xf]
        %v4005 = vld [vmem:[%s325 + $0x1c58] sm:$0xf]
        %v4006 = vld [vmem:[%s325 + $0x1c5c] sm:$0xf]
        %v4007 = vld [vmem:[%s325 + $0x1c60] sm:$0xf]
        %v4008 = vld [vmem:[%s325 + $0x1c64] sm:$0xf]
        %v4009 = vld [vmem:[%s325 + $0x1c68] sm:$0xf]
        %v4010 = vld [vmem:[%s325 + $0x1c6c] sm:$0xf]
        %v4011 = vld [vmem:[%s325 + $0x1c70] sm:$0xf]
        %v4012 = vld [vmem:[%s325 + $0x1c74] sm:$0xf]
        %v4013 = vld [vmem:[%s325 + $0x1c78] sm:$0xf]
        %v4014 = vld [vmem:[%s325 + $0x1c7c] sm:$0xf]
        %v4015 = vld [vmem:[%s325 + $0x1c80] sm:$0xf]
        %v4016 = vld [vmem:[%s325 + $0x1c84] sm:$0xf]
        %v4017 = vld [vmem:[%s325 + $0x1c88] sm:$0xf]
        %v4018 = vld [vmem:[%s325 + $0x1c8c] sm:$0xf]
        %v4019 = vld [vmem:[%s325 + $0x1c90] sm:$0xf]
        %v4020 = vld [vmem:[%s325 + $0x1c94] sm:$0xf]
        %v4021 = vld [vmem:[%s325 + $0x1c98] sm:$0xf]
        %v4022 = vld [vmem:[%s325 + $0x1c9c] sm:$0xf]
        %v4023 = vld [vmem:[%s325 + $0x1ca0] sm:$0xf]
        %v4024 = vld [vmem:[%s325 + $0x1ca4] sm:$0xf]
        %v4025 = vld [vmem:[%s325 + $0x1ca8] sm:$0xf]
        %v4026 = vld [vmem:[%s325 + $0x1cac] sm:$0xf]
        %v4027 = vld [vmem:[%s325 + $0x1cb0] sm:$0xf]
        %v4028 = vld [vmem:[%s325 + $0x1cb4] sm:$0xf]
        %v4029 = vld [vmem:[%s325 + $0x1cb8] sm:$0xf]
        %v4030 = vld [vmem:[%s325 + $0x1cbc] sm:$0xf]
        %v4031 = vld [vmem:[%s325 + $0x1cc0] sm:$0xf]
        %v4032 = vld [vmem:[%s325 + $0x1cc4] sm:$0xf]
        %v4033 = vld [vmem:[%s325 + $0x1cc8] sm:$0xf]
        %v4034 = vld [vmem:[%s325 + $0x1ccc] sm:$0xf]
        %v4035 = vld [vmem:[%s325 + $0x1cd0] sm:$0xf]
        %v4036 = vld [vmem:[%s325 + $0x1cd4] sm:$0xf]
        %v4037 = vld [vmem:[%s325 + $0x1cd8] sm:$0xf]
        %v4038 = vld [vmem:[%s325 + $0x1cdc] sm:$0xf]
        %v4039 = vld [vmem:[%s325 + $0x1ce0] sm:$0xf]
        %v4040 = vld [vmem:[%s325 + $0x1ce4] sm:$0xf]
        %v4041 = vld [vmem:[%s325 + $0x1ce8] sm:$0xf]
        %v4042 = vld [vmem:[%s325 + $0x1cec] sm:$0xf]
        %v4043 = vld [vmem:[%s325 + $0x1cf0] sm:$0xf]
        %v4044 = vld [vmem:[%s325 + $0x1cf4] sm:$0xf]
        %v4045 = vld [vmem:[%s325 + $0x1cf8] sm:$0xf]
        %v4046 = vld [vmem:[%s325 + $0x1cfc] sm:$0xf]
        %v4047 = vld [vmem:[%s325 + $0x1d00] sm:$0xf]
        %v4048 = vld [vmem:[%s325 + $0x1d04] sm:$0xf]
        %v4049 = vld [vmem:[%s325 + $0x1d08] sm:$0xf]
        %v4050 = vld [vmem:[%s325 + $0x1d0c] sm:$0xf]
        %v4051 = vld [vmem:[%s325 + $0x1d10] sm:$0xf]
        %v4052 = vld [vmem:[%s325 + $0x1d14] sm:$0xf]
        %v4053 = vld [vmem:[%s325 + $0x1d18] sm:$0xf]
        %v4054 = vld [vmem:[%s325 + $0x1d1c] sm:$0xf]
        %v4055 = vld [vmem:[%s325 + $0x1d20] sm:$0xf]
        %v4056 = vld [vmem:[%s325 + $0x1d24] sm:$0xf]
        %v4057 = vld [vmem:[%s325 + $0x1d28] sm:$0xf]
        %v4058 = vld [vmem:[%s325 + $0x1d2c] sm:$0xf]
        %v4059 = vld [vmem:[%s325 + $0x1d30] sm:$0xf]
        %v4060 = vld [vmem:[%s325 + $0x1d34] sm:$0xf]
        %v4061 = vld [vmem:[%s325 + $0x1d38] sm:$0xf]
        %v4062 = vld [vmem:[%s325 + $0x1d3c] sm:$0xf]
        %v4063 = vld [vmem:[%s325 + $0x1d40] sm:$0xf]
        %v4064 = vld [vmem:[%s325 + $0x1d44] sm:$0xf]
        %v4065 = vld [vmem:[%s325 + $0x1d48] sm:$0xf]
        %v4066 = vld [vmem:[%s325 + $0x1d4c] sm:$0xf]
        %v4067 = vld [vmem:[%s325 + $0x1d50] sm:$0xf]
        %v4068 = vld [vmem:[%s325 + $0x1d54] sm:$0xf]
        %v4069 = vld [vmem:[%s325 + $0x1d58] sm:$0xf]
        %v4070 = vld [vmem:[%s325 + $0x1d5c] sm:$0xf]
        %v4071 = vld [vmem:[%s325 + $0x1d60] sm:$0xf]
        %v4072 = vld [vmem:[%s325 + $0x1d64] sm:$0xf]
        %v4073 = vld [vmem:[%s325 + $0x1d68] sm:$0xf]
        %v4074 = vld [vmem:[%s325 + $0x1d6c] sm:$0xf]
        %v4075 = vld [vmem:[%s325 + $0x1d70] sm:$0xf]
        %v4076 = vld [vmem:[%s325 + $0x1d74] sm:$0xf]
        %v4077 = vld [vmem:[%s325 + $0x1d78] sm:$0xf]
        %v4078 = vld [vmem:[%s325 + $0x1d7c] sm:$0xf]
        %v4079 = vld [vmem:[%s325 + $0x1d80] sm:$0xf]
        %v4080 = vld [vmem:[%s325 + $0x1d84] sm:$0xf]
        %v4081 = vld [vmem:[%s325 + $0x1d88] sm:$0xf]
        %v4082 = vld [vmem:[%s325 + $0x1d8c] sm:$0xf]
        %v4083 = vld [vmem:[%s325 + $0x1d90] sm:$0xf]
        %v4084 = vld [vmem:[%s325 + $0x1d94] sm:$0xf]
        %v4085 = vld [vmem:[%s325 + $0x1d98] sm:$0xf]
        %v4086 = vld [vmem:[%s325 + $0x1d9c] sm:$0xf]
        %v4087 = vld [vmem:[%s325 + $0x1da0] sm:$0xf]
        %v4088 = vld [vmem:[%s325 + $0x1da4] sm:$0xf]
        %v4089 = vld [vmem:[%s325 + $0x1da8] sm:$0xf]
        %v4090 = vld [vmem:[%s325 + $0x1dac] sm:$0xf]
        %v4091 = vld [vmem:[%s325 + $0x1db0] sm:$0xf]
        %v4092 = vld [vmem:[%s325 + $0x1db4] sm:$0xf]
        %v4093 = vld [vmem:[%s325 + $0x1db8] sm:$0xf]
        %v4094 = vld [vmem:[%s325 + $0x1dbc] sm:$0xf]
        %v4095 = vld [vmem:[%s325 + $0x1dc0] sm:$0xf]
        %v4096 = vld [vmem:[%s325 + $0x1dc4] sm:$0xf]
        %v4097 = vld [vmem:[%s325 + $0x1dc8] sm:$0xf]
        %v4098 = vld [vmem:[%s325 + $0x1dcc] sm:$0xf]
        %v4099 = vld [vmem:[%s325 + $0x1dd0] sm:$0xf]
        %v4100 = vld [vmem:[%s325 + $0x1dd4] sm:$0xf]
        %v4101 = vld [vmem:[%s325 + $0x1dd8] sm:$0xf]
        %v4102 = vld [vmem:[%s325 + $0x1ddc] sm:$0xf]
        %v4103 = vld [vmem:[%s325 + $0x1de0] sm:$0xf]
        %v4104 = vld [vmem:[%s325 + $0x1de4] sm:$0xf]
        %v4105 = vld [vmem:[%s325 + $0x1de8] sm:$0xf]
        %v4106 = vld [vmem:[%s325 + $0x1dec] sm:$0xf]
        %v4107 = vld [vmem:[%s325 + $0x1df0] sm:$0xf]
        %v4108 = vld [vmem:[%s325 + $0x1df4] sm:$0xf]
        %v4109 = vld [vmem:[%s325 + $0x1df8] sm:$0xf]
        %v4110 = vld [vmem:[%s325 + $0x1dfc] sm:$0xf]
        %v4111 = vld [vmem:[%s325 + $0x1e00] sm:$0xf]
        %v4112 = vld [vmem:[%s325 + $0x1e04] sm:$0xf]
        %v4113 = vld [vmem:[%s325 + $0x1e08] sm:$0xf]
        %v4114 = vld [vmem:[%s325 + $0x1e0c] sm:$0xf]
        %v4115 = vld [vmem:[%s325 + $0x1e10] sm:$0xf]
        %v4116 = vld [vmem:[%s325 + $0x1e14] sm:$0xf]
        %v4117 = vld [vmem:[%s325 + $0x1e18] sm:$0xf]
        %v4118 = vld [vmem:[%s325 + $0x1e1c] sm:$0xf]
        %v4119 = vld [vmem:[%s325 + $0x1e20] sm:$0xf]
        %v4120 = vld [vmem:[%s325 + $0x1e24] sm:$0xf]
        %v4121 = vld [vmem:[%s325 + $0x1e28] sm:$0xf]
        %v4122 = vld [vmem:[%s325 + $0x1e2c] sm:$0xf]
        %v4123 = vld [vmem:[%s325 + $0x1e30] sm:$0xf]
        %v4124 = vld [vmem:[%s325 + $0x1e34] sm:$0xf]
        %v4125 = vld [vmem:[%s325 + $0x1e38] sm:$0xf]
        %v4126 = vld [vmem:[%s325 + $0x1e3c] sm:$0xf]
        %v4127 = vld [vmem:[%s325 + $0x1e40] sm:$0xf]
        %v4128 = vld [vmem:[%s325 + $0x1e44] sm:$0xf]
        %v4129 = vld [vmem:[%s325 + $0x1e48] sm:$0xf]
        %v4130 = vld [vmem:[%s325 + $0x1e4c] sm:$0xf]
        %v4131 = vld [vmem:[%s325 + $0x1e50] sm:$0xf]
        %v4132 = vld [vmem:[%s325 + $0x1e54] sm:$0xf]
        %v4133 = vld [vmem:[%s325 + $0x1e58] sm:$0xf]
        %v4134 = vld [vmem:[%s325 + $0x1e5c] sm:$0xf]
        %v4135 = vld [vmem:[%s325 + $0x1e60] sm:$0xf]
        %v4136 = vld [vmem:[%s325 + $0x1e64] sm:$0xf]
        %v4137 = vld [vmem:[%s325 + $0x1e68] sm:$0xf]
        %v4138 = vld [vmem:[%s325 + $0x1e6c] sm:$0xf]
        %v4139 = vld [vmem:[%s325 + $0x1e70] sm:$0xf]
        %v4140 = vld [vmem:[%s325 + $0x1e74] sm:$0xf]
        %v4141 = vld [vmem:[%s325 + $0x1e78] sm:$0xf]
        %v4142 = vld [vmem:[%s325 + $0x1e7c] sm:$0xf]
        %v4143 = vld [vmem:[%s325 + $0x1e80] sm:$0xf]
        %v4144 = vld [vmem:[%s325 + $0x1e84] sm:$0xf]
        %v4145 = vld [vmem:[%s325 + $0x1e88] sm:$0xf]
        %v4146 = vld [vmem:[%s325 + $0x1e8c] sm:$0xf]
        %v4147 = vld [vmem:[%s325 + $0x1e90] sm:$0xf]
        %v4148 = vld [vmem:[%s325 + $0x1e94] sm:$0xf]
        %v4149 = vld [vmem:[%s325 + $0x1e98] sm:$0xf]
        %v4150 = vld [vmem:[%s325 + $0x1e9c] sm:$0xf]
        %v4151 = vld [vmem:[%s325 + $0x1ea0] sm:$0xf]
        %v4152 = vld [vmem:[%s325 + $0x1ea4] sm:$0xf]
        %v4153 = vld [vmem:[%s325 + $0x1ea8] sm:$0xf]
        %v4154 = vld [vmem:[%s325 + $0x1eac] sm:$0xf]
        %v4155 = vld [vmem:[%s325 + $0x1eb0] sm:$0xf]
        %v4156 = vld [vmem:[%s325 + $0x1eb4] sm:$0xf]
        %v4157 = vld [vmem:[%s325 + $0x1eb8] sm:$0xf]
        %v4158 = vld [vmem:[%s325 + $0x1ebc] sm:$0xf]
        %v4159 = vld [vmem:[%s325 + $0x1ec0] sm:$0xf]
        %v4160 = vld [vmem:[%s325 + $0x1ec4] sm:$0xf]
        %v4161 = vld [vmem:[%s325 + $0x1ec8] sm:$0xf]
        %v4162 = vld [vmem:[%s325 + $0x1ecc] sm:$0xf]
        %v4163 = vld [vmem:[%s325 + $0x1ed0] sm:$0xf]
        %v4164 = vld [vmem:[%s325 + $0x1ed4] sm:$0xf]
        %v4165 = vld [vmem:[%s325 + $0x1ed8] sm:$0xf]
        %v4166 = vld [vmem:[%s325 + $0x1edc] sm:$0xf]
        %v4167 = vld [vmem:[%s325 + $0x1ee0] sm:$0xf]
        %v4168 = vld [vmem:[%s325 + $0x1ee4] sm:$0xf]
        %v4169 = vld [vmem:[%s325 + $0x1ee8] sm:$0xf]
        %v4170 = vld [vmem:[%s325 + $0x1eec] sm:$0xf]
        %v4171 = vld [vmem:[%s325 + $0x1ef0] sm:$0xf]
        %v4172 = vld [vmem:[%s325 + $0x1ef4] sm:$0xf]
        %v4173 = vld [vmem:[%s325 + $0x1ef8] sm:$0xf]
        %v4174 = vld [vmem:[%s325 + $0x1efc] sm:$0xf]
        %v4175 = vld [vmem:[%s325 + $0x1f00] sm:$0xf]
        %v4176 = vld [vmem:[%s325 + $0x1f04] sm:$0xf]
        %v4177 = vld [vmem:[%s325 + $0x1f08] sm:$0xf]
        %v4178 = vld [vmem:[%s325 + $0x1f0c] sm:$0xf]
        %v4179 = vld [vmem:[%s325 + $0x1f10] sm:$0xf]
        %v4180 = vld [vmem:[%s325 + $0x1f14] sm:$0xf]
        %v4181 = vld [vmem:[%s325 + $0x1f18] sm:$0xf]
        %v4182 = vld [vmem:[%s325 + $0x1f1c] sm:$0xf]
        %v4183 = vld [vmem:[%s325 + $0x1f20] sm:$0xf]
        %v4184 = vld [vmem:[%s325 + $0x1f24] sm:$0xf]
        %v4185 = vld [vmem:[%s325 + $0x1f28] sm:$0xf]
        %v4186 = vld [vmem:[%s325 + $0x1f2c] sm:$0xf]
        %v4187 = vld [vmem:[%s325 + $0x1f30] sm:$0xf]
        %v4188 = vld [vmem:[%s325 + $0x1f34] sm:$0xf]
        %v4189 = vld [vmem:[%s325 + $0x1f38] sm:$0xf]
        %v4190 = vld [vmem:[%s325 + $0x1f3c] sm:$0xf]
        %v4191 = vld [vmem:[%s325 + $0x1f40] sm:$0xf]
        %v4192 = vld [vmem:[%s325 + $0x1f44] sm:$0xf]
        %v4193 = vld [vmem:[%s325 + $0x1f48] sm:$0xf]
        %v4194 = vld [vmem:[%s325 + $0x1f4c] sm:$0xf]
        %v4195 = vld [vmem:[%s325 + $0x1f50] sm:$0xf]
        %v4196 = vld [vmem:[%s325 + $0x1f54] sm:$0xf]
        %v4197 = vld [vmem:[%s325 + $0x1f58] sm:$0xf]
        %v4198 = vld [vmem:[%s325 + $0x1f5c] sm:$0xf]
        %v4199 = vld [vmem:[%s325 + $0x1f60] sm:$0xf]
        %v4200 = vld [vmem:[%s325 + $0x1f64] sm:$0xf]
        %v4201 = vld [vmem:[%s325 + $0x1f68] sm:$0xf]
        %v4202 = vld [vmem:[%s325 + $0x1f6c] sm:$0xf]
        %v4203 = vld [vmem:[%s325 + $0x1f70] sm:$0xf]
        %v4204 = vld [vmem:[%s325 + $0x1f74] sm:$0xf]
        %v4205 = vld [vmem:[%s325 + $0x1f78] sm:$0xf]
        %v4206 = vld [vmem:[%s325 + $0x1f7c] sm:$0xf]
        %v4207 = vld [vmem:[%s325 + $0x1f80] sm:$0xf]
        %v4208 = vld [vmem:[%s325 + $0x1f84] sm:$0xf]
        %v4209 = vld [vmem:[%s325 + $0x1f88] sm:$0xf]
        %v4210 = vld [vmem:[%s325 + $0x1f8c] sm:$0xf]
        %v4211 = vld [vmem:[%s325 + $0x1f90] sm:$0xf]
        %v4212 = vld [vmem:[%s325 + $0x1f94] sm:$0xf]
        %v4213 = vld [vmem:[%s325 + $0x1f98] sm:$0xf]
        %v4214 = vld [vmem:[%s325 + $0x1f9c] sm:$0xf]
        %v4215 = vld [vmem:[%s325 + $0x1fa0] sm:$0xf]
        %v4216 = vld [vmem:[%s325 + $0x1fa4] sm:$0xf]
        %v4217 = vld [vmem:[%s325 + $0x1fa8] sm:$0xf]
        %v4218 = vld [vmem:[%s325 + $0x1fac] sm:$0xf]
        %v4219 = vld [vmem:[%s325 + $0x1fb0] sm:$0xf]
        %v4220 = vld [vmem:[%s325 + $0x1fb4] sm:$0xf]
        %v4221 = vld [vmem:[%s325 + $0x1fb8] sm:$0xf]
        %v4222 = vld [vmem:[%s325 + $0x1fbc] sm:$0xf]
        %v4223 = vld [vmem:[%s325 + $0x1fc0] sm:$0xf]
        %v4224 = vld [vmem:[%s325 + $0x1fc4] sm:$0xf]
        %v4225 = vld [vmem:[%s325 + $0x1fc8] sm:$0xf]
        %v4226 = vld [vmem:[%s325 + $0x1fcc] sm:$0xf]
        %v4227 = vld [vmem:[%s325 + $0x1fd0] sm:$0xf]
        %v4228 = vld [vmem:[%s325 + $0x1fd4] sm:$0xf]
        %v4229 = vld [vmem:[%s325 + $0x1fd8] sm:$0xf]
        %v4230 = vld [vmem:[%s325 + $0x1fdc] sm:$0xf]
        %v4231 = vld [vmem:[%s325 + $0x1fe0] sm:$0xf]
        %v4232 = vld [vmem:[%s325 + $0x1fe4] sm:$0xf]
        %v4233 = vld [vmem:[%s325 + $0x1fe8] sm:$0xf]
        %v4234 = vld [vmem:[%s325 + $0x1fec] sm:$0xf]
        %v4235 = vld [vmem:[%s325 + $0x1ff0] sm:$0xf]
        %v4236 = vld [vmem:[%s325 + $0x1ff4] sm:$0xf]
        %v4237 = vld [vmem:[%s325 + $0x1ff8] sm:$0xf]
        %v4238 = vld [vmem:[%s325 + $0x1ffc] sm:$0xf]
        %v6287 = vunpack.c.l.b16 %v2191
        %v6288 = vunpack.c.l.b16 %v2192
        %v6289 = vunpack.c.l.b16 %v2193
        %v6290 = vunpack.c.l.b16 %v2194
        %v6291 = vunpack.c.l.b16 %v2195
        %v6292 = vunpack.c.l.b16 %v2196
        %v6293 = vunpack.c.l.b16 %v2197
        %v6294 = vunpack.c.l.b16 %v2198
        %v6295 = vunpack.c.l.b16 %v2199
        %v6296 = vunpack.c.l.b16 %v2200
        %v6297 = vunpack.c.l.b16 %v2201
        %v6298 = vunpack.c.l.b16 %v2202
        %v6299 = vunpack.c.l.b16 %v2203
        %v6300 = vunpack.c.l.b16 %v2204
        %v6301 = vunpack.c.l.b16 %v2205
        %v6302 = vunpack.c.l.b16 %v2206
        %v6303 = vunpack.c.l.b16 %v2207
        %v6304 = vunpack.c.l.b16 %v2208
        %v6305 = vunpack.c.l.b16 %v2209
        %v6306 = vunpack.c.l.b16 %v2210
        %v6307 = vunpack.c.l.b16 %v2211
        %v6308 = vunpack.c.l.b16 %v2212
        %v6309 = vunpack.c.l.b16 %v2213
        %v6310 = vunpack.c.l.b16 %v2214
        %v6311 = vunpack.c.l.b16 %v2215
        %v6312 = vunpack.c.l.b16 %v2216
        %v6313 = vunpack.c.l.b16 %v2217
        %v6314 = vunpack.c.l.b16 %v2218
        %v6315 = vunpack.c.l.b16 %v2219
        %v6316 = vunpack.c.l.b16 %v2220
        %v6317 = vunpack.c.l.b16 %v2221
        %v6318 = vunpack.c.l.b16 %v2222
        %v6319 = vunpack.c.l.b16 %v2223
        %v6320 = vunpack.c.l.b16 %v2224
        %v6321 = vunpack.c.l.b16 %v2225
        %v6322 = vunpack.c.l.b16 %v2226
        %v6323 = vunpack.c.l.b16 %v2227
        %v6324 = vunpack.c.l.b16 %v2228
        %v6325 = vunpack.c.l.b16 %v2229
        %v6326 = vunpack.c.l.b16 %v2230
        %v6327 = vunpack.c.l.b16 %v2231
        %v6328 = vunpack.c.l.b16 %v2232
        %v6329 = vunpack.c.l.b16 %v2233
        %v6330 = vunpack.c.l.b16 %v2234
        %v6331 = vunpack.c.l.b16 %v2235
        %v6332 = vunpack.c.l.b16 %v2236
        %v6333 = vunpack.c.l.b16 %v2237
        %v6334 = vunpack.c.l.b16 %v2238
        %v6335 = vunpack.c.l.b16 %v2239
        %v6336 = vunpack.c.l.b16 %v2240
        %v6337 = vunpack.c.l.b16 %v2241
        %v6338 = vunpack.c.l.b16 %v2242
        %v6339 = vunpack.c.l.b16 %v2243
        %v6340 = vunpack.c.l.b16 %v2244
        %v6341 = vunpack.c.l.b16 %v2245
        %v6342 = vunpack.c.l.b16 %v2246
        %v6343 = vunpack.c.l.b16 %v2247
        %v6344 = vunpack.c.l.b16 %v2248
        %v6345 = vunpack.c.l.b16 %v2249
        %v6346 = vunpack.c.l.b16 %v2250
        %v6347 = vunpack.c.l.b16 %v2251
        %v6348 = vunpack.c.l.b16 %v2252
        %v6349 = vunpack.c.l.b16 %v2253
        %v6350 = vunpack.c.l.b16 %v2254
        %v6351 = vunpack.c.l.b16 %v2255
        %v6352 = vunpack.c.l.b16 %v2256
        %v6353 = vunpack.c.l.b16 %v2257
        %v6354 = vunpack.c.l.b16 %v2258
        %v6355 = vunpack.c.l.b16 %v2259
        %v6356 = vunpack.c.l.b16 %v2260
        %v6357 = vunpack.c.l.b16 %v2261
        %v6358 = vunpack.c.l.b16 %v2262
        %v6359 = vunpack.c.l.b16 %v2263
        %v6360 = vunpack.c.l.b16 %v2264
        %v6361 = vunpack.c.l.b16 %v2265
        %v6362 = vunpack.c.l.b16 %v2266
        %v6363 = vunpack.c.l.b16 %v2267
        %v6364 = vunpack.c.l.b16 %v2268
        %v6365 = vunpack.c.l.b16 %v2269
        %v6366 = vunpack.c.l.b16 %v2270
        %v6367 = vunpack.c.l.b16 %v2271
        %v6368 = vunpack.c.l.b16 %v2272
        %v6369 = vunpack.c.l.b16 %v2273
        %v6370 = vunpack.c.l.b16 %v2274
        %v6371 = vunpack.c.l.b16 %v2275
        %v6372 = vunpack.c.l.b16 %v2276
        %v6373 = vunpack.c.l.b16 %v2277
        %v6374 = vunpack.c.l.b16 %v2278
        %v6375 = vunpack.c.l.b16 %v2279
        %v6376 = vunpack.c.l.b16 %v2280
        %v6377 = vunpack.c.l.b16 %v2281
        %v6378 = vunpack.c.l.b16 %v2282
        %v6379 = vunpack.c.l.b16 %v2283
        %v6380 = vunpack.c.l.b16 %v2284
        %v6381 = vunpack.c.l.b16 %v2285
        %v6382 = vunpack.c.l.b16 %v2286
        %v6383 = vunpack.c.l.b16 %v2287
        %v6384 = vunpack.c.l.b16 %v2288
        %v6385 = vunpack.c.l.b16 %v2289
        %v6386 = vunpack.c.l.b16 %v2290
        %v6387 = vunpack.c.l.b16 %v2291
        %v6388 = vunpack.c.l.b16 %v2292
        %v6389 = vunpack.c.l.b16 %v2293
        %v6390 = vunpack.c.l.b16 %v2294
        %v6391 = vunpack.c.l.b16 %v2295
        %v6392 = vunpack.c.l.b16 %v2296
        %v6393 = vunpack.c.l.b16 %v2297
        %v6394 = vunpack.c.l.b16 %v2298
        %v6395 = vunpack.c.l.b16 %v2299
        %v6396 = vunpack.c.l.b16 %v2300
        %v6397 = vunpack.c.l.b16 %v2301
        %v6398 = vunpack.c.l.b16 %v2302
        %v6399 = vunpack.c.l.b16 %v2303
        %v6400 = vunpack.c.l.b16 %v2304
        %v6401 = vunpack.c.l.b16 %v2305
        %v6402 = vunpack.c.l.b16 %v2306
        %v6403 = vunpack.c.l.b16 %v2307
        %v6404 = vunpack.c.l.b16 %v2308
        %v6405 = vunpack.c.l.b16 %v2309
        %v6406 = vunpack.c.l.b16 %v2310
        %v6407 = vunpack.c.l.b16 %v2311
        %v6408 = vunpack.c.l.b16 %v2312
        %v6409 = vunpack.c.l.b16 %v2313
        %v6410 = vunpack.c.l.b16 %v2314
        %v6411 = vunpack.c.l.b16 %v2315
        %v6412 = vunpack.c.l.b16 %v2316
        %v6413 = vunpack.c.l.b16 %v2317
        %v6414 = vunpack.c.l.b16 %v2318
        %v6415 = vunpack.c.l.b16 %v2319
        %v6416 = vunpack.c.l.b16 %v2320
        %v6417 = vunpack.c.l.b16 %v2321
        %v6418 = vunpack.c.l.b16 %v2322
        %v6419 = vunpack.c.l.b16 %v2323
        %v6420 = vunpack.c.l.b16 %v2324
        %v6421 = vunpack.c.l.b16 %v2325
        %v6422 = vunpack.c.l.b16 %v2326
        %v6423 = vunpack.c.l.b16 %v2327
        %v6424 = vunpack.c.l.b16 %v2328
        %v6425 = vunpack.c.l.b16 %v2329
        %v6426 = vunpack.c.l.b16 %v2330
        %v6427 = vunpack.c.l.b16 %v2331
        %v6428 = vunpack.c.l.b16 %v2332
        %v6429 = vunpack.c.l.b16 %v2333
        %v6430 = vunpack.c.l.b16 %v2334
        %v6431 = vunpack.c.l.b16 %v2335
        %v6432 = vunpack.c.l.b16 %v2336
        %v6433 = vunpack.c.l.b16 %v2337
        %v6434 = vunpack.c.l.b16 %v2338
        %v6435 = vunpack.c.l.b16 %v2339
        %v6436 = vunpack.c.l.b16 %v2340
        %v6437 = vunpack.c.l.b16 %v2341
        %v6438 = vunpack.c.l.b16 %v2342
        %v6439 = vunpack.c.l.b16 %v2343
        %v6440 = vunpack.c.l.b16 %v2344
        %v6441 = vunpack.c.l.b16 %v2345
        %v6442 = vunpack.c.l.b16 %v2346
        %v6443 = vunpack.c.l.b16 %v2347
        %v6444 = vunpack.c.l.b16 %v2348
        %v6445 = vunpack.c.l.b16 %v2349
        %v6446 = vunpack.c.l.b16 %v2350
        %v6447 = vunpack.c.l.b16 %v2351
        %v6448 = vunpack.c.l.b16 %v2352
        %v6449 = vunpack.c.l.b16 %v2353
        %v6450 = vunpack.c.l.b16 %v2354
        %v6451 = vunpack.c.l.b16 %v2355
        %v6452 = vunpack.c.l.b16 %v2356
        %v6453 = vunpack.c.l.b16 %v2357
        %v6454 = vunpack.c.l.b16 %v2358
        %v6455 = vunpack.c.l.b16 %v2359
        %v6456 = vunpack.c.l.b16 %v2360
        %v6457 = vunpack.c.l.b16 %v2361
        %v6458 = vunpack.c.l.b16 %v2362
        %v6459 = vunpack.c.l.b16 %v2363
        %v6460 = vunpack.c.l.b16 %v2364
        %v6461 = vunpack.c.l.b16 %v2365
        %v6462 = vunpack.c.l.b16 %v2366
        %v6463 = vunpack.c.l.b16 %v2367
        %v6464 = vunpack.c.l.b16 %v2368
        %v6465 = vunpack.c.l.b16 %v2369
        %v6466 = vunpack.c.l.b16 %v2370
        %v6467 = vunpack.c.l.b16 %v2371
        %v6468 = vunpack.c.l.b16 %v2372
        %v6469 = vunpack.c.l.b16 %v2373
        %v6470 = vunpack.c.l.b16 %v2374
        %v6471 = vunpack.c.l.b16 %v2375
        %v6472 = vunpack.c.l.b16 %v2376
        %v6473 = vunpack.c.l.b16 %v2377
        %v6474 = vunpack.c.l.b16 %v2378
        %v6475 = vunpack.c.l.b16 %v2379
        %v6476 = vunpack.c.l.b16 %v2380
        %v6477 = vunpack.c.l.b16 %v2381
        %v6478 = vunpack.c.l.b16 %v2382
        %v6479 = vunpack.c.l.b16 %v2383
        %v6480 = vunpack.c.l.b16 %v2384
        %v6481 = vunpack.c.l.b16 %v2385
        %v6482 = vunpack.c.l.b16 %v2386
        %v6483 = vunpack.c.l.b16 %v2387
        %v6484 = vunpack.c.l.b16 %v2388
        %v6485 = vunpack.c.l.b16 %v2389
        %v6486 = vunpack.c.l.b16 %v2390
        %v6487 = vunpack.c.l.b16 %v2391
        %v6488 = vunpack.c.l.b16 %v2392
        %v6489 = vunpack.c.l.b16 %v2393
        %v6490 = vunpack.c.l.b16 %v2394
        %v6491 = vunpack.c.l.b16 %v2395
        %v6492 = vunpack.c.l.b16 %v2396
        %v6493 = vunpack.c.l.b16 %v2397
        %v6494 = vunpack.c.l.b16 %v2398
        %v6495 = vunpack.c.l.b16 %v2399
        %v6496 = vunpack.c.l.b16 %v2400
        %v6497 = vunpack.c.l.b16 %v2401
        %v6498 = vunpack.c.l.b16 %v2402
        %v6499 = vunpack.c.l.b16 %v2403
        %v6500 = vunpack.c.l.b16 %v2404
        %v6501 = vunpack.c.l.b16 %v2405
        %v6502 = vunpack.c.l.b16 %v2406
        %v6503 = vunpack.c.l.b16 %v2407
        %v6504 = vunpack.c.l.b16 %v2408
        %v6505 = vunpack.c.l.b16 %v2409
        %v6506 = vunpack.c.l.b16 %v2410
        %v6507 = vunpack.c.l.b16 %v2411
        %v6508 = vunpack.c.l.b16 %v2412
        %v6509 = vunpack.c.l.b16 %v2413
        %v6510 = vunpack.c.l.b16 %v2414
        %v6511 = vunpack.c.l.b16 %v2415
        %v6512 = vunpack.c.l.b16 %v2416
        %v6513 = vunpack.c.l.b16 %v2417
        %v6514 = vunpack.c.l.b16 %v2418
        %v6515 = vunpack.c.l.b16 %v2419
        %v6516 = vunpack.c.l.b16 %v2420
        %v6517 = vunpack.c.l.b16 %v2421
        %v6518 = vunpack.c.l.b16 %v2422
        %v6519 = vunpack.c.l.b16 %v2423
        %v6520 = vunpack.c.l.b16 %v2424
        %v6521 = vunpack.c.l.b16 %v2425
        %v6522 = vunpack.c.l.b16 %v2426
        %v6523 = vunpack.c.l.b16 %v2427
        %v6524 = vunpack.c.l.b16 %v2428
        %v6525 = vunpack.c.l.b16 %v2429
        %v6526 = vunpack.c.l.b16 %v2430
        %v6527 = vunpack.c.l.b16 %v2431
        %v6528 = vunpack.c.l.b16 %v2432
        %v6529 = vunpack.c.l.b16 %v2433
        %v6530 = vunpack.c.l.b16 %v2434
        %v6531 = vunpack.c.l.b16 %v2435
        %v6532 = vunpack.c.l.b16 %v2436
        %v6533 = vunpack.c.l.b16 %v2437
        %v6534 = vunpack.c.l.b16 %v2438
        %v6535 = vunpack.c.l.b16 %v2439
        %v6536 = vunpack.c.l.b16 %v2440
        %v6537 = vunpack.c.l.b16 %v2441
        %v6538 = vunpack.c.l.b16 %v2442
        %v6539 = vunpack.c.l.b16 %v2443
        %v6540 = vunpack.c.l.b16 %v2444
        %v6541 = vunpack.c.l.b16 %v2445
        %v6542 = vunpack.c.l.b16 %v2446
        %v6543 = vunpack.c.l.b16 %v2447
        %v6544 = vunpack.c.l.b16 %v2448
        %v6545 = vunpack.c.l.b16 %v2449
        %v6546 = vunpack.c.l.b16 %v2450
        %v6547 = vunpack.c.l.b16 %v2451
        %v6548 = vunpack.c.l.b16 %v2452
        %v6549 = vunpack.c.l.b16 %v2453
        %v6550 = vunpack.c.l.b16 %v2454
        %v6551 = vunpack.c.l.b16 %v2455
        %v6552 = vunpack.c.l.b16 %v2456
        %v6553 = vunpack.c.l.b16 %v2457
        %v6554 = vunpack.c.l.b16 %v2458
        %v6555 = vunpack.c.l.b16 %v2459
        %v6556 = vunpack.c.l.b16 %v2460
        %v6557 = vunpack.c.l.b16 %v2461
        %v6558 = vunpack.c.l.b16 %v2462
        %v6559 = vunpack.c.l.b16 %v2463
        %v6560 = vunpack.c.l.b16 %v2464
        %v6561 = vunpack.c.l.b16 %v2465
        %v6562 = vunpack.c.l.b16 %v2466
        %v6563 = vunpack.c.l.b16 %v2467
        %v6564 = vunpack.c.l.b16 %v2468
        %v6565 = vunpack.c.l.b16 %v2469
        %v6566 = vunpack.c.l.b16 %v2470
        %v6567 = vunpack.c.l.b16 %v2471
        %v6568 = vunpack.c.l.b16 %v2472
        %v6569 = vunpack.c.l.b16 %v2473
        %v6570 = vunpack.c.l.b16 %v2474
        %v6571 = vunpack.c.l.b16 %v2475
        %v6572 = vunpack.c.l.b16 %v2476
        %v6573 = vunpack.c.l.b16 %v2477
        %v6574 = vunpack.c.l.b16 %v2478
        %v6575 = vunpack.c.l.b16 %v2479
        %v6576 = vunpack.c.l.b16 %v2480
        %v6577 = vunpack.c.l.b16 %v2481
        %v6578 = vunpack.c.l.b16 %v2482
        %v6579 = vunpack.c.l.b16 %v2483
        %v6580 = vunpack.c.l.b16 %v2484
        %v6581 = vunpack.c.l.b16 %v2485
        %v6582 = vunpack.c.l.b16 %v2486
        %v6583 = vunpack.c.l.b16 %v2487
        %v6584 = vunpack.c.l.b16 %v2488
        %v6585 = vunpack.c.l.b16 %v2489
        %v6586 = vunpack.c.l.b16 %v2490
        %v6587 = vunpack.c.l.b16 %v2491
        %v6588 = vunpack.c.l.b16 %v2492
        %v6589 = vunpack.c.l.b16 %v2493
        %v6590 = vunpack.c.l.b16 %v2494
        %v6591 = vunpack.c.l.b16 %v2495
        %v6592 = vunpack.c.l.b16 %v2496
        %v6593 = vunpack.c.l.b16 %v2497
        %v6594 = vunpack.c.l.b16 %v2498
        %v6595 = vunpack.c.l.b16 %v2499
        %v6596 = vunpack.c.l.b16 %v2500
        %v6597 = vunpack.c.l.b16 %v2501
        %v6598 = vunpack.c.l.b16 %v2502
        %v6599 = vunpack.c.l.b16 %v2503
        %v6600 = vunpack.c.l.b16 %v2504
        %v6601 = vunpack.c.l.b16 %v2505
        %v6602 = vunpack.c.l.b16 %v2506
        %v6603 = vunpack.c.l.b16 %v2507
        %v6604 = vunpack.c.l.b16 %v2508
        %v6605 = vunpack.c.l.b16 %v2509
        %v6606 = vunpack.c.l.b16 %v2510
        %v6607 = vunpack.c.l.b16 %v2511
        %v6608 = vunpack.c.l.b16 %v2512
        %v6609 = vunpack.c.l.b16 %v2513
        %v6610 = vunpack.c.l.b16 %v2514
        %v6611 = vunpack.c.l.b16 %v2515
        %v6612 = vunpack.c.l.b16 %v2516
        %v6613 = vunpack.c.l.b16 %v2517
        %v6614 = vunpack.c.l.b16 %v2518
        %v6615 = vunpack.c.l.b16 %v2519
        %v6616 = vunpack.c.l.b16 %v2520
        %v6617 = vunpack.c.l.b16 %v2521
        %v6618 = vunpack.c.l.b16 %v2522
        %v6619 = vunpack.c.l.b16 %v2523
        %v6620 = vunpack.c.l.b16 %v2524
        %v6621 = vunpack.c.l.b16 %v2525
        %v6622 = vunpack.c.l.b16 %v2526
        %v6623 = vunpack.c.l.b16 %v2527
        %v6624 = vunpack.c.l.b16 %v2528
        %v6625 = vunpack.c.l.b16 %v2529
        %v6626 = vunpack.c.l.b16 %v2530
        %v6627 = vunpack.c.l.b16 %v2531
        %v6628 = vunpack.c.l.b16 %v2532
        %v6629 = vunpack.c.l.b16 %v2533
        %v6630 = vunpack.c.l.b16 %v2534
        %v6631 = vunpack.c.l.b16 %v2535
        %v6632 = vunpack.c.l.b16 %v2536
        %v6633 = vunpack.c.l.b16 %v2537
        %v6634 = vunpack.c.l.b16 %v2538
        %v6635 = vunpack.c.l.b16 %v2539
        %v6636 = vunpack.c.l.b16 %v2540
        %v6637 = vunpack.c.l.b16 %v2541
        %v6638 = vunpack.c.l.b16 %v2542
        %v6639 = vunpack.c.l.b16 %v2543
        %v6640 = vunpack.c.l.b16 %v2544
        %v6641 = vunpack.c.l.b16 %v2545
        %v6642 = vunpack.c.l.b16 %v2546
        %v6643 = vunpack.c.l.b16 %v2547
        %v6644 = vunpack.c.l.b16 %v2548
        %v6645 = vunpack.c.l.b16 %v2549
        %v6646 = vunpack.c.l.b16 %v2550
        %v6647 = vunpack.c.l.b16 %v2551
        %v6648 = vunpack.c.l.b16 %v2552
        %v6649 = vunpack.c.l.b16 %v2553
        %v6650 = vunpack.c.l.b16 %v2554
        %v6651 = vunpack.c.l.b16 %v2555
        %v6652 = vunpack.c.l.b16 %v2556
        %v6653 = vunpack.c.l.b16 %v2557
        %v6654 = vunpack.c.l.b16 %v2558
        %v6655 = vunpack.c.l.b16 %v2559
        %v6656 = vunpack.c.l.b16 %v2560
        %v6657 = vunpack.c.l.b16 %v2561
        %v6658 = vunpack.c.l.b16 %v2562
        %v6659 = vunpack.c.l.b16 %v2563
        %v6660 = vunpack.c.l.b16 %v2564
        %v6661 = vunpack.c.l.b16 %v2565
        %v6662 = vunpack.c.l.b16 %v2566
        %v6663 = vunpack.c.l.b16 %v2567
        %v6664 = vunpack.c.l.b16 %v2568
        %v6665 = vunpack.c.l.b16 %v2569
        %v6666 = vunpack.c.l.b16 %v2570
        %v6667 = vunpack.c.l.b16 %v2571
        %v6668 = vunpack.c.l.b16 %v2572
        %v6669 = vunpack.c.l.b16 %v2573
        %v6670 = vunpack.c.l.b16 %v2574
        %v6671 = vunpack.c.l.b16 %v2575
        %v6672 = vunpack.c.l.b16 %v2576
        %v6673 = vunpack.c.l.b16 %v2577
        %v6674 = vunpack.c.l.b16 %v2578
        %v6675 = vunpack.c.l.b16 %v2579
        %v6676 = vunpack.c.l.b16 %v2580
        %v6677 = vunpack.c.l.b16 %v2581
        %v6678 = vunpack.c.l.b16 %v2582
        %v6679 = vunpack.c.l.b16 %v2583
        %v6680 = vunpack.c.l.b16 %v2584
        %v6681 = vunpack.c.l.b16 %v2585
        %v6682 = vunpack.c.l.b16 %v2586
        %v6683 = vunpack.c.l.b16 %v2587
        %v6684 = vunpack.c.l.b16 %v2588
        %v6685 = vunpack.c.l.b16 %v2589
        %v6686 = vunpack.c.l.b16 %v2590
        %v6687 = vunpack.c.l.b16 %v2591
        %v6688 = vunpack.c.l.b16 %v2592
        %v6689 = vunpack.c.l.b16 %v2593
        %v6690 = vunpack.c.l.b16 %v2594
        %v6691 = vunpack.c.l.b16 %v2595
        %v6692 = vunpack.c.l.b16 %v2596
        %v6693 = vunpack.c.l.b16 %v2597
        %v6694 = vunpack.c.l.b16 %v2598
        %v6695 = vunpack.c.l.b16 %v2599
        %v6696 = vunpack.c.l.b16 %v2600
        %v6697 = vunpack.c.l.b16 %v2601
        %v6698 = vunpack.c.l.b16 %v2602
        %v6699 = vunpack.c.l.b16 %v2603
        %v6700 = vunpack.c.l.b16 %v2604
        %v6701 = vunpack.c.l.b16 %v2605
        %v6702 = vunpack.c.l.b16 %v2606
        %v6703 = vunpack.c.l.b16 %v2607
        %v6704 = vunpack.c.l.b16 %v2608
        %v6705 = vunpack.c.l.b16 %v2609
        %v6706 = vunpack.c.l.b16 %v2610
        %v6707 = vunpack.c.l.b16 %v2611
        %v6708 = vunpack.c.l.b16 %v2612
        %v6709 = vunpack.c.l.b16 %v2613
        %v6710 = vunpack.c.l.b16 %v2614
        %v6711 = vunpack.c.l.b16 %v2615
        %v6712 = vunpack.c.l.b16 %v2616
        %v6713 = vunpack.c.l.b16 %v2617
        %v6714 = vunpack.c.l.b16 %v2618
        %v6715 = vunpack.c.l.b16 %v2619
        %v6716 = vunpack.c.l.b16 %v2620
        %v6717 = vunpack.c.l.b16 %v2621
        %v6718 = vunpack.c.l.b16 %v2622
        %v6719 = vunpack.c.l.b16 %v2623
        %v6720 = vunpack.c.l.b16 %v2624
        %v6721 = vunpack.c.l.b16 %v2625
        %v6722 = vunpack.c.l.b16 %v2626
        %v6723 = vunpack.c.l.b16 %v2627
        %v6724 = vunpack.c.l.b16 %v2628
        %v6725 = vunpack.c.l.b16 %v2629
        %v6726 = vunpack.c.l.b16 %v2630
        %v6727 = vunpack.c.l.b16 %v2631
        %v6728 = vunpack.c.l.b16 %v2632
        %v6729 = vunpack.c.l.b16 %v2633
        %v6730 = vunpack.c.l.b16 %v2634
        %v6731 = vunpack.c.l.b16 %v2635
        %v6732 = vunpack.c.l.b16 %v2636
        %v6733 = vunpack.c.l.b16 %v2637
        %v6734 = vunpack.c.l.b16 %v2638
        %v6735 = vunpack.c.l.b16 %v2639
        %v6736 = vunpack.c.l.b16 %v2640
        %v6737 = vunpack.c.l.b16 %v2641
        %v6738 = vunpack.c.l.b16 %v2642
        %v6739 = vunpack.c.l.b16 %v2643
        %v6740 = vunpack.c.l.b16 %v2644
        %v6741 = vunpack.c.l.b16 %v2645
        %v6742 = vunpack.c.l.b16 %v2646
        %v6743 = vunpack.c.l.b16 %v2647
        %v6744 = vunpack.c.l.b16 %v2648
        %v6745 = vunpack.c.l.b16 %v2649
        %v6746 = vunpack.c.l.b16 %v2650
        %v6747 = vunpack.c.l.b16 %v2651
        %v6748 = vunpack.c.l.b16 %v2652
        %v6749 = vunpack.c.l.b16 %v2653
        %v6750 = vunpack.c.l.b16 %v2654
        %v6751 = vunpack.c.l.b16 %v2655
        %v6752 = vunpack.c.l.b16 %v2656
        %v6753 = vunpack.c.l.b16 %v2657
        %v6754 = vunpack.c.l.b16 %v2658
        %v6755 = vunpack.c.l.b16 %v2659
        %v6756 = vunpack.c.l.b16 %v2660
        %v6757 = vunpack.c.l.b16 %v2661
        %v6758 = vunpack.c.l.b16 %v2662
        %v6759 = vunpack.c.l.b16 %v2663
        %v6760 = vunpack.c.l.b16 %v2664
        %v6761 = vunpack.c.l.b16 %v2665
        %v6762 = vunpack.c.l.b16 %v2666
        %v6763 = vunpack.c.l.b16 %v2667
        %v6764 = vunpack.c.l.b16 %v2668
        %v6765 = vunpack.c.l.b16 %v2669
        %v6766 = vunpack.c.l.b16 %v2670
        %v6767 = vunpack.c.l.b16 %v2671
        %v6768 = vunpack.c.l.b16 %v2672
        %v6769 = vunpack.c.l.b16 %v2673
        %v6770 = vunpack.c.l.b16 %v2674
        %v6771 = vunpack.c.l.b16 %v2675
        %v6772 = vunpack.c.l.b16 %v2676
        %v6773 = vunpack.c.l.b16 %v2677
        %v6774 = vunpack.c.l.b16 %v2678
        %v6775 = vunpack.c.l.b16 %v2679
        %v6776 = vunpack.c.l.b16 %v2680
        %v6777 = vunpack.c.l.b16 %v2681
        %v6778 = vunpack.c.l.b16 %v2682
        %v6779 = vunpack.c.l.b16 %v2683
        %v6780 = vunpack.c.l.b16 %v2684
        %v6781 = vunpack.c.l.b16 %v2685
        %v6782 = vunpack.c.l.b16 %v2686
        %v6783 = vunpack.c.l.b16 %v2687
        %v6784 = vunpack.c.l.b16 %v2688
        %v6785 = vunpack.c.l.b16 %v2689
        %v6786 = vunpack.c.l.b16 %v2690
        %v6787 = vunpack.c.l.b16 %v2691
        %v6788 = vunpack.c.l.b16 %v2692
        %v6789 = vunpack.c.l.b16 %v2693
        %v6790 = vunpack.c.l.b16 %v2694
        %v6791 = vunpack.c.l.b16 %v2695
        %v6792 = vunpack.c.l.b16 %v2696
        %v6793 = vunpack.c.l.b16 %v2697
        %v6794 = vunpack.c.l.b16 %v2698
        %v6795 = vunpack.c.l.b16 %v2699
        %v6796 = vunpack.c.l.b16 %v2700
        %v6797 = vunpack.c.l.b16 %v2701
        %v6798 = vunpack.c.l.b16 %v2702
        %v6799 = vunpack.c.l.b16 %v2703
        %v6800 = vunpack.c.l.b16 %v2704
        %v6801 = vunpack.c.l.b16 %v2705
        %v6802 = vunpack.c.l.b16 %v2706
        %v6803 = vunpack.c.l.b16 %v2707
        %v6804 = vunpack.c.l.b16 %v2708
        %v6805 = vunpack.c.l.b16 %v2709
        %v6806 = vunpack.c.l.b16 %v2710
        %v6807 = vunpack.c.l.b16 %v2711
        %v6808 = vunpack.c.l.b16 %v2712
        %v6809 = vunpack.c.l.b16 %v2713
        %v6810 = vunpack.c.l.b16 %v2714
        %v6811 = vunpack.c.l.b16 %v2715
        %v6812 = vunpack.c.l.b16 %v2716
        %v6813 = vunpack.c.l.b16 %v2717
        %v6814 = vunpack.c.l.b16 %v2718
        %v6815 = vunpack.c.l.b16 %v2719
        %v6816 = vunpack.c.l.b16 %v2720
        %v6817 = vunpack.c.l.b16 %v2721
        %v6818 = vunpack.c.l.b16 %v2722
        %v6819 = vunpack.c.l.b16 %v2723
        %v6820 = vunpack.c.l.b16 %v2724
        %v6821 = vunpack.c.l.b16 %v2725
        %v6822 = vunpack.c.l.b16 %v2726
        %v6823 = vunpack.c.l.b16 %v2727
        %v6824 = vunpack.c.l.b16 %v2728
        %v6825 = vunpack.c.l.b16 %v2729
        %v6826 = vunpack.c.l.b16 %v2730
        %v6827 = vunpack.c.l.b16 %v2731
        %v6828 = vunpack.c.l.b16 %v2732
        %v6829 = vunpack.c.l.b16 %v2733
        %v6830 = vunpack.c.l.b16 %v2734
        %v6831 = vunpack.c.l.b16 %v2735
        %v6832 = vunpack.c.l.b16 %v2736
        %v6833 = vunpack.c.l.b16 %v2737
        %v6834 = vunpack.c.l.b16 %v2738
        %v6835 = vunpack.c.l.b16 %v2739
        %v6836 = vunpack.c.l.b16 %v2740
        %v6837 = vunpack.c.l.b16 %v2741
        %v6838 = vunpack.c.l.b16 %v2742
        %v6839 = vunpack.c.l.b16 %v2743
        %v6840 = vunpack.c.l.b16 %v2744
        %v6841 = vunpack.c.l.b16 %v2745
        %v6842 = vunpack.c.l.b16 %v2746
        %v6843 = vunpack.c.l.b16 %v2747
        %v6844 = vunpack.c.l.b16 %v2748
        %v6845 = vunpack.c.l.b16 %v2749
        %v6846 = vunpack.c.l.b16 %v2750
        %v6847 = vunpack.c.l.b16 %v2751
        %v6848 = vunpack.c.l.b16 %v2752
        %v6849 = vunpack.c.l.b16 %v2753
        %v6850 = vunpack.c.l.b16 %v2754
        %v6851 = vunpack.c.l.b16 %v2755
        %v6852 = vunpack.c.l.b16 %v2756
        %v6853 = vunpack.c.l.b16 %v2757
        %v6854 = vunpack.c.l.b16 %v2758
        %v6855 = vunpack.c.l.b16 %v2759
        %v6856 = vunpack.c.l.b16 %v2760
        %v6857 = vunpack.c.l.b16 %v2761
        %v6858 = vunpack.c.l.b16 %v2762
        %v6859 = vunpack.c.l.b16 %v2763
        %v6860 = vunpack.c.l.b16 %v2764
        %v6861 = vunpack.c.l.b16 %v2765
        %v6862 = vunpack.c.l.b16 %v2766
        %v6863 = vunpack.c.l.b16 %v2767
        %v6864 = vunpack.c.l.b16 %v2768
        %v6865 = vunpack.c.l.b16 %v2769
        %v6866 = vunpack.c.l.b16 %v2770
        %v6867 = vunpack.c.l.b16 %v2771
        %v6868 = vunpack.c.l.b16 %v2772
        %v6869 = vunpack.c.l.b16 %v2773
        %v6870 = vunpack.c.l.b16 %v2774
        %v6871 = vunpack.c.l.b16 %v2775
        %v6872 = vunpack.c.l.b16 %v2776
        %v6873 = vunpack.c.l.b16 %v2777
        %v6874 = vunpack.c.l.b16 %v2778
        %v6875 = vunpack.c.l.b16 %v2779
        %v6876 = vunpack.c.l.b16 %v2780
        %v6877 = vunpack.c.l.b16 %v2781
        %v6878 = vunpack.c.l.b16 %v2782
        %v6879 = vunpack.c.l.b16 %v2783
        %v6880 = vunpack.c.l.b16 %v2784
        %v6881 = vunpack.c.l.b16 %v2785
        %v6882 = vunpack.c.l.b16 %v2786
        %v6883 = vunpack.c.l.b16 %v2787
        %v6884 = vunpack.c.l.b16 %v2788
        %v6885 = vunpack.c.l.b16 %v2789
        %v6886 = vunpack.c.l.b16 %v2790
        %v6887 = vunpack.c.l.b16 %v2791
        %v6888 = vunpack.c.l.b16 %v2792
        %v6889 = vunpack.c.l.b16 %v2793
        %v6890 = vunpack.c.l.b16 %v2794
        %v6891 = vunpack.c.l.b16 %v2795
        %v6892 = vunpack.c.l.b16 %v2796
        %v6893 = vunpack.c.l.b16 %v2797
        %v6894 = vunpack.c.l.b16 %v2798
        %v6895 = vunpack.c.l.b16 %v2799
        %v6896 = vunpack.c.l.b16 %v2800
        %v6897 = vunpack.c.l.b16 %v2801
        %v6898 = vunpack.c.l.b16 %v2802
        %v6899 = vunpack.c.l.b16 %v2803
        %v6900 = vunpack.c.l.b16 %v2804
        %v6901 = vunpack.c.l.b16 %v2805
        %v6902 = vunpack.c.l.b16 %v2806
        %v6903 = vunpack.c.l.b16 %v2807
        %v6904 = vunpack.c.l.b16 %v2808
        %v6905 = vunpack.c.l.b16 %v2809
        %v6906 = vunpack.c.l.b16 %v2810
        %v6907 = vunpack.c.l.b16 %v2811
        %v6908 = vunpack.c.l.b16 %v2812
        %v6909 = vunpack.c.l.b16 %v2813
        %v6910 = vunpack.c.l.b16 %v2814
        %v6911 = vunpack.c.l.b16 %v2815
        %v6912 = vunpack.c.l.b16 %v2816
        %v6913 = vunpack.c.l.b16 %v2817
        %v6914 = vunpack.c.l.b16 %v2818
        %v6915 = vunpack.c.l.b16 %v2819
        %v6916 = vunpack.c.l.b16 %v2820
        %v6917 = vunpack.c.l.b16 %v2821
        %v6918 = vunpack.c.l.b16 %v2822
        %v6919 = vunpack.c.l.b16 %v2823
        %v6920 = vunpack.c.l.b16 %v2824
        %v6921 = vunpack.c.l.b16 %v2825
        %v6922 = vunpack.c.l.b16 %v2826
        %v6923 = vunpack.c.l.b16 %v2827
        %v6924 = vunpack.c.l.b16 %v2828
        %v6925 = vunpack.c.l.b16 %v2829
        %v6926 = vunpack.c.l.b16 %v2830
        %v6927 = vunpack.c.l.b16 %v2831
        %v6928 = vunpack.c.l.b16 %v2832
        %v6929 = vunpack.c.l.b16 %v2833
        %v6930 = vunpack.c.l.b16 %v2834
        %v6931 = vunpack.c.l.b16 %v2835
        %v6932 = vunpack.c.l.b16 %v2836
        %v6933 = vunpack.c.l.b16 %v2837
        %v6934 = vunpack.c.l.b16 %v2838
        %v6935 = vunpack.c.l.b16 %v2839
        %v6936 = vunpack.c.l.b16 %v2840
        %v6937 = vunpack.c.l.b16 %v2841
        %v6938 = vunpack.c.l.b16 %v2842
        %v6939 = vunpack.c.l.b16 %v2843
        %v6940 = vunpack.c.l.b16 %v2844
        %v6941 = vunpack.c.l.b16 %v2845
        %v6942 = vunpack.c.l.b16 %v2846
        %v6943 = vunpack.c.l.b16 %v2847
        %v6944 = vunpack.c.l.b16 %v2848
        %v6945 = vunpack.c.l.b16 %v2849
        %v6946 = vunpack.c.l.b16 %v2850
        %v6947 = vunpack.c.l.b16 %v2851
        %v6948 = vunpack.c.l.b16 %v2852
        %v6949 = vunpack.c.l.b16 %v2853
        %v6950 = vunpack.c.l.b16 %v2854
        %v6951 = vunpack.c.l.b16 %v2855
        %v6952 = vunpack.c.l.b16 %v2856
        %v6953 = vunpack.c.l.b16 %v2857
        %v6954 = vunpack.c.l.b16 %v2858
        %v6955 = vunpack.c.l.b16 %v2859
        %v6956 = vunpack.c.l.b16 %v2860
        %v6957 = vunpack.c.l.b16 %v2861
        %v6958 = vunpack.c.l.b16 %v2862
        %v6959 = vunpack.c.l.b16 %v2863
        %v6960 = vunpack.c.l.b16 %v2864
        %v6961 = vunpack.c.l.b16 %v2865
        %v6962 = vunpack.c.l.b16 %v2866
        %v6963 = vunpack.c.l.b16 %v2867
        %v6964 = vunpack.c.l.b16 %v2868
        %v6965 = vunpack.c.l.b16 %v2869
        %v6966 = vunpack.c.l.b16 %v2870
        %v6967 = vunpack.c.l.b16 %v2871
        %v6968 = vunpack.c.l.b16 %v2872
        %v6969 = vunpack.c.l.b16 %v2873
        %v6970 = vunpack.c.l.b16 %v2874
        %v6971 = vunpack.c.l.b16 %v2875
        %v6972 = vunpack.c.l.b16 %v2876
        %v6973 = vunpack.c.l.b16 %v2877
        %v6974 = vunpack.c.l.b16 %v2878
        %v6975 = vunpack.c.l.b16 %v2879
        %v6976 = vunpack.c.l.b16 %v2880
        %v6977 = vunpack.c.l.b16 %v2881
        %v6978 = vunpack.c.l.b16 %v2882
        %v6979 = vunpack.c.l.b16 %v2883
        %v6980 = vunpack.c.l.b16 %v2884
        %v6981 = vunpack.c.l.b16 %v2885
        %v6982 = vunpack.c.l.b16 %v2886
        %v6983 = vunpack.c.l.b16 %v2887
        %v6984 = vunpack.c.l.b16 %v2888
        %v6985 = vunpack.c.l.b16 %v2889
        %v6986 = vunpack.c.l.b16 %v2890
        %v6987 = vunpack.c.l.b16 %v2891
        %v6988 = vunpack.c.l.b16 %v2892
        %v6989 = vunpack.c.l.b16 %v2893
        %v6990 = vunpack.c.l.b16 %v2894
        %v6991 = vunpack.c.l.b16 %v2895
        %v6992 = vunpack.c.l.b16 %v2896
        %v6993 = vunpack.c.l.b16 %v2897
        %v6994 = vunpack.c.l.b16 %v2898
        %v6995 = vunpack.c.l.b16 %v2899
        %v6996 = vunpack.c.l.b16 %v2900
        %v6997 = vunpack.c.l.b16 %v2901
        %v6998 = vunpack.c.l.b16 %v2902
        %v6999 = vunpack.c.l.b16 %v2903
        %v7000 = vunpack.c.l.b16 %v2904
        %v7001 = vunpack.c.l.b16 %v2905
        %v7002 = vunpack.c.l.b16 %v2906
        %v7003 = vunpack.c.l.b16 %v2907
        %v7004 = vunpack.c.l.b16 %v2908
        %v7005 = vunpack.c.l.b16 %v2909
        %v7006 = vunpack.c.l.b16 %v2910
        %v7007 = vunpack.c.l.b16 %v2911
        %v7008 = vunpack.c.l.b16 %v2912
        %v7009 = vunpack.c.l.b16 %v2913
        %v7010 = vunpack.c.l.b16 %v2914
        %v7011 = vunpack.c.l.b16 %v2915
        %v7012 = vunpack.c.l.b16 %v2916
        %v7013 = vunpack.c.l.b16 %v2917
        %v7014 = vunpack.c.l.b16 %v2918
        %v7015 = vunpack.c.l.b16 %v2919
        %v7016 = vunpack.c.l.b16 %v2920
        %v7017 = vunpack.c.l.b16 %v2921
        %v7018 = vunpack.c.l.b16 %v2922
        %v7019 = vunpack.c.l.b16 %v2923
        %v7020 = vunpack.c.l.b16 %v2924
        %v7021 = vunpack.c.l.b16 %v2925
        %v7022 = vunpack.c.l.b16 %v2926
        %v7023 = vunpack.c.l.b16 %v2927
        %v7024 = vunpack.c.l.b16 %v2928
        %v7025 = vunpack.c.l.b16 %v2929
        %v7026 = vunpack.c.l.b16 %v2930
        %v7027 = vunpack.c.l.b16 %v2931
        %v7028 = vunpack.c.l.b16 %v2932
        %v7029 = vunpack.c.l.b16 %v2933
        %v7030 = vunpack.c.l.b16 %v2934
        %v7031 = vunpack.c.l.b16 %v2935
        %v7032 = vunpack.c.l.b16 %v2936
        %v7033 = vunpack.c.l.b16 %v2937
        %v7034 = vunpack.c.l.b16 %v2938
        %v7035 = vunpack.c.l.b16 %v2939
        %v7036 = vunpack.c.l.b16 %v2940
        %v7037 = vunpack.c.l.b16 %v2941
        %v7038 = vunpack.c.l.b16 %v2942
        %v7039 = vunpack.c.l.b16 %v2943
        %v7040 = vunpack.c.l.b16 %v2944
        %v7041 = vunpack.c.l.b16 %v2945
        %v7042 = vunpack.c.l.b16 %v2946
        %v7043 = vunpack.c.l.b16 %v2947
        %v7044 = vunpack.c.l.b16 %v2948
        %v7045 = vunpack.c.l.b16 %v2949
        %v7046 = vunpack.c.l.b16 %v2950
        %v7047 = vunpack.c.l.b16 %v2951
        %v7048 = vunpack.c.l.b16 %v2952
        %v7049 = vunpack.c.l.b16 %v2953
        %v7050 = vunpack.c.l.b16 %v2954
        %v7051 = vunpack.c.l.b16 %v2955
        %v7052 = vunpack.c.l.b16 %v2956
        %v7053 = vunpack.c.l.b16 %v2957
        %v7054 = vunpack.c.l.b16 %v2958
        %v7055 = vunpack.c.l.b16 %v2959
        %v7056 = vunpack.c.l.b16 %v2960
        %v7057 = vunpack.c.l.b16 %v2961
        %v7058 = vunpack.c.l.b16 %v2962
        %v7059 = vunpack.c.l.b16 %v2963
        %v7060 = vunpack.c.l.b16 %v2964
        %v7061 = vunpack.c.l.b16 %v2965
        %v7062 = vunpack.c.l.b16 %v2966
        %v7063 = vunpack.c.l.b16 %v2967
        %v7064 = vunpack.c.l.b16 %v2968
        %v7065 = vunpack.c.l.b16 %v2969
        %v7066 = vunpack.c.l.b16 %v2970
        %v7067 = vunpack.c.l.b16 %v2971
        %v7068 = vunpack.c.l.b16 %v2972
        %v7069 = vunpack.c.l.b16 %v2973
        %v7070 = vunpack.c.l.b16 %v2974
        %v7071 = vunpack.c.l.b16 %v2975
        %v7072 = vunpack.c.l.b16 %v2976
        %v7073 = vunpack.c.l.b16 %v2977
        %v7074 = vunpack.c.l.b16 %v2978
        %v7075 = vunpack.c.l.b16 %v2979
        %v7076 = vunpack.c.l.b16 %v2980
        %v7077 = vunpack.c.l.b16 %v2981
        %v7078 = vunpack.c.l.b16 %v2982
        %v7079 = vunpack.c.l.b16 %v2983
        %v7080 = vunpack.c.l.b16 %v2984
        %v7081 = vunpack.c.l.b16 %v2985
        %v7082 = vunpack.c.l.b16 %v2986
        %v7083 = vunpack.c.l.b16 %v2987
        %v7084 = vunpack.c.l.b16 %v2988
        %v7085 = vunpack.c.l.b16 %v2989
        %v7086 = vunpack.c.l.b16 %v2990
        %v7087 = vunpack.c.l.b16 %v2991
        %v7088 = vunpack.c.l.b16 %v2992
        %v7089 = vunpack.c.l.b16 %v2993
        %v7090 = vunpack.c.l.b16 %v2994
        %v7091 = vunpack.c.l.b16 %v2995
        %v7092 = vunpack.c.l.b16 %v2996
        %v7093 = vunpack.c.l.b16 %v2997
        %v7094 = vunpack.c.l.b16 %v2998
        %v7095 = vunpack.c.l.b16 %v2999
        %v7096 = vunpack.c.l.b16 %v3000
        %v7097 = vunpack.c.l.b16 %v3001
        %v7098 = vunpack.c.l.b16 %v3002
        %v7099 = vunpack.c.l.b16 %v3003
        %v7100 = vunpack.c.l.b16 %v3004
        %v7101 = vunpack.c.l.b16 %v3005
        %v7102 = vunpack.c.l.b16 %v3006
        %v7103 = vunpack.c.l.b16 %v3007
        %v7104 = vunpack.c.l.b16 %v3008
        %v7105 = vunpack.c.l.b16 %v3009
        %v7106 = vunpack.c.l.b16 %v3010
        %v7107 = vunpack.c.l.b16 %v3011
        %v7108 = vunpack.c.l.b16 %v3012
        %v7109 = vunpack.c.l.b16 %v3013
        %v7110 = vunpack.c.l.b16 %v3014
        %v7111 = vunpack.c.l.b16 %v3015
        %v7112 = vunpack.c.l.b16 %v3016
        %v7113 = vunpack.c.l.b16 %v3017
        %v7114 = vunpack.c.l.b16 %v3018
        %v7115 = vunpack.c.l.b16 %v3019
        %v7116 = vunpack.c.l.b16 %v3020
        %v7117 = vunpack.c.l.b16 %v3021
        %v7118 = vunpack.c.l.b16 %v3022
        %v7119 = vunpack.c.l.b16 %v3023
        %v7120 = vunpack.c.l.b16 %v3024
        %v7121 = vunpack.c.l.b16 %v3025
        %v7122 = vunpack.c.l.b16 %v3026
        %v7123 = vunpack.c.l.b16 %v3027
        %v7124 = vunpack.c.l.b16 %v3028
        %v7125 = vunpack.c.l.b16 %v3029
        %v7126 = vunpack.c.l.b16 %v3030
        %v7127 = vunpack.c.l.b16 %v3031
        %v7128 = vunpack.c.l.b16 %v3032
        %v7129 = vunpack.c.l.b16 %v3033
        %v7130 = vunpack.c.l.b16 %v3034
        %v7131 = vunpack.c.l.b16 %v3035
        %v7132 = vunpack.c.l.b16 %v3036
        %v7133 = vunpack.c.l.b16 %v3037
        %v7134 = vunpack.c.l.b16 %v3038
        %v7135 = vunpack.c.l.b16 %v3039
        %v7136 = vunpack.c.l.b16 %v3040
        %v7137 = vunpack.c.l.b16 %v3041
        %v7138 = vunpack.c.l.b16 %v3042
        %v7139 = vunpack.c.l.b16 %v3043
        %v7140 = vunpack.c.l.b16 %v3044
        %v7141 = vunpack.c.l.b16 %v3045
        %v7142 = vunpack.c.l.b16 %v3046
        %v7143 = vunpack.c.l.b16 %v3047
        %v7144 = vunpack.c.l.b16 %v3048
        %v7145 = vunpack.c.l.b16 %v3049
        %v7146 = vunpack.c.l.b16 %v3050
        %v7147 = vunpack.c.l.b16 %v3051
        %v7148 = vunpack.c.l.b16 %v3052
        %v7149 = vunpack.c.l.b16 %v3053
        %v7150 = vunpack.c.l.b16 %v3054
        %v7151 = vunpack.c.l.b16 %v3055
        %v7152 = vunpack.c.l.b16 %v3056
        %v7153 = vunpack.c.l.b16 %v3057
        %v7154 = vunpack.c.l.b16 %v3058
        %v7155 = vunpack.c.l.b16 %v3059
        %v7156 = vunpack.c.l.b16 %v3060
        %v7157 = vunpack.c.l.b16 %v3061
        %v7158 = vunpack.c.l.b16 %v3062
        %v7159 = vunpack.c.l.b16 %v3063
        %v7160 = vunpack.c.l.b16 %v3064
        %v7161 = vunpack.c.l.b16 %v3065
        %v7162 = vunpack.c.l.b16 %v3066
        %v7163 = vunpack.c.l.b16 %v3067
        %v7164 = vunpack.c.l.b16 %v3068
        %v7165 = vunpack.c.l.b16 %v3069
        %v7166 = vunpack.c.l.b16 %v3070
        %v7167 = vunpack.c.l.b16 %v3071
        %v7168 = vunpack.c.l.b16 %v3072
        %v7169 = vunpack.c.l.b16 %v3073
        %v7170 = vunpack.c.l.b16 %v3074
        %v7171 = vunpack.c.l.b16 %v3075
        %v7172 = vunpack.c.l.b16 %v3076
        %v7173 = vunpack.c.l.b16 %v3077
        %v7174 = vunpack.c.l.b16 %v3078
        %v7175 = vunpack.c.l.b16 %v3079
        %v7176 = vunpack.c.l.b16 %v3080
        %v7177 = vunpack.c.l.b16 %v3081
        %v7178 = vunpack.c.l.b16 %v3082
        %v7179 = vunpack.c.l.b16 %v3083
        %v7180 = vunpack.c.l.b16 %v3084
        %v7181 = vunpack.c.l.b16 %v3085
        %v7182 = vunpack.c.l.b16 %v3086
        %v7183 = vunpack.c.l.b16 %v3087
        %v7184 = vunpack.c.l.b16 %v3088
        %v7185 = vunpack.c.l.b16 %v3089
        %v7186 = vunpack.c.l.b16 %v3090
        %v7187 = vunpack.c.l.b16 %v3091
        %v7188 = vunpack.c.l.b16 %v3092
        %v7189 = vunpack.c.l.b16 %v3093
        %v7190 = vunpack.c.l.b16 %v3094
        %v7191 = vunpack.c.l.b16 %v3095
        %v7192 = vunpack.c.l.b16 %v3096
        %v7193 = vunpack.c.l.b16 %v3097
        %v7194 = vunpack.c.l.b16 %v3098
        %v7195 = vunpack.c.l.b16 %v3099
        %v7196 = vunpack.c.l.b16 %v3100
        %v7197 = vunpack.c.l.b16 %v3101
        %v7198 = vunpack.c.l.b16 %v3102
        %v7199 = vunpack.c.l.b16 %v3103
        %v7200 = vunpack.c.l.b16 %v3104
        %v7201 = vunpack.c.l.b16 %v3105
        %v7202 = vunpack.c.l.b16 %v3106
        %v7203 = vunpack.c.l.b16 %v3107
        %v7204 = vunpack.c.l.b16 %v3108
        %v7205 = vunpack.c.l.b16 %v3109
        %v7206 = vunpack.c.l.b16 %v3110
        %v7207 = vunpack.c.l.b16 %v3111
        %v7208 = vunpack.c.l.b16 %v3112
        %v7209 = vunpack.c.l.b16 %v3113
        %v7210 = vunpack.c.l.b16 %v3114
        %v7211 = vunpack.c.l.b16 %v3115
        %v7212 = vunpack.c.l.b16 %v3116
        %v7213 = vunpack.c.l.b16 %v3117
        %v7214 = vunpack.c.l.b16 %v3118
        %v7215 = vunpack.c.l.b16 %v3119
        %v7216 = vunpack.c.l.b16 %v3120
        %v7217 = vunpack.c.l.b16 %v3121
        %v7218 = vunpack.c.l.b16 %v3122
        %v7219 = vunpack.c.l.b16 %v3123
        %v7220 = vunpack.c.l.b16 %v3124
        %v7221 = vunpack.c.l.b16 %v3125
        %v7222 = vunpack.c.l.b16 %v3126
        %v7223 = vunpack.c.l.b16 %v3127
        %v7224 = vunpack.c.l.b16 %v3128
        %v7225 = vunpack.c.l.b16 %v3129
        %v7226 = vunpack.c.l.b16 %v3130
        %v7227 = vunpack.c.l.b16 %v3131
        %v7228 = vunpack.c.l.b16 %v3132
        %v7229 = vunpack.c.l.b16 %v3133
        %v7230 = vunpack.c.l.b16 %v3134
        %v7231 = vunpack.c.l.b16 %v3135
        %v7232 = vunpack.c.l.b16 %v3136
        %v7233 = vunpack.c.l.b16 %v3137
        %v7234 = vunpack.c.l.b16 %v3138
        %v7235 = vunpack.c.l.b16 %v3139
        %v7236 = vunpack.c.l.b16 %v3140
        %v7237 = vunpack.c.l.b16 %v3141
        %v7238 = vunpack.c.l.b16 %v3142
        %v7239 = vunpack.c.l.b16 %v3143
        %v7240 = vunpack.c.l.b16 %v3144
        %v7241 = vunpack.c.l.b16 %v3145
        %v7242 = vunpack.c.l.b16 %v3146
        %v7243 = vunpack.c.l.b16 %v3147
        %v7244 = vunpack.c.l.b16 %v3148
        %v7245 = vunpack.c.l.b16 %v3149
        %v7246 = vunpack.c.l.b16 %v3150
        %v7247 = vunpack.c.l.b16 %v3151
        %v7248 = vunpack.c.l.b16 %v3152
        %v7249 = vunpack.c.l.b16 %v3153
        %v7250 = vunpack.c.l.b16 %v3154
        %v7251 = vunpack.c.l.b16 %v3155
        %v7252 = vunpack.c.l.b16 %v3156
        %v7253 = vunpack.c.l.b16 %v3157
        %v7254 = vunpack.c.l.b16 %v3158
        %v7255 = vunpack.c.l.b16 %v3159
        %v7256 = vunpack.c.l.b16 %v3160
        %v7257 = vunpack.c.l.b16 %v3161
        %v7258 = vunpack.c.l.b16 %v3162
        %v7259 = vunpack.c.l.b16 %v3163
        %v7260 = vunpack.c.l.b16 %v3164
        %v7261 = vunpack.c.l.b16 %v3165
        %v7262 = vunpack.c.l.b16 %v3166
        %v7263 = vunpack.c.l.b16 %v3167
        %v7264 = vunpack.c.l.b16 %v3168
        %v7265 = vunpack.c.l.b16 %v3169
        %v7266 = vunpack.c.l.b16 %v3170
        %v7267 = vunpack.c.l.b16 %v3171
        %v7268 = vunpack.c.l.b16 %v3172
        %v7269 = vunpack.c.l.b16 %v3173
        %v7270 = vunpack.c.l.b16 %v3174
        %v7271 = vunpack.c.l.b16 %v3175
        %v7272 = vunpack.c.l.b16 %v3176
        %v7273 = vunpack.c.l.b16 %v3177
        %v7274 = vunpack.c.l.b16 %v3178
        %v7275 = vunpack.c.l.b16 %v3179
        %v7276 = vunpack.c.l.b16 %v3180
        %v7277 = vunpack.c.l.b16 %v3181
        %v7278 = vunpack.c.l.b16 %v3182
        %v7279 = vunpack.c.l.b16 %v3183
        %v7280 = vunpack.c.l.b16 %v3184
        %v7281 = vunpack.c.l.b16 %v3185
        %v7282 = vunpack.c.l.b16 %v3186
        %v7283 = vunpack.c.l.b16 %v3187
        %v7284 = vunpack.c.l.b16 %v3188
        %v7285 = vunpack.c.l.b16 %v3189
        %v7286 = vunpack.c.l.b16 %v3190
        %v7287 = vunpack.c.l.b16 %v3191
        %v7288 = vunpack.c.l.b16 %v3192
        %v7289 = vunpack.c.l.b16 %v3193
        %v7290 = vunpack.c.l.b16 %v3194
        %v7291 = vunpack.c.l.b16 %v3195
        %v7292 = vunpack.c.l.b16 %v3196
        %v7293 = vunpack.c.l.b16 %v3197
        %v7294 = vunpack.c.l.b16 %v3198
        %v7295 = vunpack.c.l.b16 %v3199
        %v7296 = vunpack.c.l.b16 %v3200
        %v7297 = vunpack.c.l.b16 %v3201
        %v7298 = vunpack.c.l.b16 %v3202
        %v7299 = vunpack.c.l.b16 %v3203
        %v7300 = vunpack.c.l.b16 %v3204
        %v7301 = vunpack.c.l.b16 %v3205
        %v7302 = vunpack.c.l.b16 %v3206
        %v7303 = vunpack.c.l.b16 %v3207
        %v7304 = vunpack.c.l.b16 %v3208
        %v7305 = vunpack.c.l.b16 %v3209
        %v7306 = vunpack.c.l.b16 %v3210
        %v7307 = vunpack.c.l.b16 %v3211
        %v7308 = vunpack.c.l.b16 %v3212
        %v7309 = vunpack.c.l.b16 %v3213
        %v7310 = vunpack.c.l.b16 %v3214
        %v7311 = vunpack.c.l.b16 %v3215
        %v7312 = vunpack.c.l.b16 %v3216
        %v7313 = vunpack.c.l.b16 %v3217
        %v7314 = vunpack.c.l.b16 %v3218
        %v7315 = vunpack.c.l.b16 %v3219
        %v7316 = vunpack.c.l.b16 %v3220
        %v7317 = vunpack.c.l.b16 %v3221
        %v7318 = vunpack.c.l.b16 %v3222
        %v7319 = vunpack.c.l.b16 %v3223
        %v7320 = vunpack.c.l.b16 %v3224
        %v7321 = vunpack.c.l.b16 %v3225
        %v7322 = vunpack.c.l.b16 %v3226
        %v7323 = vunpack.c.l.b16 %v3227
        %v7324 = vunpack.c.l.b16 %v3228
        %v7325 = vunpack.c.l.b16 %v3229
        %v7326 = vunpack.c.l.b16 %v3230
        %v7327 = vunpack.c.l.b16 %v3231
        %v7328 = vunpack.c.l.b16 %v3232
        %v7329 = vunpack.c.l.b16 %v3233
        %v7330 = vunpack.c.l.b16 %v3234
        %v7331 = vunpack.c.l.b16 %v3235
        %v7332 = vunpack.c.l.b16 %v3236
        %v7333 = vunpack.c.l.b16 %v3237
        %v7334 = vunpack.c.l.b16 %v3238
        %v7335 = vunpack.c.l.b16 %v3239
        %v7336 = vunpack.c.l.b16 %v3240
        %v7337 = vunpack.c.l.b16 %v3241
        %v7338 = vunpack.c.l.b16 %v3242
        %v7339 = vunpack.c.l.b16 %v3243
        %v7340 = vunpack.c.l.b16 %v3244
        %v7341 = vunpack.c.l.b16 %v3245
        %v7342 = vunpack.c.l.b16 %v3246
        %v7343 = vunpack.c.l.b16 %v3247
        %v7344 = vunpack.c.l.b16 %v3248
        %v7345 = vunpack.c.l.b16 %v3249
        %v7346 = vunpack.c.l.b16 %v3250
        %v7347 = vunpack.c.l.b16 %v3251
        %v7348 = vunpack.c.l.b16 %v3252
        %v7349 = vunpack.c.l.b16 %v3253
        %v7350 = vunpack.c.l.b16 %v3254
        %v7351 = vunpack.c.l.b16 %v3255
        %v7352 = vunpack.c.l.b16 %v3256
        %v7353 = vunpack.c.l.b16 %v3257
        %v7354 = vunpack.c.l.b16 %v3258
        %v7355 = vunpack.c.l.b16 %v3259
        %v7356 = vunpack.c.l.b16 %v3260
        %v7357 = vunpack.c.l.b16 %v3261
        %v7358 = vunpack.c.l.b16 %v3262
        %v7359 = vunpack.c.l.b16 %v3263
        %v7360 = vunpack.c.l.b16 %v3264
        %v7361 = vunpack.c.l.b16 %v3265
        %v7362 = vunpack.c.l.b16 %v3266
        %v7363 = vunpack.c.l.b16 %v3267
        %v7364 = vunpack.c.l.b16 %v3268
        %v7365 = vunpack.c.l.b16 %v3269
        %v7366 = vunpack.c.l.b16 %v3270
        %v7367 = vunpack.c.l.b16 %v3271
        %v7368 = vunpack.c.l.b16 %v3272
        %v7369 = vunpack.c.l.b16 %v3273
        %v7370 = vunpack.c.l.b16 %v3274
        %v7371 = vunpack.c.l.b16 %v3275
        %v7372 = vunpack.c.l.b16 %v3276
        %v7373 = vunpack.c.l.b16 %v3277
        %v7374 = vunpack.c.l.b16 %v3278
        %v7375 = vunpack.c.l.b16 %v3279
        %v7376 = vunpack.c.l.b16 %v3280
        %v7377 = vunpack.c.l.b16 %v3281
        %v7378 = vunpack.c.l.b16 %v3282
        %v7379 = vunpack.c.l.b16 %v3283
        %v7380 = vunpack.c.l.b16 %v3284
        %v7381 = vunpack.c.l.b16 %v3285
        %v7382 = vunpack.c.l.b16 %v3286
        %v7383 = vunpack.c.l.b16 %v3287
        %v7384 = vunpack.c.l.b16 %v3288
        %v7385 = vunpack.c.l.b16 %v3289
        %v7386 = vunpack.c.l.b16 %v3290
        %v7387 = vunpack.c.l.b16 %v3291
        %v7388 = vunpack.c.l.b16 %v3292
        %v7389 = vunpack.c.l.b16 %v3293
        %v7390 = vunpack.c.l.b16 %v3294
        %v7391 = vunpack.c.l.b16 %v3295
        %v7392 = vunpack.c.l.b16 %v3296
        %v7393 = vunpack.c.l.b16 %v3297
        %v7394 = vunpack.c.l.b16 %v3298
        %v7395 = vunpack.c.l.b16 %v3299
        %v7396 = vunpack.c.l.b16 %v3300
        %v7397 = vunpack.c.l.b16 %v3301
        %v7398 = vunpack.c.l.b16 %v3302
        %v7399 = vunpack.c.l.b16 %v3303
        %v7400 = vunpack.c.l.b16 %v3304
        %v7401 = vunpack.c.l.b16 %v3305
        %v7402 = vunpack.c.l.b16 %v3306
        %v7403 = vunpack.c.l.b16 %v3307
        %v7404 = vunpack.c.l.b16 %v3308
        %v7405 = vunpack.c.l.b16 %v3309
        %v7406 = vunpack.c.l.b16 %v3310
        %v7407 = vunpack.c.l.b16 %v3311
        %v7408 = vunpack.c.l.b16 %v3312
        %v7409 = vunpack.c.l.b16 %v3313
        %v7410 = vunpack.c.l.b16 %v3314
        %v7411 = vunpack.c.l.b16 %v3315
        %v7412 = vunpack.c.l.b16 %v3316
        %v7413 = vunpack.c.l.b16 %v3317
        %v7414 = vunpack.c.l.b16 %v3318
        %v7415 = vunpack.c.l.b16 %v3319
        %v7416 = vunpack.c.l.b16 %v3320
        %v7417 = vunpack.c.l.b16 %v3321
        %v7418 = vunpack.c.l.b16 %v3322
        %v7419 = vunpack.c.l.b16 %v3323
        %v7420 = vunpack.c.l.b16 %v3324
        %v7421 = vunpack.c.l.b16 %v3325
        %v7422 = vunpack.c.l.b16 %v3326
        %v7423 = vunpack.c.l.b16 %v3327
        %v7424 = vunpack.c.l.b16 %v3328
        %v7425 = vunpack.c.l.b16 %v3329
        %v7426 = vunpack.c.l.b16 %v3330
        %v7427 = vunpack.c.l.b16 %v3331
        %v7428 = vunpack.c.l.b16 %v3332
        %v7429 = vunpack.c.l.b16 %v3333
        %v7430 = vunpack.c.l.b16 %v3334
        %v7431 = vunpack.c.l.b16 %v3335
        %v7432 = vunpack.c.l.b16 %v3336
        %v7433 = vunpack.c.l.b16 %v3337
        %v7434 = vunpack.c.l.b16 %v3338
        %v7435 = vunpack.c.l.b16 %v3339
        %v7436 = vunpack.c.l.b16 %v3340
        %v7437 = vunpack.c.l.b16 %v3341
        %v7438 = vunpack.c.l.b16 %v3342
        %v7439 = vunpack.c.l.b16 %v3343
        %v7440 = vunpack.c.l.b16 %v3344
        %v7441 = vunpack.c.l.b16 %v3345
        %v7442 = vunpack.c.l.b16 %v3346
        %v7443 = vunpack.c.l.b16 %v3347
        %v7444 = vunpack.c.l.b16 %v3348
        %v7445 = vunpack.c.l.b16 %v3349
        %v7446 = vunpack.c.l.b16 %v3350
        %v7447 = vunpack.c.l.b16 %v3351
        %v7448 = vunpack.c.l.b16 %v3352
        %v7449 = vunpack.c.l.b16 %v3353
        %v7450 = vunpack.c.l.b16 %v3354
        %v7451 = vunpack.c.l.b16 %v3355
        %v7452 = vunpack.c.l.b16 %v3356
        %v7453 = vunpack.c.l.b16 %v3357
        %v7454 = vunpack.c.l.b16 %v3358
        %v7455 = vunpack.c.l.b16 %v3359
        %v7456 = vunpack.c.l.b16 %v3360
        %v7457 = vunpack.c.l.b16 %v3361
        %v7458 = vunpack.c.l.b16 %v3362
        %v7459 = vunpack.c.l.b16 %v3363
        %v7460 = vunpack.c.l.b16 %v3364
        %v7461 = vunpack.c.l.b16 %v3365
        %v7462 = vunpack.c.l.b16 %v3366
        %v7463 = vunpack.c.l.b16 %v3367
        %v7464 = vunpack.c.l.b16 %v3368
        %v7465 = vunpack.c.l.b16 %v3369
        %v7466 = vunpack.c.l.b16 %v3370
        %v7467 = vunpack.c.l.b16 %v3371
        %v7468 = vunpack.c.l.b16 %v3372
        %v7469 = vunpack.c.l.b16 %v3373
        %v7470 = vunpack.c.l.b16 %v3374
        %v7471 = vunpack.c.l.b16 %v3375
        %v7472 = vunpack.c.l.b16 %v3376
        %v7473 = vunpack.c.l.b16 %v3377
        %v7474 = vunpack.c.l.b16 %v3378
        %v7475 = vunpack.c.l.b16 %v3379
        %v7476 = vunpack.c.l.b16 %v3380
        %v7477 = vunpack.c.l.b16 %v3381
        %v7478 = vunpack.c.l.b16 %v3382
        %v7479 = vunpack.c.l.b16 %v3383
        %v7480 = vunpack.c.l.b16 %v3384
        %v7481 = vunpack.c.l.b16 %v3385
        %v7482 = vunpack.c.l.b16 %v3386
        %v7483 = vunpack.c.l.b16 %v3387
        %v7484 = vunpack.c.l.b16 %v3388
        %v7485 = vunpack.c.l.b16 %v3389
        %v7486 = vunpack.c.l.b16 %v3390
        %v7487 = vunpack.c.l.b16 %v3391
        %v7488 = vunpack.c.l.b16 %v3392
        %v7489 = vunpack.c.l.b16 %v3393
        %v7490 = vunpack.c.l.b16 %v3394
        %v7491 = vunpack.c.l.b16 %v3395
        %v7492 = vunpack.c.l.b16 %v3396
        %v7493 = vunpack.c.l.b16 %v3397
        %v7494 = vunpack.c.l.b16 %v3398
        %v7495 = vunpack.c.l.b16 %v3399
        %v7496 = vunpack.c.l.b16 %v3400
        %v7497 = vunpack.c.l.b16 %v3401
        %v7498 = vunpack.c.l.b16 %v3402
        %v7499 = vunpack.c.l.b16 %v3403
        %v7500 = vunpack.c.l.b16 %v3404
        %v7501 = vunpack.c.l.b16 %v3405
        %v7502 = vunpack.c.l.b16 %v3406
        %v7503 = vunpack.c.l.b16 %v3407
        %v7504 = vunpack.c.l.b16 %v3408
        %v7505 = vunpack.c.l.b16 %v3409
        %v7506 = vunpack.c.l.b16 %v3410
        %v7507 = vunpack.c.l.b16 %v3411
        %v7508 = vunpack.c.l.b16 %v3412
        %v7509 = vunpack.c.l.b16 %v3413
        %v7510 = vunpack.c.l.b16 %v3414
        %v7511 = vunpack.c.l.b16 %v3415
        %v7512 = vunpack.c.l.b16 %v3416
        %v7513 = vunpack.c.l.b16 %v3417
        %v7514 = vunpack.c.l.b16 %v3418
        %v7515 = vunpack.c.l.b16 %v3419
        %v7516 = vunpack.c.l.b16 %v3420
        %v7517 = vunpack.c.l.b16 %v3421
        %v7518 = vunpack.c.l.b16 %v3422
        %v7519 = vunpack.c.l.b16 %v3423
        %v7520 = vunpack.c.l.b16 %v3424
        %v7521 = vunpack.c.l.b16 %v3425
        %v7522 = vunpack.c.l.b16 %v3426
        %v7523 = vunpack.c.l.b16 %v3427
        %v7524 = vunpack.c.l.b16 %v3428
        %v7525 = vunpack.c.l.b16 %v3429
        %v7526 = vunpack.c.l.b16 %v3430
        %v7527 = vunpack.c.l.b16 %v3431
        %v7528 = vunpack.c.l.b16 %v3432
        %v7529 = vunpack.c.l.b16 %v3433
        %v7530 = vunpack.c.l.b16 %v3434
        %v7531 = vunpack.c.l.b16 %v3435
        %v7532 = vunpack.c.l.b16 %v3436
        %v7533 = vunpack.c.l.b16 %v3437
        %v7534 = vunpack.c.l.b16 %v3438
        %v7535 = vunpack.c.l.b16 %v3439
        %v7536 = vunpack.c.l.b16 %v3440
        %v7537 = vunpack.c.l.b16 %v3441
        %v7538 = vunpack.c.l.b16 %v3442
        %v7539 = vunpack.c.l.b16 %v3443
        %v7540 = vunpack.c.l.b16 %v3444
        %v7541 = vunpack.c.l.b16 %v3445
        %v7542 = vunpack.c.l.b16 %v3446
        %v7543 = vunpack.c.l.b16 %v3447
        %v7544 = vunpack.c.l.b16 %v3448
        %v7545 = vunpack.c.l.b16 %v3449
        %v7546 = vunpack.c.l.b16 %v3450
        %v7547 = vunpack.c.l.b16 %v3451
        %v7548 = vunpack.c.l.b16 %v3452
        %v7549 = vunpack.c.l.b16 %v3453
        %v7550 = vunpack.c.l.b16 %v3454
        %v7551 = vunpack.c.l.b16 %v3455
        %v7552 = vunpack.c.l.b16 %v3456
        %v7553 = vunpack.c.l.b16 %v3457
        %v7554 = vunpack.c.l.b16 %v3458
        %v7555 = vunpack.c.l.b16 %v3459
        %v7556 = vunpack.c.l.b16 %v3460
        %v7557 = vunpack.c.l.b16 %v3461
        %v7558 = vunpack.c.l.b16 %v3462
        %v7559 = vunpack.c.l.b16 %v3463
        %v7560 = vunpack.c.l.b16 %v3464
        %v7561 = vunpack.c.l.b16 %v3465
        %v7562 = vunpack.c.l.b16 %v3466
        %v7563 = vunpack.c.l.b16 %v3467
        %v7564 = vunpack.c.l.b16 %v3468
        %v7565 = vunpack.c.l.b16 %v3469
        %v7566 = vunpack.c.l.b16 %v3470
        %v7567 = vunpack.c.l.b16 %v3471
        %v7568 = vunpack.c.l.b16 %v3472
        %v7569 = vunpack.c.l.b16 %v3473
        %v7570 = vunpack.c.l.b16 %v3474
        %v7571 = vunpack.c.l.b16 %v3475
        %v7572 = vunpack.c.l.b16 %v3476
        %v7573 = vunpack.c.l.b16 %v3477
        %v7574 = vunpack.c.l.b16 %v3478
        %v7575 = vunpack.c.l.b16 %v3479
        %v7576 = vunpack.c.l.b16 %v3480
        %v7577 = vunpack.c.l.b16 %v3481
        %v7578 = vunpack.c.l.b16 %v3482
        %v7579 = vunpack.c.l.b16 %v3483
        %v7580 = vunpack.c.l.b16 %v3484
        %v7581 = vunpack.c.l.b16 %v3485
        %v7582 = vunpack.c.l.b16 %v3486
        %v7583 = vunpack.c.l.b16 %v3487
        %v7584 = vunpack.c.l.b16 %v3488
        %v7585 = vunpack.c.l.b16 %v3489
        %v7586 = vunpack.c.l.b16 %v3490
        %v7587 = vunpack.c.l.b16 %v3491
        %v7588 = vunpack.c.l.b16 %v3492
        %v7589 = vunpack.c.l.b16 %v3493
        %v7590 = vunpack.c.l.b16 %v3494
        %v7591 = vunpack.c.l.b16 %v3495
        %v7592 = vunpack.c.l.b16 %v3496
        %v7593 = vunpack.c.l.b16 %v3497
        %v7594 = vunpack.c.l.b16 %v3498
        %v7595 = vunpack.c.l.b16 %v3499
        %v7596 = vunpack.c.l.b16 %v3500
        %v7597 = vunpack.c.l.b16 %v3501
        %v7598 = vunpack.c.l.b16 %v3502
        %v7599 = vunpack.c.l.b16 %v3503
        %v7600 = vunpack.c.l.b16 %v3504
        %v7601 = vunpack.c.l.b16 %v3505
        %v7602 = vunpack.c.l.b16 %v3506
        %v7603 = vunpack.c.l.b16 %v3507
        %v7604 = vunpack.c.l.b16 %v3508
        %v7605 = vunpack.c.l.b16 %v3509
        %v7606 = vunpack.c.l.b16 %v3510
        %v7607 = vunpack.c.l.b16 %v3511
        %v7608 = vunpack.c.l.b16 %v3512
        %v7609 = vunpack.c.l.b16 %v3513
        %v7610 = vunpack.c.l.b16 %v3514
        %v7611 = vunpack.c.l.b16 %v3515
        %v7612 = vunpack.c.l.b16 %v3516
        %v7613 = vunpack.c.l.b16 %v3517
        %v7614 = vunpack.c.l.b16 %v3518
        %v7615 = vunpack.c.l.b16 %v3519
        %v7616 = vunpack.c.l.b16 %v3520
        %v7617 = vunpack.c.l.b16 %v3521
        %v7618 = vunpack.c.l.b16 %v3522
        %v7619 = vunpack.c.l.b16 %v3523
        %v7620 = vunpack.c.l.b16 %v3524
        %v7621 = vunpack.c.l.b16 %v3525
        %v7622 = vunpack.c.l.b16 %v3526
        %v7623 = vunpack.c.l.b16 %v3527
        %v7624 = vunpack.c.l.b16 %v3528
        %v7625 = vunpack.c.l.b16 %v3529
        %v7626 = vunpack.c.l.b16 %v3530
        %v7627 = vunpack.c.l.b16 %v3531
        %v7628 = vunpack.c.l.b16 %v3532
        %v7629 = vunpack.c.l.b16 %v3533
        %v7630 = vunpack.c.l.b16 %v3534
        %v7631 = vunpack.c.l.b16 %v3535
        %v7632 = vunpack.c.l.b16 %v3536
        %v7633 = vunpack.c.l.b16 %v3537
        %v7634 = vunpack.c.l.b16 %v3538
        %v7635 = vunpack.c.l.b16 %v3539
        %v7636 = vunpack.c.l.b16 %v3540
        %v7637 = vunpack.c.l.b16 %v3541
        %v7638 = vunpack.c.l.b16 %v3542
        %v7639 = vunpack.c.l.b16 %v3543
        %v7640 = vunpack.c.l.b16 %v3544
        %v7641 = vunpack.c.l.b16 %v3545
        %v7642 = vunpack.c.l.b16 %v3546
        %v7643 = vunpack.c.l.b16 %v3547
        %v7644 = vunpack.c.l.b16 %v3548
        %v7645 = vunpack.c.l.b16 %v3549
        %v7646 = vunpack.c.l.b16 %v3550
        %v7647 = vunpack.c.l.b16 %v3551
        %v7648 = vunpack.c.l.b16 %v3552
        %v7649 = vunpack.c.l.b16 %v3553
        %v7650 = vunpack.c.l.b16 %v3554
        %v7651 = vunpack.c.l.b16 %v3555
        %v7652 = vunpack.c.l.b16 %v3556
        %v7653 = vunpack.c.l.b16 %v3557
        %v7654 = vunpack.c.l.b16 %v3558
        %v7655 = vunpack.c.l.b16 %v3559
        %v7656 = vunpack.c.l.b16 %v3560
        %v7657 = vunpack.c.l.b16 %v3561
        %v7658 = vunpack.c.l.b16 %v3562
        %v7659 = vunpack.c.l.b16 %v3563
        %v7660 = vunpack.c.l.b16 %v3564
        %v7661 = vunpack.c.l.b16 %v3565
        %v7662 = vunpack.c.l.b16 %v3566
        %v7663 = vunpack.c.l.b16 %v3567
        %v7664 = vunpack.c.l.b16 %v3568
        %v7665 = vunpack.c.l.b16 %v3569
        %v7666 = vunpack.c.l.b16 %v3570
        %v7667 = vunpack.c.l.b16 %v3571
        %v7668 = vunpack.c.l.b16 %v3572
        %v7669 = vunpack.c.l.b16 %v3573
        %v7670 = vunpack.c.l.b16 %v3574
        %v7671 = vunpack.c.l.b16 %v3575
        %v7672 = vunpack.c.l.b16 %v3576
        %v7673 = vunpack.c.l.b16 %v3577
        %v7674 = vunpack.c.l.b16 %v3578
        %v7675 = vunpack.c.l.b16 %v3579
        %v7676 = vunpack.c.l.b16 %v3580
        %v7677 = vunpack.c.l.b16 %v3581
        %v7678 = vunpack.c.l.b16 %v3582
        %v7679 = vunpack.c.l.b16 %v3583
        %v7680 = vunpack.c.l.b16 %v3584
        %v7681 = vunpack.c.l.b16 %v3585
        %v7682 = vunpack.c.l.b16 %v3586
        %v7683 = vunpack.c.l.b16 %v3587
        %v7684 = vunpack.c.l.b16 %v3588
        %v7685 = vunpack.c.l.b16 %v3589
        %v7686 = vunpack.c.l.b16 %v3590
        %v7687 = vunpack.c.l.b16 %v3591
        %v7688 = vunpack.c.l.b16 %v3592
        %v7689 = vunpack.c.l.b16 %v3593
        %v7690 = vunpack.c.l.b16 %v3594
        %v7691 = vunpack.c.l.b16 %v3595
        %v7692 = vunpack.c.l.b16 %v3596
        %v7693 = vunpack.c.l.b16 %v3597
        %v7694 = vunpack.c.l.b16 %v3598
        %v7695 = vunpack.c.l.b16 %v3599
        %v7696 = vunpack.c.l.b16 %v3600
        %v7697 = vunpack.c.l.b16 %v3601
        %v7698 = vunpack.c.l.b16 %v3602
        %v7699 = vunpack.c.l.b16 %v3603
        %v7700 = vunpack.c.l.b16 %v3604
        %v7701 = vunpack.c.l.b16 %v3605
        %v7702 = vunpack.c.l.b16 %v3606
        %v7703 = vunpack.c.l.b16 %v3607
        %v7704 = vunpack.c.l.b16 %v3608
        %v7705 = vunpack.c.l.b16 %v3609
        %v7706 = vunpack.c.l.b16 %v3610
        %v7707 = vunpack.c.l.b16 %v3611
        %v7708 = vunpack.c.l.b16 %v3612
        %v7709 = vunpack.c.l.b16 %v3613
        %v7710 = vunpack.c.l.b16 %v3614
        %v7711 = vunpack.c.l.b16 %v3615
        %v7712 = vunpack.c.l.b16 %v3616
        %v7713 = vunpack.c.l.b16 %v3617
        %v7714 = vunpack.c.l.b16 %v3618
        %v7715 = vunpack.c.l.b16 %v3619
        %v7716 = vunpack.c.l.b16 %v3620
        %v7717 = vunpack.c.l.b16 %v3621
        %v7718 = vunpack.c.l.b16 %v3622
        %v7719 = vunpack.c.l.b16 %v3623
        %v7720 = vunpack.c.l.b16 %v3624
        %v7721 = vunpack.c.l.b16 %v3625
        %v7722 = vunpack.c.l.b16 %v3626
        %v7723 = vunpack.c.l.b16 %v3627
        %v7724 = vunpack.c.l.b16 %v3628
        %v7725 = vunpack.c.l.b16 %v3629
        %v7726 = vunpack.c.l.b16 %v3630
        %v7727 = vunpack.c.l.b16 %v3631
        %v7728 = vunpack.c.l.b16 %v3632
        %v7729 = vunpack.c.l.b16 %v3633
        %v7730 = vunpack.c.l.b16 %v3634
        %v7731 = vunpack.c.l.b16 %v3635
        %v7732 = vunpack.c.l.b16 %v3636
        %v7733 = vunpack.c.l.b16 %v3637
        %v7734 = vunpack.c.l.b16 %v3638
        %v7735 = vunpack.c.l.b16 %v3639
        %v7736 = vunpack.c.l.b16 %v3640
        %v7737 = vunpack.c.l.b16 %v3641
        %v7738 = vunpack.c.l.b16 %v3642
        %v7739 = vunpack.c.l.b16 %v3643
        %v7740 = vunpack.c.l.b16 %v3644
        %v7741 = vunpack.c.l.b16 %v3645
        %v7742 = vunpack.c.l.b16 %v3646
        %v7743 = vunpack.c.l.b16 %v3647
        %v7744 = vunpack.c.l.b16 %v3648
        %v7745 = vunpack.c.l.b16 %v3649
        %v7746 = vunpack.c.l.b16 %v3650
        %v7747 = vunpack.c.l.b16 %v3651
        %v7748 = vunpack.c.l.b16 %v3652
        %v7749 = vunpack.c.l.b16 %v3653
        %v7750 = vunpack.c.l.b16 %v3654
        %v7751 = vunpack.c.l.b16 %v3655
        %v7752 = vunpack.c.l.b16 %v3656
        %v7753 = vunpack.c.l.b16 %v3657
        %v7754 = vunpack.c.l.b16 %v3658
        %v7755 = vunpack.c.l.b16 %v3659
        %v7756 = vunpack.c.l.b16 %v3660
        %v7757 = vunpack.c.l.b16 %v3661
        %v7758 = vunpack.c.l.b16 %v3662
        %v7759 = vunpack.c.l.b16 %v3663
        %v7760 = vunpack.c.l.b16 %v3664
        %v7761 = vunpack.c.l.b16 %v3665
        %v7762 = vunpack.c.l.b16 %v3666
        %v7763 = vunpack.c.l.b16 %v3667
        %v7764 = vunpack.c.l.b16 %v3668
        %v7765 = vunpack.c.l.b16 %v3669
        %v7766 = vunpack.c.l.b16 %v3670
        %v7767 = vunpack.c.l.b16 %v3671
        %v7768 = vunpack.c.l.b16 %v3672
        %v7769 = vunpack.c.l.b16 %v3673
        %v7770 = vunpack.c.l.b16 %v3674
        %v7771 = vunpack.c.l.b16 %v3675
        %v7772 = vunpack.c.l.b16 %v3676
        %v7773 = vunpack.c.l.b16 %v3677
        %v7774 = vunpack.c.l.b16 %v3678
        %v7775 = vunpack.c.l.b16 %v3679
        %v7776 = vunpack.c.l.b16 %v3680
        %v7777 = vunpack.c.l.b16 %v3681
        %v7778 = vunpack.c.l.b16 %v3682
        %v7779 = vunpack.c.l.b16 %v3683
        %v7780 = vunpack.c.l.b16 %v3684
        %v7781 = vunpack.c.l.b16 %v3685
        %v7782 = vunpack.c.l.b16 %v3686
        %v7783 = vunpack.c.l.b16 %v3687
        %v7784 = vunpack.c.l.b16 %v3688
        %v7785 = vunpack.c.l.b16 %v3689
        %v7786 = vunpack.c.l.b16 %v3690
        %v7787 = vunpack.c.l.b16 %v3691
        %v7788 = vunpack.c.l.b16 %v3692
        %v7789 = vunpack.c.l.b16 %v3693
        %v7790 = vunpack.c.l.b16 %v3694
        %v7791 = vunpack.c.l.b16 %v3695
        %v7792 = vunpack.c.l.b16 %v3696
        %v7793 = vunpack.c.l.b16 %v3697
        %v7794 = vunpack.c.l.b16 %v3698
        %v7795 = vunpack.c.l.b16 %v3699
        %v7796 = vunpack.c.l.b16 %v3700
        %v7797 = vunpack.c.l.b16 %v3701
        %v7798 = vunpack.c.l.b16 %v3702
        %v7799 = vunpack.c.l.b16 %v3703
        %v7800 = vunpack.c.l.b16 %v3704
        %v7801 = vunpack.c.l.b16 %v3705
        %v7802 = vunpack.c.l.b16 %v3706
        %v7803 = vunpack.c.l.b16 %v3707
        %v7804 = vunpack.c.l.b16 %v3708
        %v7805 = vunpack.c.l.b16 %v3709
        %v7806 = vunpack.c.l.b16 %v3710
        %v7807 = vunpack.c.l.b16 %v3711
        %v7808 = vunpack.c.l.b16 %v3712
        %v7809 = vunpack.c.l.b16 %v3713
        %v7810 = vunpack.c.l.b16 %v3714
        %v7811 = vunpack.c.l.b16 %v3715
        %v7812 = vunpack.c.l.b16 %v3716
        %v7813 = vunpack.c.l.b16 %v3717
        %v7814 = vunpack.c.l.b16 %v3718
        %v7815 = vunpack.c.l.b16 %v3719
        %v7816 = vunpack.c.l.b16 %v3720
        %v7817 = vunpack.c.l.b16 %v3721
        %v7818 = vunpack.c.l.b16 %v3722
        %v7819 = vunpack.c.l.b16 %v3723
        %v7820 = vunpack.c.l.b16 %v3724
        %v7821 = vunpack.c.l.b16 %v3725
        %v7822 = vunpack.c.l.b16 %v3726
        %v7823 = vunpack.c.l.b16 %v3727
        %v7824 = vunpack.c.l.b16 %v3728
        %v7825 = vunpack.c.l.b16 %v3729
        %v7826 = vunpack.c.l.b16 %v3730
        %v7827 = vunpack.c.l.b16 %v3731
        %v7828 = vunpack.c.l.b16 %v3732
        %v7829 = vunpack.c.l.b16 %v3733
        %v7830 = vunpack.c.l.b16 %v3734
        %v7831 = vunpack.c.l.b16 %v3735
        %v7832 = vunpack.c.l.b16 %v3736
        %v7833 = vunpack.c.l.b16 %v3737
        %v7834 = vunpack.c.l.b16 %v3738
        %v7835 = vunpack.c.l.b16 %v3739
        %v7836 = vunpack.c.l.b16 %v3740
        %v7837 = vunpack.c.l.b16 %v3741
        %v7838 = vunpack.c.l.b16 %v3742
        %v7839 = vunpack.c.l.b16 %v3743
        %v7840 = vunpack.c.l.b16 %v3744
        %v7841 = vunpack.c.l.b16 %v3745
        %v7842 = vunpack.c.l.b16 %v3746
        %v7843 = vunpack.c.l.b16 %v3747
        %v7844 = vunpack.c.l.b16 %v3748
        %v7845 = vunpack.c.l.b16 %v3749
        %v7846 = vunpack.c.l.b16 %v3750
        %v7847 = vunpack.c.l.b16 %v3751
        %v7848 = vunpack.c.l.b16 %v3752
        %v7849 = vunpack.c.l.b16 %v3753
        %v7850 = vunpack.c.l.b16 %v3754
        %v7851 = vunpack.c.l.b16 %v3755
        %v7852 = vunpack.c.l.b16 %v3756
        %v7853 = vunpack.c.l.b16 %v3757
        %v7854 = vunpack.c.l.b16 %v3758
        %v7855 = vunpack.c.l.b16 %v3759
        %v7856 = vunpack.c.l.b16 %v3760
        %v7857 = vunpack.c.l.b16 %v3761
        %v7858 = vunpack.c.l.b16 %v3762
        %v7859 = vunpack.c.l.b16 %v3763
        %v7860 = vunpack.c.l.b16 %v3764
        %v7861 = vunpack.c.l.b16 %v3765
        %v7862 = vunpack.c.l.b16 %v3766
        %v7863 = vunpack.c.l.b16 %v3767
        %v7864 = vunpack.c.l.b16 %v3768
        %v7865 = vunpack.c.l.b16 %v3769
        %v7866 = vunpack.c.l.b16 %v3770
        %v7867 = vunpack.c.l.b16 %v3771
        %v7868 = vunpack.c.l.b16 %v3772
        %v7869 = vunpack.c.l.b16 %v3773
        %v7870 = vunpack.c.l.b16 %v3774
        %v7871 = vunpack.c.l.b16 %v3775
        %v7872 = vunpack.c.l.b16 %v3776
        %v7873 = vunpack.c.l.b16 %v3777
        %v7874 = vunpack.c.l.b16 %v3778
        %v7875 = vunpack.c.l.b16 %v3779
        %v7876 = vunpack.c.l.b16 %v3780
        %v7877 = vunpack.c.l.b16 %v3781
        %v7878 = vunpack.c.l.b16 %v3782
        %v7879 = vunpack.c.l.b16 %v3783
        %v7880 = vunpack.c.l.b16 %v3784
        %v7881 = vunpack.c.l.b16 %v3785
        %v7882 = vunpack.c.l.b16 %v3786
        %v7883 = vunpack.c.l.b16 %v3787
        %v7884 = vunpack.c.l.b16 %v3788
        %v7885 = vunpack.c.l.b16 %v3789
        %v7886 = vunpack.c.l.b16 %v3790
        %v7887 = vunpack.c.l.b16 %v3791
        %v7888 = vunpack.c.l.b16 %v3792
        %v7889 = vunpack.c.l.b16 %v3793
        %v7890 = vunpack.c.l.b16 %v3794
        %v7891 = vunpack.c.l.b16 %v3795
        %v7892 = vunpack.c.l.b16 %v3796
        %v7893 = vunpack.c.l.b16 %v3797
        %v7894 = vunpack.c.l.b16 %v3798
        %v7895 = vunpack.c.l.b16 %v3799
        %v7896 = vunpack.c.l.b16 %v3800
        %v7897 = vunpack.c.l.b16 %v3801
        %v7898 = vunpack.c.l.b16 %v3802
        %v7899 = vunpack.c.l.b16 %v3803
        %v7900 = vunpack.c.l.b16 %v3804
        %v7901 = vunpack.c.l.b16 %v3805
        %v7902 = vunpack.c.l.b16 %v3806
        %v7903 = vunpack.c.l.b16 %v3807
        %v7904 = vunpack.c.l.b16 %v3808
        %v7905 = vunpack.c.l.b16 %v3809
        %v7906 = vunpack.c.l.b16 %v3810
        %v7907 = vunpack.c.l.b16 %v3811
        %v7908 = vunpack.c.l.b16 %v3812
        %v7909 = vunpack.c.l.b16 %v3813
        %v7910 = vunpack.c.l.b16 %v3814
        %v7911 = vunpack.c.l.b16 %v3815
        %v7912 = vunpack.c.l.b16 %v3816
        %v7913 = vunpack.c.l.b16 %v3817
        %v7914 = vunpack.c.l.b16 %v3818
        %v7915 = vunpack.c.l.b16 %v3819
        %v7916 = vunpack.c.l.b16 %v3820
        %v7917 = vunpack.c.l.b16 %v3821
        %v7918 = vunpack.c.l.b16 %v3822
        %v7919 = vunpack.c.l.b16 %v3823
        %v7920 = vunpack.c.l.b16 %v3824
        %v7921 = vunpack.c.l.b16 %v3825
        %v7922 = vunpack.c.l.b16 %v3826
        %v7923 = vunpack.c.l.b16 %v3827
        %v7924 = vunpack.c.l.b16 %v3828
        %v7925 = vunpack.c.l.b16 %v3829
        %v7926 = vunpack.c.l.b16 %v3830
        %v7927 = vunpack.c.l.b16 %v3831
        %v7928 = vunpack.c.l.b16 %v3832
        %v7929 = vunpack.c.l.b16 %v3833
        %v7930 = vunpack.c.l.b16 %v3834
        %v7931 = vunpack.c.l.b16 %v3835
        %v7932 = vunpack.c.l.b16 %v3836
        %v7933 = vunpack.c.l.b16 %v3837
        %v7934 = vunpack.c.l.b16 %v3838
        %v7935 = vunpack.c.l.b16 %v3839
        %v7936 = vunpack.c.l.b16 %v3840
        %v7937 = vunpack.c.l.b16 %v3841
        %v7938 = vunpack.c.l.b16 %v3842
        %v7939 = vunpack.c.l.b16 %v3843
        %v7940 = vunpack.c.l.b16 %v3844
        %v7941 = vunpack.c.l.b16 %v3845
        %v7942 = vunpack.c.l.b16 %v3846
        %v7943 = vunpack.c.l.b16 %v3847
        %v7944 = vunpack.c.l.b16 %v3848
        %v7945 = vunpack.c.l.b16 %v3849
        %v7946 = vunpack.c.l.b16 %v3850
        %v7947 = vunpack.c.l.b16 %v3851
        %v7948 = vunpack.c.l.b16 %v3852
        %v7949 = vunpack.c.l.b16 %v3853
        %v7950 = vunpack.c.l.b16 %v3854
        %v7951 = vunpack.c.l.b16 %v3855
        %v7952 = vunpack.c.l.b16 %v3856
        %v7953 = vunpack.c.l.b16 %v3857
        %v7954 = vunpack.c.l.b16 %v3858
        %v7955 = vunpack.c.l.b16 %v3859
        %v7956 = vunpack.c.l.b16 %v3860
        %v7957 = vunpack.c.l.b16 %v3861
        %v7958 = vunpack.c.l.b16 %v3862
        %v7959 = vunpack.c.l.b16 %v3863
        %v7960 = vunpack.c.l.b16 %v3864
        %v7961 = vunpack.c.l.b16 %v3865
        %v7962 = vunpack.c.l.b16 %v3866
        %v7963 = vunpack.c.l.b16 %v3867
        %v7964 = vunpack.c.l.b16 %v3868
        %v7965 = vunpack.c.l.b16 %v3869
        %v7966 = vunpack.c.l.b16 %v3870
        %v7967 = vunpack.c.l.b16 %v3871
        %v7968 = vunpack.c.l.b16 %v3872
        %v7969 = vunpack.c.l.b16 %v3873
        %v7970 = vunpack.c.l.b16 %v3874
        %v7971 = vunpack.c.l.b16 %v3875
        %v7972 = vunpack.c.l.b16 %v3876
        %v7973 = vunpack.c.l.b16 %v3877
        %v7974 = vunpack.c.l.b16 %v3878
        %v7975 = vunpack.c.l.b16 %v3879
        %v7976 = vunpack.c.l.b16 %v3880
        %v7977 = vunpack.c.l.b16 %v3881
        %v7978 = vunpack.c.l.b16 %v3882
        %v7979 = vunpack.c.l.b16 %v3883
        %v7980 = vunpack.c.l.b16 %v3884
        %v7981 = vunpack.c.l.b16 %v3885
        %v7982 = vunpack.c.l.b16 %v3886
        %v7983 = vunpack.c.l.b16 %v3887
        %v7984 = vunpack.c.l.b16 %v3888
        %v7985 = vunpack.c.l.b16 %v3889
        %v7986 = vunpack.c.l.b16 %v3890
        %v7987 = vunpack.c.l.b16 %v3891
        %v7988 = vunpack.c.l.b16 %v3892
        %v7989 = vunpack.c.l.b16 %v3893
        %v7990 = vunpack.c.l.b16 %v3894
        %v7991 = vunpack.c.l.b16 %v3895
        %v7992 = vunpack.c.l.b16 %v3896
        %v7993 = vunpack.c.l.b16 %v3897
        %v7994 = vunpack.c.l.b16 %v3898
        %v7995 = vunpack.c.l.b16 %v3899
        %v7996 = vunpack.c.l.b16 %v3900
        %v7997 = vunpack.c.l.b16 %v3901
        %v7998 = vunpack.c.l.b16 %v3902
        %v7999 = vunpack.c.l.b16 %v3903
        %v8000 = vunpack.c.l.b16 %v3904
        %v8001 = vunpack.c.l.b16 %v3905
        %v8002 = vunpack.c.l.b16 %v3906
        %v8003 = vunpack.c.l.b16 %v3907
        %v8004 = vunpack.c.l.b16 %v3908
        %v8005 = vunpack.c.l.b16 %v3909
        %v8006 = vunpack.c.l.b16 %v3910
        %v8007 = vunpack.c.l.b16 %v3911
        %v8008 = vunpack.c.l.b16 %v3912
        %v8009 = vunpack.c.l.b16 %v3913
        %v8010 = vunpack.c.l.b16 %v3914
        %v8011 = vunpack.c.l.b16 %v3915
        %v8012 = vunpack.c.l.b16 %v3916
        %v8013 = vunpack.c.l.b16 %v3917
        %v8014 = vunpack.c.l.b16 %v3918
        %v8015 = vunpack.c.l.b16 %v3919
        %v8016 = vunpack.c.l.b16 %v3920
        %v8017 = vunpack.c.l.b16 %v3921
        %v8018 = vunpack.c.l.b16 %v3922
        %v8019 = vunpack.c.l.b16 %v3923
        %v8020 = vunpack.c.l.b16 %v3924
        %v8021 = vunpack.c.l.b16 %v3925
        %v8022 = vunpack.c.l.b16 %v3926
        %v8023 = vunpack.c.l.b16 %v3927
        %v8024 = vunpack.c.l.b16 %v3928
        %v8025 = vunpack.c.l.b16 %v3929
        %v8026 = vunpack.c.l.b16 %v3930
        %v8027 = vunpack.c.l.b16 %v3931
        %v8028 = vunpack.c.l.b16 %v3932
        %v8029 = vunpack.c.l.b16 %v3933
        %v8030 = vunpack.c.l.b16 %v3934
        %v8031 = vunpack.c.l.b16 %v3935
        %v8032 = vunpack.c.l.b16 %v3936
        %v8033 = vunpack.c.l.b16 %v3937
        %v8034 = vunpack.c.l.b16 %v3938
        %v8035 = vunpack.c.l.b16 %v3939
        %v8036 = vunpack.c.l.b16 %v3940
        %v8037 = vunpack.c.l.b16 %v3941
        %v8038 = vunpack.c.l.b16 %v3942
        %v8039 = vunpack.c.l.b16 %v3943
        %v8040 = vunpack.c.l.b16 %v3944
        %v8041 = vunpack.c.l.b16 %v3945
        %v8042 = vunpack.c.l.b16 %v3946
        %v8043 = vunpack.c.l.b16 %v3947
        %v8044 = vunpack.c.l.b16 %v3948
        %v8045 = vunpack.c.l.b16 %v3949
        %v8046 = vunpack.c.l.b16 %v3950
        %v8047 = vunpack.c.l.b16 %v3951
        %v8048 = vunpack.c.l.b16 %v3952
        %v8049 = vunpack.c.l.b16 %v3953
        %v8050 = vunpack.c.l.b16 %v3954
        %v8051 = vunpack.c.l.b16 %v3955
        %v8052 = vunpack.c.l.b16 %v3956
        %v8053 = vunpack.c.l.b16 %v3957
        %v8054 = vunpack.c.l.b16 %v3958
        %v8055 = vunpack.c.l.b16 %v3959
        %v8056 = vunpack.c.l.b16 %v3960
        %v8057 = vunpack.c.l.b16 %v3961
        %v8058 = vunpack.c.l.b16 %v3962
        %v8059 = vunpack.c.l.b16 %v3963
        %v8060 = vunpack.c.l.b16 %v3964
        %v8061 = vunpack.c.l.b16 %v3965
        %v8062 = vunpack.c.l.b16 %v3966
        %v8063 = vunpack.c.l.b16 %v3967
        %v8064 = vunpack.c.l.b16 %v3968
        %v8065 = vunpack.c.l.b16 %v3969
        %v8066 = vunpack.c.l.b16 %v3970
        %v8067 = vunpack.c.l.b16 %v3971
        %v8068 = vunpack.c.l.b16 %v3972
        %v8069 = vunpack.c.l.b16 %v3973
        %v8070 = vunpack.c.l.b16 %v3974
        %v8071 = vunpack.c.l.b16 %v3975
        %v8072 = vunpack.c.l.b16 %v3976
        %v8073 = vunpack.c.l.b16 %v3977
        %v8074 = vunpack.c.l.b16 %v3978
        %v8075 = vunpack.c.l.b16 %v3979
        %v8076 = vunpack.c.l.b16 %v3980
        %v8077 = vunpack.c.l.b16 %v3981
        %v8078 = vunpack.c.l.b16 %v3982
        %v8079 = vunpack.c.l.b16 %v3983
        %v8080 = vunpack.c.l.b16 %v3984
        %v8081 = vunpack.c.l.b16 %v3985
        %v8082 = vunpack.c.l.b16 %v3986
        %v8083 = vunpack.c.l.b16 %v3987
        %v8084 = vunpack.c.l.b16 %v3988
        %v8085 = vunpack.c.l.b16 %v3989
        %v8086 = vunpack.c.l.b16 %v3990
        %v8087 = vunpack.c.l.b16 %v3991
        %v8088 = vunpack.c.l.b16 %v3992
        %v8089 = vunpack.c.l.b16 %v3993
        %v8090 = vunpack.c.l.b16 %v3994
        %v8091 = vunpack.c.l.b16 %v3995
        %v8092 = vunpack.c.l.b16 %v3996
        %v8093 = vunpack.c.l.b16 %v3997
        %v8094 = vunpack.c.l.b16 %v3998
        %v8095 = vunpack.c.l.b16 %v3999
        %v8096 = vunpack.c.l.b16 %v4000
        %v8097 = vunpack.c.l.b16 %v4001
        %v8098 = vunpack.c.l.b16 %v4002
        %v8099 = vunpack.c.l.b16 %v4003
        %v8100 = vunpack.c.l.b16 %v4004
        %v8101 = vunpack.c.l.b16 %v4005
        %v8102 = vunpack.c.l.b16 %v4006
        %v8103 = vunpack.c.l.b16 %v4007
        %v8104 = vunpack.c.l.b16 %v4008
        %v8105 = vunpack.c.l.b16 %v4009
        %v8106 = vunpack.c.l.b16 %v4010
        %v8107 = vunpack.c.l.b16 %v4011
        %v8108 = vunpack.c.l.b16 %v4012
        %v8109 = vunpack.c.l.b16 %v4013
        %v8110 = vunpack.c.l.b16 %v4014
        %v8111 = vunpack.c.l.b16 %v4015
        %v8112 = vunpack.c.l.b16 %v4016
        %v8113 = vunpack.c.l.b16 %v4017
        %v8114 = vunpack.c.l.b16 %v4018
        %v8115 = vunpack.c.l.b16 %v4019
        %v8116 = vunpack.c.l.b16 %v4020
        %v8117 = vunpack.c.l.b16 %v4021
        %v8118 = vunpack.c.l.b16 %v4022
        %v8119 = vunpack.c.l.b16 %v4023
        %v8120 = vunpack.c.l.b16 %v4024
        %v8121 = vunpack.c.l.b16 %v4025
        %v8122 = vunpack.c.l.b16 %v4026
        %v8123 = vunpack.c.l.b16 %v4027
        %v8124 = vunpack.c.l.b16 %v4028
        %v8125 = vunpack.c.l.b16 %v4029
        %v8126 = vunpack.c.l.b16 %v4030
        %v8127 = vunpack.c.l.b16 %v4031
        %v8128 = vunpack.c.l.b16 %v4032
        %v8129 = vunpack.c.l.b16 %v4033
        %v8130 = vunpack.c.l.b16 %v4034
        %v8131 = vunpack.c.l.b16 %v4035
        %v8132 = vunpack.c.l.b16 %v4036
        %v8133 = vunpack.c.l.b16 %v4037
        %v8134 = vunpack.c.l.b16 %v4038
        %v8135 = vunpack.c.l.b16 %v4039
        %v8136 = vunpack.c.l.b16 %v4040
        %v8137 = vunpack.c.l.b16 %v4041
        %v8138 = vunpack.c.l.b16 %v4042
        %v8139 = vunpack.c.l.b16 %v4043
        %v8140 = vunpack.c.l.b16 %v4044
        %v8141 = vunpack.c.l.b16 %v4045
        %v8142 = vunpack.c.l.b16 %v4046
        %v8143 = vunpack.c.l.b16 %v4047
        %v8144 = vunpack.c.l.b16 %v4048
        %v8145 = vunpack.c.l.b16 %v4049
        %v8146 = vunpack.c.l.b16 %v4050
        %v8147 = vunpack.c.l.b16 %v4051
        %v8148 = vunpack.c.l.b16 %v4052
        %v8149 = vunpack.c.l.b16 %v4053
        %v8150 = vunpack.c.l.b16 %v4054
        %v8151 = vunpack.c.l.b16 %v4055
        %v8152 = vunpack.c.l.b16 %v4056
        %v8153 = vunpack.c.l.b16 %v4057
        %v8154 = vunpack.c.l.b16 %v4058
        %v8155 = vunpack.c.l.b16 %v4059
        %v8156 = vunpack.c.l.b16 %v4060
        %v8157 = vunpack.c.l.b16 %v4061
        %v8158 = vunpack.c.l.b16 %v4062
        %v8159 = vunpack.c.l.b16 %v4063
        %v8160 = vunpack.c.l.b16 %v4064
        %v8161 = vunpack.c.l.b16 %v4065
        %v8162 = vunpack.c.l.b16 %v4066
        %v8163 = vunpack.c.l.b16 %v4067
        %v8164 = vunpack.c.l.b16 %v4068
        %v8165 = vunpack.c.l.b16 %v4069
        %v8166 = vunpack.c.l.b16 %v4070
        %v8167 = vunpack.c.l.b16 %v4071
        %v8168 = vunpack.c.l.b16 %v4072
        %v8169 = vunpack.c.l.b16 %v4073
        %v8170 = vunpack.c.l.b16 %v4074
        %v8171 = vunpack.c.l.b16 %v4075
        %v8172 = vunpack.c.l.b16 %v4076
        %v8173 = vunpack.c.l.b16 %v4077
        %v8174 = vunpack.c.l.b16 %v4078
        %v8175 = vunpack.c.l.b16 %v4079
        %v8176 = vunpack.c.l.b16 %v4080
        %v8177 = vunpack.c.l.b16 %v4081
        %v8178 = vunpack.c.l.b16 %v4082
        %v8179 = vunpack.c.l.b16 %v4083
        %v8180 = vunpack.c.l.b16 %v4084
        %v8181 = vunpack.c.l.b16 %v4085
        %v8182 = vunpack.c.l.b16 %v4086
        %v8183 = vunpack.c.l.b16 %v4087
        %v8184 = vunpack.c.l.b16 %v4088
        %v8185 = vunpack.c.l.b16 %v4089
        %v8186 = vunpack.c.l.b16 %v4090
        %v8187 = vunpack.c.l.b16 %v4091
        %v8188 = vunpack.c.l.b16 %v4092
        %v8189 = vunpack.c.l.b16 %v4093
        %v8190 = vunpack.c.l.b16 %v4094
        %v8191 = vunpack.c.l.b16 %v4095
        %v8192 = vunpack.c.l.b16 %v4096
        %v8193 = vunpack.c.l.b16 %v4097
        %v8194 = vunpack.c.l.b16 %v4098
        %v8195 = vunpack.c.l.b16 %v4099
        %v8196 = vunpack.c.l.b16 %v4100
        %v8197 = vunpack.c.l.b16 %v4101
        %v8198 = vunpack.c.l.b16 %v4102
        %v8199 = vunpack.c.l.b16 %v4103
        %v8200 = vunpack.c.l.b16 %v4104
        %v8201 = vunpack.c.l.b16 %v4105
        %v8202 = vunpack.c.l.b16 %v4106
        %v8203 = vunpack.c.l.b16 %v4107
        %v8204 = vunpack.c.l.b16 %v4108
        %v8205 = vunpack.c.l.b16 %v4109
        %v8206 = vunpack.c.l.b16 %v4110
        %v8207 = vunpack.c.l.b16 %v4111
        %v8208 = vunpack.c.l.b16 %v4112
        %v8209 = vunpack.c.l.b16 %v4113
        %v8210 = vunpack.c.l.b16 %v4114
        %v8211 = vunpack.c.l.b16 %v4115
        %v8212 = vunpack.c.l.b16 %v4116
        %v8213 = vunpack.c.l.b16 %v4117
        %v8214 = vunpack.c.l.b16 %v4118
        %v8215 = vunpack.c.l.b16 %v4119
        %v8216 = vunpack.c.l.b16 %v4120
        %v8217 = vunpack.c.l.b16 %v4121
        %v8218 = vunpack.c.l.b16 %v4122
        %v8219 = vunpack.c.l.b16 %v4123
        %v8220 = vunpack.c.l.b16 %v4124
        %v8221 = vunpack.c.l.b16 %v4125
        %v8222 = vunpack.c.l.b16 %v4126
        %v8223 = vunpack.c.l.b16 %v4127
        %v8224 = vunpack.c.l.b16 %v4128
        %v8225 = vunpack.c.l.b16 %v4129
        %v8226 = vunpack.c.l.b16 %v4130
        %v8227 = vunpack.c.l.b16 %v4131
        %v8228 = vunpack.c.l.b16 %v4132
        %v8229 = vunpack.c.l.b16 %v4133
        %v8230 = vunpack.c.l.b16 %v4134
        %v8231 = vunpack.c.l.b16 %v4135
        %v8232 = vunpack.c.l.b16 %v4136
        %v8233 = vunpack.c.l.b16 %v4137
        %v8234 = vunpack.c.l.b16 %v4138
        %v8235 = vunpack.c.l.b16 %v4139
        %v8236 = vunpack.c.l.b16 %v4140
        %v8237 = vunpack.c.l.b16 %v4141
        %v8238 = vunpack.c.l.b16 %v4142
        %v8239 = vunpack.c.l.b16 %v4143
        %v8240 = vunpack.c.l.b16 %v4144
        %v8241 = vunpack.c.l.b16 %v4145
        %v8242 = vunpack.c.l.b16 %v4146
        %v8243 = vunpack.c.l.b16 %v4147
        %v8244 = vunpack.c.l.b16 %v4148
        %v8245 = vunpack.c.l.b16 %v4149
        %v8246 = vunpack.c.l.b16 %v4150
        %v8247 = vunpack.c.l.b16 %v4151
        %v8248 = vunpack.c.l.b16 %v4152
        %v8249 = vunpack.c.l.b16 %v4153
        %v8250 = vunpack.c.l.b16 %v4154
        %v8251 = vunpack.c.l.b16 %v4155
        %v8252 = vunpack.c.l.b16 %v4156
        %v8253 = vunpack.c.l.b16 %v4157
        %v8254 = vunpack.c.l.b16 %v4158
        %v8255 = vunpack.c.l.b16 %v4159
        %v8256 = vunpack.c.l.b16 %v4160
        %v8257 = vunpack.c.l.b16 %v4161
        %v8258 = vunpack.c.l.b16 %v4162
        %v8259 = vunpack.c.l.b16 %v4163
        %v8260 = vunpack.c.l.b16 %v4164
        %v8261 = vunpack.c.l.b16 %v4165
        %v8262 = vunpack.c.l.b16 %v4166
        %v8263 = vunpack.c.l.b16 %v4167
        %v8264 = vunpack.c.l.b16 %v4168
        %v8265 = vunpack.c.l.b16 %v4169
        %v8266 = vunpack.c.l.b16 %v4170
        %v8267 = vunpack.c.l.b16 %v4171
        %v8268 = vunpack.c.l.b16 %v4172
        %v8269 = vunpack.c.l.b16 %v4173
        %v8270 = vunpack.c.l.b16 %v4174
        %v8271 = vunpack.c.l.b16 %v4175
        %v8272 = vunpack.c.l.b16 %v4176
        %v8273 = vunpack.c.l.b16 %v4177
        %v8274 = vunpack.c.l.b16 %v4178
        %v8275 = vunpack.c.l.b16 %v4179
        %v8276 = vunpack.c.l.b16 %v4180
        %v8277 = vunpack.c.l.b16 %v4181
        %v8278 = vunpack.c.l.b16 %v4182
        %v8279 = vunpack.c.l.b16 %v4183
        %v8280 = vunpack.c.l.b16 %v4184
        %v8281 = vunpack.c.l.b16 %v4185
        %v8282 = vunpack.c.l.b16 %v4186
        %v8283 = vunpack.c.l.b16 %v4187
        %v8284 = vunpack.c.l.b16 %v4188
        %v8285 = vunpack.c.l.b16 %v4189
        %v8286 = vunpack.c.l.b16 %v4190
        %v8287 = vunpack.c.l.b16 %v4191
        %v8288 = vunpack.c.l.b16 %v4192
        %v8289 = vunpack.c.l.b16 %v4193
        %v8290 = vunpack.c.l.b16 %v4194
        %v8291 = vunpack.c.l.b16 %v4195
        %v8292 = vunpack.c.l.b16 %v4196
        %v8293 = vunpack.c.l.b16 %v4197
        %v8294 = vunpack.c.l.b16 %v4198
        %v8295 = vunpack.c.l.b16 %v4199
        %v8296 = vunpack.c.l.b16 %v4200
        %v8297 = vunpack.c.l.b16 %v4201
        %v8298 = vunpack.c.l.b16 %v4202
        %v8299 = vunpack.c.l.b16 %v4203
        %v8300 = vunpack.c.l.b16 %v4204
        %v8301 = vunpack.c.l.b16 %v4205
        %v8302 = vunpack.c.l.b16 %v4206
        %v8303 = vunpack.c.l.b16 %v4207
        %v8304 = vunpack.c.l.b16 %v4208
        %v8305 = vunpack.c.l.b16 %v4209
        %v8306 = vunpack.c.l.b16 %v4210
        %v8307 = vunpack.c.l.b16 %v4211
        %v8308 = vunpack.c.l.b16 %v4212
        %v8309 = vunpack.c.l.b16 %v4213
        %v8310 = vunpack.c.l.b16 %v4214
        %v8311 = vunpack.c.l.b16 %v4215
        %v8312 = vunpack.c.l.b16 %v4216
        %v8313 = vunpack.c.l.b16 %v4217
        %v8314 = vunpack.c.l.b16 %v4218
        %v8315 = vunpack.c.l.b16 %v4219
        %v8316 = vunpack.c.l.b16 %v4220
        %v8317 = vunpack.c.l.b16 %v4221
        %v8318 = vunpack.c.l.b16 %v4222
        %v8319 = vunpack.c.l.b16 %v4223
        %v8320 = vunpack.c.l.b16 %v4224
        %v8321 = vunpack.c.l.b16 %v4225
        %v8322 = vunpack.c.l.b16 %v4226
        %v8323 = vunpack.c.l.b16 %v4227
        %v8324 = vunpack.c.l.b16 %v4228
        %v8325 = vunpack.c.l.b16 %v4229
        %v8326 = vunpack.c.l.b16 %v4230
        %v8327 = vunpack.c.l.b16 %v4231
        %v8328 = vunpack.c.l.b16 %v4232
        %v8329 = vunpack.c.l.b16 %v4233
        %v8330 = vunpack.c.l.b16 %v4234
        %v8331 = vunpack.c.l.b16 %v4235
        %v8332 = vunpack.c.l.b16 %v4236
        %v8333 = vunpack.c.l.b16 %v4237
        %v8334 = vunpack.c.l.b16 %v4238
        %v8335 = vpack.c.b16 %v6288, %v6287
        %v8336 = vpack.c.b16 %v6290, %v6289
        %v8337 = vpack.c.b16 %v6292, %v6291
        %v8338 = vpack.c.b16 %v6294, %v6293
        %v8339 = vpack.c.b16 %v6296, %v6295
        %v8340 = vpack.c.b16 %v6298, %v6297
        %v8341 = vpack.c.b16 %v6300, %v6299
        %v8342 = vpack.c.b16 %v6302, %v6301
        %v8343 = vpack.c.b16 %v6304, %v6303
        %v8344 = vpack.c.b16 %v6306, %v6305
        %v8345 = vpack.c.b16 %v6308, %v6307
        %v8346 = vpack.c.b16 %v6310, %v6309
        %v8347 = vpack.c.b16 %v6312, %v6311
        %v8348 = vpack.c.b16 %v6314, %v6313
        %v8349 = vpack.c.b16 %v6316, %v6315
        %v8350 = vpack.c.b16 %v6318, %v6317
        %v8351 = vpack.c.b16 %v6320, %v6319
        %v8352 = vpack.c.b16 %v6322, %v6321
        %v8353 = vpack.c.b16 %v6324, %v6323
        %v8354 = vpack.c.b16 %v6326, %v6325
        %v8355 = vpack.c.b16 %v6328, %v6327
        %v8356 = vpack.c.b16 %v6330, %v6329
        %v8357 = vpack.c.b16 %v6332, %v6331
        %v8358 = vpack.c.b16 %v6334, %v6333
        %v8359 = vpack.c.b16 %v6336, %v6335
        %v8360 = vpack.c.b16 %v6338, %v6337
        %v8361 = vpack.c.b16 %v6340, %v6339
        %v8362 = vpack.c.b16 %v6342, %v6341
        %v8363 = vpack.c.b16 %v6344, %v6343
        %v8364 = vpack.c.b16 %v6346, %v6345
        %v8365 = vpack.c.b16 %v6348, %v6347
        %v8366 = vpack.c.b16 %v6350, %v6349
        %v8367 = vpack.c.b16 %v6352, %v6351
        %v8368 = vpack.c.b16 %v6354, %v6353
        %v8369 = vpack.c.b16 %v6356, %v6355
        %v8370 = vpack.c.b16 %v6358, %v6357
        %v8371 = vpack.c.b16 %v6360, %v6359
        %v8372 = vpack.c.b16 %v6362, %v6361
        %v8373 = vpack.c.b16 %v6364, %v6363
        %v8374 = vpack.c.b16 %v6366, %v6365
        %v8375 = vpack.c.b16 %v6368, %v6367
        %v8376 = vpack.c.b16 %v6370, %v6369
        %v8377 = vpack.c.b16 %v6372, %v6371
        %v8378 = vpack.c.b16 %v6374, %v6373
        %v8379 = vpack.c.b16 %v6376, %v6375
        %v8380 = vpack.c.b16 %v6378, %v6377
        %v8381 = vpack.c.b16 %v6380, %v6379
        %v8382 = vpack.c.b16 %v6382, %v6381
        %v8383 = vpack.c.b16 %v6384, %v6383
        %v8384 = vpack.c.b16 %v6386, %v6385
        %v8385 = vpack.c.b16 %v6388, %v6387
        %v8386 = vpack.c.b16 %v6390, %v6389
        %v8387 = vpack.c.b16 %v6392, %v6391
        %v8388 = vpack.c.b16 %v6394, %v6393
        %v8389 = vpack.c.b16 %v6396, %v6395
        %v8390 = vpack.c.b16 %v6398, %v6397
        %v8391 = vpack.c.b16 %v6400, %v6399
        %v8392 = vpack.c.b16 %v6402, %v6401
        %v8393 = vpack.c.b16 %v6404, %v6403
        %v8394 = vpack.c.b16 %v6406, %v6405
        %v8395 = vpack.c.b16 %v6408, %v6407
        %v8396 = vpack.c.b16 %v6410, %v6409
        %v8397 = vpack.c.b16 %v6412, %v6411
        %v8398 = vpack.c.b16 %v6414, %v6413
        %v8399 = vpack.c.b16 %v6416, %v6415
        %v8400 = vpack.c.b16 %v6418, %v6417
        %v8401 = vpack.c.b16 %v6420, %v6419
        %v8402 = vpack.c.b16 %v6422, %v6421
        %v8403 = vpack.c.b16 %v6424, %v6423
        %v8404 = vpack.c.b16 %v6426, %v6425
        %v8405 = vpack.c.b16 %v6428, %v6427
        %v8406 = vpack.c.b16 %v6430, %v6429
        %v8407 = vpack.c.b16 %v6432, %v6431
        %v8408 = vpack.c.b16 %v6434, %v6433
        %v8409 = vpack.c.b16 %v6436, %v6435
        %v8410 = vpack.c.b16 %v6438, %v6437
        %v8411 = vpack.c.b16 %v6440, %v6439
        %v8412 = vpack.c.b16 %v6442, %v6441
        %v8413 = vpack.c.b16 %v6444, %v6443
        %v8414 = vpack.c.b16 %v6446, %v6445
        %v8415 = vpack.c.b16 %v6448, %v6447
        %v8416 = vpack.c.b16 %v6450, %v6449
        %v8417 = vpack.c.b16 %v6452, %v6451
        %v8418 = vpack.c.b16 %v6454, %v6453
        %v8419 = vpack.c.b16 %v6456, %v6455
        %v8420 = vpack.c.b16 %v6458, %v6457
        %v8421 = vpack.c.b16 %v6460, %v6459
        %v8422 = vpack.c.b16 %v6462, %v6461
        %v8423 = vpack.c.b16 %v6464, %v6463
        %v8424 = vpack.c.b16 %v6466, %v6465
        %v8425 = vpack.c.b16 %v6468, %v6467
        %v8426 = vpack.c.b16 %v6470, %v6469
        %v8427 = vpack.c.b16 %v6472, %v6471
        %v8428 = vpack.c.b16 %v6474, %v6473
        %v8429 = vpack.c.b16 %v6476, %v6475
        %v8430 = vpack.c.b16 %v6478, %v6477
        %v8431 = vpack.c.b16 %v6480, %v6479
        %v8432 = vpack.c.b16 %v6482, %v6481
        %v8433 = vpack.c.b16 %v6484, %v6483
        %v8434 = vpack.c.b16 %v6486, %v6485
        %v8435 = vpack.c.b16 %v6488, %v6487
        %v8436 = vpack.c.b16 %v6490, %v6489
        %v8437 = vpack.c.b16 %v6492, %v6491
        %v8438 = vpack.c.b16 %v6494, %v6493
        %v8439 = vpack.c.b16 %v6496, %v6495
        %v8440 = vpack.c.b16 %v6498, %v6497
        %v8441 = vpack.c.b16 %v6500, %v6499
        %v8442 = vpack.c.b16 %v6502, %v6501
        %v8443 = vpack.c.b16 %v6504, %v6503
        %v8444 = vpack.c.b16 %v6506, %v6505
        %v8445 = vpack.c.b16 %v6508, %v6507
        %v8446 = vpack.c.b16 %v6510, %v6509
        %v8447 = vpack.c.b16 %v6512, %v6511
        %v8448 = vpack.c.b16 %v6514, %v6513
        %v8449 = vpack.c.b16 %v6516, %v6515
        %v8450 = vpack.c.b16 %v6518, %v6517
        %v8451 = vpack.c.b16 %v6520, %v6519
        %v8452 = vpack.c.b16 %v6522, %v6521
        %v8453 = vpack.c.b16 %v6524, %v6523
        %v8454 = vpack.c.b16 %v6526, %v6525
        %v8455 = vpack.c.b16 %v6528, %v6527
        %v8456 = vpack.c.b16 %v6530, %v6529
        %v8457 = vpack.c.b16 %v6532, %v6531
        %v8458 = vpack.c.b16 %v6534, %v6533
        %v8459 = vpack.c.b16 %v6536, %v6535
        %v8460 = vpack.c.b16 %v6538, %v6537
        %v8461 = vpack.c.b16 %v6540, %v6539
        %v8462 = vpack.c.b16 %v6542, %v6541
        %v8463 = vpack.c.b16 %v6544, %v6543
        %v8464 = vpack.c.b16 %v6546, %v6545
        %v8465 = vpack.c.b16 %v6548, %v6547
        %v8466 = vpack.c.b16 %v6550, %v6549
        %v8467 = vpack.c.b16 %v6552, %v6551
        %v8468 = vpack.c.b16 %v6554, %v6553
        %v8469 = vpack.c.b16 %v6556, %v6555
        %v8470 = vpack.c.b16 %v6558, %v6557
        %v8471 = vpack.c.b16 %v6560, %v6559
        %v8472 = vpack.c.b16 %v6562, %v6561
        %v8473 = vpack.c.b16 %v6564, %v6563
        %v8474 = vpack.c.b16 %v6566, %v6565
        %v8475 = vpack.c.b16 %v6568, %v6567
        %v8476 = vpack.c.b16 %v6570, %v6569
        %v8477 = vpack.c.b16 %v6572, %v6571
        %v8478 = vpack.c.b16 %v6574, %v6573
        %v8479 = vpack.c.b16 %v6576, %v6575
        %v8480 = vpack.c.b16 %v6578, %v6577
        %v8481 = vpack.c.b16 %v6580, %v6579
        %v8482 = vpack.c.b16 %v6582, %v6581
        %v8483 = vpack.c.b16 %v6584, %v6583
        %v8484 = vpack.c.b16 %v6586, %v6585
        %v8485 = vpack.c.b16 %v6588, %v6587
        %v8486 = vpack.c.b16 %v6590, %v6589
        %v8487 = vpack.c.b16 %v6592, %v6591
        %v8488 = vpack.c.b16 %v6594, %v6593
        %v8489 = vpack.c.b16 %v6596, %v6595
        %v8490 = vpack.c.b16 %v6598, %v6597
        %v8491 = vpack.c.b16 %v6600, %v6599
        %v8492 = vpack.c.b16 %v6602, %v6601
        %v8493 = vpack.c.b16 %v6604, %v6603
        %v8494 = vpack.c.b16 %v6606, %v6605
        %v8495 = vpack.c.b16 %v6608, %v6607
        %v8496 = vpack.c.b16 %v6610, %v6609
        %v8497 = vpack.c.b16 %v6612, %v6611
        %v8498 = vpack.c.b16 %v6614, %v6613
        %v8499 = vpack.c.b16 %v6616, %v6615
        %v8500 = vpack.c.b16 %v6618, %v6617
        %v8501 = vpack.c.b16 %v6620, %v6619
        %v8502 = vpack.c.b16 %v6622, %v6621
        %v8503 = vpack.c.b16 %v6624, %v6623
        %v8504 = vpack.c.b16 %v6626, %v6625
        %v8505 = vpack.c.b16 %v6628, %v6627
        %v8506 = vpack.c.b16 %v6630, %v6629
        %v8507 = vpack.c.b16 %v6632, %v6631
        %v8508 = vpack.c.b16 %v6634, %v6633
        %v8509 = vpack.c.b16 %v6636, %v6635
        %v8510 = vpack.c.b16 %v6638, %v6637
        %v8511 = vpack.c.b16 %v6640, %v6639
        %v8512 = vpack.c.b16 %v6642, %v6641
        %v8513 = vpack.c.b16 %v6644, %v6643
        %v8514 = vpack.c.b16 %v6646, %v6645
        %v8515 = vpack.c.b16 %v6648, %v6647
        %v8516 = vpack.c.b16 %v6650, %v6649
        %v8517 = vpack.c.b16 %v6652, %v6651
        %v8518 = vpack.c.b16 %v6654, %v6653
        %v8519 = vpack.c.b16 %v6656, %v6655
        %v8520 = vpack.c.b16 %v6658, %v6657
        %v8521 = vpack.c.b16 %v6660, %v6659
        %v8522 = vpack.c.b16 %v6662, %v6661
        %v8523 = vpack.c.b16 %v6664, %v6663
        %v8524 = vpack.c.b16 %v6666, %v6665
        %v8525 = vpack.c.b16 %v6668, %v6667
        %v8526 = vpack.c.b16 %v6670, %v6669
        %v8527 = vpack.c.b16 %v6672, %v6671
        %v8528 = vpack.c.b16 %v6674, %v6673
        %v8529 = vpack.c.b16 %v6676, %v6675
        %v8530 = vpack.c.b16 %v6678, %v6677
        %v8531 = vpack.c.b16 %v6680, %v6679
        %v8532 = vpack.c.b16 %v6682, %v6681
        %v8533 = vpack.c.b16 %v6684, %v6683
        %v8534 = vpack.c.b16 %v6686, %v6685
        %v8535 = vpack.c.b16 %v6688, %v6687
        %v8536 = vpack.c.b16 %v6690, %v6689
        %v8537 = vpack.c.b16 %v6692, %v6691
        %v8538 = vpack.c.b16 %v6694, %v6693
        %v8539 = vpack.c.b16 %v6696, %v6695
        %v8540 = vpack.c.b16 %v6698, %v6697
        %v8541 = vpack.c.b16 %v6700, %v6699
        %v8542 = vpack.c.b16 %v6702, %v6701
        %v8543 = vpack.c.b16 %v6704, %v6703
        %v8544 = vpack.c.b16 %v6706, %v6705
        %v8545 = vpack.c.b16 %v6708, %v6707
        %v8546 = vpack.c.b16 %v6710, %v6709
        %v8547 = vpack.c.b16 %v6712, %v6711
        %v8548 = vpack.c.b16 %v6714, %v6713
        %v8549 = vpack.c.b16 %v6716, %v6715
        %v8550 = vpack.c.b16 %v6718, %v6717
        %v8551 = vpack.c.b16 %v6720, %v6719
        %v8552 = vpack.c.b16 %v6722, %v6721
        %v8553 = vpack.c.b16 %v6724, %v6723
        %v8554 = vpack.c.b16 %v6726, %v6725
        %v8555 = vpack.c.b16 %v6728, %v6727
        %v8556 = vpack.c.b16 %v6730, %v6729
        %v8557 = vpack.c.b16 %v6732, %v6731
        %v8558 = vpack.c.b16 %v6734, %v6733
        %v8559 = vpack.c.b16 %v6736, %v6735
        %v8560 = vpack.c.b16 %v6738, %v6737
        %v8561 = vpack.c.b16 %v6740, %v6739
        %v8562 = vpack.c.b16 %v6742, %v6741
        %v8563 = vpack.c.b16 %v6744, %v6743
        %v8564 = vpack.c.b16 %v6746, %v6745
        %v8565 = vpack.c.b16 %v6748, %v6747
        %v8566 = vpack.c.b16 %v6750, %v6749
        %v8567 = vpack.c.b16 %v6752, %v6751
        %v8568 = vpack.c.b16 %v6754, %v6753
        %v8569 = vpack.c.b16 %v6756, %v6755
        %v8570 = vpack.c.b16 %v6758, %v6757
        %v8571 = vpack.c.b16 %v6760, %v6759
        %v8572 = vpack.c.b16 %v6762, %v6761
        %v8573 = vpack.c.b16 %v6764, %v6763
        %v8574 = vpack.c.b16 %v6766, %v6765
        %v8575 = vpack.c.b16 %v6768, %v6767
        %v8576 = vpack.c.b16 %v6770, %v6769
        %v8577 = vpack.c.b16 %v6772, %v6771
        %v8578 = vpack.c.b16 %v6774, %v6773
        %v8579 = vpack.c.b16 %v6776, %v6775
        %v8580 = vpack.c.b16 %v6778, %v6777
        %v8581 = vpack.c.b16 %v6780, %v6779
        %v8582 = vpack.c.b16 %v6782, %v6781
        %v8583 = vpack.c.b16 %v6784, %v6783
        %v8584 = vpack.c.b16 %v6786, %v6785
        %v8585 = vpack.c.b16 %v6788, %v6787
        %v8586 = vpack.c.b16 %v6790, %v6789
        %v8587 = vpack.c.b16 %v6792, %v6791
        %v8588 = vpack.c.b16 %v6794, %v6793
        %v8589 = vpack.c.b16 %v6796, %v6795
        %v8590 = vpack.c.b16 %v6798, %v6797
        %v8591 = vpack.c.b16 %v6800, %v6799
        %v8592 = vpack.c.b16 %v6802, %v6801
        %v8593 = vpack.c.b16 %v6804, %v6803
        %v8594 = vpack.c.b16 %v6806, %v6805
        %v8595 = vpack.c.b16 %v6808, %v6807
        %v8596 = vpack.c.b16 %v6810, %v6809
        %v8597 = vpack.c.b16 %v6812, %v6811
        %v8598 = vpack.c.b16 %v6814, %v6813
        %v8599 = vpack.c.b16 %v6816, %v6815
        %v8600 = vpack.c.b16 %v6818, %v6817
        %v8601 = vpack.c.b16 %v6820, %v6819
        %v8602 = vpack.c.b16 %v6822, %v6821
        %v8603 = vpack.c.b16 %v6824, %v6823
        %v8604 = vpack.c.b16 %v6826, %v6825
        %v8605 = vpack.c.b16 %v6828, %v6827
        %v8606 = vpack.c.b16 %v6830, %v6829
        %v8607 = vpack.c.b16 %v6832, %v6831
        %v8608 = vpack.c.b16 %v6834, %v6833
        %v8609 = vpack.c.b16 %v6836, %v6835
        %v8610 = vpack.c.b16 %v6838, %v6837
        %v8611 = vpack.c.b16 %v6840, %v6839
        %v8612 = vpack.c.b16 %v6842, %v6841
        %v8613 = vpack.c.b16 %v6844, %v6843
        %v8614 = vpack.c.b16 %v6846, %v6845
        %v8615 = vpack.c.b16 %v6848, %v6847
        %v8616 = vpack.c.b16 %v6850, %v6849
        %v8617 = vpack.c.b16 %v6852, %v6851
        %v8618 = vpack.c.b16 %v6854, %v6853
        %v8619 = vpack.c.b16 %v6856, %v6855
        %v8620 = vpack.c.b16 %v6858, %v6857
        %v8621 = vpack.c.b16 %v6860, %v6859
        %v8622 = vpack.c.b16 %v6862, %v6861
        %v8623 = vpack.c.b16 %v6864, %v6863
        %v8624 = vpack.c.b16 %v6866, %v6865
        %v8625 = vpack.c.b16 %v6868, %v6867
        %v8626 = vpack.c.b16 %v6870, %v6869
        %v8627 = vpack.c.b16 %v6872, %v6871
        %v8628 = vpack.c.b16 %v6874, %v6873
        %v8629 = vpack.c.b16 %v6876, %v6875
        %v8630 = vpack.c.b16 %v6878, %v6877
        %v8631 = vpack.c.b16 %v6880, %v6879
        %v8632 = vpack.c.b16 %v6882, %v6881
        %v8633 = vpack.c.b16 %v6884, %v6883
        %v8634 = vpack.c.b16 %v6886, %v6885
        %v8635 = vpack.c.b16 %v6888, %v6887
        %v8636 = vpack.c.b16 %v6890, %v6889
        %v8637 = vpack.c.b16 %v6892, %v6891
        %v8638 = vpack.c.b16 %v6894, %v6893
        %v8639 = vpack.c.b16 %v6896, %v6895
        %v8640 = vpack.c.b16 %v6898, %v6897
        %v8641 = vpack.c.b16 %v6900, %v6899
        %v8642 = vpack.c.b16 %v6902, %v6901
        %v8643 = vpack.c.b16 %v6904, %v6903
        %v8644 = vpack.c.b16 %v6906, %v6905
        %v8645 = vpack.c.b16 %v6908, %v6907
        %v8646 = vpack.c.b16 %v6910, %v6909
        %v8647 = vpack.c.b16 %v6912, %v6911
        %v8648 = vpack.c.b16 %v6914, %v6913
        %v8649 = vpack.c.b16 %v6916, %v6915
        %v8650 = vpack.c.b16 %v6918, %v6917
        %v8651 = vpack.c.b16 %v6920, %v6919
        %v8652 = vpack.c.b16 %v6922, %v6921
        %v8653 = vpack.c.b16 %v6924, %v6923
        %v8654 = vpack.c.b16 %v6926, %v6925
        %v8655 = vpack.c.b16 %v6928, %v6927
        %v8656 = vpack.c.b16 %v6930, %v6929
        %v8657 = vpack.c.b16 %v6932, %v6931
        %v8658 = vpack.c.b16 %v6934, %v6933
        %v8659 = vpack.c.b16 %v6936, %v6935
        %v8660 = vpack.c.b16 %v6938, %v6937
        %v8661 = vpack.c.b16 %v6940, %v6939
        %v8662 = vpack.c.b16 %v6942, %v6941
        %v8663 = vpack.c.b16 %v6944, %v6943
        %v8664 = vpack.c.b16 %v6946, %v6945
        %v8665 = vpack.c.b16 %v6948, %v6947
        %v8666 = vpack.c.b16 %v6950, %v6949
        %v8667 = vpack.c.b16 %v6952, %v6951
        %v8668 = vpack.c.b16 %v6954, %v6953
        %v8669 = vpack.c.b16 %v6956, %v6955
        %v8670 = vpack.c.b16 %v6958, %v6957
        %v8671 = vpack.c.b16 %v6960, %v6959
        %v8672 = vpack.c.b16 %v6962, %v6961
        %v8673 = vpack.c.b16 %v6964, %v6963
        %v8674 = vpack.c.b16 %v6966, %v6965
        %v8675 = vpack.c.b16 %v6968, %v6967
        %v8676 = vpack.c.b16 %v6970, %v6969
        %v8677 = vpack.c.b16 %v6972, %v6971
        %v8678 = vpack.c.b16 %v6974, %v6973
        %v8679 = vpack.c.b16 %v6976, %v6975
        %v8680 = vpack.c.b16 %v6978, %v6977
        %v8681 = vpack.c.b16 %v6980, %v6979
        %v8682 = vpack.c.b16 %v6982, %v6981
        %v8683 = vpack.c.b16 %v6984, %v6983
        %v8684 = vpack.c.b16 %v6986, %v6985
        %v8685 = vpack.c.b16 %v6988, %v6987
        %v8686 = vpack.c.b16 %v6990, %v6989
        %v8687 = vpack.c.b16 %v6992, %v6991
        %v8688 = vpack.c.b16 %v6994, %v6993
        %v8689 = vpack.c.b16 %v6996, %v6995
        %v8690 = vpack.c.b16 %v6998, %v6997
        %v8691 = vpack.c.b16 %v7000, %v6999
        %v8692 = vpack.c.b16 %v7002, %v7001
        %v8693 = vpack.c.b16 %v7004, %v7003
        %v8694 = vpack.c.b16 %v7006, %v7005
        %v8695 = vpack.c.b16 %v7008, %v7007
        %v8696 = vpack.c.b16 %v7010, %v7009
        %v8697 = vpack.c.b16 %v7012, %v7011
        %v8698 = vpack.c.b16 %v7014, %v7013
        %v8699 = vpack.c.b16 %v7016, %v7015
        %v8700 = vpack.c.b16 %v7018, %v7017
        %v8701 = vpack.c.b16 %v7020, %v7019
        %v8702 = vpack.c.b16 %v7022, %v7021
        %v8703 = vpack.c.b16 %v7024, %v7023
        %v8704 = vpack.c.b16 %v7026, %v7025
        %v8705 = vpack.c.b16 %v7028, %v7027
        %v8706 = vpack.c.b16 %v7030, %v7029
        %v8707 = vpack.c.b16 %v7032, %v7031
        %v8708 = vpack.c.b16 %v7034, %v7033
        %v8709 = vpack.c.b16 %v7036, %v7035
        %v8710 = vpack.c.b16 %v7038, %v7037
        %v8711 = vpack.c.b16 %v7040, %v7039
        %v8712 = vpack.c.b16 %v7042, %v7041
        %v8713 = vpack.c.b16 %v7044, %v7043
        %v8714 = vpack.c.b16 %v7046, %v7045
        %v8715 = vpack.c.b16 %v7048, %v7047
        %v8716 = vpack.c.b16 %v7050, %v7049
        %v8717 = vpack.c.b16 %v7052, %v7051
        %v8718 = vpack.c.b16 %v7054, %v7053
        %v8719 = vpack.c.b16 %v7056, %v7055
        %v8720 = vpack.c.b16 %v7058, %v7057
        %v8721 = vpack.c.b16 %v7060, %v7059
        %v8722 = vpack.c.b16 %v7062, %v7061
        %v8723 = vpack.c.b16 %v7064, %v7063
        %v8724 = vpack.c.b16 %v7066, %v7065
        %v8725 = vpack.c.b16 %v7068, %v7067
        %v8726 = vpack.c.b16 %v7070, %v7069
        %v8727 = vpack.c.b16 %v7072, %v7071
        %v8728 = vpack.c.b16 %v7074, %v7073
        %v8729 = vpack.c.b16 %v7076, %v7075
        %v8730 = vpack.c.b16 %v7078, %v7077
        %v8731 = vpack.c.b16 %v7080, %v7079
        %v8732 = vpack.c.b16 %v7082, %v7081
        %v8733 = vpack.c.b16 %v7084, %v7083
        %v8734 = vpack.c.b16 %v7086, %v7085
        %v8735 = vpack.c.b16 %v7088, %v7087
        %v8736 = vpack.c.b16 %v7090, %v7089
        %v8737 = vpack.c.b16 %v7092, %v7091
        %v8738 = vpack.c.b16 %v7094, %v7093
        %v8739 = vpack.c.b16 %v7096, %v7095
        %v8740 = vpack.c.b16 %v7098, %v7097
        %v8741 = vpack.c.b16 %v7100, %v7099
        %v8742 = vpack.c.b16 %v7102, %v7101
        %v8743 = vpack.c.b16 %v7104, %v7103
        %v8744 = vpack.c.b16 %v7106, %v7105
        %v8745 = vpack.c.b16 %v7108, %v7107
        %v8746 = vpack.c.b16 %v7110, %v7109
        %v8747 = vpack.c.b16 %v7112, %v7111
        %v8748 = vpack.c.b16 %v7114, %v7113
        %v8749 = vpack.c.b16 %v7116, %v7115
        %v8750 = vpack.c.b16 %v7118, %v7117
        %v8751 = vpack.c.b16 %v7120, %v7119
        %v8752 = vpack.c.b16 %v7122, %v7121
        %v8753 = vpack.c.b16 %v7124, %v7123
        %v8754 = vpack.c.b16 %v7126, %v7125
        %v8755 = vpack.c.b16 %v7128, %v7127
        %v8756 = vpack.c.b16 %v7130, %v7129
        %v8757 = vpack.c.b16 %v7132, %v7131
        %v8758 = vpack.c.b16 %v7134, %v7133
        %v8759 = vpack.c.b16 %v7136, %v7135
        %v8760 = vpack.c.b16 %v7138, %v7137
        %v8761 = vpack.c.b16 %v7140, %v7139
        %v8762 = vpack.c.b16 %v7142, %v7141
        %v8763 = vpack.c.b16 %v7144, %v7143
        %v8764 = vpack.c.b16 %v7146, %v7145
        %v8765 = vpack.c.b16 %v7148, %v7147
        %v8766 = vpack.c.b16 %v7150, %v7149
        %v8767 = vpack.c.b16 %v7152, %v7151
        %v8768 = vpack.c.b16 %v7154, %v7153
        %v8769 = vpack.c.b16 %v7156, %v7155
        %v8770 = vpack.c.b16 %v7158, %v7157
        %v8771 = vpack.c.b16 %v7160, %v7159
        %v8772 = vpack.c.b16 %v7162, %v7161
        %v8773 = vpack.c.b16 %v7164, %v7163
        %v8774 = vpack.c.b16 %v7166, %v7165
        %v8775 = vpack.c.b16 %v7168, %v7167
        %v8776 = vpack.c.b16 %v7170, %v7169
        %v8777 = vpack.c.b16 %v7172, %v7171
        %v8778 = vpack.c.b16 %v7174, %v7173
        %v8779 = vpack.c.b16 %v7176, %v7175
        %v8780 = vpack.c.b16 %v7178, %v7177
        %v8781 = vpack.c.b16 %v7180, %v7179
        %v8782 = vpack.c.b16 %v7182, %v7181
        %v8783 = vpack.c.b16 %v7184, %v7183
        %v8784 = vpack.c.b16 %v7186, %v7185
        %v8785 = vpack.c.b16 %v7188, %v7187
        %v8786 = vpack.c.b16 %v7190, %v7189
        %v8787 = vpack.c.b16 %v7192, %v7191
        %v8788 = vpack.c.b16 %v7194, %v7193
        %v8789 = vpack.c.b16 %v7196, %v7195
        %v8790 = vpack.c.b16 %v7198, %v7197
        %v8791 = vpack.c.b16 %v7200, %v7199
        %v8792 = vpack.c.b16 %v7202, %v7201
        %v8793 = vpack.c.b16 %v7204, %v7203
        %v8794 = vpack.c.b16 %v7206, %v7205
        %v8795 = vpack.c.b16 %v7208, %v7207
        %v8796 = vpack.c.b16 %v7210, %v7209
        %v8797 = vpack.c.b16 %v7212, %v7211
        %v8798 = vpack.c.b16 %v7214, %v7213
        %v8799 = vpack.c.b16 %v7216, %v7215
        %v8800 = vpack.c.b16 %v7218, %v7217
        %v8801 = vpack.c.b16 %v7220, %v7219
        %v8802 = vpack.c.b16 %v7222, %v7221
        %v8803 = vpack.c.b16 %v7224, %v7223
        %v8804 = vpack.c.b16 %v7226, %v7225
        %v8805 = vpack.c.b16 %v7228, %v7227
        %v8806 = vpack.c.b16 %v7230, %v7229
        %v8807 = vpack.c.b16 %v7232, %v7231
        %v8808 = vpack.c.b16 %v7234, %v7233
        %v8809 = vpack.c.b16 %v7236, %v7235
        %v8810 = vpack.c.b16 %v7238, %v7237
        %v8811 = vpack.c.b16 %v7240, %v7239
        %v8812 = vpack.c.b16 %v7242, %v7241
        %v8813 = vpack.c.b16 %v7244, %v7243
        %v8814 = vpack.c.b16 %v7246, %v7245
        %v8815 = vpack.c.b16 %v7248, %v7247
        %v8816 = vpack.c.b16 %v7250, %v7249
        %v8817 = vpack.c.b16 %v7252, %v7251
        %v8818 = vpack.c.b16 %v7254, %v7253
        %v8819 = vpack.c.b16 %v7256, %v7255
        %v8820 = vpack.c.b16 %v7258, %v7257
        %v8821 = vpack.c.b16 %v7260, %v7259
        %v8822 = vpack.c.b16 %v7262, %v7261
        %v8823 = vpack.c.b16 %v7264, %v7263
        %v8824 = vpack.c.b16 %v7266, %v7265
        %v8825 = vpack.c.b16 %v7268, %v7267
        %v8826 = vpack.c.b16 %v7270, %v7269
        %v8827 = vpack.c.b16 %v7272, %v7271
        %v8828 = vpack.c.b16 %v7274, %v7273
        %v8829 = vpack.c.b16 %v7276, %v7275
        %v8830 = vpack.c.b16 %v7278, %v7277
        %v8831 = vpack.c.b16 %v7280, %v7279
        %v8832 = vpack.c.b16 %v7282, %v7281
        %v8833 = vpack.c.b16 %v7284, %v7283
        %v8834 = vpack.c.b16 %v7286, %v7285
        %v8835 = vpack.c.b16 %v7288, %v7287
        %v8836 = vpack.c.b16 %v7290, %v7289
        %v8837 = vpack.c.b16 %v7292, %v7291
        %v8838 = vpack.c.b16 %v7294, %v7293
        %v8839 = vpack.c.b16 %v7296, %v7295
        %v8840 = vpack.c.b16 %v7298, %v7297
        %v8841 = vpack.c.b16 %v7300, %v7299
        %v8842 = vpack.c.b16 %v7302, %v7301
        %v8843 = vpack.c.b16 %v7304, %v7303
        %v8844 = vpack.c.b16 %v7306, %v7305
        %v8845 = vpack.c.b16 %v7308, %v7307
        %v8846 = vpack.c.b16 %v7310, %v7309
        %v8847 = vpack.c.b16 %v7312, %v7311
        %v8848 = vpack.c.b16 %v7314, %v7313
        %v8849 = vpack.c.b16 %v7316, %v7315
        %v8850 = vpack.c.b16 %v7318, %v7317
        %v8851 = vpack.c.b16 %v7320, %v7319
        %v8852 = vpack.c.b16 %v7322, %v7321
        %v8853 = vpack.c.b16 %v7324, %v7323
        %v8854 = vpack.c.b16 %v7326, %v7325
        %v8855 = vpack.c.b16 %v7328, %v7327
        %v8856 = vpack.c.b16 %v7330, %v7329
        %v8857 = vpack.c.b16 %v7332, %v7331
        %v8858 = vpack.c.b16 %v7334, %v7333
        %v8859 = vpack.c.b16 %v7336, %v7335
        %v8860 = vpack.c.b16 %v7338, %v7337
        %v8861 = vpack.c.b16 %v7340, %v7339
        %v8862 = vpack.c.b16 %v7342, %v7341
        %v8863 = vpack.c.b16 %v7344, %v7343
        %v8864 = vpack.c.b16 %v7346, %v7345
        %v8865 = vpack.c.b16 %v7348, %v7347
        %v8866 = vpack.c.b16 %v7350, %v7349
        %v8867 = vpack.c.b16 %v7352, %v7351
        %v8868 = vpack.c.b16 %v7354, %v7353
        %v8869 = vpack.c.b16 %v7356, %v7355
        %v8870 = vpack.c.b16 %v7358, %v7357
        %v8871 = vpack.c.b16 %v7360, %v7359
        %v8872 = vpack.c.b16 %v7362, %v7361
        %v8873 = vpack.c.b16 %v7364, %v7363
        %v8874 = vpack.c.b16 %v7366, %v7365
        %v8875 = vpack.c.b16 %v7368, %v7367
        %v8876 = vpack.c.b16 %v7370, %v7369
        %v8877 = vpack.c.b16 %v7372, %v7371
        %v8878 = vpack.c.b16 %v7374, %v7373
        %v8879 = vpack.c.b16 %v7376, %v7375
        %v8880 = vpack.c.b16 %v7378, %v7377
        %v8881 = vpack.c.b16 %v7380, %v7379
        %v8882 = vpack.c.b16 %v7382, %v7381
        %v8883 = vpack.c.b16 %v7384, %v7383
        %v8884 = vpack.c.b16 %v7386, %v7385
        %v8885 = vpack.c.b16 %v7388, %v7387
        %v8886 = vpack.c.b16 %v7390, %v7389
        %v8887 = vpack.c.b16 %v7392, %v7391
        %v8888 = vpack.c.b16 %v7394, %v7393
        %v8889 = vpack.c.b16 %v7396, %v7395
        %v8890 = vpack.c.b16 %v7398, %v7397
        %v8891 = vpack.c.b16 %v7400, %v7399
        %v8892 = vpack.c.b16 %v7402, %v7401
        %v8893 = vpack.c.b16 %v7404, %v7403
        %v8894 = vpack.c.b16 %v7406, %v7405
        %v8895 = vpack.c.b16 %v7408, %v7407
        %v8896 = vpack.c.b16 %v7410, %v7409
        %v8897 = vpack.c.b16 %v7412, %v7411
        %v8898 = vpack.c.b16 %v7414, %v7413
        %v8899 = vpack.c.b16 %v7416, %v7415
        %v8900 = vpack.c.b16 %v7418, %v7417
        %v8901 = vpack.c.b16 %v7420, %v7419
        %v8902 = vpack.c.b16 %v7422, %v7421
        %v8903 = vpack.c.b16 %v7424, %v7423
        %v8904 = vpack.c.b16 %v7426, %v7425
        %v8905 = vpack.c.b16 %v7428, %v7427
        %v8906 = vpack.c.b16 %v7430, %v7429
        %v8907 = vpack.c.b16 %v7432, %v7431
        %v8908 = vpack.c.b16 %v7434, %v7433
        %v8909 = vpack.c.b16 %v7436, %v7435
        %v8910 = vpack.c.b16 %v7438, %v7437
        %v8911 = vpack.c.b16 %v7440, %v7439
        %v8912 = vpack.c.b16 %v7442, %v7441
        %v8913 = vpack.c.b16 %v7444, %v7443
        %v8914 = vpack.c.b16 %v7446, %v7445
        %v8915 = vpack.c.b16 %v7448, %v7447
        %v8916 = vpack.c.b16 %v7450, %v7449
        %v8917 = vpack.c.b16 %v7452, %v7451
        %v8918 = vpack.c.b16 %v7454, %v7453
        %v8919 = vpack.c.b16 %v7456, %v7455
        %v8920 = vpack.c.b16 %v7458, %v7457
        %v8921 = vpack.c.b16 %v7460, %v7459
        %v8922 = vpack.c.b16 %v7462, %v7461
        %v8923 = vpack.c.b16 %v7464, %v7463
        %v8924 = vpack.c.b16 %v7466, %v7465
        %v8925 = vpack.c.b16 %v7468, %v7467
        %v8926 = vpack.c.b16 %v7470, %v7469
        %v8927 = vpack.c.b16 %v7472, %v7471
        %v8928 = vpack.c.b16 %v7474, %v7473
        %v8929 = vpack.c.b16 %v7476, %v7475
        %v8930 = vpack.c.b16 %v7478, %v7477
        %v8931 = vpack.c.b16 %v7480, %v7479
        %v8932 = vpack.c.b16 %v7482, %v7481
        %v8933 = vpack.c.b16 %v7484, %v7483
        %v8934 = vpack.c.b16 %v7486, %v7485
        %v8935 = vpack.c.b16 %v7488, %v7487
        %v8936 = vpack.c.b16 %v7490, %v7489
        %v8937 = vpack.c.b16 %v7492, %v7491
        %v8938 = vpack.c.b16 %v7494, %v7493
        %v8939 = vpack.c.b16 %v7496, %v7495
        %v8940 = vpack.c.b16 %v7498, %v7497
        %v8941 = vpack.c.b16 %v7500, %v7499
        %v8942 = vpack.c.b16 %v7502, %v7501
        %v8943 = vpack.c.b16 %v7504, %v7503
        %v8944 = vpack.c.b16 %v7506, %v7505
        %v8945 = vpack.c.b16 %v7508, %v7507
        %v8946 = vpack.c.b16 %v7510, %v7509
        %v8947 = vpack.c.b16 %v7512, %v7511
        %v8948 = vpack.c.b16 %v7514, %v7513
        %v8949 = vpack.c.b16 %v7516, %v7515
        %v8950 = vpack.c.b16 %v7518, %v7517
        %v8951 = vpack.c.b16 %v7520, %v7519
        %v8952 = vpack.c.b16 %v7522, %v7521
        %v8953 = vpack.c.b16 %v7524, %v7523
        %v8954 = vpack.c.b16 %v7526, %v7525
        %v8955 = vpack.c.b16 %v7528, %v7527
        %v8956 = vpack.c.b16 %v7530, %v7529
        %v8957 = vpack.c.b16 %v7532, %v7531
        %v8958 = vpack.c.b16 %v7534, %v7533
        %v8959 = vpack.c.b16 %v7536, %v7535
        %v8960 = vpack.c.b16 %v7538, %v7537
        %v8961 = vpack.c.b16 %v7540, %v7539
        %v8962 = vpack.c.b16 %v7542, %v7541
        %v8963 = vpack.c.b16 %v7544, %v7543
        %v8964 = vpack.c.b16 %v7546, %v7545
        %v8965 = vpack.c.b16 %v7548, %v7547
        %v8966 = vpack.c.b16 %v7550, %v7549
        %v8967 = vpack.c.b16 %v7552, %v7551
        %v8968 = vpack.c.b16 %v7554, %v7553
        %v8969 = vpack.c.b16 %v7556, %v7555
        %v8970 = vpack.c.b16 %v7558, %v7557
        %v8971 = vpack.c.b16 %v7560, %v7559
        %v8972 = vpack.c.b16 %v7562, %v7561
        %v8973 = vpack.c.b16 %v7564, %v7563
        %v8974 = vpack.c.b16 %v7566, %v7565
        %v8975 = vpack.c.b16 %v7568, %v7567
        %v8976 = vpack.c.b16 %v7570, %v7569
        %v8977 = vpack.c.b16 %v7572, %v7571
        %v8978 = vpack.c.b16 %v7574, %v7573
        %v8979 = vpack.c.b16 %v7576, %v7575
        %v8980 = vpack.c.b16 %v7578, %v7577
        %v8981 = vpack.c.b16 %v7580, %v7579
        %v8982 = vpack.c.b16 %v7582, %v7581
        %v8983 = vpack.c.b16 %v7584, %v7583
        %v8984 = vpack.c.b16 %v7586, %v7585
        %v8985 = vpack.c.b16 %v7588, %v7587
        %v8986 = vpack.c.b16 %v7590, %v7589
        %v8987 = vpack.c.b16 %v7592, %v7591
        %v8988 = vpack.c.b16 %v7594, %v7593
        %v8989 = vpack.c.b16 %v7596, %v7595
        %v8990 = vpack.c.b16 %v7598, %v7597
        %v8991 = vpack.c.b16 %v7600, %v7599
        %v8992 = vpack.c.b16 %v7602, %v7601
        %v8993 = vpack.c.b16 %v7604, %v7603
        %v8994 = vpack.c.b16 %v7606, %v7605
        %v8995 = vpack.c.b16 %v7608, %v7607
        %v8996 = vpack.c.b16 %v7610, %v7609
        %v8997 = vpack.c.b16 %v7612, %v7611
        %v8998 = vpack.c.b16 %v7614, %v7613
        %v8999 = vpack.c.b16 %v7616, %v7615
        %v9000 = vpack.c.b16 %v7618, %v7617
        %v9001 = vpack.c.b16 %v7620, %v7619
        %v9002 = vpack.c.b16 %v7622, %v7621
        %v9003 = vpack.c.b16 %v7624, %v7623
        %v9004 = vpack.c.b16 %v7626, %v7625
        %v9005 = vpack.c.b16 %v7628, %v7627
        %v9006 = vpack.c.b16 %v7630, %v7629
        %v9007 = vpack.c.b16 %v7632, %v7631
        %v9008 = vpack.c.b16 %v7634, %v7633
        %v9009 = vpack.c.b16 %v7636, %v7635
        %v9010 = vpack.c.b16 %v7638, %v7637
        %v9011 = vpack.c.b16 %v7640, %v7639
        %v9012 = vpack.c.b16 %v7642, %v7641
        %v9013 = vpack.c.b16 %v7644, %v7643
        %v9014 = vpack.c.b16 %v7646, %v7645
        %v9015 = vpack.c.b16 %v7648, %v7647
        %v9016 = vpack.c.b16 %v7650, %v7649
        %v9017 = vpack.c.b16 %v7652, %v7651
        %v9018 = vpack.c.b16 %v7654, %v7653
        %v9019 = vpack.c.b16 %v7656, %v7655
        %v9020 = vpack.c.b16 %v7658, %v7657
        %v9021 = vpack.c.b16 %v7660, %v7659
        %v9022 = vpack.c.b16 %v7662, %v7661
        %v9023 = vpack.c.b16 %v7664, %v7663
        %v9024 = vpack.c.b16 %v7666, %v7665
        %v9025 = vpack.c.b16 %v7668, %v7667
        %v9026 = vpack.c.b16 %v7670, %v7669
        %v9027 = vpack.c.b16 %v7672, %v7671
        %v9028 = vpack.c.b16 %v7674, %v7673
        %v9029 = vpack.c.b16 %v7676, %v7675
        %v9030 = vpack.c.b16 %v7678, %v7677
        %v9031 = vpack.c.b16 %v7680, %v7679
        %v9032 = vpack.c.b16 %v7682, %v7681
        %v9033 = vpack.c.b16 %v7684, %v7683
        %v9034 = vpack.c.b16 %v7686, %v7685
        %v9035 = vpack.c.b16 %v7688, %v7687
        %v9036 = vpack.c.b16 %v7690, %v7689
        %v9037 = vpack.c.b16 %v7692, %v7691
        %v9038 = vpack.c.b16 %v7694, %v7693
        %v9039 = vpack.c.b16 %v7696, %v7695
        %v9040 = vpack.c.b16 %v7698, %v7697
        %v9041 = vpack.c.b16 %v7700, %v7699
        %v9042 = vpack.c.b16 %v7702, %v7701
        %v9043 = vpack.c.b16 %v7704, %v7703
        %v9044 = vpack.c.b16 %v7706, %v7705
        %v9045 = vpack.c.b16 %v7708, %v7707
        %v9046 = vpack.c.b16 %v7710, %v7709
        %v9047 = vpack.c.b16 %v7712, %v7711
        %v9048 = vpack.c.b16 %v7714, %v7713
        %v9049 = vpack.c.b16 %v7716, %v7715
        %v9050 = vpack.c.b16 %v7718, %v7717
        %v9051 = vpack.c.b16 %v7720, %v7719
        %v9052 = vpack.c.b16 %v7722, %v7721
        %v9053 = vpack.c.b16 %v7724, %v7723
        %v9054 = vpack.c.b16 %v7726, %v7725
        %v9055 = vpack.c.b16 %v7728, %v7727
        %v9056 = vpack.c.b16 %v7730, %v7729
        %v9057 = vpack.c.b16 %v7732, %v7731
        %v9058 = vpack.c.b16 %v7734, %v7733
        %v9059 = vpack.c.b16 %v7736, %v7735
        %v9060 = vpack.c.b16 %v7738, %v7737
        %v9061 = vpack.c.b16 %v7740, %v7739
        %v9062 = vpack.c.b16 %v7742, %v7741
        %v9063 = vpack.c.b16 %v7744, %v7743
        %v9064 = vpack.c.b16 %v7746, %v7745
        %v9065 = vpack.c.b16 %v7748, %v7747
        %v9066 = vpack.c.b16 %v7750, %v7749
        %v9067 = vpack.c.b16 %v7752, %v7751
        %v9068 = vpack.c.b16 %v7754, %v7753
        %v9069 = vpack.c.b16 %v7756, %v7755
        %v9070 = vpack.c.b16 %v7758, %v7757
        %v9071 = vpack.c.b16 %v7760, %v7759
        %v9072 = vpack.c.b16 %v7762, %v7761
        %v9073 = vpack.c.b16 %v7764, %v7763
        %v9074 = vpack.c.b16 %v7766, %v7765
        %v9075 = vpack.c.b16 %v7768, %v7767
        %v9076 = vpack.c.b16 %v7770, %v7769
        %v9077 = vpack.c.b16 %v7772, %v7771
        %v9078 = vpack.c.b16 %v7774, %v7773
        %v9079 = vpack.c.b16 %v7776, %v7775
        %v9080 = vpack.c.b16 %v7778, %v7777
        %v9081 = vpack.c.b16 %v7780, %v7779
        %v9082 = vpack.c.b16 %v7782, %v7781
        %v9083 = vpack.c.b16 %v7784, %v7783
        %v9084 = vpack.c.b16 %v7786, %v7785
        %v9085 = vpack.c.b16 %v7788, %v7787
        %v9086 = vpack.c.b16 %v7790, %v7789
        %v9087 = vpack.c.b16 %v7792, %v7791
        %v9088 = vpack.c.b16 %v7794, %v7793
        %v9089 = vpack.c.b16 %v7796, %v7795
        %v9090 = vpack.c.b16 %v7798, %v7797
        %v9091 = vpack.c.b16 %v7800, %v7799
        %v9092 = vpack.c.b16 %v7802, %v7801
        %v9093 = vpack.c.b16 %v7804, %v7803
        %v9094 = vpack.c.b16 %v7806, %v7805
        %v9095 = vpack.c.b16 %v7808, %v7807
        %v9096 = vpack.c.b16 %v7810, %v7809
        %v9097 = vpack.c.b16 %v7812, %v7811
        %v9098 = vpack.c.b16 %v7814, %v7813
        %v9099 = vpack.c.b16 %v7816, %v7815
        %v9100 = vpack.c.b16 %v7818, %v7817
        %v9101 = vpack.c.b16 %v7820, %v7819
        %v9102 = vpack.c.b16 %v7822, %v7821
        %v9103 = vpack.c.b16 %v7824, %v7823
        %v9104 = vpack.c.b16 %v7826, %v7825
        %v9105 = vpack.c.b16 %v7828, %v7827
        %v9106 = vpack.c.b16 %v7830, %v7829
        %v9107 = vpack.c.b16 %v7832, %v7831
        %v9108 = vpack.c.b16 %v7834, %v7833
        %v9109 = vpack.c.b16 %v7836, %v7835
        %v9110 = vpack.c.b16 %v7838, %v7837
        %v9111 = vpack.c.b16 %v7840, %v7839
        %v9112 = vpack.c.b16 %v7842, %v7841
        %v9113 = vpack.c.b16 %v7844, %v7843
        %v9114 = vpack.c.b16 %v7846, %v7845
        %v9115 = vpack.c.b16 %v7848, %v7847
        %v9116 = vpack.c.b16 %v7850, %v7849
        %v9117 = vpack.c.b16 %v7852, %v7851
        %v9118 = vpack.c.b16 %v7854, %v7853
        %v9119 = vpack.c.b16 %v7856, %v7855
        %v9120 = vpack.c.b16 %v7858, %v7857
        %v9121 = vpack.c.b16 %v7860, %v7859
        %v9122 = vpack.c.b16 %v7862, %v7861
        %v9123 = vpack.c.b16 %v7864, %v7863
        %v9124 = vpack.c.b16 %v7866, %v7865
        %v9125 = vpack.c.b16 %v7868, %v7867
        %v9126 = vpack.c.b16 %v7870, %v7869
        %v9127 = vpack.c.b16 %v7872, %v7871
        %v9128 = vpack.c.b16 %v7874, %v7873
        %v9129 = vpack.c.b16 %v7876, %v7875
        %v9130 = vpack.c.b16 %v7878, %v7877
        %v9131 = vpack.c.b16 %v7880, %v7879
        %v9132 = vpack.c.b16 %v7882, %v7881
        %v9133 = vpack.c.b16 %v7884, %v7883
        %v9134 = vpack.c.b16 %v7886, %v7885
        %v9135 = vpack.c.b16 %v7888, %v7887
        %v9136 = vpack.c.b16 %v7890, %v7889
        %v9137 = vpack.c.b16 %v7892, %v7891
        %v9138 = vpack.c.b16 %v7894, %v7893
        %v9139 = vpack.c.b16 %v7896, %v7895
        %v9140 = vpack.c.b16 %v7898, %v7897
        %v9141 = vpack.c.b16 %v7900, %v7899
        %v9142 = vpack.c.b16 %v7902, %v7901
        %v9143 = vpack.c.b16 %v7904, %v7903
        %v9144 = vpack.c.b16 %v7906, %v7905
        %v9145 = vpack.c.b16 %v7908, %v7907
        %v9146 = vpack.c.b16 %v7910, %v7909
        %v9147 = vpack.c.b16 %v7912, %v7911
        %v9148 = vpack.c.b16 %v7914, %v7913
        %v9149 = vpack.c.b16 %v7916, %v7915
        %v9150 = vpack.c.b16 %v7918, %v7917
        %v9151 = vpack.c.b16 %v7920, %v7919
        %v9152 = vpack.c.b16 %v7922, %v7921
        %v9153 = vpack.c.b16 %v7924, %v7923
        %v9154 = vpack.c.b16 %v7926, %v7925
        %v9155 = vpack.c.b16 %v7928, %v7927
        %v9156 = vpack.c.b16 %v7930, %v7929
        %v9157 = vpack.c.b16 %v7932, %v7931
        %v9158 = vpack.c.b16 %v7934, %v7933
        %v9159 = vpack.c.b16 %v7936, %v7935
        %v9160 = vpack.c.b16 %v7938, %v7937
        %v9161 = vpack.c.b16 %v7940, %v7939
        %v9162 = vpack.c.b16 %v7942, %v7941
        %v9163 = vpack.c.b16 %v7944, %v7943
        %v9164 = vpack.c.b16 %v7946, %v7945
        %v9165 = vpack.c.b16 %v7948, %v7947
        %v9166 = vpack.c.b16 %v7950, %v7949
        %v9167 = vpack.c.b16 %v7952, %v7951
        %v9168 = vpack.c.b16 %v7954, %v7953
        %v9169 = vpack.c.b16 %v7956, %v7955
        %v9170 = vpack.c.b16 %v7958, %v7957
        %v9171 = vpack.c.b16 %v7960, %v7959
        %v9172 = vpack.c.b16 %v7962, %v7961
        %v9173 = vpack.c.b16 %v7964, %v7963
        %v9174 = vpack.c.b16 %v7966, %v7965
        %v9175 = vpack.c.b16 %v7968, %v7967
        %v9176 = vpack.c.b16 %v7970, %v7969
        %v9177 = vpack.c.b16 %v7972, %v7971
        %v9178 = vpack.c.b16 %v7974, %v7973
        %v9179 = vpack.c.b16 %v7976, %v7975
        %v9180 = vpack.c.b16 %v7978, %v7977
        %v9181 = vpack.c.b16 %v7980, %v7979
        %v9182 = vpack.c.b16 %v7982, %v7981
        %v9183 = vpack.c.b16 %v7984, %v7983
        %v9184 = vpack.c.b16 %v7986, %v7985
        %v9185 = vpack.c.b16 %v7988, %v7987
        %v9186 = vpack.c.b16 %v7990, %v7989
        %v9187 = vpack.c.b16 %v7992, %v7991
        %v9188 = vpack.c.b16 %v7994, %v7993
        %v9189 = vpack.c.b16 %v7996, %v7995
        %v9190 = vpack.c.b16 %v7998, %v7997
        %v9191 = vpack.c.b16 %v8000, %v7999
        %v9192 = vpack.c.b16 %v8002, %v8001
        %v9193 = vpack.c.b16 %v8004, %v8003
        %v9194 = vpack.c.b16 %v8006, %v8005
        %v9195 = vpack.c.b16 %v8008, %v8007
        %v9196 = vpack.c.b16 %v8010, %v8009
        %v9197 = vpack.c.b16 %v8012, %v8011
        %v9198 = vpack.c.b16 %v8014, %v8013
        %v9199 = vpack.c.b16 %v8016, %v8015
        %v9200 = vpack.c.b16 %v8018, %v8017
        %v9201 = vpack.c.b16 %v8020, %v8019
        %v9202 = vpack.c.b16 %v8022, %v8021
        %v9203 = vpack.c.b16 %v8024, %v8023
        %v9204 = vpack.c.b16 %v8026, %v8025
        %v9205 = vpack.c.b16 %v8028, %v8027
        %v9206 = vpack.c.b16 %v8030, %v8029
        %v9207 = vpack.c.b16 %v8032, %v8031
        %v9208 = vpack.c.b16 %v8034, %v8033
        %v9209 = vpack.c.b16 %v8036, %v8035
        %v9210 = vpack.c.b16 %v8038, %v8037
        %v9211 = vpack.c.b16 %v8040, %v8039
        %v9212 = vpack.c.b16 %v8042, %v8041
        %v9213 = vpack.c.b16 %v8044, %v8043
        %v9214 = vpack.c.b16 %v8046, %v8045
        %v9215 = vpack.c.b16 %v8048, %v8047
        %v9216 = vpack.c.b16 %v8050, %v8049
        %v9217 = vpack.c.b16 %v8052, %v8051
        %v9218 = vpack.c.b16 %v8054, %v8053
        %v9219 = vpack.c.b16 %v8056, %v8055
        %v9220 = vpack.c.b16 %v8058, %v8057
        %v9221 = vpack.c.b16 %v8060, %v8059
        %v9222 = vpack.c.b16 %v8062, %v8061
        %v9223 = vpack.c.b16 %v8064, %v8063
        %v9224 = vpack.c.b16 %v8066, %v8065
        %v9225 = vpack.c.b16 %v8068, %v8067
        %v9226 = vpack.c.b16 %v8070, %v8069
        %v9227 = vpack.c.b16 %v8072, %v8071
        %v9228 = vpack.c.b16 %v8074, %v8073
        %v9229 = vpack.c.b16 %v8076, %v8075
        %v9230 = vpack.c.b16 %v8078, %v8077
        %v9231 = vpack.c.b16 %v8080, %v8079
        %v9232 = vpack.c.b16 %v8082, %v8081
        %v9233 = vpack.c.b16 %v8084, %v8083
        %v9234 = vpack.c.b16 %v8086, %v8085
        %v9235 = vpack.c.b16 %v8088, %v8087
        %v9236 = vpack.c.b16 %v8090, %v8089
        %v9237 = vpack.c.b16 %v8092, %v8091
        %v9238 = vpack.c.b16 %v8094, %v8093
        %v9239 = vpack.c.b16 %v8096, %v8095
        %v9240 = vpack.c.b16 %v8098, %v8097
        %v9241 = vpack.c.b16 %v8100, %v8099
        %v9242 = vpack.c.b16 %v8102, %v8101
        %v9243 = vpack.c.b16 %v8104, %v8103
        %v9244 = vpack.c.b16 %v8106, %v8105
        %v9245 = vpack.c.b16 %v8108, %v8107
        %v9246 = vpack.c.b16 %v8110, %v8109
        %v9247 = vpack.c.b16 %v8112, %v8111
        %v9248 = vpack.c.b16 %v8114, %v8113
        %v9249 = vpack.c.b16 %v8116, %v8115
        %v9250 = vpack.c.b16 %v8118, %v8117
        %v9251 = vpack.c.b16 %v8120, %v8119
        %v9252 = vpack.c.b16 %v8122, %v8121
        %v9253 = vpack.c.b16 %v8124, %v8123
        %v9254 = vpack.c.b16 %v8126, %v8125
        %v9255 = vpack.c.b16 %v8128, %v8127
        %v9256 = vpack.c.b16 %v8130, %v8129
        %v9257 = vpack.c.b16 %v8132, %v8131
        %v9258 = vpack.c.b16 %v8134, %v8133
        %v9259 = vpack.c.b16 %v8136, %v8135
        %v9260 = vpack.c.b16 %v8138, %v8137
        %v9261 = vpack.c.b16 %v8140, %v8139
        %v9262 = vpack.c.b16 %v8142, %v8141
        %v9263 = vpack.c.b16 %v8144, %v8143
        %v9264 = vpack.c.b16 %v8146, %v8145
        %v9265 = vpack.c.b16 %v8148, %v8147
        %v9266 = vpack.c.b16 %v8150, %v8149
        %v9267 = vpack.c.b16 %v8152, %v8151
        %v9268 = vpack.c.b16 %v8154, %v8153
        %v9269 = vpack.c.b16 %v8156, %v8155
        %v9270 = vpack.c.b16 %v8158, %v8157
        %v9271 = vpack.c.b16 %v8160, %v8159
        %v9272 = vpack.c.b16 %v8162, %v8161
        %v9273 = vpack.c.b16 %v8164, %v8163
        %v9274 = vpack.c.b16 %v8166, %v8165
        %v9275 = vpack.c.b16 %v8168, %v8167
        %v9276 = vpack.c.b16 %v8170, %v8169
        %v9277 = vpack.c.b16 %v8172, %v8171
        %v9278 = vpack.c.b16 %v8174, %v8173
        %v9279 = vpack.c.b16 %v8176, %v8175
        %v9280 = vpack.c.b16 %v8178, %v8177
        %v9281 = vpack.c.b16 %v8180, %v8179
        %v9282 = vpack.c.b16 %v8182, %v8181
        %v9283 = vpack.c.b16 %v8184, %v8183
        %v9284 = vpack.c.b16 %v8186, %v8185
        %v9285 = vpack.c.b16 %v8188, %v8187
        %v9286 = vpack.c.b16 %v8190, %v8189
        %v9287 = vpack.c.b16 %v8192, %v8191
        %v9288 = vpack.c.b16 %v8194, %v8193
        %v9289 = vpack.c.b16 %v8196, %v8195
        %v9290 = vpack.c.b16 %v8198, %v8197
        %v9291 = vpack.c.b16 %v8200, %v8199
        %v9292 = vpack.c.b16 %v8202, %v8201
        %v9293 = vpack.c.b16 %v8204, %v8203
        %v9294 = vpack.c.b16 %v8206, %v8205
        %v9295 = vpack.c.b16 %v8208, %v8207
        %v9296 = vpack.c.b16 %v8210, %v8209
        %v9297 = vpack.c.b16 %v8212, %v8211
        %v9298 = vpack.c.b16 %v8214, %v8213
        %v9299 = vpack.c.b16 %v8216, %v8215
        %v9300 = vpack.c.b16 %v8218, %v8217
        %v9301 = vpack.c.b16 %v8220, %v8219
        %v9302 = vpack.c.b16 %v8222, %v8221
        %v9303 = vpack.c.b16 %v8224, %v8223
        %v9304 = vpack.c.b16 %v8226, %v8225
        %v9305 = vpack.c.b16 %v8228, %v8227
        %v9306 = vpack.c.b16 %v8230, %v8229
        %v9307 = vpack.c.b16 %v8232, %v8231
        %v9308 = vpack.c.b16 %v8234, %v8233
        %v9309 = vpack.c.b16 %v8236, %v8235
        %v9310 = vpack.c.b16 %v8238, %v8237
        %v9311 = vpack.c.b16 %v8240, %v8239
        %v9312 = vpack.c.b16 %v8242, %v8241
        %v9313 = vpack.c.b16 %v8244, %v8243
        %v9314 = vpack.c.b16 %v8246, %v8245
        %v9315 = vpack.c.b16 %v8248, %v8247
        %v9316 = vpack.c.b16 %v8250, %v8249
        %v9317 = vpack.c.b16 %v8252, %v8251
        %v9318 = vpack.c.b16 %v8254, %v8253
        %v9319 = vpack.c.b16 %v8256, %v8255
        %v9320 = vpack.c.b16 %v8258, %v8257
        %v9321 = vpack.c.b16 %v8260, %v8259
        %v9322 = vpack.c.b16 %v8262, %v8261
        %v9323 = vpack.c.b16 %v8264, %v8263
        %v9324 = vpack.c.b16 %v8266, %v8265
        %v9325 = vpack.c.b16 %v8268, %v8267
        %v9326 = vpack.c.b16 %v8270, %v8269
        %v9327 = vpack.c.b16 %v8272, %v8271
        %v9328 = vpack.c.b16 %v8274, %v8273
        %v9329 = vpack.c.b16 %v8276, %v8275
        %v9330 = vpack.c.b16 %v8278, %v8277
        %v9331 = vpack.c.b16 %v8280, %v8279
        %v9332 = vpack.c.b16 %v8282, %v8281
        %v9333 = vpack.c.b16 %v8284, %v8283
        %v9334 = vpack.c.b16 %v8286, %v8285
        %v9335 = vpack.c.b16 %v8288, %v8287
        %v9336 = vpack.c.b16 %v8290, %v8289
        %v9337 = vpack.c.b16 %v8292, %v8291
        %v9338 = vpack.c.b16 %v8294, %v8293
        %v9339 = vpack.c.b16 %v8296, %v8295
        %v9340 = vpack.c.b16 %v8298, %v8297
        %v9341 = vpack.c.b16 %v8300, %v8299
        %v9342 = vpack.c.b16 %v8302, %v8301
        %v9343 = vpack.c.b16 %v8304, %v8303
        %v9344 = vpack.c.b16 %v8306, %v8305
        %v9345 = vpack.c.b16 %v8308, %v8307
        %v9346 = vpack.c.b16 %v8310, %v8309
        %v9347 = vpack.c.b16 %v8312, %v8311
        %v9348 = vpack.c.b16 %v8314, %v8313
        %v9349 = vpack.c.b16 %v8316, %v8315
        %v9350 = vpack.c.b16 %v8318, %v8317
        %v9351 = vpack.c.b16 %v8320, %v8319
        %v9352 = vpack.c.b16 %v8322, %v8321
        %v9353 = vpack.c.b16 %v8324, %v8323
        %v9354 = vpack.c.b16 %v8326, %v8325
        %v9355 = vpack.c.b16 %v8328, %v8327
        %v9356 = vpack.c.b16 %v8330, %v8329
        %v9357 = vpack.c.b16 %v8332, %v8331
        %v9358 = vpack.c.b16 %v8334, %v8333
        %10383 = vmatprep.subr.bf16.mxu0 0
        %10384 = vmatpush1.bf16.msra.mxu0 %v8335
        %10385 = vmatprep.subr.bf16.mxu0 0
        %10386 = vmatpush1.bf16.msra.mxu0 %v8336
        %10387 = vmatprep.subr.bf16.mxu0 0
        %10388 = vmatpush1.bf16.msra.mxu0 %v8337
        %10389 = vmatprep.subr.bf16.mxu0 0
        %10390 = vmatpush1.bf16.msra.mxu0 %v8338
        %10391 = vmatprep.subr.bf16.mxu0 0
        %10392 = vmatpush1.bf16.msra.mxu0 %v8339
        %10393 = vmatprep.subr.bf16.mxu0 0
        %10394 = vmatpush1.bf16.msra.mxu0 %v8340
        %10395 = vmatprep.subr.bf16.mxu0 0
        %10396 = vmatpush1.bf16.msra.mxu0 %v8341
        %10397 = vmatprep.subr.bf16.mxu0 0
        %10398 = vmatpush1.bf16.msra.mxu0 %v8342
        %10399 = vmatprep.subr.bf16.mxu0 0
        %10400 = vmatpush1.bf16.msra.mxu0 %v8343
        %10401 = vmatprep.subr.bf16.mxu0 0
        %10402 = vmatpush1.bf16.msra.mxu0 %v8344
        %10403 = vmatprep.subr.bf16.mxu0 0
        %10404 = vmatpush1.bf16.msra.mxu0 %v8345
        %10405 = vmatprep.subr.bf16.mxu0 0
        %10406 = vmatpush1.bf16.msra.mxu0 %v8346
        %10407 = vmatprep.subr.bf16.mxu0 0
        %10408 = vmatpush1.bf16.msra.mxu0 %v8347
        %10409 = vmatprep.subr.bf16.mxu0 0
        %10410 = vmatpush1.bf16.msra.mxu0 %v8348
        %10411 = vmatprep.subr.bf16.mxu0 0
        %10412 = vmatpush1.bf16.msra.mxu0 %v8349
        %10413 = vmatprep.subr.bf16.mxu0 0
        %10414 = vmatpush1.bf16.msra.mxu0 %v8350
        %10415 = vmatprep.mubr.bf16.mxu0 %v2064
        %10416 = vmatmul.mubr.bf16.gmra.mrb[0].mxu0 %v2063
        %v10417 = vpop.f32.mrb[0].mxu0
        %v10418 = vadd.f32 0.0, %v10417
        %v10419 = vpop.f32.mrb[0].mxu0
        %v10420 = vpop.f32.mrb[0].mxu0
        %v10421 = vpop.f32.mrb[0].mxu0
        %10422 = vdwg.mxu0
        %10423 = vmatprep.subr.bf16.mxu0 0
        %10424 = vmatpush1.bf16.msra.mxu0 %v8351
        %10425 = vmatprep.subr.bf16.mxu0 0
        %10426 = vmatpush1.bf16.msra.mxu0 %v8352
        %10427 = vmatprep.subr.bf16.mxu0 0
        %10428 = vmatpush1.bf16.msra.mxu0 %v8353
        %10429 = vmatprep.subr.bf16.mxu0 0
        %10430 = vmatpush1.bf16.msra.mxu0 %v8354
        %10431 = vmatprep.subr.bf16.mxu0 0
        %10432 = vmatpush1.bf16.msra.mxu0 %v8355
        %10433 = vmatprep.subr.bf16.mxu0 0
        %10434 = vmatpush1.bf16.msra.mxu0 %v8356
        %10435 = vmatprep.subr.bf16.mxu0 0
        %10436 = vmatpush1.bf16.msra.mxu0 %v8357
        %10437 = vmatprep.subr.bf16.mxu0 0
        %10438 = vmatpush1.bf16.msra.mxu0 %v8358
        %10439 = vmatprep.subr.bf16.mxu0 0
        %10440 = vmatpush1.bf16.msra.mxu0 %v8359
        %10441 = vmatprep.subr.bf16.mxu0 0
        %10442 = vmatpush1.bf16.msra.mxu0 %v8360
        %10443 = vmatprep.subr.bf16.mxu0 0
        %10444 = vmatpush1.bf16.msra.mxu0 %v8361
        %10445 = vmatprep.subr.bf16.mxu0 0
        %10446 = vmatpush1.bf16.msra.mxu0 %v8362
        %10447 = vmatprep.subr.bf16.mxu0 0
        %10448 = vmatpush1.bf16.msra.mxu0 %v8363
        %10449 = vmatprep.subr.bf16.mxu0 0
        %10450 = vmatpush1.bf16.msra.mxu0 %v8364
        %10451 = vmatprep.subr.bf16.mxu0 0
        %10452 = vmatpush1.bf16.msra.mxu0 %v8365
        %10453 = vmatprep.subr.bf16.mxu0 0
        %10454 = vmatpush1.bf16.msra.mxu0 %v8366
        %10455 = vmatprep.mubr.bf16.mxu0 %v2066
        %10456 = vmatmul.mubr.bf16.gmra.mrb[0].mxu0 %v2065
        %v10457 = vpop.f32.mrb[0].mxu0
        %v10458 = vadd.f32 %v10418, %v10457
        %v10459 = vpop.f32.mrb[0].mxu0
        %v10460 = vpop.f32.mrb[0].mxu0
        %v10461 = vpop.f32.mrb[0].mxu0
        %10462 = vdwg.mxu0
        %10463 = vmatprep.subr.bf16.mxu0 0
        %10464 = vmatpush1.bf16.msra.mxu0 %v8367
        %10465 = vmatprep.subr.bf16.mxu0 0
        %10466 = vmatpush1.bf16.msra.mxu0 %v8368
        %10467 = vmatprep.subr.bf16.mxu0 0
        %10468 = vmatpush1.bf16.msra.mxu0 %v8369
        %10469 = vmatprep.subr.bf16.mxu0 0
        %10470 = vmatpush1.bf16.msra.mxu0 %v8370
        %10471 = vmatprep.subr.bf16.mxu0 0
        %10472 = vmatpush1.bf16.msra.mxu0 %v8371
        %10473 = vmatprep.subr.bf16.mxu0 0
        %10474 = vmatpush1.bf16.msra.mxu0 %v8372
        %10475 = vmatprep.subr.bf16.mxu0 0
        %10476 = vmatpush1.bf16.msra.mxu0 %v8373
        %10477 = vmatprep.subr.bf16.mxu0 0
        %10478 = vmatpush1.bf16.msra.mxu0 %v8374
        %10479 = vmatprep.subr.bf16.mxu0 0
        %10480 = vmatpush1.bf16.msra.mxu0 %v8375
        %10481 = vmatprep.subr.bf16.mxu0 0
        %10482 = vmatpush1.bf16.msra.mxu0 %v8376
        %10483 = vmatprep.subr.bf16.mxu0 0
        %10484 = vmatpush1.bf16.msra.mxu0 %v8377
        %10485 = vmatprep.subr.bf16.mxu0 0
        %10486 = vmatpush1.bf16.msra.mxu0 %v8378
        %10487 = vmatprep.subr.bf16.mxu0 0
        %10488 = vmatpush1.bf16.msra.mxu0 %v8379
        %10489 = vmatprep.subr.bf16.mxu0 0
        %10490 = vmatpush1.bf16.msra.mxu0 %v8380
        %10491 = vmatprep.subr.bf16.mxu0 0
        %10492 = vmatpush1.bf16.msra.mxu0 %v8381
        %10493 = vmatprep.subr.bf16.mxu0 0
        %10494 = vmatpush1.bf16.msra.mxu0 %v8382
        %10495 = vmatprep.mubr.bf16.mxu0 %v2068
        %10496 = vmatmul.mubr.bf16.gmra.mrb[0].mxu0 %v2067
        %v10497 = vpop.f32.mrb[0].mxu0
        %v10498 = vadd.f32 %v10458, %v10497
        %v10499 = vpop.f32.mrb[0].mxu0
        %v10500 = vpop.f32.mrb[0].mxu0
        %v10501 = vpop.f32.mrb[0].mxu0
        %10502 = vdwg.mxu0
        %10503 = vmatprep.subr.bf16.mxu0 0
        %10504 = vmatpush1.bf16.msra.mxu0 %v8383
        %10505 = vmatprep.subr.bf16.mxu0 0
        %10506 = vmatpush1.bf16.msra.mxu0 %v8384
        %10507 = vmatprep.subr.bf16.mxu0 0
        %10508 = vmatpush1.bf16.msra.mxu0 %v8385
        %10509 = vmatprep.subr.bf16.mxu0 0
        %10510 = vmatpush1.bf16.msra.mxu0 %v8386
        %10511 = vmatprep.subr.bf16.mxu0 0
        %10512 = vmatpush1.bf16.msra.mxu0 %v8387
        %10513 = vmatprep.subr.bf16.mxu0 0
        %10514 = vmatpush1.bf16.msra.mxu0 %v8388
        %10515 = vmatprep.subr.bf16.mxu0 0
        %10516 = vmatpush1.bf16.msra.mxu0 %v8389
        %10517 = vmatprep.subr.bf16.mxu0 0
        %10518 = vmatpush1.bf16.msra.mxu0 %v8390
        %10519 = vmatprep.subr.bf16.mxu0 0
        %10520 = vmatpush1.bf16.msra.mxu0 %v8391
        %10521 = vmatprep.subr.bf16.mxu0 0
        %10522 = vmatpush1.bf16.msra.mxu0 %v8392
        %10523 = vmatprep.subr.bf16.mxu0 0
        %10524 = vmatpush1.bf16.msra.mxu0 %v8393
        %10525 = vmatprep.subr.bf16.mxu0 0
        %10526 = vmatpush1.bf16.msra.mxu0 %v8394
        %10527 = vmatprep.subr.bf16.mxu0 0
        %10528 = vmatpush1.bf16.msra.mxu0 %v8395
        %10529 = vmatprep.subr.bf16.mxu0 0
        %10530 = vmatpush1.bf16.msra.mxu0 %v8396
        %10531 = vmatprep.subr.bf16.mxu0 0
        %10532 = vmatpush1.bf16.msra.mxu0 %v8397
        %10533 = vmatprep.subr.bf16.mxu0 0
        %10534 = vmatpush1.bf16.msra.mxu0 %v8398
        %10535 = vmatprep.mubr.bf16.mxu0 %v2070
        %10536 = vmatmul.mubr.bf16.gmra.mrb[0].mxu0 %v2069
        %v10537 = vpop.f32.mrb[0].mxu0
        %v10538 = vadd.f32 %v10498, %v10537
        %v10539 = vpop.f32.mrb[0].mxu0
        %v10540 = vpop.f32.mrb[0].mxu0
        %v10541 = vpop.f32.mrb[0].mxu0
        %10542 = vdwg.mxu0
        %10543 = vmatprep.subr.bf16.mxu0 0
        %10544 = vmatpush1.bf16.msra.mxu0 %v8399
        %10545 = vmatprep.subr.bf16.mxu0 0
        %10546 = vmatpush1.bf16.msra.mxu0 %v8400
        %10547 = vmatprep.subr.bf16.mxu0 0
        %10548 = vmatpush1.bf16.msra.mxu0 %v8401
        %10549 = vmatprep.subr.bf16.mxu0 0
        %10550 = vmatpush1.bf16.msra.mxu0 %v8402
        %10551 = vmatprep.subr.bf16.mxu0 0
        %10552 = vmatpush1.bf16.msra.mxu0 %v8403
        %10553 = vmatprep.subr.bf16.mxu0 0
        %10554 = vmatpush1.bf16.msra.mxu0 %v8404
        %10555 = vmatprep.subr.bf16.mxu0 0
        %10556 = vmatpush1.bf16.msra.mxu0 %v8405
        %10557 = vmatprep.subr.bf16.mxu0 0
        %10558 = vmatpush1.bf16.msra.mxu0 %v8406
        %10559 = vmatprep.subr.bf16.mxu0 0
        %10560 = vmatpush1.bf16.msra.mxu0 %v8407
        %10561 = vmatprep.subr.bf16.mxu0 0
        %10562 = vmatpush1.bf16.msra.mxu0 %v8408
        %10563 = vmatprep.subr.bf16.mxu0 0
        %10564 = vmatpush1.bf16.msra.mxu0 %v8409
        %10565 = vmatprep.subr.bf16.mxu0 0
        %10566 = vmatpush1.bf16.msra.mxu0 %v8410
        %10567 = vmatprep.subr.bf16.mxu0 0
        %10568 = vmatpush1.bf16.msra.mxu0 %v8411
        %10569 = vmatprep.subr.bf16.mxu0 0
        %10570 = vmatpush1.bf16.msra.mxu0 %v8412
        %10571 = vmatprep.subr.bf16.mxu0 0
        %10572 = vmatpush1.bf16.msra.mxu0 %v8413
        %10573 = vmatprep.subr.bf16.mxu0 0
        %10574 = vmatpush1.bf16.msra.mxu0 %v8414
        %10575 = vmatprep.mubr.bf16.mxu0 %v2072
        %10576 = vmatmul.mubr.bf16.gmra.mrb[0].mxu0 %v2071
        %v10577 = vpop.f32.mrb[0].mxu0
        %v10578 = vadd.f32 %v10538, %v10577
        %v10579 = vpop.f32.mrb[0].mxu0
        %v10580 = vpop.f32.mrb[0].mxu0
        %v10581 = vpop.f32.mrb[0].mxu0
        %10582 = vdwg.mxu0
        %10583 = vmatprep.subr.bf16.mxu0 0
        %10584 = vmatpush1.bf16.msra.mxu0 %v8415
        %10585 = vmatprep.subr.bf16.mxu0 0
        %10586 = vmatpush1.bf16.msra.mxu0 %v8416
        %10587 = vmatprep.subr.bf16.mxu0 0
        %10588 = vmatpush1.bf16.msra.mxu0 %v8417
        %10589 = vmatprep.subr.bf16.mxu0 0
        %10590 = vmatpush1.bf16.msra.mxu0 %v8418
        %10591 = vmatprep.subr.bf16.mxu0 0
        %10592 = vmatpush1.bf16.msra.mxu0 %v8419
        %10593 = vmatprep.subr.bf16.mxu0 0
        %10594 = vmatpush1.bf16.msra.mxu0 %v8420
        %10595 = vmatprep.subr.bf16.mxu0 0
        %10596 = vmatpush1.bf16.msra.mxu0 %v8421
        %10597 = vmatprep.subr.bf16.mxu0 0
        %10598 = vmatpush1.bf16.msra.mxu0 %v8422
        %10599 = vmatprep.subr.bf16.mxu0 0
        %10600 = vmatpush1.bf16.msra.mxu0 %v8423
        %10601 = vmatprep.subr.bf16.mxu0 0
        %10602 = vmatpush1.bf16.msra.mxu0 %v8424
        %10603 = vmatprep.subr.bf16.mxu0 0
        %10604 = vmatpush1.bf16.msra.mxu0 %v8425
        %10605 = vmatprep.subr.bf16.mxu0 0
        %10606 = vmatpush1.bf16.msra.mxu0 %v8426
        %10607 = vmatprep.subr.bf16.mxu0 0
        %10608 = vmatpush1.bf16.msra.mxu0 %v8427
        %10609 = vmatprep.subr.bf16.mxu0 0
        %10610 = vmatpush1.bf16.msra.mxu0 %v8428
        %10611 = vmatprep.subr.bf16.mxu0 0
        %10612 = vmatpush1.bf16.msra.mxu0 %v8429
        %10613 = vmatprep.subr.bf16.mxu0 0
        %10614 = vmatpush1.bf16.msra.mxu0 %v8430
        %10615 = vmatprep.mubr.bf16.mxu0 %v2074
        %10616 = vmatmul.mubr.bf16.gmra.mrb[0].mxu0 %v2073
        %v10617 = vpop.f32.mrb[0].mxu0
        %v10618 = vadd.f32 %v10578, %v10617
        %v10619 = vpop.f32.mrb[0].mxu0
        %v10620 = vpop.f32.mrb[0].mxu0
        %v10621 = vpop.f32.mrb[0].mxu0
        %10622 = vdwg.mxu0
        %10623 = vmatprep.subr.bf16.mxu0 0
        %10624 = vmatpush1.bf16.msra.mxu0 %v8431
        %10625 = vmatprep.subr.bf16.mxu0 0
        %10626 = vmatpush1.bf16.msra.mxu0 %v8432
        %10627 = vmatprep.subr.bf16.mxu0 0
        %10628 = vmatpush1.bf16.msra.mxu0 %v8433
        %10629 = vmatprep.subr.bf16.mxu0 0
        %10630 = vmatpush1.bf16.msra.mxu0 %v8434
        %10631 = vmatprep.subr.bf16.mxu0 0
        %10632 = vmatpush1.bf16.msra.mxu0 %v8435
        %10633 = vmatprep.subr.bf16.mxu0 0
        %10634 = vmatpush1.bf16.msra.mxu0 %v8436
        %10635 = vmatprep.subr.bf16.mxu0 0
        %10636 = vmatpush1.bf16.msra.mxu0 %v8437
        %10637 = vmatprep.subr.bf16.mxu0 0
        %10638 = vmatpush1.bf16.msra.mxu0 %v8438
        %10639 = vmatprep.subr.bf16.mxu0 0
        %10640 = vmatpush1.bf16.msra.mxu0 %v8439
        %10641 = vmatprep.subr.bf16.mxu0 0
        %10642 = vmatpush1.bf16.msra.mxu0 %v8440
        %10643 = vmatprep.subr.bf16.mxu0 0
        %10644 = vmatpush1.bf16.msra.mxu0 %v8441
        %10645 = vmatprep.subr.bf16.mxu0 0
        %10646 = vmatpush1.bf16.msra.mxu0 %v8442
        %10647 = vmatprep.subr.bf16.mxu0 0
        %10648 = vmatpush1.bf16.msra.mxu0 %v8443
        %10649 = vmatprep.subr.bf16.mxu0 0
        %10650 = vmatpush1.bf16.msra.mxu0 %v8444
        %10651 = vmatprep.subr.bf16.mxu0 0
        %10652 = vmatpush1.bf16.msra.mxu0 %v8445
        %10653 = vmatprep.subr.bf16.mxu0 0
        %10654 = vmatpush1.bf16.msra.mxu0 %v8446
        %10655 = vmatprep.mubr.bf16.mxu0 %v2076
        %10656 = vmatmul.mubr.bf16.gmra.mrb[0].mxu0 %v2075
        %v10657 = vpop.f32.mrb[0].mxu0
        %v10658 = vadd.f32 %v10618, %v10657
        %v10659 = vpop.f32.mrb[0].mxu0
        %v10660 = vpop.f32.mrb[0].mxu0
        %v10661 = vpop.f32.mrb[0].mxu0
        %10662 = vdwg.mxu0
        %10663 = vmatprep.subr.bf16.mxu0 0
        %10664 = vmatpush1.bf16.msra.mxu0 %v8447
        %10665 = vmatprep.subr.bf16.mxu0 0
        %10666 = vmatpush1.bf16.msra.mxu0 %v8448
        %10667 = vmatprep.subr.bf16.mxu0 0
        %10668 = vmatpush1.bf16.msra.mxu0 %v8449
        %10669 = vmatprep.subr.bf16.mxu0 0
        %10670 = vmatpush1.bf16.msra.mxu0 %v8450
        %10671 = vmatprep.subr.bf16.mxu0 0
        %10672 = vmatpush1.bf16.msra.mxu0 %v8451
        %10673 = vmatprep.subr.bf16.mxu0 0
        %10674 = vmatpush1.bf16.msra.mxu0 %v8452
        %10675 = vmatprep.subr.bf16.mxu0 0
        %10676 = vmatpush1.bf16.msra.mxu0 %v8453
        %10677 = vmatprep.subr.bf16.mxu0 0
        %10678 = vmatpush1.bf16.msra.mxu0 %v8454
        %10679 = vmatprep.subr.bf16.mxu0 0
        %10680 = vmatpush1.bf16.msra.mxu0 %v8455
        %10681 = vmatprep.subr.bf16.mxu0 0
        %10682 = vmatpush1.bf16.msra.mxu0 %v8456
        %10683 = vmatprep.subr.bf16.mxu0 0
        %10684 = vmatpush1.bf16.msra.mxu0 %v8457
        %10685 = vmatprep.subr.bf16.mxu0 0
        %10686 = vmatpush1.bf16.msra.mxu0 %v8458
        %10687 = vmatprep.subr.bf16.mxu0 0
        %10688 = vmatpush1.bf16.msra.mxu0 %v8459
        %10689 = vmatprep.subr.bf16.mxu0 0
        %10690 = vmatpush1.bf16.msra.mxu0 %v8460
        %10691 = vmatprep.subr.bf16.mxu0 0
        %10692 = vmatpush1.bf16.msra.mxu0 %v8461
        %10693 = vmatprep.subr.bf16.mxu0 0
        %10694 = vmatpush1.bf16.msra.mxu0 %v8462
        %10695 = vmatprep.mubr.bf16.mxu0 %v2078
        %10696 = vmatmul.mubr.bf16.gmra.mrb[0].mxu0 %v2077
        %v10697 = vpop.f32.mrb[0].mxu0
        %v10698 = vadd.f32 %v10658, %v10697
        %v10699 = vpop.f32.mrb[0].mxu0
        %v10700 = vpop.f32.mrb[0].mxu0
        %v10701 = vpop.f32.mrb[0].mxu0
        %10702 = vdwg.mxu0
        %10703 = vmatprep.subr.bf16.mxu0 0
        %10704 = vmatpush1.bf16.msra.mxu0 %v8463
        %10705 = vmatprep.subr.bf16.mxu0 0
        %10706 = vmatpush1.bf16.msra.mxu0 %v8464
        %10707 = vmatprep.subr.bf16.mxu0 0
        %10708 = vmatpush1.bf16.msra.mxu0 %v8465
        %10709 = vmatprep.subr.bf16.mxu0 0
        %10710 = vmatpush1.bf16.msra.mxu0 %v8466
        %10711 = vmatprep.subr.bf16.mxu0 0
        %10712 = vmatpush1.bf16.msra.mxu0 %v8467
        %10713 = vmatprep.subr.bf16.mxu0 0
        %10714 = vmatpush1.bf16.msra.mxu0 %v8468
        %10715 = vmatprep.subr.bf16.mxu0 0
        %10716 = vmatpush1.bf16.msra.mxu0 %v8469
        %10717 = vmatprep.subr.bf16.mxu0 0
        %10718 = vmatpush1.bf16.msra.mxu0 %v8470
        %10719 = vmatprep.subr.bf16.mxu0 0
        %10720 = vmatpush1.bf16.msra.mxu0 %v8471
        %10721 = vmatprep.subr.bf16.mxu0 0
        %10722 = vmatpush1.bf16.msra.mxu0 %v8472
        %10723 = vmatprep.subr.bf16.mxu0 0
        %10724 = vmatpush1.bf16.msra.mxu0 %v8473
        %10725 = vmatprep.subr.bf16.mxu0 0
        %10726 = vmatpush1.bf16.msra.mxu0 %v8474
        %10727 = vmatprep.subr.bf16.mxu0 0
        %10728 = vmatpush1.bf16.msra.mxu0 %v8475
        %10729 = vmatprep.subr.bf16.mxu0 0
        %10730 = vmatpush1.bf16.msra.mxu0 %v8476
        %10731 = vmatprep.subr.bf16.mxu0 0
        %10732 = vmatpush1.bf16.msra.mxu0 %v8477
        %10733 = vmatprep.subr.bf16.mxu0 0
        %10734 = vmatpush1.bf16.msra.mxu0 %v8478
        %10735 = vmatprep.mubr.bf16.mxu0 %v2080
        %10736 = vmatmul.mubr.bf16.gmra.mrb[0].mxu0 %v2079
        %v10737 = vpop.f32.mrb[0].mxu0
        %v10738 = vadd.f32 %v10698, %v10737
        %v10739 = vpop.f32.mrb[0].mxu0
        %v10740 = vpop.f32.mrb[0].mxu0
        %v10741 = vpop.f32.mrb[0].mxu0
        %10742 = vdwg.mxu0
        %10743 = vmatprep.subr.bf16.mxu0 0
        %10744 = vmatpush1.bf16.msra.mxu0 %v8479
        %10745 = vmatprep.subr.bf16.mxu0 0
        %10746 = vmatpush1.bf16.msra.mxu0 %v8480
        %10747 = vmatprep.subr.bf16.mxu0 0
        %10748 = vmatpush1.bf16.msra.mxu0 %v8481
        %10749 = vmatprep.subr.bf16.mxu0 0
        %10750 = vmatpush1.bf16.msra.mxu0 %v8482
        %10751 = vmatprep.subr.bf16.mxu0 0
        %10752 = vmatpush1.bf16.msra.mxu0 %v8483
        %10753 = vmatprep.subr.bf16.mxu0 0
        %10754 = vmatpush1.bf16.msra.mxu0 %v8484
        %10755 = vmatprep.subr.bf16.mxu0 0
        %10756 = vmatpush1.bf16.msra.mxu0 %v8485
        %10757 = vmatprep.subr.bf16.mxu0 0
        %10758 = vmatpush1.bf16.msra.mxu0 %v8486
        %10759 = vmatprep.subr.bf16.mxu0 0
        %10760 = vmatpush1.bf16.msra.mxu0 %v8487
        %10761 = vmatprep.subr.bf16.mxu0 0
        %10762 = vmatpush1.bf16.msra.mxu0 %v8488
        %10763 = vmatprep.subr.bf16.mxu0 0
        %10764 = vmatpush1.bf16.msra.mxu0 %v8489
        %10765 = vmatprep.subr.bf16.mxu0 0
        %10766 = vmatpush1.bf16.msra.mxu0 %v8490
        %10767 = vmatprep.subr.bf16.mxu0 0
        %10768 = vmatpush1.bf16.msra.mxu0 %v8491
        %10769 = vmatprep.subr.bf16.mxu0 0
        %10770 = vmatpush1.bf16.msra.mxu0 %v8492
        %10771 = vmatprep.subr.bf16.mxu0 0
        %10772 = vmatpush1.bf16.msra.mxu0 %v8493
        %10773 = vmatprep.subr.bf16.mxu0 0
        %10774 = vmatpush1.bf16.msra.mxu0 %v8494
        %10775 = vmatprep.mubr.bf16.mxu0 %v2082
        %10776 = vmatmul.mubr.bf16.gmra.mrb[0].mxu0 %v2081
        %v10777 = vpop.f32.mrb[0].mxu0
        %v10778 = vadd.f32 %v10738, %v10777
        %v10779 = vpop.f32.mrb[0].mxu0
        %v10780 = vpop.f32.mrb[0].mxu0
        %v10781 = vpop.f32.mrb[0].mxu0
        %10782 = vdwg.mxu0
        %10783 = vmatprep.subr.bf16.mxu0 0
        %10784 = vmatpush1.bf16.msra.mxu0 %v8495
        %10785 = vmatprep.subr.bf16.mxu0 0
        %10786 = vmatpush1.bf16.msra.mxu0 %v8496
        %10787 = vmatprep.subr.bf16.mxu0 0
        %10788 = vmatpush1.bf16.msra.mxu0 %v8497
        %10789 = vmatprep.subr.bf16.mxu0 0
        %10790 = vmatpush1.bf16.msra.mxu0 %v8498
        %10791 = vmatprep.subr.bf16.mxu0 0
        %10792 = vmatpush1.bf16.msra.mxu0 %v8499
        %10793 = vmatprep.subr.bf16.mxu0 0
        %10794 = vmatpush1.bf16.msra.mxu0 %v8500
        %10795 = vmatprep.subr.bf16.mxu0 0
        %10796 = vmatpush1.bf16.msra.mxu0 %v8501
        %10797 = vmatprep.subr.bf16.mxu0 0
        %10798 = vmatpush1.bf16.msra.mxu0 %v8502
        %10799 = vmatprep.subr.bf16.mxu0 0
        %10800 = vmatpush1.bf16.msra.mxu0 %v8503
        %10801 = vmatprep.subr.bf16.mxu0 0
        %10802 = vmatpush1.bf16.msra.mxu0 %v8504
        %10803 = vmatprep.subr.bf16.mxu0 0
        %10804 = vmatpush1.bf16.msra.mxu0 %v8505
        %10805 = vmatprep.subr.bf16.mxu0 0
        %10806 = vmatpush1.bf16.msra.mxu0 %v8506
        %10807 = vmatprep.subr.bf16.mxu0 0
        %10808 = vmatpush1.bf16.msra.mxu0 %v8507
        %10809 = vmatprep.subr.bf16.mxu0 0
        %10810 = vmatpush1.bf16.msra.mxu0 %v8508
        %10811 = vmatprep.subr.bf16.mxu0 0
        %10812 = vmatpush1.bf16.msra.mxu0 %v8509
        %10813 = vmatprep.subr.bf16.mxu0 0
        %10814 = vmatpush1.bf16.msra.mxu0 %v8510
        %10815 = vmatprep.mubr.bf16.mxu0 %v2084
        %10816 = vmatmul.mubr.bf16.gmra.mrb[0].mxu0 %v2083
        %v10817 = vpop.f32.mrb[0].mxu0
        %v10818 = vadd.f32 %v10778, %v10817
        %v10819 = vpop.f32.mrb[0].mxu0
        %v10820 = vpop.f32.mrb[0].mxu0
        %v10821 = vpop.f32.mrb[0].mxu0
        %10822 = vdwg.mxu0
        %10823 = vmatprep.subr.bf16.mxu0 0
        %10824 = vmatpush1.bf16.msra.mxu0 %v8511
        %10825 = vmatprep.subr.bf16.mxu0 0
        %10826 = vmatpush1.bf16.msra.mxu0 %v8512
        %10827 = vmatprep.subr.bf16.mxu0 0
        %10828 = vmatpush1.bf16.msra.mxu0 %v8513
        %10829 = vmatprep.subr.bf16.mxu0 0
        %10830 = vmatpush1.bf16.msra.mxu0 %v8514
        %10831 = vmatprep.subr.bf16.mxu0 0
        %10832 = vmatpush1.bf16.msra.mxu0 %v8515
        %10833 = vmatprep.subr.bf16.mxu0 0
        %10834 = vmatpush1.bf16.msra.mxu0 %v8516
        %10835 = vmatprep.subr.bf16.mxu0 0
        %10836 = vmatpush1.bf16.msra.mxu0 %v8517
        %10837 = vmatprep.subr.bf16.mxu0 0
        %10838 = vmatpush1.bf16.msra.mxu0 %v8518
        %10839 = vmatprep.subr.bf16.mxu0 0
        %10840 = vmatpush1.bf16.msra.mxu0 %v8519
        %10841 = vmatprep.subr.bf16.mxu0 0
        %10842 = vmatpush1.bf16.msra.mxu0 %v8520
        %10843 = vmatprep.subr.bf16.mxu0 0
        %10844 = vmatpush1.bf16.msra.mxu0 %v8521
        %10845 = vmatprep.subr.bf16.mxu0 0
        %10846 = vmatpush1.bf16.msra.mxu0 %v8522
        %10847 = vmatprep.subr.bf16.mxu0 0
        %10848 = vmatpush1.bf16.msra.mxu0 %v8523
        %10849 = vmatprep.subr.bf16.mxu0 0
        %10850 = vmatpush1.bf16.msra.mxu0 %v8524
        %10851 = vmatprep.subr.bf16.mxu0 0
        %10852 = vmatpush1.bf16.msra.mxu0 %v8525
        %10853 = vmatprep.subr.bf16.mxu0 0
        %10854 = vmatpush1.bf16.msra.mxu0 %v8526
        %10855 = vmatprep.mubr.bf16.mxu0 %v2086
        %10856 = vmatmul.mubr.bf16.gmra.mrb[0].mxu0 %v2085
        %v10857 = vpop.f32.mrb[0].mxu0
        %v10858 = vadd.f32 %v10818, %v10857
        %v10859 = vpop.f32.mrb[0].mxu0
        %v10860 = vpop.f32.mrb[0].mxu0
        %v10861 = vpop.f32.mrb[0].mxu0
        %10862 = vdwg.mxu0
        %10863 = vmatprep.subr.bf16.mxu0 0
        %10864 = vmatpush1.bf16.msra.mxu0 %v8527
        %10865 = vmatprep.subr.bf16.mxu0 0
        %10866 = vmatpush1.bf16.msra.mxu0 %v8528
        %10867 = vmatprep.subr.bf16.mxu0 0
        %10868 = vmatpush1.bf16.msra.mxu0 %v8529
        %10869 = vmatprep.subr.bf16.mxu0 0
        %10870 = vmatpush1.bf16.msra.mxu0 %v8530
        %10871 = vmatprep.subr.bf16.mxu0 0
        %10872 = vmatpush1.bf16.msra.mxu0 %v8531
        %10873 = vmatprep.subr.bf16.mxu0 0
        %10874 = vmatpush1.bf16.msra.mxu0 %v8532
        %10875 = vmatprep.subr.bf16.mxu0 0
        %10876 = vmatpush1.bf16.msra.mxu0 %v8533
        %10877 = vmatprep.subr.bf16.mxu0 0
        %10878 = vmatpush1.bf16.msra.mxu0 %v8534
        %10879 = vmatprep.subr.bf16.mxu0 0
        %10880 = vmatpush1.bf16.msra.mxu0 %v8535
        %10881 = vmatprep.subr.bf16.mxu0 0
        %10882 = vmatpush1.bf16.msra.mxu0 %v8536
        %10883 = vmatprep.subr.bf16.mxu0 0
        %10884 = vmatpush1.bf16.msra.mxu0 %v8537
        %10885 = vmatprep.subr.bf16.mxu0 0
        %10886 = vmatpush1.bf16.msra.mxu0 %v8538
        %10887 = vmatprep.subr.bf16.mxu0 0
        %10888 = vmatpush1.bf16.msra.mxu0 %v8539
        %10889 = vmatprep.subr.bf16.mxu0 0
        %10890 = vmatpush1.bf16.msra.mxu0 %v8540
        %10891 = vmatprep.subr.bf16.mxu0 0
        %10892 = vmatpush1.bf16.msra.mxu0 %v8541
        %10893 = vmatprep.subr.bf16.mxu0 0
        %10894 = vmatpush1.bf16.msra.mxu0 %v8542
        %10895 = vmatprep.mubr.bf16.mxu0 %v2088
        %10896 = vmatmul.mubr.bf16.gmra.mrb[0].mxu0 %v2087
        %v10897 = vpop.f32.mrb[0].mxu0
        %v10898 = vadd.f32 %v10858, %v10897
        %v10899 = vpop.f32.mrb[0].mxu0
        %v10900 = vpop.f32.mrb[0].mxu0
        %v10901 = vpop.f32.mrb[0].mxu0
        %10902 = vdwg.mxu0
        %10903 = vmatprep.subr.bf16.mxu0 0
        %10904 = vmatpush1.bf16.msra.mxu0 %v8543
        %10905 = vmatprep.subr.bf16.mxu0 0
        %10906 = vmatpush1.bf16.msra.mxu0 %v8544
        %10907 = vmatprep.subr.bf16.mxu0 0
        %10908 = vmatpush1.bf16.msra.mxu0 %v8545
        %10909 = vmatprep.subr.bf16.mxu0 0
        %10910 = vmatpush1.bf16.msra.mxu0 %v8546
        %10911 = vmatprep.subr.bf16.mxu0 0
        %10912 = vmatpush1.bf16.msra.mxu0 %v8547
        %10913 = vmatprep.subr.bf16.mxu0 0
        %10914 = vmatpush1.bf16.msra.mxu0 %v8548
        %10915 = vmatprep.subr.bf16.mxu0 0
        %10916 = vmatpush1.bf16.msra.mxu0 %v8549
        %10917 = vmatprep.subr.bf16.mxu0 0
        %10918 = vmatpush1.bf16.msra.mxu0 %v8550
        %10919 = vmatprep.subr.bf16.mxu0 0
        %10920 = vmatpush1.bf16.msra.mxu0 %v8551
        %10921 = vmatprep.subr.bf16.mxu0 0
        %10922 = vmatpush1.bf16.msra.mxu0 %v8552
        %10923 = vmatprep.subr.bf16.mxu0 0
        %10924 = vmatpush1.bf16.msra.mxu0 %v8553
        %10925 = vmatprep.subr.bf16.mxu0 0
        %10926 = vmatpush1.bf16.msra.mxu0 %v8554
        %10927 = vmatprep.subr.bf16.mxu0 0
        %10928 = vmatpush1.bf16.msra.mxu0 %v8555
        %10929 = vmatprep.subr.bf16.mxu0 0
        %10930 = vmatpush1.bf16.msra.mxu0 %v8556
        %10931 = vmatprep.subr.bf16.mxu0 0
        %10932 = vmatpush1.bf16.msra.mxu0 %v8557
        %10933 = vmatprep.subr.bf16.mxu0 0
        %10934 = vmatpush1.bf16.msra.mxu0 %v8558
        %10935 = vmatprep.mubr.bf16.mxu0 %v2090
        %10936 = vmatmul.mubr.bf16.gmra.mrb[0].mxu0 %v2089
        %v10937 = vpop.f32.mrb[0].mxu0
        %v10938 = vadd.f32 %v10898, %v10937
        %v10939 = vpop.f32.mrb[0].mxu0
        %v10940 = vpop.f32.mrb[0].mxu0
        %v10941 = vpop.f32.mrb[0].mxu0
        %10942 = vdwg.mxu0
        %10943 = vmatprep.subr.bf16.mxu0 0
        %10944 = vmatpush1.bf16.msra.mxu0 %v8559
        %10945 = vmatprep.subr.bf16.mxu0 0
        %10946 = vmatpush1.bf16.msra.mxu0 %v8560
        %10947 = vmatprep.subr.bf16.mxu0 0
        %10948 = vmatpush1.bf16.msra.mxu0 %v8561
        %10949 = vmatprep.subr.bf16.mxu0 0
        %10950 = vmatpush1.bf16.msra.mxu0 %v8562
        %10951 = vmatprep.subr.bf16.mxu0 0
        %10952 = vmatpush1.bf16.msra.mxu0 %v8563
        %10953 = vmatprep.subr.bf16.mxu0 0
        %10954 = vmatpush1.bf16.msra.mxu0 %v8564
        %10955 = vmatprep.subr.bf16.mxu0 0
        %10956 = vmatpush1.bf16.msra.mxu0 %v8565
        %10957 = vmatprep.subr.bf16.mxu0 0
        %10958 = vmatpush1.bf16.msra.mxu0 %v8566
        %10959 = vmatprep.subr.bf16.mxu0 0
        %10960 = vmatpush1.bf16.msra.mxu0 %v8567
        %10961 = vmatprep.subr.bf16.mxu0 0
        %10962 = vmatpush1.bf16.msra.mxu0 %v8568
        %10963 = vmatprep.subr.bf16.mxu0 0
        %10964 = vmatpush1.bf16.msra.mxu0 %v8569
        %10965 = vmatprep.subr.bf16.mxu0 0
        %10966 = vmatpush1.bf16.msra.mxu0 %v8570
        %10967 = vmatprep.subr.bf16.mxu0 0
        %10968 = vmatpush1.bf16.msra.mxu0 %v8571
        %10969 = vmatprep.subr.bf16.mxu0 0
        %10970 = vmatpush1.bf16.msra.mxu0 %v8572
        %10971 = vmatprep.subr.bf16.mxu0 0
        %10972 = vmatpush1.bf16.msra.mxu0 %v8573
        %10973 = vmatprep.subr.bf16.mxu0 0
        %10974 = vmatpush1.bf16.msra.mxu0 %v8574
        %10975 = vmatprep.mubr.bf16.mxu0 %v2092
        %10976 = vmatmul.mubr.bf16.gmra.mrb[0].mxu0 %v2091
        %v10977 = vpop.f32.mrb[0].mxu0
        %v10978 = vadd.f32 %v10938, %v10977
        %v10979 = vpop.f32.mrb[0].mxu0
        %v10980 = vpop.f32.mrb[0].mxu0
        %v10981 = vpop.f32.mrb[0].mxu0
        %10982 = vdwg.mxu0
        %10983 = vmatprep.subr.bf16.mxu0 0
        %10984 = vmatpush1.bf16.msra.mxu0 %v8575
        %10985 = vmatprep.subr.bf16.mxu0 0
        %10986 = vmatpush1.bf16.msra.mxu0 %v8576
        %10987 = vmatprep.subr.bf16.mxu0 0
        %10988 = vmatpush1.bf16.msra.mxu0 %v8577
        %10989 = vmatprep.subr.bf16.mxu0 0
        %10990 = vmatpush1.bf16.msra.mxu0 %v8578
        %10991 = vmatprep.subr.bf16.mxu0 0
        %10992 = vmatpush1.bf16.msra.mxu0 %v8579
        %10993 = vmatprep.subr.bf16.mxu0 0
        %10994 = vmatpush1.bf16.msra.mxu0 %v8580
        %10995 = vmatprep.subr.bf16.mxu0 0
        %10996 = vmatpush1.bf16.msra.mxu0 %v8581
        %10997 = vmatprep.subr.bf16.mxu0 0
        %10998 = vmatpush1.bf16.msra.mxu0 %v8582
        %10999 = vmatprep.subr.bf16.mxu0 0
        %11000 = vmatpush1.bf16.msra.mxu0 %v8583
        %11001 = vmatprep.subr.bf16.mxu0 0
        %11002 = vmatpush1.bf16.msra.mxu0 %v8584
        %11003 = vmatprep.subr.bf16.mxu0 0
        %11004 = vmatpush1.bf16.msra.mxu0 %v8585
        %11005 = vmatprep.subr.bf16.mxu0 0
        %11006 = vmatpush1.bf16.msra.mxu0 %v8586
        %11007 = vmatprep.subr.bf16.mxu0 0
        %11008 = vmatpush1.bf16.msra.mxu0 %v8587
        %11009 = vmatprep.subr.bf16.mxu0 0
        %11010 = vmatpush1.bf16.msra.mxu0 %v8588
        %11011 = vmatprep.subr.bf16.mxu0 0
        %11012 = vmatpush1.bf16.msra.mxu0 %v8589
        %11013 = vmatprep.subr.bf16.mxu0 0
        %11014 = vmatpush1.bf16.msra.mxu0 %v8590
        %11015 = vmatprep.mubr.bf16.mxu0 %v2094
        %11016 = vmatmul.mubr.bf16.gmra.mrb[0].mxu0 %v2093
        %v11017 = vpop.f32.mrb[0].mxu0
        %v11018 = vadd.f32 %v10978, %v11017
        %v11019 = vpop.f32.mrb[0].mxu0
        %v11020 = vpop.f32.mrb[0].mxu0
        %v11021 = vpop.f32.mrb[0].mxu0
        %11022 = vdwg.mxu0
        %11023 = vmatprep.subr.bf16.mxu0 0
        %11024 = vmatpush1.bf16.msra.mxu0 %v8591
        %11025 = vmatprep.subr.bf16.mxu0 0
        %11026 = vmatpush1.bf16.msra.mxu0 %v8592
        %11027 = vmatprep.subr.bf16.mxu0 0
        %11028 = vmatpush1.bf16.msra.mxu0 %v8593
        %11029 = vmatprep.subr.bf16.mxu0 0
        %11030 = vmatpush1.bf16.msra.mxu0 %v8594
        %11031 = vmatprep.subr.bf16.mxu0 0
        %11032 = vmatpush1.bf16.msra.mxu0 %v8595
        %11033 = vmatprep.subr.bf16.mxu0 0
        %11034 = vmatpush1.bf16.msra.mxu0 %v8596
        %11035 = vmatprep.subr.bf16.mxu0 0
        %11036 = vmatpush1.bf16.msra.mxu0 %v8597
        %11037 = vmatprep.subr.bf16.mxu0 0
        %11038 = vmatpush1.bf16.msra.mxu0 %v8598
        %11039 = vmatprep.subr.bf16.mxu0 0
        %11040 = vmatpush1.bf16.msra.mxu0 %v8599
        %11041 = vmatprep.subr.bf16.mxu0 0
        %11042 = vmatpush1.bf16.msra.mxu0 %v8600
        %11043 = vmatprep.subr.bf16.mxu0 0
        %11044 = vmatpush1.bf16.msra.mxu0 %v8601
        %11045 = vmatprep.subr.bf16.mxu0 0
        %11046 = vmatpush1.bf16.msra.mxu0 %v8602
        %11047 = vmatprep.subr.bf16.mxu0 0
        %11048 = vmatpush1.bf16.msra.mxu0 %v8603
        %11049 = vmatprep.subr.bf16.mxu0 0
        %11050 = vmatpush1.bf16.msra.mxu0 %v8604
        %11051 = vmatprep.subr.bf16.mxu0 0
        %11052 = vmatpush1.bf16.msra.mxu0 %v8605
        %11053 = vmatprep.subr.bf16.mxu0 0
        %11054 = vmatpush1.bf16.msra.mxu0 %v8606
        %11055 = vmatprep.mubr.bf16.mxu0 %v2096
        %11056 = vmatmul.mubr.bf16.gmra.mrb[0].mxu0 %v2095
        %v11057 = vpop.f32.mrb[0].mxu0
        %v11058 = vadd.f32 %v11018, %v11057
        %v11059 = vpop.f32.mrb[0].mxu0
        %v11060 = vpop.f32.mrb[0].mxu0
        %v11061 = vpop.f32.mrb[0].mxu0
        %11062 = vdwg.mxu0
        %11063 = vmatprep.subr.bf16.mxu0 0
        %11064 = vmatpush1.bf16.msra.mxu0 %v8607
        %11065 = vmatprep.subr.bf16.mxu0 0
        %11066 = vmatpush1.bf16.msra.mxu0 %v8608
        %11067 = vmatprep.subr.bf16.mxu0 0
        %11068 = vmatpush1.bf16.msra.mxu0 %v8609
        %11069 = vmatprep.subr.bf16.mxu0 0
        %11070 = vmatpush1.bf16.msra.mxu0 %v8610
        %11071 = vmatprep.subr.bf16.mxu0 0
        %11072 = vmatpush1.bf16.msra.mxu0 %v8611
        %11073 = vmatprep.subr.bf16.mxu0 0
        %11074 = vmatpush1.bf16.msra.mxu0 %v8612
        %11075 = vmatprep.subr.bf16.mxu0 0
        %11076 = vmatpush1.bf16.msra.mxu0 %v8613
        %11077 = vmatprep.subr.bf16.mxu0 0
        %11078 = vmatpush1.bf16.msra.mxu0 %v8614
        %11079 = vmatprep.subr.bf16.mxu0 0
        %11080 = vmatpush1.bf16.msra.mxu0 %v8615
        %11081 = vmatprep.subr.bf16.mxu0 0
        %11082 = vmatpush1.bf16.msra.mxu0 %v8616
        %11083 = vmatprep.subr.bf16.mxu0 0
        %11084 = vmatpush1.bf16.msra.mxu0 %v8617
        %11085 = vmatprep.subr.bf16.mxu0 0
        %11086 = vmatpush1.bf16.msra.mxu0 %v8618
        %11087 = vmatprep.subr.bf16.mxu0 0
        %11088 = vmatpush1.bf16.msra.mxu0 %v8619
        %11089 = vmatprep.subr.bf16.mxu0 0
        %11090 = vmatpush1.bf16.msra.mxu0 %v8620
        %11091 = vmatprep.subr.bf16.mxu0 0
        %11092 = vmatpush1.bf16.msra.mxu0 %v8621
        %11093 = vmatprep.subr.bf16.mxu0 0
        %11094 = vmatpush1.bf16.msra.mxu0 %v8622
        %11095 = vmatprep.mubr.bf16.mxu0 %v2098
        %11096 = vmatmul.mubr.bf16.gmra.mrb[0].mxu0 %v2097
        %v11097 = vpop.f32.mrb[0].mxu0
        %v11098 = vadd.f32 %v11058, %v11097
        %v11099 = vpop.f32.mrb[0].mxu0
        %v11100 = vpop.f32.mrb[0].mxu0
        %v11101 = vpop.f32.mrb[0].mxu0
        %11102 = vdwg.mxu0
        %11103 = vmatprep.subr.bf16.mxu0 0
        %11104 = vmatpush1.bf16.msra.mxu0 %v8623
        %11105 = vmatprep.subr.bf16.mxu0 0
        %11106 = vmatpush1.bf16.msra.mxu0 %v8624
        %11107 = vmatprep.subr.bf16.mxu0 0
        %11108 = vmatpush1.bf16.msra.mxu0 %v8625
        %11109 = vmatprep.subr.bf16.mxu0 0
        %11110 = vmatpush1.bf16.msra.mxu0 %v8626
        %11111 = vmatprep.subr.bf16.mxu0 0
        %11112 = vmatpush1.bf16.msra.mxu0 %v8627
        %11113 = vmatprep.subr.bf16.mxu0 0
        %11114 = vmatpush1.bf16.msra.mxu0 %v8628
        %11115 = vmatprep.subr.bf16.mxu0 0
        %11116 = vmatpush1.bf16.msra.mxu0 %v8629
        %11117 = vmatprep.subr.bf16.mxu0 0
        %11118 = vmatpush1.bf16.msra.mxu0 %v8630
        %11119 = vmatprep.subr.bf16.mxu0 0
        %11120 = vmatpush1.bf16.msra.mxu0 %v8631
        %11121 = vmatprep.subr.bf16.mxu0 0
        %11122 = vmatpush1.bf16.msra.mxu0 %v8632
        %11123 = vmatprep.subr.bf16.mxu0 0
        %11124 = vmatpush1.bf16.msra.mxu0 %v8633
        %11125 = vmatprep.subr.bf16.mxu0 0
        %11126 = vmatpush1.bf16.msra.mxu0 %v8634
        %11127 = vmatprep.subr.bf16.mxu0 0
        %11128 = vmatpush1.bf16.msra.mxu0 %v8635
        %11129 = vmatprep.subr.bf16.mxu0 0
        %11130 = vmatpush1.bf16.msra.mxu0 %v8636
        %11131 = vmatprep.subr.bf16.mxu0 0
        %11132 = vmatpush1.bf16.msra.mxu0 %v8637
        %11133 = vmatprep.subr.bf16.mxu0 0
        %11134 = vmatpush1.bf16.msra.mxu0 %v8638
        %11135 = vmatprep.mubr.bf16.mxu0 %v2100
        %11136 = vmatmul.mubr.bf16.gmra.mrb[0].mxu0 %v2099
        %v11137 = vpop.f32.mrb[0].mxu0
        %v11138 = vadd.f32 %v11098, %v11137
        %v11139 = vpop.f32.mrb[0].mxu0
        %v11140 = vpop.f32.mrb[0].mxu0
        %v11141 = vpop.f32.mrb[0].mxu0
        %11142 = vdwg.mxu0
        %11143 = vmatprep.subr.bf16.mxu0 0
        %11144 = vmatpush1.bf16.msra.mxu0 %v8639
        %11145 = vmatprep.subr.bf16.mxu0 0
        %11146 = vmatpush1.bf16.msra.mxu0 %v8640
        %11147 = vmatprep.subr.bf16.mxu0 0
        %11148 = vmatpush1.bf16.msra.mxu0 %v8641
        %11149 = vmatprep.subr.bf16.mxu0 0
        %11150 = vmatpush1.bf16.msra.mxu0 %v8642
        %11151 = vmatprep.subr.bf16.mxu0 0
        %11152 = vmatpush1.bf16.msra.mxu0 %v8643
        %11153 = vmatprep.subr.bf16.mxu0 0
        %11154 = vmatpush1.bf16.msra.mxu0 %v8644
        %11155 = vmatprep.subr.bf16.mxu0 0
        %11156 = vmatpush1.bf16.msra.mxu0 %v8645
        %11157 = vmatprep.subr.bf16.mxu0 0
        %11158 = vmatpush1.bf16.msra.mxu0 %v8646
        %11159 = vmatprep.subr.bf16.mxu0 0
        %11160 = vmatpush1.bf16.msra.mxu0 %v8647
        %11161 = vmatprep.subr.bf16.mxu0 0
        %11162 = vmatpush1.bf16.msra.mxu0 %v8648
        %11163 = vmatprep.subr.bf16.mxu0 0
        %11164 = vmatpush1.bf16.msra.mxu0 %v8649
        %11165 = vmatprep.subr.bf16.mxu0 0
        %11166 = vmatpush1.bf16.msra.mxu0 %v8650
        %11167 = vmatprep.subr.bf16.mxu0 0
        %11168 = vmatpush1.bf16.msra.mxu0 %v8651
        %11169 = vmatprep.subr.bf16.mxu0 0
        %11170 = vmatpush1.bf16.msra.mxu0 %v8652
        %11171 = vmatprep.subr.bf16.mxu0 0
        %11172 = vmatpush1.bf16.msra.mxu0 %v8653
        %11173 = vmatprep.subr.bf16.mxu0 0
        %11174 = vmatpush1.bf16.msra.mxu0 %v8654
        %11175 = vmatprep.mubr.bf16.mxu0 %v2102
        %11176 = vmatmul.mubr.bf16.gmra.mrb[0].mxu0 %v2101
        %v11177 = vpop.f32.mrb[0].mxu0
        %v11178 = vadd.f32 %v11138, %v11177
        %v11179 = vpop.f32.mrb[0].mxu0
        %v11180 = vpop.f32.mrb[0].mxu0
        %v11181 = vpop.f32.mrb[0].mxu0
        %11182 = vdwg.mxu0
        %11183 = vmatprep.subr.bf16.mxu0 0
        %11184 = vmatpush1.bf16.msra.mxu0 %v8655
        %11185 = vmatprep.subr.bf16.mxu0 0
        %11186 = vmatpush1.bf16.msra.mxu0 %v8656
        %11187 = vmatprep.subr.bf16.mxu0 0
        %11188 = vmatpush1.bf16.msra.mxu0 %v8657
        %11189 = vmatprep.subr.bf16.mxu0 0
        %11190 = vmatpush1.bf16.msra.mxu0 %v8658
        %11191 = vmatprep.subr.bf16.mxu0 0
        %11192 = vmatpush1.bf16.msra.mxu0 %v8659
        %11193 = vmatprep.subr.bf16.mxu0 0
        %11194 = vmatpush1.bf16.msra.mxu0 %v8660
        %11195 = vmatprep.subr.bf16.mxu0 0
        %11196 = vmatpush1.bf16.msra.mxu0 %v8661
        %11197 = vmatprep.subr.bf16.mxu0 0
        %11198 = vmatpush1.bf16.msra.mxu0 %v8662
        %11199 = vmatprep.subr.bf16.mxu0 0
        %11200 = vmatpush1.bf16.msra.mxu0 %v8663
        %11201 = vmatprep.subr.bf16.mxu0 0
        %11202 = vmatpush1.bf16.msra.mxu0 %v8664
        %11203 = vmatprep.subr.bf16.mxu0 0
        %11204 = vmatpush1.bf16.msra.mxu0 %v8665
        %11205 = vmatprep.subr.bf16.mxu0 0
        %11206 = vmatpush1.bf16.msra.mxu0 %v8666
        %11207 = vmatprep.subr.bf16.mxu0 0
        %11208 = vmatpush1.bf16.msra.mxu0 %v8667
        %11209 = vmatprep.subr.bf16.mxu0 0
        %11210 = vmatpush1.bf16.msra.mxu0 %v8668
        %11211 = vmatprep.subr.bf16.mxu0 0
        %11212 = vmatpush1.bf16.msra.mxu0 %v8669
        %11213 = vmatprep.subr.bf16.mxu0 0
        %11214 = vmatpush1.bf16.msra.mxu0 %v8670
        %11215 = vmatprep.mubr.bf16.mxu0 %v2104
        %11216 = vmatmul.mubr.bf16.gmra.mrb[0].mxu0 %v2103
        %v11217 = vpop.f32.mrb[0].mxu0
        %v11218 = vadd.f32 %v11178, %v11217
        %v11219 = vpop.f32.mrb[0].mxu0
        %v11220 = vpop.f32.mrb[0].mxu0
        %v11221 = vpop.f32.mrb[0].mxu0
        %11222 = vdwg.mxu0
        %11223 = vmatprep.subr.bf16.mxu0 0
        %11224 = vmatpush1.bf16.msra.mxu0 %v8671
        %11225 = vmatprep.subr.bf16.mxu0 0
        %11226 = vmatpush1.bf16.msra.mxu0 %v8672
        %11227 = vmatprep.subr.bf16.mxu0 0
        %11228 = vmatpush1.bf16.msra.mxu0 %v8673
        %11229 = vmatprep.subr.bf16.mxu0 0
        %11230 = vmatpush1.bf16.msra.mxu0 %v8674
        %11231 = vmatprep.subr.bf16.mxu0 0
        %11232 = vmatpush1.bf16.msra.mxu0 %v8675
        %11233 = vmatprep.subr.bf16.mxu0 0
        %11234 = vmatpush1.bf16.msra.mxu0 %v8676
        %11235 = vmatprep.subr.bf16.mxu0 0
        %11236 = vmatpush1.bf16.msra.mxu0 %v8677
        %11237 = vmatprep.subr.bf16.mxu0 0
        %11238 = vmatpush1.bf16.msra.mxu0 %v8678
        %11239 = vmatprep.subr.bf16.mxu0 0
        %11240 = vmatpush1.bf16.msra.mxu0 %v8679
        %11241 = vmatprep.subr.bf16.mxu0 0
        %11242 = vmatpush1.bf16.msra.mxu0 %v8680
        %11243 = vmatprep.subr.bf16.mxu0 0
        %11244 = vmatpush1.bf16.msra.mxu0 %v8681
        %11245 = vmatprep.subr.bf16.mxu0 0
        %11246 = vmatpush1.bf16.msra.mxu0 %v8682
        %11247 = vmatprep.subr.bf16.mxu0 0
        %11248 = vmatpush1.bf16.msra.mxu0 %v8683
        %11249 = vmatprep.subr.bf16.mxu0 0
        %11250 = vmatpush1.bf16.msra.mxu0 %v8684
        %11251 = vmatprep.subr.bf16.mxu0 0
        %11252 = vmatpush1.bf16.msra.mxu0 %v8685
        %11253 = vmatprep.subr.bf16.mxu0 0
        %11254 = vmatpush1.bf16.msra.mxu0 %v8686
        %11255 = vmatprep.mubr.bf16.mxu0 %v2106
        %11256 = vmatmul.mubr.bf16.gmra.mrb[0].mxu0 %v2105
        %v11257 = vpop.f32.mrb[0].mxu0
        %v11258 = vadd.f32 %v11218, %v11257
        %v11259 = vpop.f32.mrb[0].mxu0
        %v11260 = vpop.f32.mrb[0].mxu0
        %v11261 = vpop.f32.mrb[0].mxu0
        %11262 = vdwg.mxu0
        %11263 = vmatprep.subr.bf16.mxu0 0
        %11264 = vmatpush1.bf16.msra.mxu0 %v8687
        %11265 = vmatprep.subr.bf16.mxu0 0
        %11266 = vmatpush1.bf16.msra.mxu0 %v8688
        %11267 = vmatprep.subr.bf16.mxu0 0
        %11268 = vmatpush1.bf16.msra.mxu0 %v8689
        %11269 = vmatprep.subr.bf16.mxu0 0
        %11270 = vmatpush1.bf16.msra.mxu0 %v8690
        %11271 = vmatprep.subr.bf16.mxu0 0
        %11272 = vmatpush1.bf16.msra.mxu0 %v8691
        %11273 = vmatprep.subr.bf16.mxu0 0
        %11274 = vmatpush1.bf16.msra.mxu0 %v8692
        %11275 = vmatprep.subr.bf16.mxu0 0
        %11276 = vmatpush1.bf16.msra.mxu0 %v8693
        %11277 = vmatprep.subr.bf16.mxu0 0
        %11278 = vmatpush1.bf16.msra.mxu0 %v8694
        %11279 = vmatprep.subr.bf16.mxu0 0
        %11280 = vmatpush1.bf16.msra.mxu0 %v8695
        %11281 = vmatprep.subr.bf16.mxu0 0
        %11282 = vmatpush1.bf16.msra.mxu0 %v8696
        %11283 = vmatprep.subr.bf16.mxu0 0
        %11284 = vmatpush1.bf16.msra.mxu0 %v8697
        %11285 = vmatprep.subr.bf16.mxu0 0
        %11286 = vmatpush1.bf16.msra.mxu0 %v8698
        %11287 = vmatprep.subr.bf16.mxu0 0
        %11288 = vmatpush1.bf16.msra.mxu0 %v8699
        %11289 = vmatprep.subr.bf16.mxu0 0
        %11290 = vmatpush1.bf16.msra.mxu0 %v8700
        %11291 = vmatprep.subr.bf16.mxu0 0
        %11292 = vmatpush1.bf16.msra.mxu0 %v8701
        %11293 = vmatprep.subr.bf16.mxu0 0
        %11294 = vmatpush1.bf16.msra.mxu0 %v8702
        %11295 = vmatprep.mubr.bf16.mxu0 %v2108
        %11296 = vmatmul.mubr.bf16.gmra.mrb[0].mxu0 %v2107
        %v11297 = vpop.f32.mrb[0].mxu0
        %v11298 = vadd.f32 %v11258, %v11297
        %v11299 = vpop.f32.mrb[0].mxu0
        %v11300 = vpop.f32.mrb[0].mxu0
        %v11301 = vpop.f32.mrb[0].mxu0
        %11302 = vdwg.mxu0
        %11303 = vmatprep.subr.bf16.mxu0 0
        %11304 = vmatpush1.bf16.msra.mxu0 %v8703
        %11305 = vmatprep.subr.bf16.mxu0 0
        %11306 = vmatpush1.bf16.msra.mxu0 %v8704
        %11307 = vmatprep.subr.bf16.mxu0 0
        %11308 = vmatpush1.bf16.msra.mxu0 %v8705
        %11309 = vmatprep.subr.bf16.mxu0 0
        %11310 = vmatpush1.bf16.msra.mxu0 %v8706
        %11311 = vmatprep.subr.bf16.mxu0 0
        %11312 = vmatpush1.bf16.msra.mxu0 %v8707
        %11313 = vmatprep.subr.bf16.mxu0 0
        %11314 = vmatpush1.bf16.msra.mxu0 %v8708
        %11315 = vmatprep.subr.bf16.mxu0 0
        %11316 = vmatpush1.bf16.msra.mxu0 %v8709
        %11317 = vmatprep.subr.bf16.mxu0 0
        %11318 = vmatpush1.bf16.msra.mxu0 %v8710
        %11319 = vmatprep.subr.bf16.mxu0 0
        %11320 = vmatpush1.bf16.msra.mxu0 %v8711
        %11321 = vmatprep.subr.bf16.mxu0 0
        %11322 = vmatpush1.bf16.msra.mxu0 %v8712
        %11323 = vmatprep.subr.bf16.mxu0 0
        %11324 = vmatpush1.bf16.msra.mxu0 %v8713
        %11325 = vmatprep.subr.bf16.mxu0 0
        %11326 = vmatpush1.bf16.msra.mxu0 %v8714
        %11327 = vmatprep.subr.bf16.mxu0 0
        %11328 = vmatpush1.bf16.msra.mxu0 %v8715
        %11329 = vmatprep.subr.bf16.mxu0 0
        %11330 = vmatpush1.bf16.msra.mxu0 %v8716
        %11331 = vmatprep.subr.bf16.mxu0 0
        %11332 = vmatpush1.bf16.msra.mxu0 %v8717
        %11333 = vmatprep.subr.bf16.mxu0 0
        %11334 = vmatpush1.bf16.msra.mxu0 %v8718
        %11335 = vmatprep.mubr.bf16.mxu0 %v2110
        %11336 = vmatmul.mubr.bf16.gmra.mrb[0].mxu0 %v2109
        %v11337 = vpop.f32.mrb[0].mxu0
        %v11338 = vadd.f32 %v11298, %v11337
        %v11339 = vpop.f32.mrb[0].mxu0
        %v11340 = vpop.f32.mrb[0].mxu0
        %v11341 = vpop.f32.mrb[0].mxu0
        %11342 = vdwg.mxu0
        %11343 = vmatprep.subr.bf16.mxu0 0
        %11344 = vmatpush1.bf16.msra.mxu0 %v8719
        %11345 = vmatprep.subr.bf16.mxu0 0
        %11346 = vmatpush1.bf16.msra.mxu0 %v8720
        %11347 = vmatprep.subr.bf16.mxu0 0
        %11348 = vmatpush1.bf16.msra.mxu0 %v8721
        %11349 = vmatprep.subr.bf16.mxu0 0
        %11350 = vmatpush1.bf16.msra.mxu0 %v8722
        %11351 = vmatprep.subr.bf16.mxu0 0
        %11352 = vmatpush1.bf16.msra.mxu0 %v8723
        %11353 = vmatprep.subr.bf16.mxu0 0
        %11354 = vmatpush1.bf16.msra.mxu0 %v8724
        %11355 = vmatprep.subr.bf16.mxu0 0
        %11356 = vmatpush1.bf16.msra.mxu0 %v8725
        %11357 = vmatprep.subr.bf16.mxu0 0
        %11358 = vmatpush1.bf16.msra.mxu0 %v8726
        %11359 = vmatprep.subr.bf16.mxu0 0
        %11360 = vmatpush1.bf16.msra.mxu0 %v8727
        %11361 = vmatprep.subr.bf16.mxu0 0
        %11362 = vmatpush1.bf16.msra.mxu0 %v8728
        %11363 = vmatprep.subr.bf16.mxu0 0
        %11364 = vmatpush1.bf16.msra.mxu0 %v8729
        %11365 = vmatprep.subr.bf16.mxu0 0
        %11366 = vmatpush1.bf16.msra.mxu0 %v8730
        %11367 = vmatprep.subr.bf16.mxu0 0
        %11368 = vmatpush1.bf16.msra.mxu0 %v8731
        %11369 = vmatprep.subr.bf16.mxu0 0
        %11370 = vmatpush1.bf16.msra.mxu0 %v8732
        %11371 = vmatprep.subr.bf16.mxu0 0
        %11372 = vmatpush1.bf16.msra.mxu0 %v8733
        %11373 = vmatprep.subr.bf16.mxu0 0
        %11374 = vmatpush1.bf16.msra.mxu0 %v8734
        %11375 = vmatprep.mubr.bf16.mxu0 %v2112
        %11376 = vmatmul.mubr.bf16.gmra.mrb[0].mxu0 %v2111
        %v11377 = vpop.f32.mrb[0].mxu0
        %v11378 = vadd.f32 %v11338, %v11377
        %v11379 = vpop.f32.mrb[0].mxu0
        %v11380 = vpop.f32.mrb[0].mxu0
        %v11381 = vpop.f32.mrb[0].mxu0
        %11382 = vdwg.mxu0
        %11383 = vmatprep.subr.bf16.mxu0 0
        %11384 = vmatpush1.bf16.msra.mxu0 %v8735
        %11385 = vmatprep.subr.bf16.mxu0 0
        %11386 = vmatpush1.bf16.msra.mxu0 %v8736
        %11387 = vmatprep.subr.bf16.mxu0 0
        %11388 = vmatpush1.bf16.msra.mxu0 %v8737
        %11389 = vmatprep.subr.bf16.mxu0 0
        %11390 = vmatpush1.bf16.msra.mxu0 %v8738
        %11391 = vmatprep.subr.bf16.mxu0 0
        %11392 = vmatpush1.bf16.msra.mxu0 %v8739
        %11393 = vmatprep.subr.bf16.mxu0 0
        %11394 = vmatpush1.bf16.msra.mxu0 %v8740
        %11395 = vmatprep.subr.bf16.mxu0 0
        %11396 = vmatpush1.bf16.msra.mxu0 %v8741
        %11397 = vmatprep.subr.bf16.mxu0 0
        %11398 = vmatpush1.bf16.msra.mxu0 %v8742
        %11399 = vmatprep.subr.bf16.mxu0 0
        %11400 = vmatpush1.bf16.msra.mxu0 %v8743
        %11401 = vmatprep.subr.bf16.mxu0 0
        %11402 = vmatpush1.bf16.msra.mxu0 %v8744
        %11403 = vmatprep.subr.bf16.mxu0 0
        %11404 = vmatpush1.bf16.msra.mxu0 %v8745
        %11405 = vmatprep.subr.bf16.mxu0 0
        %11406 = vmatpush1.bf16.msra.mxu0 %v8746
        %11407 = vmatprep.subr.bf16.mxu0 0
        %11408 = vmatpush1.bf16.msra.mxu0 %v8747
        %11409 = vmatprep.subr.bf16.mxu0 0
        %11410 = vmatpush1.bf16.msra.mxu0 %v8748
        %11411 = vmatprep.subr.bf16.mxu0 0
        %11412 = vmatpush1.bf16.msra.mxu0 %v8749
        %11413 = vmatprep.subr.bf16.mxu0 0
        %11414 = vmatpush1.bf16.msra.mxu0 %v8750
        %11415 = vmatprep.mubr.bf16.mxu0 %v2114
        %11416 = vmatmul.mubr.bf16.gmra.mrb[0].mxu0 %v2113
        %v11417 = vpop.f32.mrb[0].mxu0
        %v11418 = vadd.f32 %v11378, %v11417
        %v11419 = vpop.f32.mrb[0].mxu0
        %v11420 = vpop.f32.mrb[0].mxu0
        %v11421 = vpop.f32.mrb[0].mxu0
        %11422 = vdwg.mxu0
        %11423 = vmatprep.subr.bf16.mxu0 0
        %11424 = vmatpush1.bf16.msra.mxu0 %v8751
        %11425 = vmatprep.subr.bf16.mxu0 0
        %11426 = vmatpush1.bf16.msra.mxu0 %v8752
        %11427 = vmatprep.subr.bf16.mxu0 0
        %11428 = vmatpush1.bf16.msra.mxu0 %v8753
        %11429 = vmatprep.subr.bf16.mxu0 0
        %11430 = vmatpush1.bf16.msra.mxu0 %v8754
        %11431 = vmatprep.subr.bf16.mxu0 0
        %11432 = vmatpush1.bf16.msra.mxu0 %v8755
        %11433 = vmatprep.subr.bf16.mxu0 0
        %11434 = vmatpush1.bf16.msra.mxu0 %v8756
        %11435 = vmatprep.subr.bf16.mxu0 0
        %11436 = vmatpush1.bf16.msra.mxu0 %v8757
        %11437 = vmatprep.subr.bf16.mxu0 0
        %11438 = vmatpush1.bf16.msra.mxu0 %v8758
        %11439 = vmatprep.subr.bf16.mxu0 0
        %11440 = vmatpush1.bf16.msra.mxu0 %v8759
        %11441 = vmatprep.subr.bf16.mxu0 0
        %11442 = vmatpush1.bf16.msra.mxu0 %v8760
        %11443 = vmatprep.subr.bf16.mxu0 0
        %11444 = vmatpush1.bf16.msra.mxu0 %v8761
        %11445 = vmatprep.subr.bf16.mxu0 0
        %11446 = vmatpush1.bf16.msra.mxu0 %v8762
        %11447 = vmatprep.subr.bf16.mxu0 0
        %11448 = vmatpush1.bf16.msra.mxu0 %v8763
        %11449 = vmatprep.subr.bf16.mxu0 0
        %11450 = vmatpush1.bf16.msra.mxu0 %v8764
        %11451 = vmatprep.subr.bf16.mxu0 0
        %11452 = vmatpush1.bf16.msra.mxu0 %v8765
        %11453 = vmatprep.subr.bf16.mxu0 0
        %11454 = vmatpush1.bf16.msra.mxu0 %v8766
        %11455 = vmatprep.mubr.bf16.mxu0 %v2116
        %11456 = vmatmul.mubr.bf16.gmra.mrb[0].mxu0 %v2115
        %v11457 = vpop.f32.mrb[0].mxu0
        %v11458 = vadd.f32 %v11418, %v11457
        %v11459 = vpop.f32.mrb[0].mxu0
        %v11460 = vpop.f32.mrb[0].mxu0
        %v11461 = vpop.f32.mrb[0].mxu0
        %11462 = vdwg.mxu0
        %11463 = vmatprep.subr.bf16.mxu0 0
        %11464 = vmatpush1.bf16.msra.mxu0 %v8767
        %11465 = vmatprep.subr.bf16.mxu0 0
        %11466 = vmatpush1.bf16.msra.mxu0 %v8768
        %11467 = vmatprep.subr.bf16.mxu0 0
        %11468 = vmatpush1.bf16.msra.mxu0 %v8769
        %11469 = vmatprep.subr.bf16.mxu0 0
        %11470 = vmatpush1.bf16.msra.mxu0 %v8770
        %11471 = vmatprep.subr.bf16.mxu0 0
        %11472 = vmatpush1.bf16.msra.mxu0 %v8771
        %11473 = vmatprep.subr.bf16.mxu0 0
        %11474 = vmatpush1.bf16.msra.mxu0 %v8772
        %11475 = vmatprep.subr.bf16.mxu0 0
        %11476 = vmatpush1.bf16.msra.mxu0 %v8773
        %11477 = vmatprep.subr.bf16.mxu0 0
        %11478 = vmatpush1.bf16.msra.mxu0 %v8774
        %11479 = vmatprep.subr.bf16.mxu0 0
        %11480 = vmatpush1.bf16.msra.mxu0 %v8775
        %11481 = vmatprep.subr.bf16.mxu0 0
        %11482 = vmatpush1.bf16.msra.mxu0 %v8776
        %11483 = vmatprep.subr.bf16.mxu0 0
        %11484 = vmatpush1.bf16.msra.mxu0 %v8777
        %11485 = vmatprep.subr.bf16.mxu0 0
        %11486 = vmatpush1.bf16.msra.mxu0 %v8778
        %11487 = vmatprep.subr.bf16.mxu0 0
        %11488 = vmatpush1.bf16.msra.mxu0 %v8779
        %11489 = vmatprep.subr.bf16.mxu0 0
        %11490 = vmatpush1.bf16.msra.mxu0 %v8780
        %11491 = vmatprep.subr.bf16.mxu0 0
        %11492 = vmatpush1.bf16.msra.mxu0 %v8781
        %11493 = vmatprep.subr.bf16.mxu0 0
        %11494 = vmatpush1.bf16.msra.mxu0 %v8782
        %11495 = vmatprep.mubr.bf16.mxu0 %v2118
        %11496 = vmatmul.mubr.bf16.gmra.mrb[0].mxu0 %v2117
        %v11497 = vpop.f32.mrb[0].mxu0
        %v11498 = vadd.f32 %v11458, %v11497
        %v11499 = vpop.f32.mrb[0].mxu0
        %v11500 = vpop.f32.mrb[0].mxu0
        %v11501 = vpop.f32.mrb[0].mxu0
        %11502 = vdwg.mxu0
        %11503 = vmatprep.subr.bf16.mxu0 0
        %11504 = vmatpush1.bf16.msra.mxu0 %v8783
        %11505 = vmatprep.subr.bf16.mxu0 0
        %11506 = vmatpush1.bf16.msra.mxu0 %v8784
        %11507 = vmatprep.subr.bf16.mxu0 0
        %11508 = vmatpush1.bf16.msra.mxu0 %v8785
        %11509 = vmatprep.subr.bf16.mxu0 0
        %11510 = vmatpush1.bf16.msra.mxu0 %v8786
        %11511 = vmatprep.subr.bf16.mxu0 0
        %11512 = vmatpush1.bf16.msra.mxu0 %v8787
        %11513 = vmatprep.subr.bf16.mxu0 0
        %11514 = vmatpush1.bf16.msra.mxu0 %v8788
        %11515 = vmatprep.subr.bf16.mxu0 0
        %11516 = vmatpush1.bf16.msra.mxu0 %v8789
        %11517 = vmatprep.subr.bf16.mxu0 0
        %11518 = vmatpush1.bf16.msra.mxu0 %v8790
        %11519 = vmatprep.subr.bf16.mxu0 0
        %11520 = vmatpush1.bf16.msra.mxu0 %v8791
        %11521 = vmatprep.subr.bf16.mxu0 0
        %11522 = vmatpush1.bf16.msra.mxu0 %v8792
        %11523 = vmatprep.subr.bf16.mxu0 0
        %11524 = vmatpush1.bf16.msra.mxu0 %v8793
        %11525 = vmatprep.subr.bf16.mxu0 0
        %11526 = vmatpush1.bf16.msra.mxu0 %v8794
        %11527 = vmatprep.subr.bf16.mxu0 0
        %11528 = vmatpush1.bf16.msra.mxu0 %v8795
        %11529 = vmatprep.subr.bf16.mxu0 0
        %11530 = vmatpush1.bf16.msra.mxu0 %v8796
        %11531 = vmatprep.subr.bf16.mxu0 0
        %11532 = vmatpush1.bf16.msra.mxu0 %v8797
        %11533 = vmatprep.subr.bf16.mxu0 0
        %11534 = vmatpush1.bf16.msra.mxu0 %v8798
        %11535 = vmatprep.mubr.bf16.mxu0 %v2120
        %11536 = vmatmul.mubr.bf16.gmra.mrb[0].mxu0 %v2119
        %v11537 = vpop.f32.mrb[0].mxu0
        %v11538 = vadd.f32 %v11498, %v11537
        %v11539 = vpop.f32.mrb[0].mxu0
        %v11540 = vpop.f32.mrb[0].mxu0
        %v11541 = vpop.f32.mrb[0].mxu0
        %11542 = vdwg.mxu0
        %11543 = vmatprep.subr.bf16.mxu0 0
        %11544 = vmatpush1.bf16.msra.mxu0 %v8799
        %11545 = vmatprep.subr.bf16.mxu0 0
        %11546 = vmatpush1.bf16.msra.mxu0 %v8800
        %11547 = vmatprep.subr.bf16.mxu0 0
        %11548 = vmatpush1.bf16.msra.mxu0 %v8801
        %11549 = vmatprep.subr.bf16.mxu0 0
        %11550 = vmatpush1.bf16.msra.mxu0 %v8802
        %11551 = vmatprep.subr.bf16.mxu0 0
        %11552 = vmatpush1.bf16.msra.mxu0 %v8803
        %11553 = vmatprep.subr.bf16.mxu0 0
        %11554 = vmatpush1.bf16.msra.mxu0 %v8804
        %11555 = vmatprep.subr.bf16.mxu0 0
        %11556 = vmatpush1.bf16.msra.mxu0 %v8805
        %11557 = vmatprep.subr.bf16.mxu0 0
        %11558 = vmatpush1.bf16.msra.mxu0 %v8806
        %11559 = vmatprep.subr.bf16.mxu0 0
        %11560 = vmatpush1.bf16.msra.mxu0 %v8807
        %11561 = vmatprep.subr.bf16.mxu0 0
        %11562 = vmatpush1.bf16.msra.mxu0 %v8808
        %11563 = vmatprep.subr.bf16.mxu0 0
        %11564 = vmatpush1.bf16.msra.mxu0 %v8809
        %11565 = vmatprep.subr.bf16.mxu0 0
        %11566 = vmatpush1.bf16.msra.mxu0 %v8810
        %11567 = vmatprep.subr.bf16.mxu0 0
        %11568 = vmatpush1.bf16.msra.mxu0 %v8811
        %11569 = vmatprep.subr.bf16.mxu0 0
        %11570 = vmatpush1.bf16.msra.mxu0 %v8812
        %11571 = vmatprep.subr.bf16.mxu0 0
        %11572 = vmatpush1.bf16.msra.mxu0 %v8813
        %11573 = vmatprep.subr.bf16.mxu0 0
        %11574 = vmatpush1.bf16.msra.mxu0 %v8814
        %11575 = vmatprep.mubr.bf16.mxu0 %v2122
        %11576 = vmatmul.mubr.bf16.gmra.mrb[0].mxu0 %v2121
        %v11577 = vpop.f32.mrb[0].mxu0
        %v11578 = vadd.f32 %v11538, %v11577
        %v11579 = vpop.f32.mrb[0].mxu0
        %v11580 = vpop.f32.mrb[0].mxu0
        %v11581 = vpop.f32.mrb[0].mxu0
        %11582 = vdwg.mxu0
        %11583 = vmatprep.subr.bf16.mxu0 0
        %11584 = vmatpush1.bf16.msra.mxu0 %v8815
        %11585 = vmatprep.subr.bf16.mxu0 0
        %11586 = vmatpush1.bf16.msra.mxu0 %v8816
        %11587 = vmatprep.subr.bf16.mxu0 0
        %11588 = vmatpush1.bf16.msra.mxu0 %v8817
        %11589 = vmatprep.subr.bf16.mxu0 0
        %11590 = vmatpush1.bf16.msra.mxu0 %v8818
        %11591 = vmatprep.subr.bf16.mxu0 0
        %11592 = vmatpush1.bf16.msra.mxu0 %v8819
        %11593 = vmatprep.subr.bf16.mxu0 0
        %11594 = vmatpush1.bf16.msra.mxu0 %v8820
        %11595 = vmatprep.subr.bf16.mxu0 0
        %11596 = vmatpush1.bf16.msra.mxu0 %v8821
        %11597 = vmatprep.subr.bf16.mxu0 0
        %11598 = vmatpush1.bf16.msra.mxu0 %v8822
        %11599 = vmatprep.subr.bf16.mxu0 0
        %11600 = vmatpush1.bf16.msra.mxu0 %v8823
        %11601 = vmatprep.subr.bf16.mxu0 0
        %11602 = vmatpush1.bf16.msra.mxu0 %v8824
        %11603 = vmatprep.subr.bf16.mxu0 0
        %11604 = vmatpush1.bf16.msra.mxu0 %v8825
        %11605 = vmatprep.subr.bf16.mxu0 0
        %11606 = vmatpush1.bf16.msra.mxu0 %v8826
        %11607 = vmatprep.subr.bf16.mxu0 0
        %11608 = vmatpush1.bf16.msra.mxu0 %v8827
        %11609 = vmatprep.subr.bf16.mxu0 0
        %11610 = vmatpush1.bf16.msra.mxu0 %v8828
        %11611 = vmatprep.subr.bf16.mxu0 0
        %11612 = vmatpush1.bf16.msra.mxu0 %v8829
        %11613 = vmatprep.subr.bf16.mxu0 0
        %11614 = vmatpush1.bf16.msra.mxu0 %v8830
        %11615 = vmatprep.mubr.bf16.mxu0 %v2124
        %11616 = vmatmul.mubr.bf16.gmra.mrb[0].mxu0 %v2123
        %v11617 = vpop.f32.mrb[0].mxu0
        %v11618 = vadd.f32 %v11578, %v11617
        %v11619 = vpop.f32.mrb[0].mxu0
        %v11620 = vpop.f32.mrb[0].mxu0
        %v11621 = vpop.f32.mrb[0].mxu0
        %11622 = vdwg.mxu0
        %11623 = vmatprep.subr.bf16.mxu0 0
        %11624 = vmatpush1.bf16.msra.mxu0 %v8831
        %11625 = vmatprep.subr.bf16.mxu0 0
        %11626 = vmatpush1.bf16.msra.mxu0 %v8832
        %11627 = vmatprep.subr.bf16.mxu0 0
        %11628 = vmatpush1.bf16.msra.mxu0 %v8833
        %11629 = vmatprep.subr.bf16.mxu0 0
        %11630 = vmatpush1.bf16.msra.mxu0 %v8834
        %11631 = vmatprep.subr.bf16.mxu0 0
        %11632 = vmatpush1.bf16.msra.mxu0 %v8835
        %11633 = vmatprep.subr.bf16.mxu0 0
        %11634 = vmatpush1.bf16.msra.mxu0 %v8836
        %11635 = vmatprep.subr.bf16.mxu0 0
        %11636 = vmatpush1.bf16.msra.mxu0 %v8837
        %11637 = vmatprep.subr.bf16.mxu0 0
        %11638 = vmatpush1.bf16.msra.mxu0 %v8838
        %11639 = vmatprep.subr.bf16.mxu0 0
        %11640 = vmatpush1.bf16.msra.mxu0 %v8839
        %11641 = vmatprep.subr.bf16.mxu0 0
        %11642 = vmatpush1.bf16.msra.mxu0 %v8840
        %11643 = vmatprep.subr.bf16.mxu0 0
        %11644 = vmatpush1.bf16.msra.mxu0 %v8841
        %11645 = vmatprep.subr.bf16.mxu0 0
        %11646 = vmatpush1.bf16.msra.mxu0 %v8842
        %11647 = vmatprep.subr.bf16.mxu0 0
        %11648 = vmatpush1.bf16.msra.mxu0 %v8843
        %11649 = vmatprep.subr.bf16.mxu0 0
        %11650 = vmatpush1.bf16.msra.mxu0 %v8844
        %11651 = vmatprep.subr.bf16.mxu0 0
        %11652 = vmatpush1.bf16.msra.mxu0 %v8845
        %11653 = vmatprep.subr.bf16.mxu0 0
        %11654 = vmatpush1.bf16.msra.mxu0 %v8846
        %11655 = vmatprep.mubr.bf16.mxu0 %v2126
        %11656 = vmatmul.mubr.bf16.gmra.mrb[0].mxu0 %v2125
        %v11657 = vpop.f32.mrb[0].mxu0
        %v11658 = vadd.f32 %v11618, %v11657
        %v11659 = vpop.f32.mrb[0].mxu0
        %v11660 = vpop.f32.mrb[0].mxu0
        %v11661 = vpop.f32.mrb[0].mxu0
        %11662 = vdwg.mxu0
        %11663 = vmatprep.subr.bf16.mxu0 0
        %11664 = vmatpush1.bf16.msra.mxu0 %v8847
        %11665 = vmatprep.subr.bf16.mxu0 0
        %11666 = vmatpush1.bf16.msra.mxu0 %v8848
        %11667 = vmatprep.subr.bf16.mxu0 0
        %11668 = vmatpush1.bf16.msra.mxu0 %v8849
        %11669 = vmatprep.subr.bf16.mxu0 0
        %11670 = vmatpush1.bf16.msra.mxu0 %v8850
        %11671 = vmatprep.subr.bf16.mxu0 0
        %11672 = vmatpush1.bf16.msra.mxu0 %v8851
        %11673 = vmatprep.subr.bf16.mxu0 0
        %11674 = vmatpush1.bf16.msra.mxu0 %v8852
        %11675 = vmatprep.subr.bf16.mxu0 0
        %11676 = vmatpush1.bf16.msra.mxu0 %v8853
        %11677 = vmatprep.subr.bf16.mxu0 0
        %11678 = vmatpush1.bf16.msra.mxu0 %v8854
        %11679 = vmatprep.subr.bf16.mxu0 0
        %11680 = vmatpush1.bf16.msra.mxu0 %v8855
        %11681 = vmatprep.subr.bf16.mxu0 0
        %11682 = vmatpush1.bf16.msra.mxu0 %v8856
        %11683 = vmatprep.subr.bf16.mxu0 0
        %11684 = vmatpush1.bf16.msra.mxu0 %v8857
        %11685 = vmatprep.subr.bf16.mxu0 0
        %11686 = vmatpush1.bf16.msra.mxu0 %v8858
        %11687 = vmatprep.subr.bf16.mxu0 0
        %11688 = vmatpush1.bf16.msra.mxu0 %v8859
        %11689 = vmatprep.subr.bf16.mxu0 0
        %11690 = vmatpush1.bf16.msra.mxu0 %v8860
        %11691 = vmatprep.subr.bf16.mxu0 0
        %11692 = vmatpush1.bf16.msra.mxu0 %v8861
        %11693 = vmatprep.subr.bf16.mxu0 0
        %11694 = vmatpush1.bf16.msra.mxu0 %v8862
        %11695 = vmatprep.mubr.bf16.mxu0 %v2128
        %11696 = vmatmul.mubr.bf16.gmra.mrb[0].mxu0 %v2127
        %v11697 = vpop.f32.mrb[0].mxu0
        %v11698 = vadd.f32 %v11658, %v11697
        %v11699 = vpop.f32.mrb[0].mxu0
        %v11700 = vpop.f32.mrb[0].mxu0
        %v11701 = vpop.f32.mrb[0].mxu0
        %11702 = vdwg.mxu0
        %11703 = vmatprep.subr.bf16.mxu0 0
        %11704 = vmatpush1.bf16.msra.mxu0 %v8863
        %11705 = vmatprep.subr.bf16.mxu0 0
        %11706 = vmatpush1.bf16.msra.mxu0 %v8864
        %11707 = vmatprep.subr.bf16.mxu0 0
        %11708 = vmatpush1.bf16.msra.mxu0 %v8865
        %11709 = vmatprep.subr.bf16.mxu0 0
        %11710 = vmatpush1.bf16.msra.mxu0 %v8866
        %11711 = vmatprep.subr.bf16.mxu0 0
        %11712 = vmatpush1.bf16.msra.mxu0 %v8867
        %11713 = vmatprep.subr.bf16.mxu0 0
        %11714 = vmatpush1.bf16.msra.mxu0 %v8868
        %11715 = vmatprep.subr.bf16.mxu0 0
        %11716 = vmatpush1.bf16.msra.mxu0 %v8869
        %11717 = vmatprep.subr.bf16.mxu0 0
        %11718 = vmatpush1.bf16.msra.mxu0 %v8870
        %11719 = vmatprep.subr.bf16.mxu0 0
        %11720 = vmatpush1.bf16.msra.mxu0 %v8871
        %11721 = vmatprep.subr.bf16.mxu0 0
        %11722 = vmatpush1.bf16.msra.mxu0 %v8872
        %11723 = vmatprep.subr.bf16.mxu0 0
        %11724 = vmatpush1.bf16.msra.mxu0 %v8873
        %11725 = vmatprep.subr.bf16.mxu0 0
        %11726 = vmatpush1.bf16.msra.mxu0 %v8874
        %11727 = vmatprep.subr.bf16.mxu0 0
        %11728 = vmatpush1.bf16.msra.mxu0 %v8875
        %11729 = vmatprep.subr.bf16.mxu0 0
        %11730 = vmatpush1.bf16.msra.mxu0 %v8876
        %11731 = vmatprep.subr.bf16.mxu0 0
        %11732 = vmatpush1.bf16.msra.mxu0 %v8877
        %11733 = vmatprep.subr.bf16.mxu0 0
        %11734 = vmatpush1.bf16.msra.mxu0 %v8878
        %11735 = vmatprep.mubr.bf16.mxu0 %v2130
        %11736 = vmatmul.mubr.bf16.gmra.mrb[0].mxu0 %v2129
        %v11737 = vpop.f32.mrb[0].mxu0
        %v11738 = vadd.f32 %v11698, %v11737
        %v11739 = vpop.f32.mrb[0].mxu0
        %v11740 = vpop.f32.mrb[0].mxu0
        %v11741 = vpop.f32.mrb[0].mxu0
        %11742 = vdwg.mxu0
        %11743 = vmatprep.subr.bf16.mxu0 0
        %11744 = vmatpush1.bf16.msra.mxu0 %v8879
        %11745 = vmatprep.subr.bf16.mxu0 0
        %11746 = vmatpush1.bf16.msra.mxu0 %v8880
        %11747 = vmatprep.subr.bf16.mxu0 0
        %11748 = vmatpush1.bf16.msra.mxu0 %v8881
        %11749 = vmatprep.subr.bf16.mxu0 0
        %11750 = vmatpush1.bf16.msra.mxu0 %v8882
        %11751 = vmatprep.subr.bf16.mxu0 0
        %11752 = vmatpush1.bf16.msra.mxu0 %v8883
        %11753 = vmatprep.subr.bf16.mxu0 0
        %11754 = vmatpush1.bf16.msra.mxu0 %v8884
        %11755 = vmatprep.subr.bf16.mxu0 0
        %11756 = vmatpush1.bf16.msra.mxu0 %v8885
        %11757 = vmatprep.subr.bf16.mxu0 0
        %11758 = vmatpush1.bf16.msra.mxu0 %v8886
        %11759 = vmatprep.subr.bf16.mxu0 0
        %11760 = vmatpush1.bf16.msra.mxu0 %v8887
        %11761 = vmatprep.subr.bf16.mxu0 0
        %11762 = vmatpush1.bf16.msra.mxu0 %v8888
        %11763 = vmatprep.subr.bf16.mxu0 0
        %11764 = vmatpush1.bf16.msra.mxu0 %v8889
        %11765 = vmatprep.subr.bf16.mxu0 0
        %11766 = vmatpush1.bf16.msra.mxu0 %v8890
        %11767 = vmatprep.subr.bf16.mxu0 0
        %11768 = vmatpush1.bf16.msra.mxu0 %v8891
        %11769 = vmatprep.subr.bf16.mxu0 0
        %11770 = vmatpush1.bf16.msra.mxu0 %v8892
        %11771 = vmatprep.subr.bf16.mxu0 0
        %11772 = vmatpush1.bf16.msra.mxu0 %v8893
        %11773 = vmatprep.subr.bf16.mxu0 0
        %11774 = vmatpush1.bf16.msra.mxu0 %v8894
        %11775 = vmatprep.mubr.bf16.mxu0 %v2132
        %11776 = vmatmul.mubr.bf16.gmra.mrb[0].mxu0 %v2131
        %v11777 = vpop.f32.mrb[0].mxu0
        %v11778 = vadd.f32 %v11738, %v11777
        %v11779 = vpop.f32.mrb[0].mxu0
        %v11780 = vpop.f32.mrb[0].mxu0
        %v11781 = vpop.f32.mrb[0].mxu0
        %11782 = vdwg.mxu0
        %11783 = vmatprep.subr.bf16.mxu0 0
        %11784 = vmatpush1.bf16.msra.mxu0 %v8895
        %11785 = vmatprep.subr.bf16.mxu0 0
        %11786 = vmatpush1.bf16.msra.mxu0 %v8896
        %11787 = vmatprep.subr.bf16.mxu0 0
        %11788 = vmatpush1.bf16.msra.mxu0 %v8897
        %11789 = vmatprep.subr.bf16.mxu0 0
        %11790 = vmatpush1.bf16.msra.mxu0 %v8898
        %11791 = vmatprep.subr.bf16.mxu0 0
        %11792 = vmatpush1.bf16.msra.mxu0 %v8899
        %11793 = vmatprep.subr.bf16.mxu0 0
        %11794 = vmatpush1.bf16.msra.mxu0 %v8900
        %11795 = vmatprep.subr.bf16.mxu0 0
        %11796 = vmatpush1.bf16.msra.mxu0 %v8901
        %11797 = vmatprep.subr.bf16.mxu0 0
        %11798 = vmatpush1.bf16.msra.mxu0 %v8902
        %11799 = vmatprep.subr.bf16.mxu0 0
        %11800 = vmatpush1.bf16.msra.mxu0 %v8903
        %11801 = vmatprep.subr.bf16.mxu0 0
        %11802 = vmatpush1.bf16.msra.mxu0 %v8904
        %11803 = vmatprep.subr.bf16.mxu0 0
        %11804 = vmatpush1.bf16.msra.mxu0 %v8905
        %11805 = vmatprep.subr.bf16.mxu0 0
        %11806 = vmatpush1.bf16.msra.mxu0 %v8906
        %11807 = vmatprep.subr.bf16.mxu0 0
        %11808 = vmatpush1.bf16.msra.mxu0 %v8907
        %11809 = vmatprep.subr.bf16.mxu0 0
        %11810 = vmatpush1.bf16.msra.mxu0 %v8908
        %11811 = vmatprep.subr.bf16.mxu0 0
        %11812 = vmatpush1.bf16.msra.mxu0 %v8909
        %11813 = vmatprep.subr.bf16.mxu0 0
        %11814 = vmatpush1.bf16.msra.mxu0 %v8910
        %11815 = vmatprep.mubr.bf16.mxu0 %v2134
        %11816 = vmatmul.mubr.bf16.gmra.mrb[0].mxu0 %v2133
        %v11817 = vpop.f32.mrb[0].mxu0
        %v11818 = vadd.f32 %v11778, %v11817
        %v11819 = vpop.f32.mrb[0].mxu0
        %v11820 = vpop.f32.mrb[0].mxu0
        %v11821 = vpop.f32.mrb[0].mxu0
        %11822 = vdwg.mxu0
        %11823 = vmatprep.subr.bf16.mxu0 0
        %11824 = vmatpush1.bf16.msra.mxu0 %v8911
        %11825 = vmatprep.subr.bf16.mxu0 0
        %11826 = vmatpush1.bf16.msra.mxu0 %v8912
        %11827 = vmatprep.subr.bf16.mxu0 0
        %11828 = vmatpush1.bf16.msra.mxu0 %v8913
        %11829 = vmatprep.subr.bf16.mxu0 0
        %11830 = vmatpush1.bf16.msra.mxu0 %v8914
        %11831 = vmatprep.subr.bf16.mxu0 0
        %11832 = vmatpush1.bf16.msra.mxu0 %v8915
        %11833 = vmatprep.subr.bf16.mxu0 0
        %11834 = vmatpush1.bf16.msra.mxu0 %v8916
        %11835 = vmatprep.subr.bf16.mxu0 0
        %11836 = vmatpush1.bf16.msra.mxu0 %v8917
        %11837 = vmatprep.subr.bf16.mxu0 0
        %11838 = vmatpush1.bf16.msra.mxu0 %v8918
        %11839 = vmatprep.subr.bf16.mxu0 0
        %11840 = vmatpush1.bf16.msra.mxu0 %v8919
        %11841 = vmatprep.subr.bf16.mxu0 0
        %11842 = vmatpush1.bf16.msra.mxu0 %v8920
        %11843 = vmatprep.subr.bf16.mxu0 0
        %11844 = vmatpush1.bf16.msra.mxu0 %v8921
        %11845 = vmatprep.subr.bf16.mxu0 0
        %11846 = vmatpush1.bf16.msra.mxu0 %v8922
        %11847 = vmatprep.subr.bf16.mxu0 0
        %11848 = vmatpush1.bf16.msra.mxu0 %v8923
        %11849 = vmatprep.subr.bf16.mxu0 0
        %11850 = vmatpush1.bf16.msra.mxu0 %v8924
        %11851 = vmatprep.subr.bf16.mxu0 0
        %11852 = vmatpush1.bf16.msra.mxu0 %v8925
        %11853 = vmatprep.subr.bf16.mxu0 0
        %11854 = vmatpush1.bf16.msra.mxu0 %v8926
        %11855 = vmatprep.mubr.bf16.mxu0 %v2136
        %11856 = vmatmul.mubr.bf16.gmra.mrb[0].mxu0 %v2135
        %v11857 = vpop.f32.mrb[0].mxu0
        %v11858 = vadd.f32 %v11818, %v11857
        %v11859 = vpop.f32.mrb[0].mxu0
        %v11860 = vpop.f32.mrb[0].mxu0
        %v11861 = vpop.f32.mrb[0].mxu0
        %11862 = vdwg.mxu0
        %11863 = vmatprep.subr.bf16.mxu0 0
        %11864 = vmatpush1.bf16.msra.mxu0 %v8927
        %11865 = vmatprep.subr.bf16.mxu0 0
        %11866 = vmatpush1.bf16.msra.mxu0 %v8928
        %11867 = vmatprep.subr.bf16.mxu0 0
        %11868 = vmatpush1.bf16.msra.mxu0 %v8929
        %11869 = vmatprep.subr.bf16.mxu0 0
        %11870 = vmatpush1.bf16.msra.mxu0 %v8930
        %11871 = vmatprep.subr.bf16.mxu0 0
        %11872 = vmatpush1.bf16.msra.mxu0 %v8931
        %11873 = vmatprep.subr.bf16.mxu0 0
        %11874 = vmatpush1.bf16.msra.mxu0 %v8932
        %11875 = vmatprep.subr.bf16.mxu0 0
        %11876 = vmatpush1.bf16.msra.mxu0 %v8933
        %11877 = vmatprep.subr.bf16.mxu0 0
        %11878 = vmatpush1.bf16.msra.mxu0 %v8934
        %11879 = vmatprep.subr.bf16.mxu0 0
        %11880 = vmatpush1.bf16.msra.mxu0 %v8935
        %11881 = vmatprep.subr.bf16.mxu0 0
        %11882 = vmatpush1.bf16.msra.mxu0 %v8936
        %11883 = vmatprep.subr.bf16.mxu0 0
        %11884 = vmatpush1.bf16.msra.mxu0 %v8937
        %11885 = vmatprep.subr.bf16.mxu0 0
        %11886 = vmatpush1.bf16.msra.mxu0 %v8938
        %11887 = vmatprep.subr.bf16.mxu0 0
        %11888 = vmatpush1.bf16.msra.mxu0 %v8939
        %11889 = vmatprep.subr.bf16.mxu0 0
        %11890 = vmatpush1.bf16.msra.mxu0 %v8940
        %11891 = vmatprep.subr.bf16.mxu0 0
        %11892 = vmatpush1.bf16.msra.mxu0 %v8941
        %11893 = vmatprep.subr.bf16.mxu0 0
        %11894 = vmatpush1.bf16.msra.mxu0 %v8942
        %11895 = vmatprep.mubr.bf16.mxu0 %v2138
        %11896 = vmatmul.mubr.bf16.gmra.mrb[0].mxu0 %v2137
        %v11897 = vpop.f32.mrb[0].mxu0
        %v11898 = vadd.f32 %v11858, %v11897
        %v11899 = vpop.f32.mrb[0].mxu0
        %v11900 = vpop.f32.mrb[0].mxu0
        %v11901 = vpop.f32.mrb[0].mxu0
        %11902 = vdwg.mxu0
        %11903 = vmatprep.subr.bf16.mxu0 0
        %11904 = vmatpush1.bf16.msra.mxu0 %v8943
        %11905 = vmatprep.subr.bf16.mxu0 0
        %11906 = vmatpush1.bf16.msra.mxu0 %v8944
        %11907 = vmatprep.subr.bf16.mxu0 0
        %11908 = vmatpush1.bf16.msra.mxu0 %v8945
        %11909 = vmatprep.subr.bf16.mxu0 0
        %11910 = vmatpush1.bf16.msra.mxu0 %v8946
        %11911 = vmatprep.subr.bf16.mxu0 0
        %11912 = vmatpush1.bf16.msra.mxu0 %v8947
        %11913 = vmatprep.subr.bf16.mxu0 0
        %11914 = vmatpush1.bf16.msra.mxu0 %v8948
        %11915 = vmatprep.subr.bf16.mxu0 0
        %11916 = vmatpush1.bf16.msra.mxu0 %v8949
        %11917 = vmatprep.subr.bf16.mxu0 0
        %11918 = vmatpush1.bf16.msra.mxu0 %v8950
        %11919 = vmatprep.subr.bf16.mxu0 0
        %11920 = vmatpush1.bf16.msra.mxu0 %v8951
        %11921 = vmatprep.subr.bf16.mxu0 0
        %11922 = vmatpush1.bf16.msra.mxu0 %v8952
        %11923 = vmatprep.subr.bf16.mxu0 0
        %11924 = vmatpush1.bf16.msra.mxu0 %v8953
        %11925 = vmatprep.subr.bf16.mxu0 0
        %11926 = vmatpush1.bf16.msra.mxu0 %v8954
        %11927 = vmatprep.subr.bf16.mxu0 0
        %11928 = vmatpush1.bf16.msra.mxu0 %v8955
        %11929 = vmatprep.subr.bf16.mxu0 0
        %11930 = vmatpush1.bf16.msra.mxu0 %v8956
        %11931 = vmatprep.subr.bf16.mxu0 0
        %11932 = vmatpush1.bf16.msra.mxu0 %v8957
        %11933 = vmatprep.subr.bf16.mxu0 0
        %11934 = vmatpush1.bf16.msra.mxu0 %v8958
        %11935 = vmatprep.mubr.bf16.mxu0 %v2140
        %11936 = vmatmul.mubr.bf16.gmra.mrb[0].mxu0 %v2139
        %v11937 = vpop.f32.mrb[0].mxu0
        %v11938 = vadd.f32 %v11898, %v11937
        %v11939 = vpop.f32.mrb[0].mxu0
        %v11940 = vpop.f32.mrb[0].mxu0
        %v11941 = vpop.f32.mrb[0].mxu0
        %11942 = vdwg.mxu0
        %11943 = vmatprep.subr.bf16.mxu0 0
        %11944 = vmatpush1.bf16.msra.mxu0 %v8959
        %11945 = vmatprep.subr.bf16.mxu0 0
        %11946 = vmatpush1.bf16.msra.mxu0 %v8960
        %11947 = vmatprep.subr.bf16.mxu0 0
        %11948 = vmatpush1.bf16.msra.mxu0 %v8961
        %11949 = vmatprep.subr.bf16.mxu0 0
        %11950 = vmatpush1.bf16.msra.mxu0 %v8962
        %11951 = vmatprep.subr.bf16.mxu0 0
        %11952 = vmatpush1.bf16.msra.mxu0 %v8963
        %11953 = vmatprep.subr.bf16.mxu0 0
        %11954 = vmatpush1.bf16.msra.mxu0 %v8964
        %11955 = vmatprep.subr.bf16.mxu0 0
        %11956 = vmatpush1.bf16.msra.mxu0 %v8965
        %11957 = vmatprep.subr.bf16.mxu0 0
        %11958 = vmatpush1.bf16.msra.mxu0 %v8966
        %11959 = vmatprep.subr.bf16.mxu0 0
        %11960 = vmatpush1.bf16.msra.mxu0 %v8967
        %11961 = vmatprep.subr.bf16.mxu0 0
        %11962 = vmatpush1.bf16.msra.mxu0 %v8968
        %11963 = vmatprep.subr.bf16.mxu0 0
        %11964 = vmatpush1.bf16.msra.mxu0 %v8969
        %11965 = vmatprep.subr.bf16.mxu0 0
        %11966 = vmatpush1.bf16.msra.mxu0 %v8970
        %11967 = vmatprep.subr.bf16.mxu0 0
        %11968 = vmatpush1.bf16.msra.mxu0 %v8971
        %11969 = vmatprep.subr.bf16.mxu0 0
        %11970 = vmatpush1.bf16.msra.mxu0 %v8972
        %11971 = vmatprep.subr.bf16.mxu0 0
        %11972 = vmatpush1.bf16.msra.mxu0 %v8973
        %11973 = vmatprep.subr.bf16.mxu0 0
        %11974 = vmatpush1.bf16.msra.mxu0 %v8974
        %11975 = vmatprep.mubr.bf16.mxu0 %v2142
        %11976 = vmatmul.mubr.bf16.gmra.mrb[0].mxu0 %v2141
        %v11977 = vpop.f32.mrb[0].mxu0
        %v11978 = vadd.f32 %v11938, %v11977
        %v11979 = vpop.f32.mrb[0].mxu0
        %v11980 = vpop.f32.mrb[0].mxu0
        %v11981 = vpop.f32.mrb[0].mxu0
        %11982 = vdwg.mxu0
        %11983 = vmatprep.subr.bf16.mxu0 0
        %11984 = vmatpush1.bf16.msra.mxu0 %v8975
        %11985 = vmatprep.subr.bf16.mxu0 0
        %11986 = vmatpush1.bf16.msra.mxu0 %v8976
        %11987 = vmatprep.subr.bf16.mxu0 0
        %11988 = vmatpush1.bf16.msra.mxu0 %v8977
        %11989 = vmatprep.subr.bf16.mxu0 0
        %11990 = vmatpush1.bf16.msra.mxu0 %v8978
        %11991 = vmatprep.subr.bf16.mxu0 0
        %11992 = vmatpush1.bf16.msra.mxu0 %v8979
        %11993 = vmatprep.subr.bf16.mxu0 0
        %11994 = vmatpush1.bf16.msra.mxu0 %v8980
        %11995 = vmatprep.subr.bf16.mxu0 0
        %11996 = vmatpush1.bf16.msra.mxu0 %v8981
        %11997 = vmatprep.subr.bf16.mxu0 0
        %11998 = vmatpush1.bf16.msra.mxu0 %v8982
        %11999 = vmatprep.subr.bf16.mxu0 0
        %12000 = vmatpush1.bf16.msra.mxu0 %v8983
        %12001 = vmatprep.subr.bf16.mxu0 0
        %12002 = vmatpush1.bf16.msra.mxu0 %v8984
        %12003 = vmatprep.subr.bf16.mxu0 0
        %12004 = vmatpush1.bf16.msra.mxu0 %v8985
        %12005 = vmatprep.subr.bf16.mxu0 0
        %12006 = vmatpush1.bf16.msra.mxu0 %v8986
        %12007 = vmatprep.subr.bf16.mxu0 0
        %12008 = vmatpush1.bf16.msra.mxu0 %v8987
        %12009 = vmatprep.subr.bf16.mxu0 0
        %12010 = vmatpush1.bf16.msra.mxu0 %v8988
        %12011 = vmatprep.subr.bf16.mxu0 0
        %12012 = vmatpush1.bf16.msra.mxu0 %v8989
        %12013 = vmatprep.subr.bf16.mxu0 0
        %12014 = vmatpush1.bf16.msra.mxu0 %v8990
        %12015 = vmatprep.mubr.bf16.mxu0 %v2144
        %12016 = vmatmul.mubr.bf16.gmra.mrb[0].mxu0 %v2143
        %v12017 = vpop.f32.mrb[0].mxu0
        %v12018 = vadd.f32 %v11978, %v12017
        %v12019 = vpop.f32.mrb[0].mxu0
        %v12020 = vpop.f32.mrb[0].mxu0
        %v12021 = vpop.f32.mrb[0].mxu0
        %12022 = vdwg.mxu0
        %12023 = vmatprep.subr.bf16.mxu0 0
        %12024 = vmatpush1.bf16.msra.mxu0 %v8991
        %12025 = vmatprep.subr.bf16.mxu0 0
        %12026 = vmatpush1.bf16.msra.mxu0 %v8992
        %12027 = vmatprep.subr.bf16.mxu0 0
        %12028 = vmatpush1.bf16.msra.mxu0 %v8993
        %12029 = vmatprep.subr.bf16.mxu0 0
        %12030 = vmatpush1.bf16.msra.mxu0 %v8994
        %12031 = vmatprep.subr.bf16.mxu0 0
        %12032 = vmatpush1.bf16.msra.mxu0 %v8995
        %12033 = vmatprep.subr.bf16.mxu0 0
        %12034 = vmatpush1.bf16.msra.mxu0 %v8996
        %12035 = vmatprep.subr.bf16.mxu0 0
        %12036 = vmatpush1.bf16.msra.mxu0 %v8997
        %12037 = vmatprep.subr.bf16.mxu0 0
        %12038 = vmatpush1.bf16.msra.mxu0 %v8998
        %12039 = vmatprep.subr.bf16.mxu0 0
        %12040 = vmatpush1.bf16.msra.mxu0 %v8999
        %12041 = vmatprep.subr.bf16.mxu0 0
        %12042 = vmatpush1.bf16.msra.mxu0 %v9000
        %12043 = vmatprep.subr.bf16.mxu0 0
        %12044 = vmatpush1.bf16.msra.mxu0 %v9001
        %12045 = vmatprep.subr.bf16.mxu0 0
        %12046 = vmatpush1.bf16.msra.mxu0 %v9002
        %12047 = vmatprep.subr.bf16.mxu0 0
        %12048 = vmatpush1.bf16.msra.mxu0 %v9003
        %12049 = vmatprep.subr.bf16.mxu0 0
        %12050 = vmatpush1.bf16.msra.mxu0 %v9004
        %12051 = vmatprep.subr.bf16.mxu0 0
        %12052 = vmatpush1.bf16.msra.mxu0 %v9005
        %12053 = vmatprep.subr.bf16.mxu0 0
        %12054 = vmatpush1.bf16.msra.mxu0 %v9006
        %12055 = vmatprep.mubr.bf16.mxu0 %v2146
        %12056 = vmatmul.mubr.bf16.gmra.mrb[0].mxu0 %v2145
        %v12057 = vpop.f32.mrb[0].mxu0
        %v12058 = vadd.f32 %v12018, %v12057
        %v12059 = vpop.f32.mrb[0].mxu0
        %v12060 = vpop.f32.mrb[0].mxu0
        %v12061 = vpop.f32.mrb[0].mxu0
        %12062 = vdwg.mxu0
        %12063 = vmatprep.subr.bf16.mxu0 0
        %12064 = vmatpush1.bf16.msra.mxu0 %v9007
        %12065 = vmatprep.subr.bf16.mxu0 0
        %12066 = vmatpush1.bf16.msra.mxu0 %v9008
        %12067 = vmatprep.subr.bf16.mxu0 0
        %12068 = vmatpush1.bf16.msra.mxu0 %v9009
        %12069 = vmatprep.subr.bf16.mxu0 0
        %12070 = vmatpush1.bf16.msra.mxu0 %v9010
        %12071 = vmatprep.subr.bf16.mxu0 0
        %12072 = vmatpush1.bf16.msra.mxu0 %v9011
        %12073 = vmatprep.subr.bf16.mxu0 0
        %12074 = vmatpush1.bf16.msra.mxu0 %v9012
        %12075 = vmatprep.subr.bf16.mxu0 0
        %12076 = vmatpush1.bf16.msra.mxu0 %v9013
        %12077 = vmatprep.subr.bf16.mxu0 0
        %12078 = vmatpush1.bf16.msra.mxu0 %v9014
        %12079 = vmatprep.subr.bf16.mxu0 0
        %12080 = vmatpush1.bf16.msra.mxu0 %v9015
        %12081 = vmatprep.subr.bf16.mxu0 0
        %12082 = vmatpush1.bf16.msra.mxu0 %v9016
        %12083 = vmatprep.subr.bf16.mxu0 0
        %12084 = vmatpush1.bf16.msra.mxu0 %v9017
        %12085 = vmatprep.subr.bf16.mxu0 0
        %12086 = vmatpush1.bf16.msra.mxu0 %v9018
        %12087 = vmatprep.subr.bf16.mxu0 0
        %12088 = vmatpush1.bf16.msra.mxu0 %v9019
        %12089 = vmatprep.subr.bf16.mxu0 0
        %12090 = vmatpush1.bf16.msra.mxu0 %v9020
        %12091 = vmatprep.subr.bf16.mxu0 0
        %12092 = vmatpush1.bf16.msra.mxu0 %v9021
        %12093 = vmatprep.subr.bf16.mxu0 0
        %12094 = vmatpush1.bf16.msra.mxu0 %v9022
        %12095 = vmatprep.mubr.bf16.mxu0 %v2148
        %12096 = vmatmul.mubr.bf16.gmra.mrb[0].mxu0 %v2147
        %v12097 = vpop.f32.mrb[0].mxu0
        %v12098 = vadd.f32 %v12058, %v12097
        %v12099 = vpop.f32.mrb[0].mxu0
        %v12100 = vpop.f32.mrb[0].mxu0
        %v12101 = vpop.f32.mrb[0].mxu0
        %12102 = vdwg.mxu0
        %12103 = vmatprep.subr.bf16.mxu0 0
        %12104 = vmatpush1.bf16.msra.mxu0 %v9023
        %12105 = vmatprep.subr.bf16.mxu0 0
        %12106 = vmatpush1.bf16.msra.mxu0 %v9024
        %12107 = vmatprep.subr.bf16.mxu0 0
        %12108 = vmatpush1.bf16.msra.mxu0 %v9025
        %12109 = vmatprep.subr.bf16.mxu0 0
        %12110 = vmatpush1.bf16.msra.mxu0 %v9026
        %12111 = vmatprep.subr.bf16.mxu0 0
        %12112 = vmatpush1.bf16.msra.mxu0 %v9027
        %12113 = vmatprep.subr.bf16.mxu0 0
        %12114 = vmatpush1.bf16.msra.mxu0 %v9028
        %12115 = vmatprep.subr.bf16.mxu0 0
        %12116 = vmatpush1.bf16.msra.mxu0 %v9029
        %12117 = vmatprep.subr.bf16.mxu0 0
        %12118 = vmatpush1.bf16.msra.mxu0 %v9030
        %12119 = vmatprep.subr.bf16.mxu0 0
        %12120 = vmatpush1.bf16.msra.mxu0 %v9031
        %12121 = vmatprep.subr.bf16.mxu0 0
        %12122 = vmatpush1.bf16.msra.mxu0 %v9032
        %12123 = vmatprep.subr.bf16.mxu0 0
        %12124 = vmatpush1.bf16.msra.mxu0 %v9033
        %12125 = vmatprep.subr.bf16.mxu0 0
        %12126 = vmatpush1.bf16.msra.mxu0 %v9034
        %12127 = vmatprep.subr.bf16.mxu0 0
        %12128 = vmatpush1.bf16.msra.mxu0 %v9035
        %12129 = vmatprep.subr.bf16.mxu0 0
        %12130 = vmatpush1.bf16.msra.mxu0 %v9036
        %12131 = vmatprep.subr.bf16.mxu0 0
        %12132 = vmatpush1.bf16.msra.mxu0 %v9037
        %12133 = vmatprep.subr.bf16.mxu0 0
        %12134 = vmatpush1.bf16.msra.mxu0 %v9038
        %12135 = vmatprep.mubr.bf16.mxu0 %v2150
        %12136 = vmatmul.mubr.bf16.gmra.mrb[0].mxu0 %v2149
        %v12137 = vpop.f32.mrb[0].mxu0
        %v12138 = vadd.f32 %v12098, %v12137
        %v12139 = vpop.f32.mrb[0].mxu0
        %v12140 = vpop.f32.mrb[0].mxu0
        %v12141 = vpop.f32.mrb[0].mxu0
        %12142 = vdwg.mxu0
        %12143 = vmatprep.subr.bf16.mxu0 0
        %12144 = vmatpush1.bf16.msra.mxu0 %v9039
        %12145 = vmatprep.subr.bf16.mxu0 0
        %12146 = vmatpush1.bf16.msra.mxu0 %v9040
        %12147 = vmatprep.subr.bf16.mxu0 0
        %12148 = vmatpush1.bf16.msra.mxu0 %v9041
        %12149 = vmatprep.subr.bf16.mxu0 0
        %12150 = vmatpush1.bf16.msra.mxu0 %v9042
        %12151 = vmatprep.subr.bf16.mxu0 0
        %12152 = vmatpush1.bf16.msra.mxu0 %v9043
        %12153 = vmatprep.subr.bf16.mxu0 0
        %12154 = vmatpush1.bf16.msra.mxu0 %v9044
        %12155 = vmatprep.subr.bf16.mxu0 0
        %12156 = vmatpush1.bf16.msra.mxu0 %v9045
        %12157 = vmatprep.subr.bf16.mxu0 0
        %12158 = vmatpush1.bf16.msra.mxu0 %v9046
        %12159 = vmatprep.subr.bf16.mxu0 0
        %12160 = vmatpush1.bf16.msra.mxu0 %v9047
        %12161 = vmatprep.subr.bf16.mxu0 0
        %12162 = vmatpush1.bf16.msra.mxu0 %v9048
        %12163 = vmatprep.subr.bf16.mxu0 0
        %12164 = vmatpush1.bf16.msra.mxu0 %v9049
        %12165 = vmatprep.subr.bf16.mxu0 0
        %12166 = vmatpush1.bf16.msra.mxu0 %v9050
        %12167 = vmatprep.subr.bf16.mxu0 0
        %12168 = vmatpush1.bf16.msra.mxu0 %v9051
        %12169 = vmatprep.subr.bf16.mxu0 0
        %12170 = vmatpush1.bf16.msra.mxu0 %v9052
        %12171 = vmatprep.subr.bf16.mxu0 0
        %12172 = vmatpush1.bf16.msra.mxu0 %v9053
        %12173 = vmatprep.subr.bf16.mxu0 0
        %12174 = vmatpush1.bf16.msra.mxu0 %v9054
        %12175 = vmatprep.mubr.bf16.mxu0 %v2152
        %12176 = vmatmul.mubr.bf16.gmra.mrb[0].mxu0 %v2151
        %v12177 = vpop.f32.mrb[0].mxu0
        %v12178 = vadd.f32 %v12138, %v12177
        %v12179 = vpop.f32.mrb[0].mxu0
        %v12180 = vpop.f32.mrb[0].mxu0
        %v12181 = vpop.f32.mrb[0].mxu0
        %12182 = vdwg.mxu0
        %12183 = vmatprep.subr.bf16.mxu0 0
        %12184 = vmatpush1.bf16.msra.mxu0 %v9055
        %12185 = vmatprep.subr.bf16.mxu0 0
        %12186 = vmatpush1.bf16.msra.mxu0 %v9056
        %12187 = vmatprep.subr.bf16.mxu0 0
        %12188 = vmatpush1.bf16.msra.mxu0 %v9057
        %12189 = vmatprep.subr.bf16.mxu0 0
        %12190 = vmatpush1.bf16.msra.mxu0 %v9058
        %12191 = vmatprep.subr.bf16.mxu0 0
        %12192 = vmatpush1.bf16.msra.mxu0 %v9059
        %12193 = vmatprep.subr.bf16.mxu0 0
        %12194 = vmatpush1.bf16.msra.mxu0 %v9060
        %12195 = vmatprep.subr.bf16.mxu0 0
        %12196 = vmatpush1.bf16.msra.mxu0 %v9061
        %12197 = vmatprep.subr.bf16.mxu0 0
        %12198 = vmatpush1.bf16.msra.mxu0 %v9062
        %12199 = vmatprep.subr.bf16.mxu0 0
        %12200 = vmatpush1.bf16.msra.mxu0 %v9063
        %12201 = vmatprep.subr.bf16.mxu0 0
        %12202 = vmatpush1.bf16.msra.mxu0 %v9064
        %12203 = vmatprep.subr.bf16.mxu0 0
        %12204 = vmatpush1.bf16.msra.mxu0 %v9065
        %12205 = vmatprep.subr.bf16.mxu0 0
        %12206 = vmatpush1.bf16.msra.mxu0 %v9066
        %12207 = vmatprep.subr.bf16.mxu0 0
        %12208 = vmatpush1.bf16.msra.mxu0 %v9067
        %12209 = vmatprep.subr.bf16.mxu0 0
        %12210 = vmatpush1.bf16.msra.mxu0 %v9068
        %12211 = vmatprep.subr.bf16.mxu0 0
        %12212 = vmatpush1.bf16.msra.mxu0 %v9069
        %12213 = vmatprep.subr.bf16.mxu0 0
        %12214 = vmatpush1.bf16.msra.mxu0 %v9070
        %12215 = vmatprep.mubr.bf16.mxu0 %v2154
        %12216 = vmatmul.mubr.bf16.gmra.mrb[0].mxu0 %v2153
        %v12217 = vpop.f32.mrb[0].mxu0
        %v12218 = vadd.f32 %v12178, %v12217
        %v12219 = vpop.f32.mrb[0].mxu0
        %v12220 = vpop.f32.mrb[0].mxu0
        %v12221 = vpop.f32.mrb[0].mxu0
        %12222 = vdwg.mxu0
        %12223 = vmatprep.subr.bf16.mxu0 0
        %12224 = vmatpush1.bf16.msra.mxu0 %v9071
        %12225 = vmatprep.subr.bf16.mxu0 0
        %12226 = vmatpush1.bf16.msra.mxu0 %v9072
        %12227 = vmatprep.subr.bf16.mxu0 0
        %12228 = vmatpush1.bf16.msra.mxu0 %v9073
        %12229 = vmatprep.subr.bf16.mxu0 0
        %12230 = vmatpush1.bf16.msra.mxu0 %v9074
        %12231 = vmatprep.subr.bf16.mxu0 0
        %12232 = vmatpush1.bf16.msra.mxu0 %v9075
        %12233 = vmatprep.subr.bf16.mxu0 0
        %12234 = vmatpush1.bf16.msra.mxu0 %v9076
        %12235 = vmatprep.subr.bf16.mxu0 0
        %12236 = vmatpush1.bf16.msra.mxu0 %v9077
        %12237 = vmatprep.subr.bf16.mxu0 0
        %12238 = vmatpush1.bf16.msra.mxu0 %v9078
        %12239 = vmatprep.subr.bf16.mxu0 0
        %12240 = vmatpush1.bf16.msra.mxu0 %v9079
        %12241 = vmatprep.subr.bf16.mxu0 0
        %12242 = vmatpush1.bf16.msra.mxu0 %v9080
        %12243 = vmatprep.subr.bf16.mxu0 0
        %12244 = vmatpush1.bf16.msra.mxu0 %v9081
        %12245 = vmatprep.subr.bf16.mxu0 0
        %12246 = vmatpush1.bf16.msra.mxu0 %v9082
        %12247 = vmatprep.subr.bf16.mxu0 0
        %12248 = vmatpush1.bf16.msra.mxu0 %v9083
        %12249 = vmatprep.subr.bf16.mxu0 0
        %12250 = vmatpush1.bf16.msra.mxu0 %v9084
        %12251 = vmatprep.subr.bf16.mxu0 0
        %12252 = vmatpush1.bf16.msra.mxu0 %v9085
        %12253 = vmatprep.subr.bf16.mxu0 0
        %12254 = vmatpush1.bf16.msra.mxu0 %v9086
        %12255 = vmatprep.mubr.bf16.mxu0 %v2156
        %12256 = vmatmul.mubr.bf16.gmra.mrb[0].mxu0 %v2155
        %v12257 = vpop.f32.mrb[0].mxu0
        %v12258 = vadd.f32 %v12218, %v12257
        %v12259 = vpop.f32.mrb[0].mxu0
        %v12260 = vpop.f32.mrb[0].mxu0
        %v12261 = vpop.f32.mrb[0].mxu0
        %12262 = vdwg.mxu0
        %12263 = vmatprep.subr.bf16.mxu0 0
        %12264 = vmatpush1.bf16.msra.mxu0 %v9087
        %12265 = vmatprep.subr.bf16.mxu0 0
        %12266 = vmatpush1.bf16.msra.mxu0 %v9088
        %12267 = vmatprep.subr.bf16.mxu0 0
        %12268 = vmatpush1.bf16.msra.mxu0 %v9089
        %12269 = vmatprep.subr.bf16.mxu0 0
        %12270 = vmatpush1.bf16.msra.mxu0 %v9090
        %12271 = vmatprep.subr.bf16.mxu0 0
        %12272 = vmatpush1.bf16.msra.mxu0 %v9091
        %12273 = vmatprep.subr.bf16.mxu0 0
        %12274 = vmatpush1.bf16.msra.mxu0 %v9092
        %12275 = vmatprep.subr.bf16.mxu0 0
        %12276 = vmatpush1.bf16.msra.mxu0 %v9093
        %12277 = vmatprep.subr.bf16.mxu0 0
        %12278 = vmatpush1.bf16.msra.mxu0 %v9094
        %12279 = vmatprep.subr.bf16.mxu0 0
        %12280 = vmatpush1.bf16.msra.mxu0 %v9095
        %12281 = vmatprep.subr.bf16.mxu0 0
        %12282 = vmatpush1.bf16.msra.mxu0 %v9096
        %12283 = vmatprep.subr.bf16.mxu0 0
        %12284 = vmatpush1.bf16.msra.mxu0 %v9097
        %12285 = vmatprep.subr.bf16.mxu0 0
        %12286 = vmatpush1.bf16.msra.mxu0 %v9098
        %12287 = vmatprep.subr.bf16.mxu0 0
        %12288 = vmatpush1.bf16.msra.mxu0 %v9099
        %12289 = vmatprep.subr.bf16.mxu0 0
        %12290 = vmatpush1.bf16.msra.mxu0 %v9100
        %12291 = vmatprep.subr.bf16.mxu0 0
        %12292 = vmatpush1.bf16.msra.mxu0 %v9101
        %12293 = vmatprep.subr.bf16.mxu0 0
        %12294 = vmatpush1.bf16.msra.mxu0 %v9102
        %12295 = vmatprep.mubr.bf16.mxu0 %v2158
        %12296 = vmatmul.mubr.bf16.gmra.mrb[0].mxu0 %v2157
        %v12297 = vpop.f32.mrb[0].mxu0
        %v12298 = vadd.f32 %v12258, %v12297
        %v12299 = vpop.f32.mrb[0].mxu0
        %v12300 = vpop.f32.mrb[0].mxu0
        %v12301 = vpop.f32.mrb[0].mxu0
        %12302 = vdwg.mxu0
        %12303 = vmatprep.subr.bf16.mxu0 0
        %12304 = vmatpush1.bf16.msra.mxu0 %v9103
        %12305 = vmatprep.subr.bf16.mxu0 0
        %12306 = vmatpush1.bf16.msra.mxu0 %v9104
        %12307 = vmatprep.subr.bf16.mxu0 0
        %12308 = vmatpush1.bf16.msra.mxu0 %v9105
        %12309 = vmatprep.subr.bf16.mxu0 0
        %12310 = vmatpush1.bf16.msra.mxu0 %v9106
        %12311 = vmatprep.subr.bf16.mxu0 0
        %12312 = vmatpush1.bf16.msra.mxu0 %v9107
        %12313 = vmatprep.subr.bf16.mxu0 0
        %12314 = vmatpush1.bf16.msra.mxu0 %v9108
        %12315 = vmatprep.subr.bf16.mxu0 0
        %12316 = vmatpush1.bf16.msra.mxu0 %v9109
        %12317 = vmatprep.subr.bf16.mxu0 0
        %12318 = vmatpush1.bf16.msra.mxu0 %v9110
        %12319 = vmatprep.subr.bf16.mxu0 0
        %12320 = vmatpush1.bf16.msra.mxu0 %v9111
        %12321 = vmatprep.subr.bf16.mxu0 0
        %12322 = vmatpush1.bf16.msra.mxu0 %v9112
        %12323 = vmatprep.subr.bf16.mxu0 0
        %12324 = vmatpush1.bf16.msra.mxu0 %v9113
        %12325 = vmatprep.subr.bf16.mxu0 0
        %12326 = vmatpush1.bf16.msra.mxu0 %v9114
        %12327 = vmatprep.subr.bf16.mxu0 0
        %12328 = vmatpush1.bf16.msra.mxu0 %v9115
        %12329 = vmatprep.subr.bf16.mxu0 0
        %12330 = vmatpush1.bf16.msra.mxu0 %v9116
        %12331 = vmatprep.subr.bf16.mxu0 0
        %12332 = vmatpush1.bf16.msra.mxu0 %v9117
        %12333 = vmatprep.subr.bf16.mxu0 0
        %12334 = vmatpush1.bf16.msra.mxu0 %v9118
        %12335 = vmatprep.mubr.bf16.mxu0 %v2160
        %12336 = vmatmul.mubr.bf16.gmra.mrb[0].mxu0 %v2159
        %v12337 = vpop.f32.mrb[0].mxu0
        %v12338 = vadd.f32 %v12298, %v12337
        %v12339 = vpop.f32.mrb[0].mxu0
        %v12340 = vpop.f32.mrb[0].mxu0
        %v12341 = vpop.f32.mrb[0].mxu0
        %12342 = vdwg.mxu0
        %12343 = vmatprep.subr.bf16.mxu0 0
        %12344 = vmatpush1.bf16.msra.mxu0 %v9119
        %12345 = vmatprep.subr.bf16.mxu0 0
        %12346 = vmatpush1.bf16.msra.mxu0 %v9120
        %12347 = vmatprep.subr.bf16.mxu0 0
        %12348 = vmatpush1.bf16.msra.mxu0 %v9121
        %12349 = vmatprep.subr.bf16.mxu0 0
        %12350 = vmatpush1.bf16.msra.mxu0 %v9122
        %12351 = vmatprep.subr.bf16.mxu0 0
        %12352 = vmatpush1.bf16.msra.mxu0 %v9123
        %12353 = vmatprep.subr.bf16.mxu0 0
        %12354 = vmatpush1.bf16.msra.mxu0 %v9124
        %12355 = vmatprep.subr.bf16.mxu0 0
        %12356 = vmatpush1.bf16.msra.mxu0 %v9125
        %12357 = vmatprep.subr.bf16.mxu0 0
        %12358 = vmatpush1.bf16.msra.mxu0 %v9126
        %12359 = vmatprep.subr.bf16.mxu0 0
        %12360 = vmatpush1.bf16.msra.mxu0 %v9127
        %12361 = vmatprep.subr.bf16.mxu0 0
        %12362 = vmatpush1.bf16.msra.mxu0 %v9128
        %12363 = vmatprep.subr.bf16.mxu0 0
        %12364 = vmatpush1.bf16.msra.mxu0 %v9129
        %12365 = vmatprep.subr.bf16.mxu0 0
        %12366 = vmatpush1.bf16.msra.mxu0 %v9130
        %12367 = vmatprep.subr.bf16.mxu0 0
        %12368 = vmatpush1.bf16.msra.mxu0 %v9131
        %12369 = vmatprep.subr.bf16.mxu0 0
        %12370 = vmatpush1.bf16.msra.mxu0 %v9132
        %12371 = vmatprep.subr.bf16.mxu0 0
        %12372 = vmatpush1.bf16.msra.mxu0 %v9133
        %12373 = vmatprep.subr.bf16.mxu0 0
        %12374 = vmatpush1.bf16.msra.mxu0 %v9134
        %12375 = vmatprep.mubr.bf16.mxu0 %v2162
        %12376 = vmatmul.mubr.bf16.gmra.mrb[0].mxu0 %v2161
        %v12377 = vpop.f32.mrb[0].mxu0
        %v12378 = vadd.f32 %v12338, %v12377
        %v12379 = vpop.f32.mrb[0].mxu0
        %v12380 = vpop.f32.mrb[0].mxu0
        %v12381 = vpop.f32.mrb[0].mxu0
        %12382 = vdwg.mxu0
        %12383 = vmatprep.subr.bf16.mxu0 0
        %12384 = vmatpush1.bf16.msra.mxu0 %v9135
        %12385 = vmatprep.subr.bf16.mxu0 0
        %12386 = vmatpush1.bf16.msra.mxu0 %v9136
        %12387 = vmatprep.subr.bf16.mxu0 0
        %12388 = vmatpush1.bf16.msra.mxu0 %v9137
        %12389 = vmatprep.subr.bf16.mxu0 0
        %12390 = vmatpush1.bf16.msra.mxu0 %v9138
        %12391 = vmatprep.subr.bf16.mxu0 0
        %12392 = vmatpush1.bf16.msra.mxu0 %v9139
        %12393 = vmatprep.subr.bf16.mxu0 0
        %12394 = vmatpush1.bf16.msra.mxu0 %v9140
        %12395 = vmatprep.subr.bf16.mxu0 0
        %12396 = vmatpush1.bf16.msra.mxu0 %v9141
        %12397 = vmatprep.subr.bf16.mxu0 0
        %12398 = vmatpush1.bf16.msra.mxu0 %v9142
        %12399 = vmatprep.subr.bf16.mxu0 0
        %12400 = vmatpush1.bf16.msra.mxu0 %v9143
        %12401 = vmatprep.subr.bf16.mxu0 0
        %12402 = vmatpush1.bf16.msra.mxu0 %v9144
        %12403 = vmatprep.subr.bf16.mxu0 0
        %12404 = vmatpush1.bf16.msra.mxu0 %v9145
        %12405 = vmatprep.subr.bf16.mxu0 0
        %12406 = vmatpush1.bf16.msra.mxu0 %v9146
        %12407 = vmatprep.subr.bf16.mxu0 0
        %12408 = vmatpush1.bf16.msra.mxu0 %v9147
        %12409 = vmatprep.subr.bf16.mxu0 0
        %12410 = vmatpush1.bf16.msra.mxu0 %v9148
        %12411 = vmatprep.subr.bf16.mxu0 0
        %12412 = vmatpush1.bf16.msra.mxu0 %v9149
        %12413 = vmatprep.subr.bf16.mxu0 0
        %12414 = vmatpush1.bf16.msra.mxu0 %v9150
        %12415 = vmatprep.mubr.bf16.mxu0 %v2164
        %12416 = vmatmul.mubr.bf16.gmra.mrb[0].mxu0 %v2163
        %v12417 = vpop.f32.mrb[0].mxu0
        %v12418 = vadd.f32 %v12378, %v12417
        %v12419 = vpop.f32.mrb[0].mxu0
        %v12420 = vpop.f32.mrb[0].mxu0
        %v12421 = vpop.f32.mrb[0].mxu0
        %12422 = vdwg.mxu0
        %12423 = vmatprep.subr.bf16.mxu0 0
        %12424 = vmatpush1.bf16.msra.mxu0 %v9151
        %12425 = vmatprep.subr.bf16.mxu0 0
        %12426 = vmatpush1.bf16.msra.mxu0 %v9152
        %12427 = vmatprep.subr.bf16.mxu0 0
        %12428 = vmatpush1.bf16.msra.mxu0 %v9153
        %12429 = vmatprep.subr.bf16.mxu0 0
        %12430 = vmatpush1.bf16.msra.mxu0 %v9154
        %12431 = vmatprep.subr.bf16.mxu0 0
        %12432 = vmatpush1.bf16.msra.mxu0 %v9155
        %12433 = vmatprep.subr.bf16.mxu0 0
        %12434 = vmatpush1.bf16.msra.mxu0 %v9156
        %12435 = vmatprep.subr.bf16.mxu0 0
        %12436 = vmatpush1.bf16.msra.mxu0 %v9157
        %12437 = vmatprep.subr.bf16.mxu0 0
        %12438 = vmatpush1.bf16.msra.mxu0 %v9158
        %12439 = vmatprep.subr.bf16.mxu0 0
        %12440 = vmatpush1.bf16.msra.mxu0 %v9159
        %12441 = vmatprep.subr.bf16.mxu0 0
        %12442 = vmatpush1.bf16.msra.mxu0 %v9160
        %12443 = vmatprep.subr.bf16.mxu0 0
        %12444 = vmatpush1.bf16.msra.mxu0 %v9161
        %12445 = vmatprep.subr.bf16.mxu0 0
        %12446 = vmatpush1.bf16.msra.mxu0 %v9162
        %12447 = vmatprep.subr.bf16.mxu0 0
        %12448 = vmatpush1.bf16.msra.mxu0 %v9163
        %12449 = vmatprep.subr.bf16.mxu0 0
        %12450 = vmatpush1.bf16.msra.mxu0 %v9164
        %12451 = vmatprep.subr.bf16.mxu0 0
        %12452 = vmatpush1.bf16.msra.mxu0 %v9165
        %12453 = vmatprep.subr.bf16.mxu0 0
        %12454 = vmatpush1.bf16.msra.mxu0 %v9166
        %12455 = vmatprep.mubr.bf16.mxu0 %v2166
        %12456 = vmatmul.mubr.bf16.gmra.mrb[0].mxu0 %v2165
        %v12457 = vpop.f32.mrb[0].mxu0
        %v12458 = vadd.f32 %v12418, %v12457
        %v12459 = vpop.f32.mrb[0].mxu0
        %v12460 = vpop.f32.mrb[0].mxu0
        %v12461 = vpop.f32.mrb[0].mxu0
        %12462 = vdwg.mxu0
        %12463 = vmatprep.subr.bf16.mxu0 0
        %12464 = vmatpush1.bf16.msra.mxu0 %v9167
        %12465 = vmatprep.subr.bf16.mxu0 0
        %12466 = vmatpush1.bf16.msra.mxu0 %v9168
        %12467 = vmatprep.subr.bf16.mxu0 0
        %12468 = vmatpush1.bf16.msra.mxu0 %v9169
        %12469 = vmatprep.subr.bf16.mxu0 0
        %12470 = vmatpush1.bf16.msra.mxu0 %v9170
        %12471 = vmatprep.subr.bf16.mxu0 0
        %12472 = vmatpush1.bf16.msra.mxu0 %v9171
        %12473 = vmatprep.subr.bf16.mxu0 0
        %12474 = vmatpush1.bf16.msra.mxu0 %v9172
        %12475 = vmatprep.subr.bf16.mxu0 0
        %12476 = vmatpush1.bf16.msra.mxu0 %v9173
        %12477 = vmatprep.subr.bf16.mxu0 0
        %12478 = vmatpush1.bf16.msra.mxu0 %v9174
        %12479 = vmatprep.subr.bf16.mxu0 0
        %12480 = vmatpush1.bf16.msra.mxu0 %v9175
        %12481 = vmatprep.subr.bf16.mxu0 0
        %12482 = vmatpush1.bf16.msra.mxu0 %v9176
        %12483 = vmatprep.subr.bf16.mxu0 0
        %12484 = vmatpush1.bf16.msra.mxu0 %v9177
        %12485 = vmatprep.subr.bf16.mxu0 0
        %12486 = vmatpush1.bf16.msra.mxu0 %v9178
        %12487 = vmatprep.subr.bf16.mxu0 0
        %12488 = vmatpush1.bf16.msra.mxu0 %v9179
        %12489 = vmatprep.subr.bf16.mxu0 0
        %12490 = vmatpush1.bf16.msra.mxu0 %v9180
        %12491 = vmatprep.subr.bf16.mxu0 0
        %12492 = vmatpush1.bf16.msra.mxu0 %v9181
        %12493 = vmatprep.subr.bf16.mxu0 0
        %12494 = vmatpush1.bf16.msra.mxu0 %v9182
        %12495 = vmatprep.mubr.bf16.mxu0 %v2168
        %12496 = vmatmul.mubr.bf16.gmra.mrb[0].mxu0 %v2167
        %v12497 = vpop.f32.mrb[0].mxu0
        %v12498 = vadd.f32 %v12458, %v12497
        %v12499 = vpop.f32.mrb[0].mxu0
        %v12500 = vpop.f32.mrb[0].mxu0
        %v12501 = vpop.f32.mrb[0].mxu0
        %12502 = vdwg.mxu0
        %12503 = vmatprep.subr.bf16.mxu0 0
        %12504 = vmatpush1.bf16.msra.mxu0 %v9183
        %12505 = vmatprep.subr.bf16.mxu0 0
        %12506 = vmatpush1.bf16.msra.mxu0 %v9184
        %12507 = vmatprep.subr.bf16.mxu0 0
        %12508 = vmatpush1.bf16.msra.mxu0 %v9185
        %12509 = vmatprep.subr.bf16.mxu0 0
        %12510 = vmatpush1.bf16.msra.mxu0 %v9186
        %12511 = vmatprep.subr.bf16.mxu0 0
        %12512 = vmatpush1.bf16.msra.mxu0 %v9187
        %12513 = vmatprep.subr.bf16.mxu0 0
        %12514 = vmatpush1.bf16.msra.mxu0 %v9188
        %12515 = vmatprep.subr.bf16.mxu0 0
        %12516 = vmatpush1.bf16.msra.mxu0 %v9189
        %12517 = vmatprep.subr.bf16.mxu0 0
        %12518 = vmatpush1.bf16.msra.mxu0 %v9190
        %12519 = vmatprep.subr.bf16.mxu0 0
        %12520 = vmatpush1.bf16.msra.mxu0 %v9191
        %12521 = vmatprep.subr.bf16.mxu0 0
        %12522 = vmatpush1.bf16.msra.mxu0 %v9192
        %12523 = vmatprep.subr.bf16.mxu0 0
        %12524 = vmatpush1.bf16.msra.mxu0 %v9193
        %12525 = vmatprep.subr.bf16.mxu0 0
        %12526 = vmatpush1.bf16.msra.mxu0 %v9194
        %12527 = vmatprep.subr.bf16.mxu0 0
        %12528 = vmatpush1.bf16.msra.mxu0 %v9195
        %12529 = vmatprep.subr.bf16.mxu0 0
        %12530 = vmatpush1.bf16.msra.mxu0 %v9196
        %12531 = vmatprep.subr.bf16.mxu0 0
        %12532 = vmatpush1.bf16.msra.mxu0 %v9197
        %12533 = vmatprep.subr.bf16.mxu0 0
        %12534 = vmatpush1.bf16.msra.mxu0 %v9198
        %12535 = vmatprep.mubr.bf16.mxu0 %v2170
        %12536 = vmatmul.mubr.bf16.gmra.mrb[0].mxu0 %v2169
        %v12537 = vpop.f32.mrb[0].mxu0
        %v12538 = vadd.f32 %v12498, %v12537
        %v12539 = vpop.f32.mrb[0].mxu0
        %v12540 = vpop.f32.mrb[0].mxu0
        %v12541 = vpop.f32.mrb[0].mxu0
        %12542 = vdwg.mxu0
        %12543 = vmatprep.subr.bf16.mxu0 0
        %12544 = vmatpush1.bf16.msra.mxu0 %v9199
        %12545 = vmatprep.subr.bf16.mxu0 0
        %12546 = vmatpush1.bf16.msra.mxu0 %v9200
        %12547 = vmatprep.subr.bf16.mxu0 0
        %12548 = vmatpush1.bf16.msra.mxu0 %v9201
        %12549 = vmatprep.subr.bf16.mxu0 0
        %12550 = vmatpush1.bf16.msra.mxu0 %v9202
        %12551 = vmatprep.subr.bf16.mxu0 0
        %12552 = vmatpush1.bf16.msra.mxu0 %v9203
        %12553 = vmatprep.subr.bf16.mxu0 0
        %12554 = vmatpush1.bf16.msra.mxu0 %v9204
        %12555 = vmatprep.subr.bf16.mxu0 0
        %12556 = vmatpush1.bf16.msra.mxu0 %v9205
        %12557 = vmatprep.subr.bf16.mxu0 0
        %12558 = vmatpush1.bf16.msra.mxu0 %v9206
        %12559 = vmatprep.subr.bf16.mxu0 0
        %12560 = vmatpush1.bf16.msra.mxu0 %v9207
        %12561 = vmatprep.subr.bf16.mxu0 0
        %12562 = vmatpush1.bf16.msra.mxu0 %v9208
        %12563 = vmatprep.subr.bf16.mxu0 0
        %12564 = vmatpush1.bf16.msra.mxu0 %v9209
        %12565 = vmatprep.subr.bf16.mxu0 0
        %12566 = vmatpush1.bf16.msra.mxu0 %v9210
        %12567 = vmatprep.subr.bf16.mxu0 0
        %12568 = vmatpush1.bf16.msra.mxu0 %v9211
        %12569 = vmatprep.subr.bf16.mxu0 0
        %12570 = vmatpush1.bf16.msra.mxu0 %v9212
        %12571 = vmatprep.subr.bf16.mxu0 0
        %12572 = vmatpush1.bf16.msra.mxu0 %v9213
        %12573 = vmatprep.subr.bf16.mxu0 0
        %12574 = vmatpush1.bf16.msra.mxu0 %v9214
        %12575 = vmatprep.mubr.bf16.mxu0 %v2172
        %12576 = vmatmul.mubr.bf16.gmra.mrb[0].mxu0 %v2171
        %v12577 = vpop.f32.mrb[0].mxu0
        %v12578 = vadd.f32 %v12538, %v12577
        %v12579 = vpop.f32.mrb[0].mxu0
        %v12580 = vpop.f32.mrb[0].mxu0
        %v12581 = vpop.f32.mrb[0].mxu0
        %12582 = vdwg.mxu0
        %12583 = vmatprep.subr.bf16.mxu0 0
        %12584 = vmatpush1.bf16.msra.mxu0 %v9215
        %12585 = vmatprep.subr.bf16.mxu0 0
        %12586 = vmatpush1.bf16.msra.mxu0 %v9216
        %12587 = vmatprep.subr.bf16.mxu0 0
        %12588 = vmatpush1.bf16.msra.mxu0 %v9217
        %12589 = vmatprep.subr.bf16.mxu0 0
        %12590 = vmatpush1.bf16.msra.mxu0 %v9218
        %12591 = vmatprep.subr.bf16.mxu0 0
        %12592 = vmatpush1.bf16.msra.mxu0 %v9219
        %12593 = vmatprep.subr.bf16.mxu0 0
        %12594 = vmatpush1.bf16.msra.mxu0 %v9220
        %12595 = vmatprep.subr.bf16.mxu0 0
        %12596 = vmatpush1.bf16.msra.mxu0 %v9221
        %12597 = vmatprep.subr.bf16.mxu0 0
        %12598 = vmatpush1.bf16.msra.mxu0 %v9222
        %12599 = vmatprep.subr.bf16.mxu0 0
        %12600 = vmatpush1.bf16.msra.mxu0 %v9223
        %12601 = vmatprep.subr.bf16.mxu0 0
        %12602 = vmatpush1.bf16.msra.mxu0 %v9224
        %12603 = vmatprep.subr.bf16.mxu0 0
        %12604 = vmatpush1.bf16.msra.mxu0 %v9225
        %12605 = vmatprep.subr.bf16.mxu0 0
        %12606 = vmatpush1.bf16.msra.mxu0 %v9226
        %12607 = vmatprep.subr.bf16.mxu0 0
        %12608 = vmatpush1.bf16.msra.mxu0 %v9227
        %12609 = vmatprep.subr.bf16.mxu0 0
        %12610 = vmatpush1.bf16.msra.mxu0 %v9228
        %12611 = vmatprep.subr.bf16.mxu0 0
        %12612 = vmatpush1.bf16.msra.mxu0 %v9229
        %12613 = vmatprep.subr.bf16.mxu0 0
        %12614 = vmatpush1.bf16.msra.mxu0 %v9230
        %12615 = vmatprep.mubr.bf16.mxu0 %v2174
        %12616 = vmatmul.mubr.bf16.gmra.mrb[0].mxu0 %v2173
        %v12617 = vpop.f32.mrb[0].mxu0
        %v12618 = vadd.f32 %v12578, %v12617
        %v12619 = vpop.f32.mrb[0].mxu0
        %v12620 = vpop.f32.mrb[0].mxu0
        %v12621 = vpop.f32.mrb[0].mxu0
        %12622 = vdwg.mxu0
        %12623 = vmatprep.subr.bf16.mxu0 0
        %12624 = vmatpush1.bf16.msra.mxu0 %v9231
        %12625 = vmatprep.subr.bf16.mxu0 0
        %12626 = vmatpush1.bf16.msra.mxu0 %v9232
        %12627 = vmatprep.subr.bf16.mxu0 0
        %12628 = vmatpush1.bf16.msra.mxu0 %v9233
        %12629 = vmatprep.subr.bf16.mxu0 0
        %12630 = vmatpush1.bf16.msra.mxu0 %v9234
        %12631 = vmatprep.subr.bf16.mxu0 0
        %12632 = vmatpush1.bf16.msra.mxu0 %v9235
        %12633 = vmatprep.subr.bf16.mxu0 0
        %12634 = vmatpush1.bf16.msra.mxu0 %v9236
        %12635 = vmatprep.subr.bf16.mxu0 0
        %12636 = vmatpush1.bf16.msra.mxu0 %v9237
        %12637 = vmatprep.subr.bf16.mxu0 0
        %12638 = vmatpush1.bf16.msra.mxu0 %v9238
        %12639 = vmatprep.subr.bf16.mxu0 0
        %12640 = vmatpush1.bf16.msra.mxu0 %v9239
        %12641 = vmatprep.subr.bf16.mxu0 0
        %12642 = vmatpush1.bf16.msra.mxu0 %v9240
        %12643 = vmatprep.subr.bf16.mxu0 0
        %12644 = vmatpush1.bf16.msra.mxu0 %v9241
        %12645 = vmatprep.subr.bf16.mxu0 0
        %12646 = vmatpush1.bf16.msra.mxu0 %v9242
        %12647 = vmatprep.subr.bf16.mxu0 0
        %12648 = vmatpush1.bf16.msra.mxu0 %v9243
        %12649 = vmatprep.subr.bf16.mxu0 0
        %12650 = vmatpush1.bf16.msra.mxu0 %v9244
        %12651 = vmatprep.subr.bf16.mxu0 0
        %12652 = vmatpush1.bf16.msra.mxu0 %v9245
        %12653 = vmatprep.subr.bf16.mxu0 0
        %12654 = vmatpush1.bf16.msra.mxu0 %v9246
        %12655 = vmatprep.mubr.bf16.mxu0 %v2176
        %12656 = vmatmul.mubr.bf16.gmra.mrb[0].mxu0 %v2175
        %v12657 = vpop.f32.mrb[0].mxu0
        %v12658 = vadd.f32 %v12618, %v12657
        %v12659 = vpop.f32.mrb[0].mxu0
        %v12660 = vpop.f32.mrb[0].mxu0
        %v12661 = vpop.f32.mrb[0].mxu0
        %12662 = vdwg.mxu0
        %12663 = vmatprep.subr.bf16.mxu0 0
        %12664 = vmatpush1.bf16.msra.mxu0 %v9247
        %12665 = vmatprep.subr.bf16.mxu0 0
        %12666 = vmatpush1.bf16.msra.mxu0 %v9248
        %12667 = vmatprep.subr.bf16.mxu0 0
        %12668 = vmatpush1.bf16.msra.mxu0 %v9249
        %12669 = vmatprep.subr.bf16.mxu0 0
        %12670 = vmatpush1.bf16.msra.mxu0 %v9250
        %12671 = vmatprep.subr.bf16.mxu0 0
        %12672 = vmatpush1.bf16.msra.mxu0 %v9251
        %12673 = vmatprep.subr.bf16.mxu0 0
        %12674 = vmatpush1.bf16.msra.mxu0 %v9252
        %12675 = vmatprep.subr.bf16.mxu0 0
        %12676 = vmatpush1.bf16.msra.mxu0 %v9253
        %12677 = vmatprep.subr.bf16.mxu0 0
        %12678 = vmatpush1.bf16.msra.mxu0 %v9254
        %12679 = vmatprep.subr.bf16.mxu0 0
        %12680 = vmatpush1.bf16.msra.mxu0 %v9255
        %12681 = vmatprep.subr.bf16.mxu0 0
        %12682 = vmatpush1.bf16.msra.mxu0 %v9256
        %12683 = vmatprep.subr.bf16.mxu0 0
        %12684 = vmatpush1.bf16.msra.mxu0 %v9257
        %12685 = vmatprep.subr.bf16.mxu0 0
        %12686 = vmatpush1.bf16.msra.mxu0 %v9258
        %12687 = vmatprep.subr.bf16.mxu0 0
        %12688 = vmatpush1.bf16.msra.mxu0 %v9259
        %12689 = vmatprep.subr.bf16.mxu0 0
        %12690 = vmatpush1.bf16.msra.mxu0 %v9260
        %12691 = vmatprep.subr.bf16.mxu0 0
        %12692 = vmatpush1.bf16.msra.mxu0 %v9261
        %12693 = vmatprep.subr.bf16.mxu0 0
        %12694 = vmatpush1.bf16.msra.mxu0 %v9262
        %12695 = vmatprep.mubr.bf16.mxu0 %v2178
        %12696 = vmatmul.mubr.bf16.gmra.mrb[0].mxu0 %v2177
        %v12697 = vpop.f32.mrb[0].mxu0
        %v12698 = vadd.f32 %v12658, %v12697
        %v12699 = vpop.f32.mrb[0].mxu0
        %v12700 = vpop.f32.mrb[0].mxu0
        %v12701 = vpop.f32.mrb[0].mxu0
        %12702 = vdwg.mxu0
        %12703 = vmatprep.subr.bf16.mxu0 0
        %12704 = vmatpush1.bf16.msra.mxu0 %v9263
        %12705 = vmatprep.subr.bf16.mxu0 0
        %12706 = vmatpush1.bf16.msra.mxu0 %v9264
        %12707 = vmatprep.subr.bf16.mxu0 0
        %12708 = vmatpush1.bf16.msra.mxu0 %v9265
        %12709 = vmatprep.subr.bf16.mxu0 0
        %12710 = vmatpush1.bf16.msra.mxu0 %v9266
        %12711 = vmatprep.subr.bf16.mxu0 0
        %12712 = vmatpush1.bf16.msra.mxu0 %v9267
        %12713 = vmatprep.subr.bf16.mxu0 0
        %12714 = vmatpush1.bf16.msra.mxu0 %v9268
        %12715 = vmatprep.subr.bf16.mxu0 0
        %12716 = vmatpush1.bf16.msra.mxu0 %v9269
        %12717 = vmatprep.subr.bf16.mxu0 0
        %12718 = vmatpush1.bf16.msra.mxu0 %v9270
        %12719 = vmatprep.subr.bf16.mxu0 0
        %12720 = vmatpush1.bf16.msra.mxu0 %v9271
        %12721 = vmatprep.subr.bf16.mxu0 0
        %12722 = vmatpush1.bf16.msra.mxu0 %v9272
        %12723 = vmatprep.subr.bf16.mxu0 0
        %12724 = vmatpush1.bf16.msra.mxu0 %v9273
        %12725 = vmatprep.subr.bf16.mxu0 0
        %12726 = vmatpush1.bf16.msra.mxu0 %v9274
        %12727 = vmatprep.subr.bf16.mxu0 0
        %12728 = vmatpush1.bf16.msra.mxu0 %v9275
        %12729 = vmatprep.subr.bf16.mxu0 0
        %12730 = vmatpush1.bf16.msra.mxu0 %v9276
        %12731 = vmatprep.subr.bf16.mxu0 0
        %12732 = vmatpush1.bf16.msra.mxu0 %v9277
        %12733 = vmatprep.subr.bf16.mxu0 0
        %12734 = vmatpush1.bf16.msra.mxu0 %v9278
        %12735 = vmatprep.mubr.bf16.mxu0 %v2180
        %12736 = vmatmul.mubr.bf16.gmra.mrb[0].mxu0 %v2179
        %v12737 = vpop.f32.mrb[0].mxu0
        %v12738 = vadd.f32 %v12698, %v12737
        %v12739 = vpop.f32.mrb[0].mxu0
        %v12740 = vpop.f32.mrb[0].mxu0
        %v12741 = vpop.f32.mrb[0].mxu0
        %12742 = vdwg.mxu0
        %12743 = vmatprep.subr.bf16.mxu0 0
        %12744 = vmatpush1.bf16.msra.mxu0 %v9279
        %12745 = vmatprep.subr.bf16.mxu0 0
        %12746 = vmatpush1.bf16.msra.mxu0 %v9280
        %12747 = vmatprep.subr.bf16.mxu0 0
        %12748 = vmatpush1.bf16.msra.mxu0 %v9281
        %12749 = vmatprep.subr.bf16.mxu0 0
        %12750 = vmatpush1.bf16.msra.mxu0 %v9282
        %12751 = vmatprep.subr.bf16.mxu0 0
        %12752 = vmatpush1.bf16.msra.mxu0 %v9283
        %12753 = vmatprep.subr.bf16.mxu0 0
        %12754 = vmatpush1.bf16.msra.mxu0 %v9284
        %12755 = vmatprep.subr.bf16.mxu0 0
        %12756 = vmatpush1.bf16.msra.mxu0 %v9285
        %12757 = vmatprep.subr.bf16.mxu0 0
        %12758 = vmatpush1.bf16.msra.mxu0 %v9286
        %12759 = vmatprep.subr.bf16.mxu0 0
        %12760 = vmatpush1.bf16.msra.mxu0 %v9287
        %12761 = vmatprep.subr.bf16.mxu0 0
        %12762 = vmatpush1.bf16.msra.mxu0 %v9288
        %12763 = vmatprep.subr.bf16.mxu0 0
        %12764 = vmatpush1.bf16.msra.mxu0 %v9289
        %12765 = vmatprep.subr.bf16.mxu0 0
        %12766 = vmatpush1.bf16.msra.mxu0 %v9290
        %12767 = vmatprep.subr.bf16.mxu0 0
        %12768 = vmatpush1.bf16.msra.mxu0 %v9291
        %12769 = vmatprep.subr.bf16.mxu0 0
        %12770 = vmatpush1.bf16.msra.mxu0 %v9292
        %12771 = vmatprep.subr.bf16.mxu0 0
        %12772 = vmatpush1.bf16.msra.mxu0 %v9293
        %12773 = vmatprep.subr.bf16.mxu0 0
        %12774 = vmatpush1.bf16.msra.mxu0 %v9294
        %12775 = vmatprep.mubr.bf16.mxu0 %v2182
        %12776 = vmatmul.mubr.bf16.gmra.mrb[0].mxu0 %v2181
        %v12777 = vpop.f32.mrb[0].mxu0
        %v12778 = vadd.f32 %v12738, %v12777
        %v12779 = vpop.f32.mrb[0].mxu0
        %v12780 = vpop.f32.mrb[0].mxu0
        %v12781 = vpop.f32.mrb[0].mxu0
        %12782 = vdwg.mxu0
        %12783 = vmatprep.subr.bf16.mxu0 0
        %12784 = vmatpush1.bf16.msra.mxu0 %v9295
        %12785 = vmatprep.subr.bf16.mxu0 0
        %12786 = vmatpush1.bf16.msra.mxu0 %v9296
        %12787 = vmatprep.subr.bf16.mxu0 0
        %12788 = vmatpush1.bf16.msra.mxu0 %v9297
        %12789 = vmatprep.subr.bf16.mxu0 0
        %12790 = vmatpush1.bf16.msra.mxu0 %v9298
        %12791 = vmatprep.subr.bf16.mxu0 0
        %12792 = vmatpush1.bf16.msra.mxu0 %v9299
        %12793 = vmatprep.subr.bf16.mxu0 0
        %12794 = vmatpush1.bf16.msra.mxu0 %v9300
        %12795 = vmatprep.subr.bf16.mxu0 0
        %12796 = vmatpush1.bf16.msra.mxu0 %v9301
        %12797 = vmatprep.subr.bf16.mxu0 0
        %12798 = vmatpush1.bf16.msra.mxu0 %v9302
        %12799 = vmatprep.subr.bf16.mxu0 0
        %12800 = vmatpush1.bf16.msra.mxu0 %v9303
        %12801 = vmatprep.subr.bf16.mxu0 0
        %12802 = vmatpush1.bf16.msra.mxu0 %v9304
        %12803 = vmatprep.subr.bf16.mxu0 0
        %12804 = vmatpush1.bf16.msra.mxu0 %v9305
        %12805 = vmatprep.subr.bf16.mxu0 0
        %12806 = vmatpush1.bf16.msra.mxu0 %v9306
        %12807 = vmatprep.subr.bf16.mxu0 0
        %12808 = vmatpush1.bf16.msra.mxu0 %v9307
        %12809 = vmatprep.subr.bf16.mxu0 0
        %12810 = vmatpush1.bf16.msra.mxu0 %v9308
        %12811 = vmatprep.subr.bf16.mxu0 0
        %12812 = vmatpush1.bf16.msra.mxu0 %v9309
        %12813 = vmatprep.subr.bf16.mxu0 0
        %12814 = vmatpush1.bf16.msra.mxu0 %v9310
        %12815 = vmatprep.mubr.bf16.mxu0 %v2184
        %12816 = vmatmul.mubr.bf16.gmra.mrb[0].mxu0 %v2183
        %v12817 = vpop.f32.mrb[0].mxu0
        %v12818 = vadd.f32 %v12778, %v12817
        %v12819 = vpop.f32.mrb[0].mxu0
        %v12820 = vpop.f32.mrb[0].mxu0
        %v12821 = vpop.f32.mrb[0].mxu0
        %12822 = vdwg.mxu0
        %12823 = vmatprep.subr.bf16.mxu0 0
        %12824 = vmatpush1.bf16.msra.mxu0 %v9311
        %12825 = vmatprep.subr.bf16.mxu0 0
        %12826 = vmatpush1.bf16.msra.mxu0 %v9312
        %12827 = vmatprep.subr.bf16.mxu0 0
        %12828 = vmatpush1.bf16.msra.mxu0 %v9313
        %12829 = vmatprep.subr.bf16.mxu0 0
        %12830 = vmatpush1.bf16.msra.mxu0 %v9314
        %12831 = vmatprep.subr.bf16.mxu0 0
        %12832 = vmatpush1.bf16.msra.mxu0 %v9315
        %12833 = vmatprep.subr.bf16.mxu0 0
        %12834 = vmatpush1.bf16.msra.mxu0 %v9316
        %12835 = vmatprep.subr.bf16.mxu0 0
        %12836 = vmatpush1.bf16.msra.mxu0 %v9317
        %12837 = vmatprep.subr.bf16.mxu0 0
        %12838 = vmatpush1.bf16.msra.mxu0 %v9318
        %12839 = vmatprep.subr.bf16.mxu0 0
        %12840 = vmatpush1.bf16.msra.mxu0 %v9319
        %12841 = vmatprep.subr.bf16.mxu0 0
        %12842 = vmatpush1.bf16.msra.mxu0 %v9320
        %12843 = vmatprep.subr.bf16.mxu0 0
        %12844 = vmatpush1.bf16.msra.mxu0 %v9321
        %12845 = vmatprep.subr.bf16.mxu0 0
        %12846 = vmatpush1.bf16.msra.mxu0 %v9322
        %12847 = vmatprep.subr.bf16.mxu0 0
        %12848 = vmatpush1.bf16.msra.mxu0 %v9323
        %12849 = vmatprep.subr.bf16.mxu0 0
        %12850 = vmatpush1.bf16.msra.mxu0 %v9324
        %12851 = vmatprep.subr.bf16.mxu0 0
        %12852 = vmatpush1.bf16.msra.mxu0 %v9325
        %12853 = vmatprep.subr.bf16.mxu0 0
        %12854 = vmatpush1.bf16.msra.mxu0 %v9326
        %12855 = vmatprep.mubr.bf16.mxu0 %v2186
        %12856 = vmatmul.mubr.bf16.gmra.mrb[0].mxu0 %v2185
        %v12857 = vpop.f32.mrb[0].mxu0
        %v12858 = vadd.f32 %v12818, %v12857
        %v12859 = vpop.f32.mrb[0].mxu0
        %v12860 = vpop.f32.mrb[0].mxu0
        %v12861 = vpop.f32.mrb[0].mxu0
        %12862 = vdwg.mxu0
        %12863 = vmatprep.subr.bf16.mxu0 0
        %12864 = vmatpush1.bf16.msra.mxu0 %v9327
        %12865 = vmatprep.subr.bf16.mxu0 0
        %12866 = vmatpush1.bf16.msra.mxu0 %v9328
        %12867 = vmatprep.subr.bf16.mxu0 0
        %12868 = vmatpush1.bf16.msra.mxu0 %v9329
        %12869 = vmatprep.subr.bf16.mxu0 0
        %12870 = vmatpush1.bf16.msra.mxu0 %v9330
        %12871 = vmatprep.subr.bf16.mxu0 0
        %12872 = vmatpush1.bf16.msra.mxu0 %v9331
        %12873 = vmatprep.subr.bf16.mxu0 0
        %12874 = vmatpush1.bf16.msra.mxu0 %v9332
        %12875 = vmatprep.subr.bf16.mxu0 0
        %12876 = vmatpush1.bf16.msra.mxu0 %v9333
        %12877 = vmatprep.subr.bf16.mxu0 0
        %12878 = vmatpush1.bf16.msra.mxu0 %v9334
        %12879 = vmatprep.subr.bf16.mxu0 0
        %12880 = vmatpush1.bf16.msra.mxu0 %v9335
        %12881 = vmatprep.subr.bf16.mxu0 0
        %12882 = vmatpush1.bf16.msra.mxu0 %v9336
        %12883 = vmatprep.subr.bf16.mxu0 0
        %12884 = vmatpush1.bf16.msra.mxu0 %v9337
        %12885 = vmatprep.subr.bf16.mxu0 0
        %12886 = vmatpush1.bf16.msra.mxu0 %v9338
        %12887 = vmatprep.subr.bf16.mxu0 0
        %12888 = vmatpush1.bf16.msra.mxu0 %v9339
        %12889 = vmatprep.subr.bf16.mxu0 0
        %12890 = vmatpush1.bf16.msra.mxu0 %v9340
        %12891 = vmatprep.subr.bf16.mxu0 0
        %12892 = vmatpush1.bf16.msra.mxu0 %v9341
        %12893 = vmatprep.subr.bf16.mxu0 0
        %12894 = vmatpush1.bf16.msra.mxu0 %v9342
        %12895 = vmatprep.mubr.bf16.mxu0 %v2188
        %12896 = vmatmul.mubr.bf16.gmra.mrb[0].mxu0 %v2187
        %v12897 = vpop.f32.mrb[0].mxu0
        %v12898 = vadd.f32 %v12858, %v12897
        %v12899 = vpop.f32.mrb[0].mxu0
        %v12900 = vpop.f32.mrb[0].mxu0
        %v12901 = vpop.f32.mrb[0].mxu0
        %12902 = vdwg.mxu0
        %12903 = vmatprep.subr.bf16.mxu0 0
        %12904 = vmatpush1.bf16.msra.mxu0 %v9343
        %12905 = vmatprep.subr.bf16.mxu0 0
        %12906 = vmatpush1.bf16.msra.mxu0 %v9344
        %12907 = vmatprep.subr.bf16.mxu0 0
        %12908 = vmatpush1.bf16.msra.mxu0 %v9345
        %12909 = vmatprep.subr.bf16.mxu0 0
        %12910 = vmatpush1.bf16.msra.mxu0 %v9346
        %12911 = vmatprep.subr.bf16.mxu0 0
        %12912 = vmatpush1.bf16.msra.mxu0 %v9347
        %12913 = vmatprep.subr.bf16.mxu0 0
        %12914 = vmatpush1.bf16.msra.mxu0 %v9348
        %12915 = vmatprep.subr.bf16.mxu0 0
        %12916 = vmatpush1.bf16.msra.mxu0 %v9349
        %12917 = vmatprep.subr.bf16.mxu0 0
        %12918 = vmatpush1.bf16.msra.mxu0 %v9350
        %12919 = vmatprep.subr.bf16.mxu0 0
        %12920 = vmatpush1.bf16.msra.mxu0 %v9351
        %12921 = vmatprep.subr.bf16.mxu0 0
        %12922 = vmatpush1.bf16.msra.mxu0 %v9352
        %12923 = vmatprep.subr.bf16.mxu0 0
        %12924 = vmatpush1.bf16.msra.mxu0 %v9353
        %12925 = vmatprep.subr.bf16.mxu0 0
        %12926 = vmatpush1.bf16.msra.mxu0 %v9354
        %12927 = vmatprep.subr.bf16.mxu0 0
        %12928 = vmatpush1.bf16.msra.mxu0 %v9355
        %12929 = vmatprep.subr.bf16.mxu0 0
        %12930 = vmatpush1.bf16.msra.mxu0 %v9356
        %12931 = vmatprep.subr.bf16.mxu0 0
        %12932 = vmatpush1.bf16.msra.mxu0 %v9357
        %12933 = vmatprep.subr.bf16.mxu0 0
        %12934 = vmatpush1.bf16.msra.mxu0 %v9358
        %12935 = vmatprep.mubr.bf16.mxu0 %v2190
        %12936 = vmatmul.mubr.bf16.gmra.mrb[0].mxu0 %v2189
        %v12937 = vpop.f32.mrb[0].mxu0
        %v12938 = vadd.f32 %v12898, %v12937
        %v12939 = vpop.f32.mrb[0].mxu0
        %v12940 = vpop.f32.mrb[0].mxu0
        %v12941 = vpop.f32.mrb[0].mxu0
        %12942 = vdwg.mxu0
        %v12943 = vadd.f32 %v2062, %v12938
        %vm12944 = vcmask 261120
        %12945 = vst.msk [vmem:[#allocation2] sm:$0xff] %vm12944, %v12943
        %p12946 = scmp.eq.s32.totalorder %s19, 2
        // Predicated region
        $region53: #{tpu_custom_call.1} parent=47 // pred_check
          %p12947 = pneg %p12946
        $region54: #{tpu_custom_call.1} parent=47 // pred_check_branch
          %12949 = sbr.rel (%p12947) target = $region56
        $region55: #{tpu_custom_call.1} parent=47 // pred_region
          %v12950 = vld [vmem:[#allocation2] sm:$0xff]
          %v12951 = vld [vmem:[%s4] sm:$0x1]
          %v12953 = vlaneseq
          %v12954 = vshrl.u32 %v12953, 7
          %v12955 = vsub.s32 0, %v12954
          %v12956 = vrot.slane %v12951, %v12955
          %v12958 = vadd.f32 %v12950, %v12956
          %v12959 = vmax.f32 %v12958, 0.0
          %v12960 = vld [vmem:[%s5] sm:$0xff]
          %v12961 = vld [vmem:[%s5 + $0x8] sm:$0xff]
          %v12962 = vld [vmem:[%s5 + $0x10] sm:$0xff]
          %v12963 = vld [vmem:[%s5 + $0x18] sm:$0xff]
          %v12964 = vld [vmem:[%s6] sm:$0x1]
          %v12966 = vlaneseq
          %v12967 = vshrl.u32 %v12966, 7
          %v12968 = vsub.s32 0, %v12967
          %v12969 = vrot.slane %v12964, %v12968
          %v12972 = vsel %vm12944, %v12959, 0
          %12974 = vmatprep.subr.mxu0 0.0
          %12975 = vmatpush1.msra.mxu0 %v12960
          %12976 = vmatprep.subr.mxu0 0.0
          %12977 = vmatpush1.msra.mxu0 %v12961
          %12978 = vmatprep.subr.mxu0 0.0
          %12979 = vmatpush1.msra.mxu0 %v12962
          %12980 = vmatprep.subr.mxu0 0.0
          %12981 = vmatpush1.msra.mxu0 %v12963
          %12982 = vmatprep.subr.mxu0 0.0
          %12983 = vmatpush1.msra.mxu0 0.0
          %12984 = vmatprep.subr.mxu0 0.0
          %12985 = vmatpush1.msra.mxu0 0.0
          %12986 = vmatprep.subr.mxu0 0.0
          %12987 = vmatpush1.msra.mxu0 0.0
          %12988 = vmatprep.subr.mxu0 0.0
          %12989 = vmatpush1.msra.mxu0 0.0
          %12990 = vmatprep.subr.mxu0 0.0
          %12991 = vmatpush1.msra.mxu0 0.0
          %12992 = vmatprep.subr.mxu0 0.0
          %12993 = vmatpush1.msra.mxu0 0.0
          %12994 = vmatprep.subr.mxu0 0.0
          %12995 = vmatpush1.msra.mxu0 0.0
          %12996 = vmatprep.subr.mxu0 0.0
          %12997 = vmatpush1.msra.mxu0 0.0
          %12998 = vmatprep.subr.mxu0 0.0
          %12999 = vmatpush1.msra.mxu0 0.0
          %13000 = vmatprep.subr.mxu0 0.0
          %13001 = vmatpush1.msra.mxu0 0.0
          %13002 = vmatprep.subr.mxu0 0.0
          %13003 = vmatpush1.msra.mxu0 0.0
          %13004 = vmatprep.subr.mxu0 0.0
          %13005 = vmatpush1.msra.mxu0 0.0
          %13006 = vmatprep.subr.mxu0 0.0
          %13007 = vmatpush1.msra.mxu0 0.0
          %13008 = vmatprep.subr.mxu0 0.0
          %13009 = vmatpush1.msra.mxu0 0.0
          %13010 = vmatprep.subr.mxu0 0.0
          %13011 = vmatpush1.msra.mxu0 0.0
          %13012 = vmatprep.subr.mxu0 0.0
          %13013 = vmatpush1.msra.mxu0 0.0
          %13014 = vmatprep.subr.mxu0 0.0
          %13015 = vmatpush1.msra.mxu0 0.0
          %13016 = vmatprep.subr.mxu0 0.0
          %13017 = vmatpush1.msra.mxu0 0.0
          %13018 = vmatprep.subr.mxu0 0.0
          %13019 = vmatpush1.msra.mxu0 0.0
          %13020 = vmatprep.subr.mxu0 0.0
          %13021 = vmatpush1.msra.mxu0 0.0
          %13022 = vmatprep.subr.mxu0 0.0
          %13023 = vmatpush1.msra.mxu0 0.0
          %13024 = vmatprep.subr.mxu0 0.0
          %13025 = vmatpush1.msra.mxu0 0.0
          %13026 = vmatprep.subr.mxu0 0.0
          %13027 = vmatpush1.msra.mxu0 0.0
          %13028 = vmatprep.subr.mxu0 0.0
          %13029 = vmatpush1.msra.mxu0 0.0
          %13030 = vmatprep.subr.mxu0 0.0
          %13031 = vmatpush1.msra.mxu0 0.0
          %13032 = vmatprep.subr.mxu0 0.0
          %13033 = vmatpush1.msra.mxu0 0.0
          %13034 = vmatprep.subr.mxu0 0.0
          %13035 = vmatpush1.msra.mxu0 0.0
          %13036 = vmatprep.subr.mxu0 0.0
          %13037 = vmatpush1.msra.mxu0 0.0
          %13038 = vmatprep.mubr.f32.mxu0 0.0
          %13039 = vmatmul.mubr.f32.gmra.mrb[0].mxu0 %v12972
          %v13040 = vpop.f32.mrb[0].mxu0
          %v13041 = vadd.f32 %v12969, %v13040
          %v13042 = vpop.f32.mrb[0].mxu0
          %13043 = vdwg.mxu0
          %13044 = vst [vmem:[#allocation3] sm:$0xff] %v13041
        $region56: #{tpu_custom_call.1} parent=47 // pred_fallthru
          _
        // Predicated region
        $region57: #{tpu_custom_call.1} parent=47 // pred_check
          %p13045 = pneg %p199
        $region58: #{tpu_custom_call.1} parent=47 // pred_check_branch
          %13047 = sbr.rel (%p13045) target = $region60
        $region59: #{tpu_custom_call.1} parent=47 // pred_region
          %s13049 = ssub.s32 128, 128
          %13050 = vsyncadd [#allocation4], %s13049
          %s13052 = sshll.u32 [#allocation3], 4
          %s13053 = int_to_ptr.vmem [resolvable:$true] %s13052
          %13055 = dma.vmem_to_hbm [thread:$0]  %s13053, 128, %s7, [#allocation4]
        $region60: #{tpu_custom_call.1} parent=47 // pred_fallthru
          _
        // Predicated region
        $region61: #{tpu_custom_call.1} parent=47 // pred_check
          %p13056 = pneg %p199
        $region62: #{tpu_custom_call.1} parent=47 // pred_check_branch
          %13058 = sbr.rel (%p13056) target = $region64
        $region63: #{tpu_custom_call.1} parent=47 // pred_region
          %13059 = dma.done [#allocation4], 128
        $region64: #{tpu_custom_call.1} parent=47 // pred_fallthru
          _
      $region48: #{tpu_custom_call.1} parent=5 // pred_fallthru
        _
      %p13060 = scmp.le.s32.totalorder 2, %s14
      // Predicated region
      $region65: #{tpu_custom_call.1} parent=5 // pred_check
        %p13061 = pneg %p13060
      $region66: #{tpu_custom_call.1} parent=5 // pred_check_branch
        %13063 = sbr.rel (%p13061) target = $region68
      $region67: #{tpu_custom_call.1} parent=5 // pred_region
        %s13064 = ssub.s32 %s14, 2
      $region68: #{tpu_custom_call.1} parent=5 // pred_fallthru
        _
    $region6: #{tpu_custom_call.1} parent=1 // loop_footer
      %s18 = sadd.s32 1, %s14
    $region7: #{tpu_custom_call.1} parent=1 // loop_footer_branch
      %13 = sbr.rel target = $region3
    $region8: #{tpu_custom_call.1} parent=1 // loop_exit
      _
    %13065 = vsyncpa [#allocation4], 1
    %s13066 = scalar_lea.sflag [#allocation4], 1
    %13067 = vsyncpa %s13066, 1

</llo_original>
